<compile_context>
chip_gen: v7x
topology: tpu7x:2x2x1
jax: 0.10.0
libtpu: 0.0.40
codegen_flags: <defaults>
</compile_context>

<pallas_src>
import jax
import jax.numpy as jnp
from jax.experimental import pallas as pl
from jax.experimental.pallas import tpu as pltpu


def _basic_block_kernel(x_ref, w1_ref, s1_ref, b1_ref, w2_ref, s2_ref, b2_ref,
                        o_ref, xpad_ref, ypad_ref):
    # x_ref:  (H, W, Cin)        -- one image (batch dim squeezed by BlockSpec)
    # w*_ref: (3, 3, Cin, Cout)  -- HWIO weights
    # s*/b*:  (1, Cout)          -- folded eval-mode BatchNorm scale / shift
    # o_ref:  (H, W, Cout)
    # xpad_ref / ypad_ref: (H+2, W+2, C) f32 VMEM scratch (zero halos)
    H, W, Cin = x_ref.shape
    P = o_ref.shape[-1]
    HW = H * W

    # Build the 1-pixel zero halo for conv1 inside VMEM (no padded HBM copy).
    xpad_ref[...] = jnp.zeros_like(xpad_ref)
    xpad_ref[1:H + 1, 1:W + 1, :] = x_ref[...].astype(jnp.float32)

    # ---- conv1 (3x3, stride 1, pad 1): 9 shifted MXU matmuls ---------------
    acc = jnp.zeros((HW, P), dtype=jnp.float32)
    for dh in range(3):
        for dw in range(3):
            patch = xpad_ref[dh:dh + H, dw:dw + W, :].reshape(HW, Cin)
            acc = acc + jnp.dot(patch, w1_ref[dh, dw],
                                preferred_element_type=jnp.float32)
    # BN1 (folded affine) + ReLU
    out1 = jnp.maximum(acc * s1_ref[...] + b1_ref[...], 0.0)

    # Stage conv1 activation with a zero halo for conv2 (stays in VMEM).
    ypad_ref[...] = jnp.zeros_like(ypad_ref)
    ypad_ref[1:H + 1, 1:W + 1, :] = out1.reshape(H, W, P)

    # ---- conv2 (3x3, stride 1, pad 1) + BN2 --------------------------------
    acc2 = jnp.zeros((HW, P), dtype=jnp.float32)
    for dh in range(3):
        for dw in range(3):
            patch = ypad_ref[dh:dh + H, dw:dw + W, :].reshape(HW, P)
            acc2 = acc2 + jnp.dot(patch, w2_ref[dh, dw],
                                  preferred_element_type=jnp.float32)
    out2 = acc2 * s2_ref[...] + b2_ref[...]

    # ---- identity residual (downsample=None) + final ReLU ------------------
    residual = x_ref[...].reshape(HW, Cin).astype(jnp.float32)
    out = jnp.maximum(out2 + residual, 0.0)
    o_ref[...] = out.reshape(H, W, P).astype(o_ref.dtype)


def basic_block_forward(x, w1, gamma1, beta1, mean1, var1,
                        w2, gamma2, beta2, mean2, var2, *, eps=1e-5):
    """x: [N, H, W, C] (NHWC).  w1, w2: [3, 3, Cin, Cout] (HWIO, pre-converted
    from PyTorch OIHW once at load time, not per call).  BatchNorm uses
    eval-mode running statistics, folded into per-channel scale/shift."""
    N, H, W, Cin = x.shape
    P = w1.shape[-1]
    assert w1.shape == (3, 3, Cin, P) and w2.shape == (3, 3, P, P)
    assert Cin == P, "identity residual path requires inplanes == planes"
    # TODO(synk): stride != 1, downsample, leaky_relu and the
    # before_relu / intermediate early-exit paths are not implemented here.

    inv1 = gamma1 / jnp.sqrt(var1 + eps)
    s1 = inv1.reshape(1, P).astype(jnp.float32)
    b1 = (beta1 - mean1 * inv1).reshape(1, P).astype(jnp.float32)
    inv2 = gamma2 / jnp.sqrt(var2 + eps)
    s2 = inv2.reshape(1, P).astype(jnp.float32)
    b2 = (beta2 - mean2 * inv2).reshape(1, P).astype(jnp.float32)

    return pl.pallas_call(
        _basic_block_kernel,
        out_shape=jax.ShapeDtypeStruct((N, H, W, P), x.dtype),
        grid=(N,),
        in_specs=[
            pl.BlockSpec((None, H, W, Cin), lambda n: (n, 0, 0, 0)),
            pl.BlockSpec((3, 3, Cin, P), lambda n: (0, 0, 0, 0)),
            pl.BlockSpec((1, P), lambda n: (0, 0)),
            pl.BlockSpec((1, P), lambda n: (0, 0)),
            pl.BlockSpec((3, 3, P, P), lambda n: (0, 0, 0, 0)),
            pl.BlockSpec((1, P), lambda n: (0, 0)),
            pl.BlockSpec((1, P), lambda n: (0, 0)),
        ],
        out_specs=pl.BlockSpec((None, H, W, P), lambda n: (n, 0, 0, 0)),
        scratch_shapes=[
            pltpu.VMEM((H + 2, W + 2, Cin), jnp.float32),  # x with 1-px halo
            pltpu.VMEM((H + 2, W + 2, P), jnp.float32),    # conv1 act w/ halo
        ],
        compiler_params=pltpu.CompilerParams(
            dimension_semantics=("parallel",),
            vmem_limit_bytes=32 * 1024 * 1024,
        ),
    )(x, w1, s1, b1, w2, s2, b2)


def reference_forward(x, w1, gamma1, beta1, mean1, var1,
                      w2, gamma2, beta2, mean2, var2, eps=1e-5):
    def conv(inp, w):
        return jax.lax.conv_general_dilated(
            inp, w, window_strides=(1, 1), padding=((1, 1), (1, 1)),
            dimension_numbers=("NHWC", "HWIO", "NHWC"))

    def bn(inp, g, b, m, v):
        return (inp - m) * (g / jnp.sqrt(v + eps)) + b

    out = jnp.maximum(bn(conv(x, w1), gamma1, beta1, mean1, var1), 0.0)
    out = bn(conv(out, w2), gamma2, beta2, mean2, var2)
    return jnp.maximum(out + x, 0.0)


if __name__ == "__main__":
    N, H, W, C = 2, 16, 16, 32   # inplanes == planes, stride=1, downsample=None

    key = jax.random.PRNGKey(0)
    keys = jax.random.split(key, 11)
    x = jax.random.normal(keys[0], (N, H, W, C), dtype=jnp.float32)

    fan_in = 9 * C
    bound = 1.0 / (fan_in ** 0.5)
    w1 = jax.random.uniform(keys[1], (3, 3, C, C), minval=-bound, maxval=bound,
                            dtype=jnp.float32)
    w2 = jax.random.uniform(keys[2], (3, 3, C, C), minval=-bound, maxval=bound,
                            dtype=jnp.float32)

    g1 = jax.random.uniform(keys[3], (C,), minval=0.5, maxval=1.5, dtype=jnp.float32)
    be1 = 0.1 * jax.random.normal(keys[4], (C,), dtype=jnp.float32)
    m1 = 0.1 * jax.random.normal(keys[5], (C,), dtype=jnp.float32)
    v1 = jax.random.uniform(keys[6], (C,), minval=0.5, maxval=1.5, dtype=jnp.float32)

    g2 = jax.random.uniform(keys[7], (C,), minval=0.5, maxval=1.5, dtype=jnp.float32)
    be2 = 0.1 * jax.random.normal(keys[8], (C,), dtype=jnp.float32)
    m2 = 0.1 * jax.random.normal(keys[9], (C,), dtype=jnp.float32)
    v2 = jax.random.uniform(keys[10], (C,), minval=0.5, maxval=1.5, dtype=jnp.float32)

    out = basic_block_forward(x, w1, g1, be1, m1, v1, w2, g2, be2, m2, v2)
    out = jax.block_until_ready(out)

    ref = reference_forward(x, w1, g1, be1, m1, v1, w2, g2, be2, m2, v2)
    assert out.shape == (N, H, W, C)
    err = float(jnp.max(jnp.abs(out - ref)))
    assert jnp.allclose(out, ref, atol=1e-4, rtol=1e-4), err

    print("KERNEL_OK")
</pallas_src>

<mosaic_0001>
module attributes {stable_mosaic.version = 11 : i64} {
  func.func @_basic_block_kernel(%arg0: i32, %arg1: memref<1x16x16x32xf32, #tpu.memory_space<vmem>>, %arg2: memref<3x3x32x32xf32, #tpu.memory_space<vmem>>, %arg3: memref<1x32xf32, #tpu.memory_space<vmem>>, %arg4: memref<1x32xf32, #tpu.memory_space<vmem>>, %arg5: memref<3x3x32x32xf32, #tpu.memory_space<vmem>>, %arg6: memref<1x32xf32, #tpu.memory_space<vmem>>, %arg7: memref<1x32xf32, #tpu.memory_space<vmem>>, %arg8: memref<1x16x16x32xf32, #tpu.memory_space<vmem>>, %arg9: memref<18x18x32xf32, #tpu.memory_space<vmem>>, %arg10: memref<18x18x32xf32, #tpu.memory_space<vmem>>) attributes {dimension_semantics = [#tpu.dimension_semantics<parallel>], iteration_bounds = array<i64: 2>, scalar_prefetch = 0 : i64, scratch_operands = 2 : i64, tpu.core_type = #tpu.core_type<tc>, window_params = [{transform_indices = @transform_0, window_bounds = array<i64: 1, 16, 16, 32>}, {pipeline_mode = #tpu.pipeline_mode<synchronous>, transform_indices = @transform_1, window_bounds = array<i64: 3, 3, 32, 32>}, {pipeline_mode = #tpu.pipeline_mode<synchronous>, transform_indices = @transform_2, window_bounds = array<i64: 1, 32>}, {pipeline_mode = #tpu.pipeline_mode<synchronous>, transform_indices = @transform_3, window_bounds = array<i64: 1, 32>}, {pipeline_mode = #tpu.pipeline_mode<synchronous>, transform_indices = @transform_4, window_bounds = array<i64: 3, 3, 32, 32>}, {pipeline_mode = #tpu.pipeline_mode<synchronous>, transform_indices = @transform_5, window_bounds = array<i64: 1, 32>}, {pipeline_mode = #tpu.pipeline_mode<synchronous>, transform_indices = @transform_6, window_bounds = array<i64: 1, 32>}, {transform_indices = @transform_7, window_bounds = array<i64: 1, 16, 16, 32>}]} {
    %cst = arith.constant 0.000000e+00 : f32
    %0 = vector.broadcast %cst : f32 to vector<18x18x32xf32>
    %c0 = arith.constant 0 : index
    %c0_0 = arith.constant 0 : index
    %c0_1 = arith.constant 0 : index
    %1 = vector.load %arg9[%c0, %c0_0, %c0_1] : memref<18x18x32xf32, #tpu.memory_space<vmem>>, vector<18x18x32xf32>
    tpu.vector_store %arg9[%c0, %c0_0, %c0_1], %0 {strides = array<i32>} : memref<18x18x32xf32, #tpu.memory_space<vmem>>, vector<18x18x32xf32>,
    %c0_2 = arith.constant 0 : index
    %c0_3 = arith.constant 0 : index
    %c0_4 = arith.constant 0 : index
    %c0_5 = arith.constant 0 : index
    %2 = vector.load %arg1[%c0_2, %c0_3, %c0_4, %c0_5] : memref<1x16x16x32xf32, #tpu.memory_space<vmem>>, vector<1x16x16x32xf32>
    %3 = vector.shape_cast %2 : vector<1x16x16x32xf32> to vector<16x16x32xf32>
    %c1 = arith.constant 1 : index
    %c1_6 = arith.constant 1 : index
    %c0_7 = arith.constant 0 : index
    %4 = vector.load %arg9[%c1, %c1_6, %c0_7] : memref<18x18x32xf32, #tpu.memory_space<vmem>>, vector<16x16x32xf32>
    tpu.vector_store %arg9[%c1, %c1_6, %c0_7], %3 {strides = array<i32>} : memref<18x18x32xf32, #tpu.memory_space<vmem>>, vector<16x16x32xf32>,
    %cst_8 = arith.constant 0.000000e+00 : f32
    %5 = vector.broadcast %cst_8 : f32 to vector<256x32xf32>
    %c0_9 = arith.constant 0 : index
    %c0_10 = arith.constant 0 : index
    %c0_11 = arith.constant 0 : index
    %6 = vector.load %arg9[%c0_9, %c0_10, %c0_11] : memref<18x18x32xf32, #tpu.memory_space<vmem>>, vector<16x16x32xf32>
    %7 = vector.shape_cast %6 : vector<16x16x32xf32> to vector<256x32xf32>
    %c0_12 = arith.constant 0 : index
    %c0_13 = arith.constant 0 : index
    %c0_14 = arith.constant 0 : index
    %c0_15 = arith.constant 0 : index
    %8 = vector.load %arg2[%c0_12, %c0_13, %c0_14, %c0_15] : memref<3x3x32x32xf32, #tpu.memory_space<vmem>>, vector<1x1x32x32xf32>
    %9 = vector.shape_cast %8 : vector<1x1x32x32xf32> to vector<32x32xf32>
    %cst_16 = arith.constant dense<0.000000e+00> : vector<256x32xf32>
    %10 = tpu.matmul %7, %9, %cst_16 {dimension_numbers = #tpu.dot_dimension_numbers<[1], [0], [0], [1], [0, 0, 1, 1], [], []>} : vector<256x32xf32>, vector<32x32xf32>, vector<256x32xf32> -> vector<256x32xf32>
    %11 = arith.addf %5, %10 : vector<256x32xf32>
    %c0_17 = arith.constant 0 : index
    %c1_18 = arith.constant 1 : index
    %c0_19 = arith.constant 0 : index
    %12 = vector.load %arg9[%c0_17, %c1_18, %c0_19] : memref<18x18x32xf32, #tpu.memory_space<vmem>>, vector<16x16x32xf32>
    %13 = vector.shape_cast %12 : vector<16x16x32xf32> to vector<256x32xf32>
    %c0_20 = arith.constant 0 : index
    %c1_21 = arith.constant 1 : index
    %c0_22 = arith.constant 0 : index
    %c0_23 = arith.constant 0 : index
    %14 = vector.load %arg2[%c0_20, %c1_21, %c0_22, %c0_23] : memref<3x3x32x32xf32, #tpu.memory_space<vmem>>, vector<1x1x32x32xf32>
    %15 = vector.shape_cast %14 : vector<1x1x32x32xf32> to vector<32x32xf32>
    %cst_24 = arith.constant dense<0.000000e+00> : vector<256x32xf32>
    %16 = tpu.matmul %13, %15, %cst_24 {dimension_numbers = #tpu.dot_dimension_numbers<[1], [0], [0], [1], [0, 0, 1, 1], [], []>} : vector<256x32xf32>, vector<32x32xf32>, vector<256x32xf32> -> vector<256x32xf32>
    %17 = arith.addf %11, %16 : vector<256x32xf32>
    %c0_25 = arith.constant 0 : index
    %c2 = arith.constant 2 : index
    %c0_26 = arith.constant 0 : index
    %18 = vector.load %arg9[%c0_25, %c2, %c0_26] : memref<18x18x32xf32, #tpu.memory_space<vmem>>, vector<16x16x32xf32>
    %19 = vector.shape_cast %18 : vector<16x16x32xf32> to vector<256x32xf32>
    %c0_27 = arith.constant 0 : index
    %c2_28 = arith.constant 2 : index
    %c0_29 = arith.constant 0 : index
    %c0_30 = arith.constant 0 : index
    %20 = vector.load %arg2[%c0_27, %c2_28, %c0_29, %c0_30] : memref<3x3x32x32xf32, #tpu.memory_space<vmem>>, vector<1x1x32x32xf32>
    %21 = vector.shape_cast %20 : vector<1x1x32x32xf32> to vector<32x32xf32>
    %cst_31 = arith.constant dense<0.000000e+00> : vector<256x32xf32>
    %22 = tpu.matmul %19, %21, %cst_31 {dimension_numbers = #tpu.dot_dimension_numbers<[1], [0], [0], [1], [0, 0, 1, 1], [], []>} : vector<256x32xf32>, vector<32x32xf32>, vector<256x32xf32> -> vector<256x32xf32>
    %23 = arith.addf %17, %22 : vector<256x32xf32>
    %c1_32 = arith.constant 1 : index
    %c0_33 = arith.constant 0 : index
    %c0_34 = arith.constant 0 : index
    %24 = vector.load %arg9[%c1_32, %c0_33, %c0_34] : memref<18x18x32xf32, #tpu.memory_space<vmem>>, vector<16x16x32xf32>
    %25 = vector.shape_cast %24 : vector<16x16x32xf32> to vector<256x32xf32>
    %c1_35 = arith.constant 1 : index
    %c0_36 = arith.constant 0 : index
    %c0_37 = arith.constant 0 : index
    %c0_38 = arith.constant 0 : index
    %26 = vector.load %arg2[%c1_35, %c0_36, %c0_37, %c0_38] : memref<3x3x32x32xf32, #tpu.memory_space<vmem>>, vector<1x1x32x32xf32>
    %27 = vector.shape_cast %26 : vector<1x1x32x32xf32> to vector<32x32xf32>
    %cst_39 = arith.constant dense<0.000000e+00> : vector<256x32xf32>
    %28 = tpu.matmul %25, %27, %cst_39 {dimension_numbers = #tpu.dot_dimension_numbers<[1], [0], [0], [1], [0, 0, 1, 1], [], []>} : vector<256x32xf32>, vector<32x32xf32>, vector<256x32xf32> -> vector<256x32xf32>
    %29 = arith.addf %23, %28 : vector<256x32xf32>
    %c1_40 = arith.constant 1 : index
    %c1_41 = arith.constant 1 : index
    %c0_42 = arith.constant 0 : index
    %30 = vector.load %arg9[%c1_40, %c1_41, %c0_42] : memref<18x18x32xf32, #tpu.memory_space<vmem>>, vector<16x16x32xf32>
    %31 = vector.shape_cast %30 : vector<16x16x32xf32> to vector<256x32xf32>
    %c1_43 = arith.constant 1 : index
    %c1_44 = arith.constant 1 : index
    %c0_45 = arith.constant 0 : index
    %c0_46 = arith.constant 0 : index
    %32 = vector.load %arg2[%c1_43, %c1_44, %c0_45, %c0_46] : memref<3x3x32x32xf32, #tpu.memory_space<vmem>>, vector<1x1x32x32xf32>
    %33 = vector.shape_cast %32 : vector<1x1x32x32xf32> to vector<32x32xf32>
    %cst_47 = arith.constant dense<0.000000e+00> : vector<256x32xf32>
    %34 = tpu.matmul %31, %33, %cst_47 {dimension_numbers = #tpu.dot_dimension_numbers<[1], [0], [0], [1], [0, 0, 1, 1], [], []>} : vector<256x32xf32>, vector<32x32xf32>, vector<256x32xf32> -> vector<256x32xf32>
    %35 = arith.addf %29, %34 : vector<256x32xf32>
    %c1_48 = arith.constant 1 : index
    %c2_49 = arith.constant 2 : index
    %c0_50 = arith.constant 0 : index
    %36 = vector.load %arg9[%c1_48, %c2_49, %c0_50] : memref<18x18x32xf32, #tpu.memory_space<vmem>>, vector<16x16x32xf32>
    %37 = vector.shape_cast %36 : vector<16x16x32xf32> to vector<256x32xf32>
    %c1_51 = arith.constant 1 : index
    %c2_52 = arith.constant 2 : index
    %c0_53 = arith.constant 0 : index
    %c0_54 = arith.constant 0 : index
    %38 = vector.load %arg2[%c1_51, %c2_52, %c0_53, %c0_54] : memref<3x3x32x32xf32, #tpu.memory_space<vmem>>, vector<1x1x32x32xf32>
    %39 = vector.shape_cast %38 : vector<1x1x32x32xf32> to vector<32x32xf32>
    %cst_55 = arith.constant dense<0.000000e+00> : vector<256x32xf32>
    %40 = tpu.matmul %37, %39, %cst_55 {dimension_numbers = #tpu.dot_dimension_numbers<[1], [0], [0], [1], [0, 0, 1, 1], [], []>} : vector<256x32xf32>, vector<32x32xf32>, vector<256x32xf32> -> vector<256x32xf32>
    %41 = arith.addf %35, %40 : vector<256x32xf32>
    %c2_56 = arith.constant 2 : index
    %c0_57 = arith.constant 0 : index
    %c0_58 = arith.constant 0 : index
    %42 = vector.load %arg9[%c2_56, %c0_57, %c0_58] : memref<18x18x32xf32, #tpu.memory_space<vmem>>, vector<16x16x32xf32>
    %43 = vector.shape_cast %42 : vector<16x16x32xf32> to vector<256x32xf32>
    %c2_59 = arith.constant 2 : index
    %c0_60 = arith.constant 0 : index
    %c0_61 = arith.constant 0 : index
    %c0_62 = arith.constant 0 : index
    %44 = vector.load %arg2[%c2_59, %c0_60, %c0_61, %c0_62] : memref<3x3x32x32xf32, #tpu.memory_space<vmem>>, vector<1x1x32x32xf32>
    %45 = vector.shape_cast %44 : vector<1x1x32x32xf32> to vector<32x32xf32>
    %cst_63 = arith.constant dense<0.000000e+00> : vector<256x32xf32>
    %46 = tpu.matmul %43, %45, %cst_63 {dimension_numbers = #tpu.dot_dimension_numbers<[1], [0], [0], [1], [0, 0, 1, 1], [], []>} : vector<256x32xf32>, vector<32x32xf32>, vector<256x32xf32> -> vector<256x32xf32>
    %47 = arith.addf %41, %46 : vector<256x32xf32>
    %c2_64 = arith.constant 2 : index
    %c1_65 = arith.constant 1 : index
    %c0_66 = arith.constant 0 : index
    %48 = vector.load %arg9[%c2_64, %c1_65, %c0_66] : memref<18x18x32xf32, #tpu.memory_space<vmem>>, vector<16x16x32xf32>
    %49 = vector.shape_cast %48 : vector<16x16x32xf32> to vector<256x32xf32>
    %c2_67 = arith.constant 2 : index
    %c1_68 = arith.constant 1 : index
    %c0_69 = arith.constant 0 : index
    %c0_70 = arith.constant 0 : index
    %50 = vector.load %arg2[%c2_67, %c1_68, %c0_69, %c0_70] : memref<3x3x32x32xf32, #tpu.memory_space<vmem>>, vector<1x1x32x32xf32>
    %51 = vector.shape_cast %50 : vector<1x1x32x32xf32> to vector<32x32xf32>
    %cst_71 = arith.constant dense<0.000000e+00> : vector<256x32xf32>
    %52 = tpu.matmul %49, %51, %cst_71 {dimension_numbers = #tpu.dot_dimension_numbers<[1], [0], [0], [1], [0, 0, 1, 1], [], []>} : vector<256x32xf32>, vector<32x32xf32>, vector<256x32xf32> -> vector<256x32xf32>
    %53 = arith.addf %47, %52 : vector<256x32xf32>
    %c2_72 = arith.constant 2 : index
    %c2_73 = arith.constant 2 : index
    %c0_74 = arith.constant 0 : index
    %54 = vector.load %arg9[%c2_72, %c2_73, %c0_74] : memref<18x18x32xf32, #tpu.memory_space<vmem>>, vector<16x16x32xf32>
    %55 = vector.shape_cast %54 : vector<16x16x32xf32> to vector<256x32xf32>
    %c2_75 = arith.constant 2 : index
    %c2_76 = arith.constant 2 : index
    %c0_77 = arith.constant 0 : index
    %c0_78 = arith.constant 0 : index
    %56 = vector.load %arg2[%c2_75, %c2_76, %c0_77, %c0_78] : memref<3x3x32x32xf32, #tpu.memory_space<vmem>>, vector<1x1x32x32xf32>
    %57 = vector.shape_cast %56 : vector<1x1x32x32xf32> to vector<32x32xf32>
    %cst_79 = arith.constant dense<0.000000e+00> : vector<256x32xf32>
    %58 = tpu.matmul %55, %57, %cst_79 {dimension_numbers = #tpu.dot_dimension_numbers<[1], [0], [0], [1], [0, 0, 1, 1], [], []>} : vector<256x32xf32>, vector<32x32xf32>, vector<256x32xf32> -> vector<256x32xf32>
    %59 = arith.addf %53, %58 : vector<256x32xf32>
    %c0_80 = arith.constant 0 : index
    %c0_81 = arith.constant 0 : index
    %60 = vector.load %arg3[%c0_80, %c0_81] : memref<1x32xf32, #tpu.memory_space<vmem>>, vector<1x32xf32>
    %61 = vector.broadcast %60 : vector<1x32xf32> to vector<256x32xf32>
    %62 = arith.mulf %59, %61 : vector<256x32xf32>
    %c0_82 = arith.constant 0 : index
    %c0_83 = arith.constant 0 : index
    %63 = vector.load %arg4[%c0_82, %c0_83] : memref<1x32xf32, #tpu.memory_space<vmem>>, vector<1x32xf32>
    %64 = vector.broadcast %63 : vector<1x32xf32> to vector<256x32xf32>
    %65 = arith.addf %62, %64 : vector<256x32xf32>
    %cst_84 = arith.constant 0.000000e+00 : f32
    %66 = vector.broadcast %cst_84 : f32 to vector<256x32xf32>
    %67 = arith.maximumf %65, %66 : vector<256x32xf32>
    %cst_85 = arith.constant 0.000000e+00 : f32
    %68 = vector.broadcast %cst_85 : f32 to vector<18x18x32xf32>
    %c0_86 = arith.constant 0 : index
    %c0_87 = arith.constant 0 : index
    %c0_88 = arith.constant 0 : index
    %69 = vector.load %arg10[%c0_86, %c0_87, %c0_88] : memref<18x18x32xf32, #tpu.memory_space<vmem>>, vector<18x18x32xf32>
    tpu.vector_store %arg10[%c0_86, %c0_87, %c0_88], %68 {strides = array<i32>} : memref<18x18x32xf32, #tpu.memory_space<vmem>>, vector<18x18x32xf32>,
    %70 = vector.shape_cast %67 : vector<256x32xf32> to vector<16x16x32xf32>
    %c1_89 = arith.constant 1 : index
    %c1_90 = arith.constant 1 : index
    %c0_91 = arith.constant 0 : index
    %71 = vector.load %arg10[%c1_89, %c1_90, %c0_91] : memref<18x18x32xf32, #tpu.memory_space<vmem>>, vector<16x16x32xf32>
    tpu.vector_store %arg10[%c1_89, %c1_90, %c0_91], %70 {strides = array<i32>} : memref<18x18x32xf32, #tpu.memory_space<vmem>>, vector<16x16x32xf32>,
    %cst_92 = arith.constant 0.000000e+00 : f32
    %72 = vector.broadcast %cst_92 : f32 to vector<256x32xf32>
    %c0_93 = arith.constant 0 : index
    %c0_94 = arith.constant 0 : index
    %c0_95 = arith.constant 0 : index
    %73 = vector.load %arg10[%c0_93, %c0_94, %c0_95] : memref<18x18x32xf32, #tpu.memory_space<vmem>>, vector<16x16x32xf32>
    %74 = vector.shape_cast %73 : vector<16x16x32xf32> to vector<256x32xf32>
    %c0_96 = arith.constant 0 : index
    %c0_97 = arith.constant 0 : index
    %c0_98 = arith.constant 0 : index
    %c0_99 = arith.constant 0 : index
    %75 = vector.load %arg5[%c0_96, %c0_97, %c0_98, %c0_99] : memref<3x3x32x32xf32, #tpu.memory_space<vmem>>, vector<1x1x32x32xf32>
    %76 = vector.shape_cast %75 : vector<1x1x32x32xf32> to vector<32x32xf32>
    %cst_100 = arith.constant dense<0.000000e+00> : vector<256x32xf32>
    %77 = tpu.matmul %74, %76, %cst_100 {dimension_numbers = #tpu.dot_dimension_numbers<[1], [0], [0], [1], [0, 0, 1, 1], [], []>} : vector<256x32xf32>, vector<32x32xf32>, vector<256x32xf32> -> vector<256x32xf32>
    %78 = arith.addf %72, %77 : vector<256x32xf32>
    %c0_101 = arith.constant 0 : index
    %c1_102 = arith.constant 1 : index
    %c0_103 = arith.constant 0 : index
    %79 = vector.load %arg10[%c0_101, %c1_102, %c0_103] : memref<18x18x32xf32, #tpu.memory_space<vmem>>, vector<16x16x32xf32>
    %80 = vector.shape_cast %79 : vector<16x16x32xf32> to vector<256x32xf32>
    %c0_104 = arith.constant 0 : index
    %c1_105 = arith.constant 1 : index
    %c0_106 = arith.constant 0 : index
    %c0_107 = arith.constant 0 : index
    %81 = vector.load %arg5[%c0_104, %c1_105, %c0_106, %c0_107] : memref<3x3x32x32xf32, #tpu.memory_space<vmem>>, vector<1x1x32x32xf32>
    %82 = vector.shape_cast %81 : vector<1x1x32x32xf32> to vector<32x32xf32>
    %cst_108 = arith.constant dense<0.000000e+00> : vector<256x32xf32>
    %83 = tpu.matmul %80, %82, %cst_108 {dimension_numbers = #tpu.dot_dimension_numbers<[1], [0], [0], [1], [0, 0, 1, 1], [], []>} : vector<256x32xf32>, vector<32x32xf32>, vector<256x32xf32> -> vector<256x32xf32>
    %84 = arith.addf %78, %83 : vector<256x32xf32>
    %c0_109 = arith.constant 0 : index
    %c2_110 = arith.constant 2 : index
    %c0_111 = arith.constant 0 : index
    %85 = vector.load %arg10[%c0_109, %c2_110, %c0_111] : memref<18x18x32xf32, #tpu.memory_space<vmem>>, vector<16x16x32xf32>
    %86 = vector.shape_cast %85 : vector<16x16x32xf32> to vector<256x32xf32>
    %c0_112 = arith.constant 0 : index
    %c2_113 = arith.constant 2 : index
    %c0_114 = arith.constant 0 : index
    %c0_115 = arith.constant 0 : index
    %87 = vector.load %arg5[%c0_112, %c2_113, %c0_114, %c0_115] : memref<3x3x32x32xf32, #tpu.memory_space<vmem>>, vector<1x1x32x32xf32>
    %88 = vector.shape_cast %87 : vector<1x1x32x32xf32> to vector<32x32xf32>
    %cst_116 = arith.constant dense<0.000000e+00> : vector<256x32xf32>
    %89 = tpu.matmul %86, %88, %cst_116 {dimension_numbers = #tpu.dot_dimension_numbers<[1], [0], [0], [1], [0, 0, 1, 1], [], []>} : vector<256x32xf32>, vector<32x32xf32>, vector<256x32xf32> -> vector<256x32xf32>
    %90 = arith.addf %84, %89 : vector<256x32xf32>
    %c1_117 = arith.constant 1 : index
    %c0_118 = arith.constant 0 : index
    %c0_119 = arith.constant 0 : index
    %91 = vector.load %arg10[%c1_117, %c0_118, %c0_119] : memref<18x18x32xf32, #tpu.memory_space<vmem>>, vector<16x16x32xf32>
    %92 = vector.shape_cast %91 : vector<16x16x32xf32> to vector<256x32xf32>
    %c1_120 = arith.constant 1 : index
    %c0_121 = arith.constant 0 : index
    %c0_122 = arith.constant 0 : index
    %c0_123 = arith.constant 0 : index
    %93 = vector.load %arg5[%c1_120, %c0_121, %c0_122, %c0_123] : memref<3x3x32x32xf32, #tpu.memory_space<vmem>>, vector<1x1x32x32xf32>
    %94 = vector.shape_cast %93 : vector<1x1x32x32xf32> to vector<32x32xf32>
    %cst_124 = arith.constant dense<0.000000e+00> : vector<256x32xf32>
    %95 = tpu.matmul %92, %94, %cst_124 {dimension_numbers = #tpu.dot_dimension_numbers<[1], [0], [0], [1], [0, 0, 1, 1], [], []>} : vector<256x32xf32>, vector<32x32xf32>, vector<256x32xf32> -> vector<256x32xf32>
    %96 = arith.addf %90, %95 : vector<256x32xf32>
    %c1_125 = arith.constant 1 : index
    %c1_126 = arith.constant 1 : index
    %c0_127 = arith.constant 0 : index
    %97 = vector.load %arg10[%c1_125, %c1_126, %c0_127] : memref<18x18x32xf32, #tpu.memory_space<vmem>>, vector<16x16x32xf32>
    %98 = vector.shape_cast %97 : vector<16x16x32xf32> to vector<256x32xf32>
    %c1_128 = arith.constant 1 : index
    %c1_129 = arith.constant 1 : index
    %c0_130 = arith.constant 0 : index
    %c0_131 = arith.constant 0 : index
    %99 = vector.load %arg5[%c1_128, %c1_129, %c0_130, %c0_131] : memref<3x3x32x32xf32, #tpu.memory_space<vmem>>, vector<1x1x32x32xf32>
    %100 = vector.shape_cast %99 : vector<1x1x32x32xf32> to vector<32x32xf32>
    %cst_132 = arith.constant dense<0.000000e+00> : vector<256x32xf32>
    %101 = tpu.matmul %98, %100, %cst_132 {dimension_numbers = #tpu.dot_dimension_numbers<[1], [0], [0], [1], [0, 0, 1, 1], [], []>} : vector<256x32xf32>, vector<32x32xf32>, vector<256x32xf32> -> vector<256x32xf32>
    %102 = arith.addf %96, %101 : vector<256x32xf32>
    %c1_133 = arith.constant 1 : index
    %c2_134 = arith.constant 2 : index
    %c0_135 = arith.constant 0 : index
    %103 = vector.load %arg10[%c1_133, %c2_134, %c0_135] : memref<18x18x32xf32, #tpu.memory_space<vmem>>, vector<16x16x32xf32>
    %104 = vector.shape_cast %103 : vector<16x16x32xf32> to vector<256x32xf32>
    %c1_136 = arith.constant 1 : index
    %c2_137 = arith.constant 2 : index
    %c0_138 = arith.constant 0 : index
    %c0_139 = arith.constant 0 : index
    %105 = vector.load %arg5[%c1_136, %c2_137, %c0_138, %c0_139] : memref<3x3x32x32xf32, #tpu.memory_space<vmem>>, vector<1x1x32x32xf32>
    %106 = vector.shape_cast %105 : vector<1x1x32x32xf32> to vector<32x32xf32>
    %cst_140 = arith.constant dense<0.000000e+00> : vector<256x32xf32>
    %107 = tpu.matmul %104, %106, %cst_140 {dimension_numbers = #tpu.dot_dimension_numbers<[1], [0], [0], [1], [0, 0, 1, 1], [], []>} : vector<256x32xf32>, vector<32x32xf32>, vector<256x32xf32> -> vector<256x32xf32>
    %108 = arith.addf %102, %107 : vector<256x32xf32>
    %c2_141 = arith.constant 2 : index
    %c0_142 = arith.constant 0 : index
    %c0_143 = arith.constant 0 : index
    %109 = vector.load %arg10[%c2_141, %c0_142, %c0_143] : memref<18x18x32xf32, #tpu.memory_space<vmem>>, vector<16x16x32xf32>
    %110 = vector.shape_cast %109 : vector<16x16x32xf32> to vector<256x32xf32>
    %c2_144 = arith.constant 2 : index
    %c0_145 = arith.constant 0 : index
    %c0_146 = arith.constant 0 : index
    %c0_147 = arith.constant 0 : index
    %111 = vector.load %arg5[%c2_144, %c0_145, %c0_146, %c0_147] : memref<3x3x32x32xf32, #tpu.memory_space<vmem>>, vector<1x1x32x32xf32>
    %112 = vector.shape_cast %111 : vector<1x1x32x32xf32> to vector<32x32xf32>
    %cst_148 = arith.constant dense<0.000000e+00> : vector<256x32xf32>
    %113 = tpu.matmul %110, %112, %cst_148 {dimension_numbers = #tpu.dot_dimension_numbers<[1], [0], [0], [1], [0, 0, 1, 1], [], []>} : vector<256x32xf32>, vector<32x32xf32>, vector<256x32xf32> -> vector<256x32xf32>
    %114 = arith.addf %108, %113 : vector<256x32xf32>
    %c2_149 = arith.constant 2 : index
    %c1_150 = arith.constant 1 : index
    %c0_151 = arith.constant 0 : index
    %115 = vector.load %arg10[%c2_149, %c1_150, %c0_151] : memref<18x18x32xf32, #tpu.memory_space<vmem>>, vector<16x16x32xf32>
    %116 = vector.shape_cast %115 : vector<16x16x32xf32> to vector<256x32xf32>
    %c2_152 = arith.constant 2 : index
    %c1_153 = arith.constant 1 : index
    %c0_154 = arith.constant 0 : index
    %c0_155 = arith.constant 0 : index
    %117 = vector.load %arg5[%c2_152, %c1_153, %c0_154, %c0_155] : memref<3x3x32x32xf32, #tpu.memory_space<vmem>>, vector<1x1x32x32xf32>
    %118 = vector.shape_cast %117 : vector<1x1x32x32xf32> to vector<32x32xf32>
    %cst_156 = arith.constant dense<0.000000e+00> : vector<256x32xf32>
    %119 = tpu.matmul %116, %118, %cst_156 {dimension_numbers = #tpu.dot_dimension_numbers<[1], [0], [0], [1], [0, 0, 1, 1], [], []>} : vector<256x32xf32>, vector<32x32xf32>, vector<256x32xf32> -> vector<256x32xf32>
    %120 = arith.addf %114, %119 : vector<256x32xf32>
    %c2_157 = arith.constant 2 : index
    %c2_158 = arith.constant 2 : index
    %c0_159 = arith.constant 0 : index
    %121 = vector.load %arg10[%c2_157, %c2_158, %c0_159] : memref<18x18x32xf32, #tpu.memory_space<vmem>>, vector<16x16x32xf32>
    %122 = vector.shape_cast %121 : vector<16x16x32xf32> to vector<256x32xf32>
    %c2_160 = arith.constant 2 : index
    %c2_161 = arith.constant 2 : index
    %c0_162 = arith.constant 0 : index
    %c0_163 = arith.constant 0 : index
    %123 = vector.load %arg5[%c2_160, %c2_161, %c0_162, %c0_163] : memref<3x3x32x32xf32, #tpu.memory_space<vmem>>, vector<1x1x32x32xf32>
    %124 = vector.shape_cast %123 : vector<1x1x32x32xf32> to vector<32x32xf32>
    %cst_164 = arith.constant dense<0.000000e+00> : vector<256x32xf32>
    %125 = tpu.matmul %122, %124, %cst_164 {dimension_numbers = #tpu.dot_dimension_numbers<[1], [0], [0], [1], [0, 0, 1, 1], [], []>} : vector<256x32xf32>, vector<32x32xf32>, vector<256x32xf32> -> vector<256x32xf32>
    %126 = arith.addf %120, %125 : vector<256x32xf32>
    %c0_165 = arith.constant 0 : index
    %c0_166 = arith.constant 0 : index
    %127 = vector.load %arg6[%c0_165, %c0_166] : memref<1x32xf32, #tpu.memory_space<vmem>>, vector<1x32xf32>
    %128 = vector.broadcast %127 : vector<1x32xf32> to vector<256x32xf32>
    %129 = arith.mulf %126, %128 : vector<256x32xf32>
    %c0_167 = arith.constant 0 : index
    %c0_168 = arith.constant 0 : index
    %130 = vector.load %arg7[%c0_167, %c0_168] : memref<1x32xf32, #tpu.memory_space<vmem>>, vector<1x32xf32>
    %131 = vector.broadcast %130 : vector<1x32xf32> to vector<256x32xf32>
    %132 = arith.addf %129, %131 : vector<256x32xf32>
    %c0_169 = arith.constant 0 : index
    %c0_170 = arith.constant 0 : index
    %c0_171 = arith.constant 0 : index
    %c0_172 = arith.constant 0 : index
    %133 = vector.load %arg1[%c0_169, %c0_170, %c0_171, %c0_172] : memref<1x16x16x32xf32, #tpu.memory_space<vmem>>, vector<1x16x16x32xf32>
    %134 = vector.shape_cast %133 : vector<1x16x16x32xf32> to vector<16x16x32xf32>
    %135 = vector.shape_cast %134 : vector<16x16x32xf32> to vector<256x32xf32>
    %136 = arith.addf %132, %135 : vector<256x32xf32>
    %cst_173 = arith.constant 0.000000e+00 : f32
    %137 = vector.broadcast %cst_173 : f32 to vector<256x32xf32>
    %138 = arith.maximumf %136, %137 : vector<256x32xf32>
    %139 = vector.shape_cast %138 : vector<256x32xf32> to vector<16x16x32xf32>
    %c0_174 = arith.constant 0 : index
    %c0_175 = arith.constant 0 : index
    %c0_176 = arith.constant 0 : index
    %c0_177 = arith.constant 0 : index
    %140 = vector.load %arg8[%c0_174, %c0_175, %c0_176, %c0_177] : memref<1x16x16x32xf32, #tpu.memory_space<vmem>>, vector<1x16x16x32xf32>
    %141 = vector.shape_cast %140 : vector<1x16x16x32xf32> to vector<16x16x32xf32>
    %142 = vector.shape_cast %139 : vector<16x16x32xf32> to vector<1x16x16x32xf32>
    tpu.vector_store %arg8[%c0_174, %c0_175, %c0_176, %c0_177], %142 {strides = array<i32>} : memref<1x16x16x32xf32, #tpu.memory_space<vmem>>, vector<1x16x16x32xf32>,
    return
  }
  func.func @transform_0(%arg0: i32) -> (i32, i32, i32, i32) {
    %c0_i32 = arith.constant 0 : i32
    %c0_i32_0 = arith.constant 0 : i32
    %c0_i32_1 = arith.constant 0 : i32
    %c0_i32_2 = arith.constant 0 : i32
    return %arg0, %c0_i32, %c0_i32_0, %c0_i32_1 : i32, i32, i32, i32
  }
  func.func @transform_1(%arg0: i32) -> (i32, i32, i32, i32) {
    %c0_i32 = arith.constant 0 : i32
    %c0_i32_0 = arith.constant 0 : i32
    %c0_i32_1 = arith.constant 0 : i32
    %c0_i32_2 = arith.constant 0 : i32
    %c0_i32_3 = arith.constant 0 : i32
    return %c0_i32, %c0_i32_0, %c0_i32_1, %c0_i32_2 : i32, i32, i32, i32
  }
  func.func @transform_2(%arg0: i32) -> (i32, i32) {
    %c0_i32 = arith.constant 0 : i32
    %c0_i32_0 = arith.constant 0 : i32
    %c0_i32_1 = arith.constant 0 : i32
    return %c0_i32, %c0_i32_0 : i32, i32
  }
  func.func @transform_3(%arg0: i32) -> (i32, i32) {
    %c0_i32 = arith.constant 0 : i32
    %c0_i32_0 = arith.constant 0 : i32
    %c0_i32_1 = arith.constant 0 : i32
    return %c0_i32, %c0_i32_0 : i32, i32
  }
  func.func @transform_4(%arg0: i32) -> (i32, i32, i32, i32) {
    %c0_i32 = arith.constant 0 : i32
    %c0_i32_0 = arith.constant 0 : i32
    %c0_i32_1 = arith.constant 0 : i32
    %c0_i32_2 = arith.constant 0 : i32
    %c0_i32_3 = arith.constant 0 : i32
    return %c0_i32, %c0_i32_0, %c0_i32_1, %c0_i32_2 : i32, i32, i32, i32
  }
  func.func @transform_5(%arg0: i32) -> (i32, i32) {
    %c0_i32 = arith.constant 0 : i32
    %c0_i32_0 = arith.constant 0 : i32
    %c0_i32_1 = arith.constant 0 : i32
    return %c0_i32, %c0_i32_0 : i32, i32
  }
  func.func @transform_6(%arg0: i32) -> (i32, i32) {
    %c0_i32 = arith.constant 0 : i32
    %c0_i32_0 = arith.constant 0 : i32
    %c0_i32_1 = arith.constant 0 : i32
    return %c0_i32, %c0_i32_0 : i32, i32
  }
  func.func @transform_7(%arg0: i32) -> (i32, i32, i32, i32) {
    %c0_i32 = arith.constant 0 : i32
    %c0_i32_0 = arith.constant 0 : i32
    %c0_i32_1 = arith.constant 0 : i32
    %c0_i32_2 = arith.constant 0 : i32
    return %arg0, %c0_i32, %c0_i32_0, %c0_i32_1 : i32, i32, i32, i32
  }
}

</mosaic_0001>

<llo_original>
// kernel: tpu_custom_call.1
$region0: #{tpu_custom_call.1}
  #allocation0 [shape = 'u32[]', space=smem, size = 0x4, offset = 0x4, fixed_abs, tag = 'smem constant byte address 0x4 - core index']
  #allocation1 [shape = 'u32[144,128]{1,0:T(1,128)}', space=vmem, size = 0x12000, scoped, tag = 'internal scratch']
  #allocation2 [shape = 'f32[18,18,32]{2,1,0:T(8,128)}', space=vmem, size = 0x36000, scoped, tag = 'scratch operand']
  #allocation3 [shape = 'f32[18,18,32]{2,1,0:T(8,128)}', space=vmem, size = 0x36000, scoped, tag = 'scratch operand']
  %s0 = inlined_call_operand.hbm [shape: f32[2,16,16,32], index: 0, kind: input, shape index: {}]
  %s1 = inlined_call_operand.hbm [shape: f32[3,3,32,32], index: 1, kind: input, shape index: {}]
  %s2 = inlined_call_operand.vmem [shape: f32[1,32], index: 2, kind: input, shape index: {}]
  %s3 = inlined_call_operand.vmem [shape: f32[1,32], index: 3, kind: input, shape index: {}]
  %s4 = inlined_call_operand.hbm [shape: f32[3,3,32,32], index: 4, kind: input, shape index: {}]
  %s5 = inlined_call_operand.vmem [shape: f32[1,32], index: 5, kind: input, shape index: {}]
  %s6 = inlined_call_operand.vmem [shape: f32[1,32], index: 6, kind: input, shape index: {}]
  %s7 = inlined_call_operand.hbm [shape: f32[2,16,16,32], index: 7, kind: output, shape index: {}]
  %s8 = sld [smem:[#allocation0]]
  $region73: #{tpu_custom_call.1} parent=0
    _
  %s10 = ssub.s32 1, %s8
  %s11 = scalar_select 0, %s10, %s8
  $region1: #{tpu_custom_call.1} parent=0
    #allocation4 [shape = 'u8[262144]{0}', space=vmem, size = 0x40000, scoped, tag = 'input window, operand 0']
    #allocation5 [shape = 's32[2]{0}', space=sflag, size = 0x8, scoped, tag = 'scoped memory for tpu_custom_call.1']
    #allocation6 [shape = 's32[2]{0}', space=sflag, size = 0x8, scoped, tag = 'scoped memory for tpu_custom_call.1']
    #allocation7 [shape = 'u8[147456]{0}', space=vmem, size = 0x24000, scoped, tag = 'input window, operand 1, single buffered']
    #allocation8 [shape = 's32[1]{0}', space=sflag, size = 0x4, scoped, tag = 'scoped memory for tpu_custom_call.1']
    #allocation9 [shape = 'u8[147456]{0}', space=vmem, size = 0x24000, scoped, tag = 'input window, operand 4, single buffered']
    #allocation10 [shape = 'u8[262144]{0}', space=vmem, size = 0x40000, scoped, tag = 'output window, operand 0']
    %12 = vsyncpa [#allocation5], 0
    %s13 = scalar_lea.sflag [#allocation5], 1
    %14 = vsyncpa %s13, 0
    %15 = vsyncpa [#allocation8], 0
    %16 = vsyncpa [#allocation6], 0
    %s17 = scalar_lea.sflag [#allocation6], 1
    %18 = vsyncpa %s17, 0
    loop: start=0, step=1, limit=4
    $region2: #{tpu_custom_call.1} parent=1 // loop_pre_header
      _
    $region3: #{tpu_custom_call.1} parent=1 // loop_header
      %s20 = sphi 0, %s24
      %p21 = scmp.ge.s32.totalorder %s20, 4
      %s30 = sphi 0, %s32
      %s33 = sphi 0, %s30
      %s34 = sphi 0, %s33
      %s50 = sphi 0, %s34
      %s54 = sphi 0, %s54
      %s56 = sphi 0, %s54
      %s57 = sphi 0, %s56
      %s71 = sphi 0, %s57
      %s75 = sphi 0, %s75
      %s77 = sphi 0, %s75
      %s78 = sphi 0, %s77
      %s92 = sphi 0, %s78
      %s96 = sphi 0, %s96
      %s98 = sphi 0, %s96
      %s99 = sphi 0, %s98
      %s113 = sphi 0, %s99
      %s117 = sphi 0, %s117
      %s119 = sphi 0, %s117
      %s120 = sphi 0, %s119
      %s134 = sphi 0, %s120
      %s138 = sphi 0, %s138
      %s140 = sphi 0, %s138
      %s141 = sphi 0, %s140
      %s155 = sphi 0, %s141
      %s159 = sphi 0, %s159
      %s161 = sphi 0, %s159
      %s162 = sphi 0, %s161
      %s176 = sphi 0, %s162
      %s182 = sphi 0, %s184
      %s185 = sphi 0, %s182
      %s186 = sphi 0, %s185
      %s202 = sphi 0, %s186
    $region4: #{tpu_custom_call.1} parent=1 // loop_header_branch
      %23 = sbr.rel (%p21) target = $region8
    $region5: #{tpu_custom_call.1} parent=1 // loop_body
      %s25 = ssub.s32 %s20, 1
      %s26 = ssub.s32 %s20, 2
      %s27 = sadd.s32 %s20, 1
      %s28 = ssub.s32 %s20, %s27
      %p29 = scmp.eq.s32.totalorder %s28, 0
      %s31 = sadd.s32 %s30, 1
      %s32 = scalar_select %p29, %s30, %s31
      %p35 = pneg %p29
      %p36 = scmp.eq.s32.totalorder %s20, 1
      %p37 = por %p35, %p36
      %p38 = scmp.ne.s32.totalorder %s30, %s33
      %p39 = scmp.eq.s32.totalorder %s20, 0
      %p40 = por %p38, %p39
      %p41 = scmp.ne.s32.totalorder %s30, %s33
      %p42 = scmp.eq.s32.totalorder %s25, 1
      %p43 = por %p41, %p42
      %p44 = scmp.ne.s32.totalorder %s33, %s34
      %p45 = scmp.eq.s32.totalorder %s25, 0
      %p46 = por %p44, %p45
      %p47 = scmp.ne.s32.totalorder %s33, %s34
      %p48 = scmp.eq.s32.totalorder %s26, 1
      %p49 = por %p47, %p48
      %p51 = scmp.ne.s32.totalorder %s34, %s50
      %p52 = scmp.eq.s32.totalorder %s26, 0
      %p53 = por %p51, %p52
      %s55 = sadd.s32 %s54, 1
      %p58 = scmp.eq.s32.totalorder %s20, 1
      %p59 = scmp.ne.s32.totalorder %s54, %s56
      %p60 = scmp.eq.s32.totalorder %s20, 0
      %p61 = por %p59, %p60
      %p62 = scmp.ne.s32.totalorder %s54, %s56
      %p63 = scmp.eq.s32.totalorder %s25, 1
      %p64 = por %p62, %p63
      %p65 = scmp.ne.s32.totalorder %s56, %s57
      %p66 = scmp.eq.s32.totalorder %s25, 0
      %p67 = por %p65, %p66
      %p68 = scmp.ne.s32.totalorder %s56, %s57
      %p69 = scmp.eq.s32.totalorder %s26, 1
      %p70 = por %p68, %p69
      %p72 = scmp.ne.s32.totalorder %s57, %s71
      %p73 = scmp.eq.s32.totalorder %s26, 0
      %p74 = por %p72, %p73
      %s76 = sadd.s32 %s75, 1
      %p79 = scmp.eq.s32.totalorder %s20, 1
      %p80 = scmp.ne.s32.totalorder %s75, %s77
      %p81 = scmp.eq.s32.totalorder %s20, 0
      %p82 = por %p80, %p81
      %p83 = scmp.ne.s32.totalorder %s75, %s77
      %p84 = scmp.eq.s32.totalorder %s25, 1
      %p85 = por %p83, %p84
      %p86 = scmp.ne.s32.totalorder %s77, %s78
      %p87 = scmp.eq.s32.totalorder %s25, 0
      %p88 = por %p86, %p87
      %p89 = scmp.ne.s32.totalorder %s77, %s78
      %p90 = scmp.eq.s32.totalorder %s26, 1
      %p91 = por %p89, %p90
      %p93 = scmp.ne.s32.totalorder %s78, %s92
      %p94 = scmp.eq.s32.totalorder %s26, 0
      %p95 = por %p93, %p94
      %s97 = sadd.s32 %s96, 1
      %p100 = scmp.eq.s32.totalorder %s20, 1
      %p101 = scmp.ne.s32.totalorder %s96, %s98
      %p102 = scmp.eq.s32.totalorder %s20, 0
      %p103 = por %p101, %p102
      %p104 = scmp.ne.s32.totalorder %s96, %s98
      %p105 = scmp.eq.s32.totalorder %s25, 1
      %p106 = por %p104, %p105
      %p107 = scmp.ne.s32.totalorder %s98, %s99
      %p108 = scmp.eq.s32.totalorder %s25, 0
      %p109 = por %p107, %p108
      %p110 = scmp.ne.s32.totalorder %s98, %s99
      %p111 = scmp.eq.s32.totalorder %s26, 1
      %p112 = por %p110, %p111
      %p114 = scmp.ne.s32.totalorder %s99, %s113
      %p115 = scmp.eq.s32.totalorder %s26, 0
      %p116 = por %p114, %p115
      %s118 = sadd.s32 %s117, 1
      %p121 = scmp.eq.s32.totalorder %s20, 1
      %p122 = scmp.ne.s32.totalorder %s117, %s119
      %p123 = scmp.eq.s32.totalorder %s20, 0
      %p124 = por %p122, %p123
      %p125 = scmp.ne.s32.totalorder %s117, %s119
      %p126 = scmp.eq.s32.totalorder %s25, 1
      %p127 = por %p125, %p126
      %p128 = scmp.ne.s32.totalorder %s119, %s120
      %p129 = scmp.eq.s32.totalorder %s25, 0
      %p130 = por %p128, %p129
      %p131 = scmp.ne.s32.totalorder %s119, %s120
      %p132 = scmp.eq.s32.totalorder %s26, 1
      %p133 = por %p131, %p132
      %p135 = scmp.ne.s32.totalorder %s120, %s134
      %p136 = scmp.eq.s32.totalorder %s26, 0
      %p137 = por %p135, %p136
      %s139 = sadd.s32 %s138, 1
      %p142 = scmp.eq.s32.totalorder %s20, 1
      %p143 = scmp.ne.s32.totalorder %s138, %s140
      %p144 = scmp.eq.s32.totalorder %s20, 0
      %p145 = por %p143, %p144
      %p146 = scmp.ne.s32.totalorder %s138, %s140
      %p147 = scmp.eq.s32.totalorder %s25, 1
      %p148 = por %p146, %p147
      %p149 = scmp.ne.s32.totalorder %s140, %s141
      %p150 = scmp.eq.s32.totalorder %s25, 0
      %p151 = por %p149, %p150
      %p152 = scmp.ne.s32.totalorder %s140, %s141
      %p153 = scmp.eq.s32.totalorder %s26, 1
      %p154 = por %p152, %p153
      %p156 = scmp.ne.s32.totalorder %s141, %s155
      %p157 = scmp.eq.s32.totalorder %s26, 0
      %p158 = por %p156, %p157
      %s160 = sadd.s32 %s159, 1
      %p163 = scmp.eq.s32.totalorder %s20, 1
      %p164 = scmp.ne.s32.totalorder %s159, %s161
      %p165 = scmp.eq.s32.totalorder %s20, 0
      %p166 = por %p164, %p165
      %p167 = scmp.ne.s32.totalorder %s159, %s161
      %p168 = scmp.eq.s32.totalorder %s25, 1
      %p169 = por %p167, %p168
      %p170 = scmp.ne.s32.totalorder %s161, %s162
      %p171 = scmp.eq.s32.totalorder %s25, 0
      %p172 = por %p170, %p171
      %p173 = scmp.ne.s32.totalorder %s161, %s162
      %p174 = scmp.eq.s32.totalorder %s26, 1
      %p175 = por %p173, %p174
      %p177 = scmp.ne.s32.totalorder %s162, %s176
      %p178 = scmp.eq.s32.totalorder %s26, 0
      %p179 = por %p177, %p178
      %s180 = ssub.s32 %s20, %s27
      %p181 = scmp.eq.s32.totalorder %s180, 0
      %s183 = sadd.s32 %s182, 1
      %s184 = scalar_select %p181, %s182, %s183
      %p187 = pneg %p181
      %p188 = scmp.eq.s32.totalorder %s20, 1
      %p189 = por %p187, %p188
      %p190 = scmp.ne.s32.totalorder %s182, %s185
      %p191 = scmp.eq.s32.totalorder %s20, 0
      %p192 = por %p190, %p191
      %p193 = scmp.ne.s32.totalorder %s182, %s185
      %p194 = scmp.eq.s32.totalorder %s25, 1
      %p195 = por %p193, %p194
      %p196 = scmp.ne.s32.totalorder %s185, %s186
      %p197 = scmp.eq.s32.totalorder %s25, 0
      %p198 = por %p196, %p197
      %p199 = scmp.ne.s32.totalorder %s185, %s186
      %p200 = scmp.eq.s32.totalorder %s26, 1
      %p201 = por %p199, %p200
      %p203 = scmp.ne.s32.totalorder %s186, %s202
      %p204 = scmp.eq.s32.totalorder %s26, 0
      %p205 = por %p203, %p204
      %p206 = scmp.le.s32.totalorder 1, %s20
      %p207 = scmp.lt.s32.totalorder %s20, 3
      %p208 = pnand %p206, %p207
      %p209 = pneg %p208
      // Predicated region
      $region9: #{tpu_custom_call.1} parent=5 // pred_check
        _
      $region10: #{tpu_custom_call.1} parent=5 // pred_check_branch
        %211 = sbr.rel (%p208) target = $region12
      $region11: #{tpu_custom_call.1} parent=5 // pred_region
        %s212 = ssub.s32 %s20, 1
        // Predicated region
        $region13: #{tpu_custom_call.1} parent=11 // pred_check
          %p213 = pneg %p67
        $region14: #{tpu_custom_call.1} parent=11 // pred_check_branch
          %215 = sbr.rel (%p213) target = $region16
        $region15: #{tpu_custom_call.1} parent=11 // pred_region
          %s217 = ssub.s32 4608, 4608
          %218 = vsyncadd [#allocation8], %s217
          %s219 = sshll.u32 [#allocation7], 4
          %s220 = int_to_ptr.vmem [resolvable:$true] %s219
          %225 = dma.hbm_to_vmem [thread:$0]  %s1, 4608, %s220, [#allocation8], 128, 128, 8
        $region16: #{tpu_custom_call.1} parent=11 // pred_fallthru
          _
        // Predicated region
        $region17: #{tpu_custom_call.1} parent=11 // pred_check
          %p226 = pneg %p88
        $region18: #{tpu_custom_call.1} parent=11 // pred_check_branch
          %228 = sbr.rel (%p226) target = $region20
        $region19: #{tpu_custom_call.1} parent=11 // pred_region
          _
        $region20: #{tpu_custom_call.1} parent=11 // pred_fallthru
          _
        // Predicated region
        $region21: #{tpu_custom_call.1} parent=11 // pred_check
          %p229 = pneg %p109
        $region22: #{tpu_custom_call.1} parent=11 // pred_check_branch
          %231 = sbr.rel (%p229) target = $region24
        $region23: #{tpu_custom_call.1} parent=11 // pred_region
          _
        $region24: #{tpu_custom_call.1} parent=11 // pred_fallthru
          _
        // Predicated region
        $region25: #{tpu_custom_call.1} parent=11 // pred_check
          %p232 = pneg %p130
        $region26: #{tpu_custom_call.1} parent=11 // pred_check_branch
          %234 = sbr.rel (%p232) target = $region28
        $region27: #{tpu_custom_call.1} parent=11 // pred_region
          %s236 = ssub.s32 4608, 4608
          %237 = vsyncadd [#allocation8], %s236
          %s238 = sshll.u32 [#allocation9], 4
          %s239 = int_to_ptr.vmem [resolvable:$true] %s238
          %244 = dma.hbm_to_vmem [thread:$0]  %s4, 4608, %s239, [#allocation8], 128, 128, 8
        $region28: #{tpu_custom_call.1} parent=11 // pred_fallthru
          _
        // Predicated region
        $region29: #{tpu_custom_call.1} parent=11 // pred_check
          %p245 = pneg %p151
        $region30: #{tpu_custom_call.1} parent=11 // pred_check_branch
          %247 = sbr.rel (%p245) target = $region32
        $region31: #{tpu_custom_call.1} parent=11 // pred_region
          _
        $region32: #{tpu_custom_call.1} parent=11 // pred_fallthru
          _
        // Predicated region
        $region33: #{tpu_custom_call.1} parent=11 // pred_check
          %p248 = pneg %p172
        $region34: #{tpu_custom_call.1} parent=11 // pred_check_branch
          %250 = sbr.rel (%p248) target = $region36
        $region35: #{tpu_custom_call.1} parent=11 // pred_region
          _
        $region36: #{tpu_custom_call.1} parent=11 // pred_fallthru
          _
      $region12: #{tpu_custom_call.1} parent=5 // pred_fallthru
        _
      %p251 = scmp.lt.s32.totalorder %s20, 2
      // Predicated region
      $region37: #{tpu_custom_call.1} parent=5 // pred_check
        %p252 = pneg %p251
      $region38: #{tpu_custom_call.1} parent=5 // pred_check_branch
        %254 = sbr.rel (%p252) target = $region40
      $region39: #{tpu_custom_call.1} parent=5 // pred_region
        // Predicated region
        $region41: #{tpu_custom_call.1} parent=39 // pred_check
          %p255 = pneg %p40
        $region42: #{tpu_custom_call.1} parent=39 // pred_check_branch
          %257 = sbr.rel (%p255) target = $region44
        $region43: #{tpu_custom_call.1} parent=39 // pred_region
          %s258 = sand.u32 %s30, 1
          %s259 = scalar_lea.sflag [#allocation5], %s258
          %s260 = sand.u32 %s30, 1
          %s261 = smul.addr %s260, 256
          %s262 = scalar_lea.vmem [#allocation4], %s261
          %s264 = ssub.s32 4096, 4096
          %265 = vsyncadd %s259, %s264
          %s266 = smul.addr %s20, 32
          %s267 = smul.addr %s266, 128
          %s268 = scalar_lea.hbm %s0, %s267
          %s269 = sshll.u32 %s262, 4
          %s270 = int_to_ptr.vmem [resolvable:$true] %s269
          %275 = dma.hbm_to_vmem [thread:$0]  %s268, 4096, %s270, %s259, 128, 128, 8
        $region44: #{tpu_custom_call.1} parent=39 // pred_fallthru
          _
      $region40: #{tpu_custom_call.1} parent=5 // pred_fallthru
        _
      %p276 = scmp.le.s32.totalorder 1, %s20
      %p277 = scmp.lt.s32.totalorder %s20, 3
      %p278 = pnand %p276, %p277
      %p279 = pneg %p278
      // Predicated region
      $region45: #{tpu_custom_call.1} parent=5 // pred_check
        _
      $region46: #{tpu_custom_call.1} parent=5 // pred_check_branch
        %281 = sbr.rel (%p278) target = $region48
      $region47: #{tpu_custom_call.1} parent=5 // pred_region
        %s282 = ssub.s32 %s20, 1
        %s283 = sand.u32 %s33, 1
        %s284 = scalar_lea.sflag [#allocation5], %s283
        %s285 = sand.u32 %s33, 1
        %s286 = smul.addr %s285, 256
        %s287 = scalar_lea.vmem [#allocation4], %s286
        // Predicated region
        $region49: #{tpu_custom_call.1} parent=47 // pred_check
          %p288 = pneg %p46
        $region50: #{tpu_custom_call.1} parent=47 // pred_check_branch
          %290 = sbr.rel (%p288) target = $region52
        $region51: #{tpu_custom_call.1} parent=47 // pred_region
          %291 = dma.done %s284, 4096
        $region52: #{tpu_custom_call.1} parent=47 // pred_fallthru
          _
        // Predicated region
        $region53: #{tpu_custom_call.1} parent=47 // pred_check
          %p292 = pneg %p67
        $region54: #{tpu_custom_call.1} parent=47 // pred_check_branch
          %294 = sbr.rel (%p292) target = $region56
        $region55: #{tpu_custom_call.1} parent=47 // pred_region
          %295 = dma.done [#allocation8], 4608
        $region56: #{tpu_custom_call.1} parent=47 // pred_fallthru
          _
        // Predicated region
        $region57: #{tpu_custom_call.1} parent=47 // pred_check
          %p296 = pneg %p130
        $region58: #{tpu_custom_call.1} parent=47 // pred_check_branch
          %298 = sbr.rel (%p296) target = $region60
        $region59: #{tpu_custom_call.1} parent=47 // pred_region
          %299 = dma.done [#allocation8], 4608
        $region60: #{tpu_custom_call.1} parent=47 // pred_fallthru
          _
        %s300 = sand.u32 %s33, 1
        %s301 = scalar_lea.sflag [#allocation5], %s300
        %s302 = sand.u32 %s33, 1
        %s303 = smul.addr %s302, 256
        %s304 = scalar_lea.vmem [#allocation4], %s303
        %p305 = pneg %p46
        %p306 = pneg %p43
        %p307 = pneg %p67
        %p308 = pneg %p64
        %p309 = pneg %p88
        %p310 = pneg %p85
        %p311 = pneg %p109
        %p312 = pneg %p106
        %p313 = pneg %p130
        %p314 = pneg %p127
        %p315 = pneg %p151
        %p316 = pneg %p148
        %p317 = pneg %p172
        %p318 = pneg %p169
        %p319 = pneg %p198
        %p320 = pneg %p195
        %s321 = sand.u32 %s185, 1
        %s322 = scalar_lea.sflag [#allocation6], %s321
        %s323 = sand.u32 %s185, 1
        %s324 = smul.addr %s323, 256
        %s325 = scalar_lea.vmem [#allocation10], %s324
        %vm326 = vcmask 261120
        %327 = vst.msk [vmem:[#allocation2] sm:$0xff] %vm326, 0.0
        %328 = vst.msk [vmem:[#allocation2 + $0x8] sm:$0xff] %vm326, 0.0
        %vm329 = vcmask 254976
        %330 = vst.msk [vmem:[#allocation2 + $0x10] sm:$0x3] %vm329, 0.0
        %331 = vst.msk [vmem:[#allocation2 + $0x18] sm:$0xff] %vm326, 0.0
        %332 = vst.msk [vmem:[#allocation2 + $0x20] sm:$0xff] %vm326, 0.0
        %333 = vst.msk [vmem:[#allocation2 + $0x28] sm:$0x3] %vm329, 0.0
        %334 = vst.msk [vmem:[#allocation2 + $0x30] sm:$0xff] %vm326, 0.0
        %335 = vst.msk [vmem:[#allocation2 + $0x38] sm:$0xff] %vm326, 0.0
        %336 = vst.msk [vmem:[#allocation2 + $0x40] sm:$0x3] %vm329, 0.0
        %337 = vst.msk [vmem:[#allocation2 + $0x48] sm:$0xff] %vm326, 0.0
        %338 = vst.msk [vmem:[#allocation2 + $0x50] sm:$0xff] %vm326, 0.0
        %339 = vst.msk [vmem:[#allocation2 + $0x58] sm:$0x3] %vm329, 0.0
        %340 = vst.msk [vmem:[#allocation2 + $0x60] sm:$0xff] %vm326, 0.0
        %341 = vst.msk [vmem:[#allocation2 + $0x68] sm:$0xff] %vm326, 0.0
        %342 = vst.msk [vmem:[#allocation2 + $0x70] sm:$0x3] %vm329, 0.0
        %343 = vst.msk [vmem:[#allocation2 + $0x78] sm:$0xff] %vm326, 0.0
        %344 = vst.msk [vmem:[#allocation2 + $0x80] sm:$0xff] %vm326, 0.0
        %345 = vst.msk [vmem:[#allocation2 + $0x88] sm:$0x3] %vm329, 0.0
        %346 = vst.msk [vmem:[#allocation2 + $0x90] sm:$0xff] %vm326, 0.0
        %347 = vst.msk [vmem:[#allocation2 + $0x98] sm:$0xff] %vm326, 0.0
        %348 = vst.msk [vmem:[#allocation2 + $0xa0] sm:$0x3] %vm329, 0.0
        %349 = vst.msk [vmem:[#allocation2 + $0xa8] sm:$0xff] %vm326, 0.0
        %350 = vst.msk [vmem:[#allocation2 + $0xb0] sm:$0xff] %vm326, 0.0
        %351 = vst.msk [vmem:[#allocation2 + $0xb8] sm:$0x3] %vm329, 0.0
        %352 = vst.msk [vmem:[#allocation2 + $0xc0] sm:$0xff] %vm326, 0.0
        %353 = vst.msk [vmem:[#allocation2 + $0xc8] sm:$0xff] %vm326, 0.0
        %354 = vst.msk [vmem:[#allocation2 + $0xd0] sm:$0x3] %vm329, 0.0
        %355 = vst.msk [vmem:[#allocation2 + $0xd8] sm:$0xff] %vm326, 0.0
        %356 = vst.msk [vmem:[#allocation2 + $0xe0] sm:$0xff] %vm326, 0.0
        %357 = vst.msk [vmem:[#allocation2 + $0xe8] sm:$0x3] %vm329, 0.0
        %358 = vst.msk [vmem:[#allocation2 + $0xf0] sm:$0xff] %vm326, 0.0
        %359 = vst.msk [vmem:[#allocation2 + $0xf8] sm:$0xff] %vm326, 0.0
        %360 = vst.msk [vmem:[#allocation2 + $0x100] sm:$0x3] %vm329, 0.0
        %361 = vst.msk [vmem:[#allocation2 + $0x108] sm:$0xff] %vm326, 0.0
        %362 = vst.msk [vmem:[#allocation2 + $0x110] sm:$0xff] %vm326, 0.0
        %363 = vst.msk [vmem:[#allocation2 + $0x118] sm:$0x3] %vm329, 0.0
        %364 = vst.msk [vmem:[#allocation2 + $0x120] sm:$0xff] %vm326, 0.0
        %365 = vst.msk [vmem:[#allocation2 + $0x128] sm:$0xff] %vm326, 0.0
        %366 = vst.msk [vmem:[#allocation2 + $0x130] sm:$0x3] %vm329, 0.0
        %367 = vst.msk [vmem:[#allocation2 + $0x138] sm:$0xff] %vm326, 0.0
        %368 = vst.msk [vmem:[#allocation2 + $0x140] sm:$0xff] %vm326, 0.0
        %369 = vst.msk [vmem:[#allocation2 + $0x148] sm:$0x3] %vm329, 0.0
        %370 = vst.msk [vmem:[#allocation2 + $0x150] sm:$0xff] %vm326, 0.0
        %371 = vst.msk [vmem:[#allocation2 + $0x158] sm:$0xff] %vm326, 0.0
        %372 = vst.msk [vmem:[#allocation2 + $0x160] sm:$0x3] %vm329, 0.0
        %373 = vst.msk [vmem:[#allocation2 + $0x168] sm:$0xff] %vm326, 0.0
        %374 = vst.msk [vmem:[#allocation2 + $0x170] sm:$0xff] %vm326, 0.0
        %375 = vst.msk [vmem:[#allocation2 + $0x178] sm:$0x3] %vm329, 0.0
        %376 = vst.msk [vmem:[#allocation2 + $0x180] sm:$0xff] %vm326, 0.0
        %377 = vst.msk [vmem:[#allocation2 + $0x188] sm:$0xff] %vm326, 0.0
        %378 = vst.msk [vmem:[#allocation2 + $0x190] sm:$0x3] %vm329, 0.0
        %379 = vst.msk [vmem:[#allocation2 + $0x198] sm:$0xff] %vm326, 0.0
        %380 = vst.msk [vmem:[#allocation2 + $0x1a0] sm:$0xff] %vm326, 0.0
        %381 = vst.msk [vmem:[#allocation2 + $0x1a8] sm:$0x3] %vm329, 0.0
        %v382 = vld [vmem:[%s287] sm:$0xff]
        %v383 = vld [vmem:[%s287 + $0x8] sm:$0xff]
        %v384 = vld [vmem:[%s287 + $0x10] sm:$0xff]
        %v385 = vld [vmem:[%s287 + $0x18] sm:$0xff]
        %v386 = vld [vmem:[%s287 + $0x20] sm:$0xff]
        %v387 = vld [vmem:[%s287 + $0x28] sm:$0xff]
        %v388 = vld [vmem:[%s287 + $0x30] sm:$0xff]
        %v389 = vld [vmem:[%s287 + $0x38] sm:$0xff]
        %v390 = vld [vmem:[%s287 + $0x40] sm:$0xff]
        %v391 = vld [vmem:[%s287 + $0x48] sm:$0xff]
        %v392 = vld [vmem:[%s287 + $0x50] sm:$0xff]
        %v393 = vld [vmem:[%s287 + $0x58] sm:$0xff]
        %v394 = vld [vmem:[%s287 + $0x60] sm:$0xff]
        %v395 = vld [vmem:[%s287 + $0x68] sm:$0xff]
        %v396 = vld [vmem:[%s287 + $0x70] sm:$0xff]
        %v397 = vld [vmem:[%s287 + $0x78] sm:$0xff]
        %v398 = vld [vmem:[%s287 + $0x80] sm:$0xff]
        %v399 = vld [vmem:[%s287 + $0x88] sm:$0xff]
        %v400 = vld [vmem:[%s287 + $0x90] sm:$0xff]
        %v401 = vld [vmem:[%s287 + $0x98] sm:$0xff]
        %v402 = vld [vmem:[%s287 + $0xa0] sm:$0xff]
        %v403 = vld [vmem:[%s287 + $0xa8] sm:$0xff]
        %v404 = vld [vmem:[%s287 + $0xb0] sm:$0xff]
        %v405 = vld [vmem:[%s287 + $0xb8] sm:$0xff]
        %v406 = vld [vmem:[%s287 + $0xc0] sm:$0xff]
        %v407 = vld [vmem:[%s287 + $0xc8] sm:$0xff]
        %v408 = vld [vmem:[%s287 + $0xd0] sm:$0xff]
        %v409 = vld [vmem:[%s287 + $0xd8] sm:$0xff]
        %v410 = vld [vmem:[%s287 + $0xe0] sm:$0xff]
        %v411 = vld [vmem:[%s287 + $0xe8] sm:$0xff]
        %v412 = vld [vmem:[%s287 + $0xf0] sm:$0xff]
        %v413 = vld [vmem:[%s287 + $0xf8] sm:$0xff]
        %s414 = scalar_lea.vmem [#allocation2], 24
        %415 = vst.msk [vmem:[%s414 + $0x1] sm:$0xff] %vm326, %v382
        %416 = vst.msk [vmem:[%s414 + $0x9] sm:$0xff] %vm326, %v383
        %417 = vst.msk [vmem:[%s414 + $0x19] sm:$0xff] %vm326, %v384
        %418 = vst.msk [vmem:[%s414 + $0x21] sm:$0xff] %vm326, %v385
        %419 = vst.msk [vmem:[%s414 + $0x31] sm:$0xff] %vm326, %v386
        %420 = vst.msk [vmem:[%s414 + $0x39] sm:$0xff] %vm326, %v387
        %421 = vst.msk [vmem:[%s414 + $0x49] sm:$0xff] %vm326, %v388
        %422 = vst.msk [vmem:[%s414 + $0x51] sm:$0xff] %vm326, %v389
        %423 = vst.msk [vmem:[%s414 + $0x61] sm:$0xff] %vm326, %v390
        %424 = vst.msk [vmem:[%s414 + $0x69] sm:$0xff] %vm326, %v391
        %425 = vst.msk [vmem:[%s414 + $0x79] sm:$0xff] %vm326, %v392
        %426 = vst.msk [vmem:[%s414 + $0x81] sm:$0xff] %vm326, %v393
        %427 = vst.msk [vmem:[%s414 + $0x91] sm:$0xff] %vm326, %v394
        %428 = vst.msk [vmem:[%s414 + $0x99] sm:$0xff] %vm326, %v395
        %429 = vst.msk [vmem:[%s414 + $0xa9] sm:$0xff] %vm326, %v396
        %430 = vst.msk [vmem:[%s414 + $0xb1] sm:$0xff] %vm326, %v397
        %431 = vst.msk [vmem:[%s414 + $0xc1] sm:$0xff] %vm326, %v398
        %432 = vst.msk [vmem:[%s414 + $0xc9] sm:$0xff] %vm326, %v399
        %433 = vst.msk [vmem:[%s414 + $0xd9] sm:$0xff] %vm326, %v400
        %434 = vst.msk [vmem:[%s414 + $0xe1] sm:$0xff] %vm326, %v401
        %435 = vst.msk [vmem:[%s414 + $0xf1] sm:$0xff] %vm326, %v402
        %436 = vst.msk [vmem:[%s414 + $0xf9] sm:$0xff] %vm326, %v403
        %437 = vst.msk [vmem:[%s414 + $0x109] sm:$0xff] %vm326, %v404
        %438 = vst.msk [vmem:[%s414 + $0x111] sm:$0xff] %vm326, %v405
        %439 = vst.msk [vmem:[%s414 + $0x121] sm:$0xff] %vm326, %v406
        %440 = vst.msk [vmem:[%s414 + $0x129] sm:$0xff] %vm326, %v407
        %441 = vst.msk [vmem:[%s414 + $0x139] sm:$0xff] %vm326, %v408
        %442 = vst.msk [vmem:[%s414 + $0x141] sm:$0xff] %vm326, %v409
        %443 = vst.msk [vmem:[%s414 + $0x151] sm:$0xff] %vm326, %v410
        %444 = vst.msk [vmem:[%s414 + $0x159] sm:$0xff] %vm326, %v411
        %445 = vst.msk [vmem:[%s414 + $0x169] sm:$0xff] %vm326, %v412
        %446 = vst.msk [vmem:[%s414 + $0x171] sm:$0xff] %vm326, %v413
        %v447 = vld [vmem:[#allocation2] sm:$0xff]
        %v448 = vld [vmem:[#allocation2 + $0x8] sm:$0xff]
        %v449 = vld [vmem:[#allocation2 + $0x18] sm:$0xff]
        %v450 = vld [vmem:[#allocation2 + $0x20] sm:$0xff]
        %v451 = vld [vmem:[#allocation2 + $0x30] sm:$0xff]
        %v452 = vld [vmem:[#allocation2 + $0x38] sm:$0xff]
        %v453 = vld [vmem:[#allocation2 + $0x48] sm:$0xff]
        %v454 = vld [vmem:[#allocation2 + $0x50] sm:$0xff]
        %v455 = vld [vmem:[#allocation2 + $0x60] sm:$0xff]
        %v456 = vld [vmem:[#allocation2 + $0x68] sm:$0xff]
        %v457 = vld [vmem:[#allocation2 + $0x78] sm:$0xff]
        %v458 = vld [vmem:[#allocation2 + $0x80] sm:$0xff]
        %v459 = vld [vmem:[#allocation2 + $0x90] sm:$0xff]
        %v460 = vld [vmem:[#allocation2 + $0x98] sm:$0xff]
        %v461 = vld [vmem:[#allocation2 + $0xa8] sm:$0xff]
        %v462 = vld [vmem:[#allocation2 + $0xb0] sm:$0xff]
        %v463 = vld [vmem:[#allocation2 + $0xc0] sm:$0xff]
        %v464 = vld [vmem:[#allocation2 + $0xc8] sm:$0xff]
        %v465 = vld [vmem:[#allocation2 + $0xd8] sm:$0xff]
        %v466 = vld [vmem:[#allocation2 + $0xe0] sm:$0xff]
        %v467 = vld [vmem:[#allocation2 + $0xf0] sm:$0xff]
        %v468 = vld [vmem:[#allocation2 + $0xf8] sm:$0xff]
        %v469 = vld [vmem:[#allocation2 + $0x108] sm:$0xff]
        %v470 = vld [vmem:[#allocation2 + $0x110] sm:$0xff]
        %v471 = vld [vmem:[#allocation2 + $0x120] sm:$0xff]
        %v472 = vld [vmem:[#allocation2 + $0x128] sm:$0xff]
        %v473 = vld [vmem:[#allocation2 + $0x138] sm:$0xff]
        %v474 = vld [vmem:[#allocation2 + $0x140] sm:$0xff]
        %v475 = vld [vmem:[#allocation2 + $0x150] sm:$0xff]
        %v476 = vld [vmem:[#allocation2 + $0x158] sm:$0xff]
        %v477 = vld [vmem:[#allocation2 + $0x168] sm:$0xff]
        %v478 = vld [vmem:[#allocation2 + $0x170] sm:$0xff]
        %v479 = vld [vmem:[#allocation7] sm:$0xff]
        %v480 = vld [vmem:[#allocation7 + $0x8] sm:$0xff]
        %v481 = vld [vmem:[#allocation7 + $0x10] sm:$0xff]
        %v482 = vld [vmem:[#allocation7 + $0x18] sm:$0xff]
        %v483 = vld [vmem:[#allocation2 + $0x1] sm:$0xff]
        %v484 = vld [vmem:[#allocation2 + $0x9] sm:$0xff]
        %v485 = vld [vmem:[#allocation2 + $0x19] sm:$0xff]
        %v486 = vld [vmem:[#allocation2 + $0x21] sm:$0xff]
        %v487 = vld [vmem:[#allocation2 + $0x31] sm:$0xff]
        %v488 = vld [vmem:[#allocation2 + $0x39] sm:$0xff]
        %v489 = vld [vmem:[#allocation2 + $0x49] sm:$0xff]
        %v490 = vld [vmem:[#allocation2 + $0x51] sm:$0xff]
        %v491 = vld [vmem:[#allocation2 + $0x61] sm:$0xff]
        %v492 = vld [vmem:[#allocation2 + $0x69] sm:$0xff]
        %v493 = vld [vmem:[#allocation2 + $0x79] sm:$0xff]
        %v494 = vld [vmem:[#allocation2 + $0x81] sm:$0xff]
        %v495 = vld [vmem:[#allocation2 + $0x91] sm:$0xff]
        %v496 = vld [vmem:[#allocation2 + $0x99] sm:$0xff]
        %v497 = vld [vmem:[#allocation2 + $0xa9] sm:$0xff]
        %v498 = vld [vmem:[#allocation2 + $0xb1] sm:$0xff]
        %v499 = vld [vmem:[#allocation2 + $0xc1] sm:$0xff]
        %v500 = vld [vmem:[#allocation2 + $0xc9] sm:$0xff]
        %v501 = vld [vmem:[#allocation2 + $0xd9] sm:$0xff]
        %v502 = vld [vmem:[#allocation2 + $0xe1] sm:$0xff]
        %v503 = vld [vmem:[#allocation2 + $0xf1] sm:$0xff]
        %v504 = vld [vmem:[#allocation2 + $0xf9] sm:$0xff]
        %v505 = vld [vmem:[#allocation2 + $0x109] sm:$0xff]
        %v506 = vld [vmem:[#allocation2 + $0x111] sm:$0xff]
        %v507 = vld [vmem:[#allocation2 + $0x121] sm:$0xff]
        %v508 = vld [vmem:[#allocation2 + $0x129] sm:$0xff]
        %v509 = vld [vmem:[#allocation2 + $0x139] sm:$0xff]
        %v510 = vld [vmem:[#allocation2 + $0x141] sm:$0xff]
        %v511 = vld [vmem:[#allocation2 + $0x151] sm:$0xff]
        %v512 = vld [vmem:[#allocation2 + $0x159] sm:$0xff]
        %v513 = vld [vmem:[#allocation2 + $0x169] sm:$0xff]
        %v514 = vld [vmem:[#allocation2 + $0x171] sm:$0xff]
        %s515 = scalar_lea.vmem [#allocation7], 32
        %v516 = vld [vmem:[%s515] sm:$0xff]
        %v517 = vld [vmem:[%s515 + $0x8] sm:$0xff]
        %v518 = vld [vmem:[%s515 + $0x10] sm:$0xff]
        %v519 = vld [vmem:[%s515 + $0x18] sm:$0xff]
        %v521 = vsel %vm326, %v483, 0
        %v524 = vsel %vm326, %v484, 0
        %v527 = vsel %vm326, %v485, 0
        %v530 = vsel %vm326, %v486, 0
        %v533 = vsel %vm326, %v487, 0
        %v536 = vsel %vm326, %v488, 0
        %v539 = vsel %vm326, %v489, 0
        %v542 = vsel %vm326, %v490, 0
        %v545 = vsel %vm326, %v491, 0
        %v548 = vsel %vm326, %v492, 0
        %v551 = vsel %vm326, %v493, 0
        %v554 = vsel %vm326, %v494, 0
        %v557 = vsel %vm326, %v495, 0
        %v560 = vsel %vm326, %v496, 0
        %v563 = vsel %vm326, %v497, 0
        %v566 = vsel %vm326, %v498, 0
        %v569 = vsel %vm326, %v499, 0
        %v572 = vsel %vm326, %v500, 0
        %v575 = vsel %vm326, %v501, 0
        %v578 = vsel %vm326, %v502, 0
        %v581 = vsel %vm326, %v503, 0
        %v584 = vsel %vm326, %v504, 0
        %v587 = vsel %vm326, %v505, 0
        %v590 = vsel %vm326, %v506, 0
        %v593 = vsel %vm326, %v507, 0
        %v596 = vsel %vm326, %v508, 0
        %v599 = vsel %vm326, %v509, 0
        %v602 = vsel %vm326, %v510, 0
        %v605 = vsel %vm326, %v511, 0
        %v608 = vsel %vm326, %v512, 0
        %v611 = vsel %vm326, %v513, 0
        %v614 = vsel %vm326, %v514, 0
        %616 = vmatprep.subr.mxu0 0.0
        %617 = vmatpush1.msra.mxu0 %v516
        %618 = vmatprep.subr.mxu0 0.0
        %619 = vmatpush1.msra.mxu0 %v517
        %620 = vmatprep.subr.mxu0 0.0
        %621 = vmatpush1.msra.mxu0 %v518
        %622 = vmatprep.subr.mxu0 0.0
        %623 = vmatpush1.msra.mxu0 %v519
        %624 = vmatprep.subr.mxu0 0.0
        %625 = vmatpush1.msra.mxu0 0.0
        %626 = vmatprep.subr.mxu0 0.0
        %627 = vmatpush1.msra.mxu0 0.0
        %628 = vmatprep.subr.mxu0 0.0
        %629 = vmatpush1.msra.mxu0 0.0
        %630 = vmatprep.subr.mxu0 0.0
        %631 = vmatpush1.msra.mxu0 0.0
        %632 = vmatprep.subr.mxu0 0.0
        %633 = vmatpush1.msra.mxu0 0.0
        %634 = vmatprep.subr.mxu0 0.0
        %635 = vmatpush1.msra.mxu0 0.0
        %636 = vmatprep.subr.mxu0 0.0
        %637 = vmatpush1.msra.mxu0 0.0
        %638 = vmatprep.subr.mxu0 0.0
        %639 = vmatpush1.msra.mxu0 0.0
        %640 = vmatprep.subr.mxu0 0.0
        %641 = vmatpush1.msra.mxu0 0.0
        %642 = vmatprep.subr.mxu0 0.0
        %643 = vmatpush1.msra.mxu0 0.0
        %644 = vmatprep.subr.mxu0 0.0
        %645 = vmatpush1.msra.mxu0 0.0
        %646 = vmatprep.subr.mxu0 0.0
        %647 = vmatpush1.msra.mxu0 0.0
        %648 = vmatprep.subr.mxu0 0.0
        %649 = vmatpush1.msra.mxu0 0.0
        %650 = vmatprep.subr.mxu0 0.0
        %651 = vmatpush1.msra.mxu0 0.0
        %652 = vmatprep.subr.mxu0 0.0
        %653 = vmatpush1.msra.mxu0 0.0
        %654 = vmatprep.subr.mxu0 0.0
        %655 = vmatpush1.msra.mxu0 0.0
        %656 = vmatprep.subr.mxu0 0.0
        %657 = vmatpush1.msra.mxu0 0.0
        %658 = vmatprep.subr.mxu0 0.0
        %659 = vmatpush1.msra.mxu0 0.0
        %660 = vmatprep.subr.mxu0 0.0
        %661 = vmatpush1.msra.mxu0 0.0
        %662 = vmatprep.subr.mxu0 0.0
        %663 = vmatpush1.msra.mxu0 0.0
        %664 = vmatprep.subr.mxu0 0.0
        %665 = vmatpush1.msra.mxu0 0.0
        %666 = vmatprep.subr.mxu0 0.0
        %667 = vmatpush1.msra.mxu0 0.0
        %668 = vmatprep.subr.mxu0 0.0
        %669 = vmatpush1.msra.mxu0 0.0
        %670 = vmatprep.subr.mxu0 0.0
        %671 = vmatpush1.msra.mxu0 0.0
        %672 = vmatprep.subr.mxu0 0.0
        %673 = vmatpush1.msra.mxu0 0.0
        %674 = vmatprep.subr.mxu0 0.0
        %675 = vmatpush1.msra.mxu0 0.0
        %676 = vmatprep.subr.mxu0 0.0
        %677 = vmatpush1.msra.mxu0 0.0
        %678 = vmatprep.subr.mxu0 0.0
        %679 = vmatpush1.msra.mxu0 0.0
        %680 = vmatprep.mubr.f32.mxu0 0.0
        %681 = vmatmul.mubr.f32.gmra.mrb[0].mxu0 %v521
        %v682 = vpop.f32.mrb[0].mxu0
        %v683 = vadd.f32 0.0, %v682
        %v684 = vpop.f32.mrb[0].mxu0
        %685 = vmatprep.mubr.f32.mxu0 0.0
        %686 = vmatmul.mubr.f32.gmra.mrb[0].mxu0 %v524
        %v687 = vpop.f32.mrb[0].mxu0
        %v688 = vadd.f32 0.0, %v687
        %v689 = vpop.f32.mrb[0].mxu0
        %690 = vmatprep.mubr.f32.mxu0 0.0
        %691 = vmatmul.mubr.f32.gmra.mrb[0].mxu0 %v527
        %v692 = vpop.f32.mrb[0].mxu0
        %v693 = vadd.f32 0.0, %v692
        %v694 = vpop.f32.mrb[0].mxu0
        %695 = vmatprep.mubr.f32.mxu0 0.0
        %696 = vmatmul.mubr.f32.gmra.mrb[0].mxu0 %v530
        %v697 = vpop.f32.mrb[0].mxu0
        %v698 = vadd.f32 0.0, %v697
        %v699 = vpop.f32.mrb[0].mxu0
        %700 = vmatprep.mubr.f32.mxu0 0.0
        %701 = vmatmul.mubr.f32.gmra.mrb[0].mxu0 %v533
        %v702 = vpop.f32.mrb[0].mxu0
        %v703 = vadd.f32 0.0, %v702
        %v704 = vpop.f32.mrb[0].mxu0
        %705 = vmatprep.mubr.f32.mxu0 0.0
        %706 = vmatmul.mubr.f32.gmra.mrb[0].mxu0 %v536
        %v707 = vpop.f32.mrb[0].mxu0
        %v708 = vadd.f32 0.0, %v707
        %v709 = vpop.f32.mrb[0].mxu0
        %710 = vmatprep.mubr.f32.mxu0 0.0
        %711 = vmatmul.mubr.f32.gmra.mrb[0].mxu0 %v539
        %v712 = vpop.f32.mrb[0].mxu0
        %v713 = vadd.f32 0.0, %v712
        %v714 = vpop.f32.mrb[0].mxu0
        %715 = vmatprep.mubr.f32.mxu0 0.0
        %716 = vmatmul.mubr.f32.gmra.mrb[0].mxu0 %v542
        %v717 = vpop.f32.mrb[0].mxu0
        %v718 = vadd.f32 0.0, %v717
        %v719 = vpop.f32.mrb[0].mxu0
        %720 = vmatprep.mubr.f32.mxu0 0.0
        %721 = vmatmul.mubr.f32.gmra.mrb[0].mxu0 %v545
        %v722 = vpop.f32.mrb[0].mxu0
        %v723 = vadd.f32 0.0, %v722
        %v724 = vpop.f32.mrb[0].mxu0
        %725 = vmatprep.mubr.f32.mxu0 0.0
        %726 = vmatmul.mubr.f32.gmra.mrb[0].mxu0 %v548
        %v727 = vpop.f32.mrb[0].mxu0
        %v728 = vadd.f32 0.0, %v727
        %v729 = vpop.f32.mrb[0].mxu0
        %730 = vmatprep.mubr.f32.mxu0 0.0
        %731 = vmatmul.mubr.f32.gmra.mrb[0].mxu0 %v551
        %v732 = vpop.f32.mrb[0].mxu0
        %v733 = vadd.f32 0.0, %v732
        %v734 = vpop.f32.mrb[0].mxu0
        %735 = vmatprep.mubr.f32.mxu0 0.0
        %736 = vmatmul.mubr.f32.gmra.mrb[0].mxu0 %v554
        %v737 = vpop.f32.mrb[0].mxu0
        %v738 = vadd.f32 0.0, %v737
        %v739 = vpop.f32.mrb[0].mxu0
        %740 = vmatprep.mubr.f32.mxu0 0.0
        %741 = vmatmul.mubr.f32.gmra.mrb[0].mxu0 %v557
        %v742 = vpop.f32.mrb[0].mxu0
        %v743 = vadd.f32 0.0, %v742
        %v744 = vpop.f32.mrb[0].mxu0
        %745 = vmatprep.mubr.f32.mxu0 0.0
        %746 = vmatmul.mubr.f32.gmra.mrb[0].mxu0 %v560
        %v747 = vpop.f32.mrb[0].mxu0
        %v748 = vadd.f32 0.0, %v747
        %v749 = vpop.f32.mrb[0].mxu0
        %750 = vmatprep.mubr.f32.mxu0 0.0
        %751 = vmatmul.mubr.f32.gmra.mrb[0].mxu0 %v563
        %v752 = vpop.f32.mrb[0].mxu0
        %v753 = vadd.f32 0.0, %v752
        %v754 = vpop.f32.mrb[0].mxu0
        %755 = vmatprep.mubr.f32.mxu0 0.0
        %756 = vmatmul.mubr.f32.gmra.mrb[0].mxu0 %v566
        %v757 = vpop.f32.mrb[0].mxu0
        %v758 = vadd.f32 0.0, %v757
        %v759 = vpop.f32.mrb[0].mxu0
        %760 = vmatprep.mubr.f32.mxu0 0.0
        %761 = vmatmul.mubr.f32.gmra.mrb[0].mxu0 %v569
        %v762 = vpop.f32.mrb[0].mxu0
        %v763 = vadd.f32 0.0, %v762
        %v764 = vpop.f32.mrb[0].mxu0
        %765 = vmatprep.mubr.f32.mxu0 0.0
        %766 = vmatmul.mubr.f32.gmra.mrb[0].mxu0 %v572
        %v767 = vpop.f32.mrb[0].mxu0
        %v768 = vadd.f32 0.0, %v767
        %v769 = vpop.f32.mrb[0].mxu0
        %770 = vmatprep.mubr.f32.mxu0 0.0
        %771 = vmatmul.mubr.f32.gmra.mrb[0].mxu0 %v575
        %v772 = vpop.f32.mrb[0].mxu0
        %v773 = vadd.f32 0.0, %v772
        %v774 = vpop.f32.mrb[0].mxu0
        %775 = vmatprep.mubr.f32.mxu0 0.0
        %776 = vmatmul.mubr.f32.gmra.mrb[0].mxu0 %v578
        %v777 = vpop.f32.mrb[0].mxu0
        %v778 = vadd.f32 0.0, %v777
        %v779 = vpop.f32.mrb[0].mxu0
        %780 = vmatprep.mubr.f32.mxu0 0.0
        %781 = vmatmul.mubr.f32.gmra.mrb[0].mxu0 %v581
        %v782 = vpop.f32.mrb[0].mxu0
        %v783 = vadd.f32 0.0, %v782
        %v784 = vpop.f32.mrb[0].mxu0
        %785 = vmatprep.mubr.f32.mxu0 0.0
        %786 = vmatmul.mubr.f32.gmra.mrb[0].mxu0 %v584
        %v787 = vpop.f32.mrb[0].mxu0
        %v788 = vadd.f32 0.0, %v787
        %v789 = vpop.f32.mrb[0].mxu0
        %790 = vmatprep.mubr.f32.mxu0 0.0
        %791 = vmatmul.mubr.f32.gmra.mrb[0].mxu0 %v587
        %v792 = vpop.f32.mrb[0].mxu0
        %v793 = vadd.f32 0.0, %v792
        %v794 = vpop.f32.mrb[0].mxu0
        %795 = vmatprep.mubr.f32.mxu0 0.0
        %796 = vmatmul.mubr.f32.gmra.mrb[0].mxu0 %v590
        %v797 = vpop.f32.mrb[0].mxu0
        %v798 = vadd.f32 0.0, %v797
        %v799 = vpop.f32.mrb[0].mxu0
        %800 = vmatprep.mubr.f32.mxu0 0.0
        %801 = vmatmul.mubr.f32.gmra.mrb[0].mxu0 %v593
        %v802 = vpop.f32.mrb[0].mxu0
        %v803 = vadd.f32 0.0, %v802
        %v804 = vpop.f32.mrb[0].mxu0
        %805 = vmatprep.mubr.f32.mxu0 0.0
        %806 = vmatmul.mubr.f32.gmra.mrb[0].mxu0 %v596
        %v807 = vpop.f32.mrb[0].mxu0
        %v808 = vadd.f32 0.0, %v807
        %v809 = vpop.f32.mrb[0].mxu0
        %810 = vmatprep.mubr.f32.mxu0 0.0
        %811 = vmatmul.mubr.f32.gmra.mrb[0].mxu0 %v599
        %v812 = vpop.f32.mrb[0].mxu0
        %v813 = vadd.f32 0.0, %v812
        %v814 = vpop.f32.mrb[0].mxu0
        %815 = vmatprep.mubr.f32.mxu0 0.0
        %816 = vmatmul.mubr.f32.gmra.mrb[0].mxu0 %v602
        %v817 = vpop.f32.mrb[0].mxu0
        %v818 = vadd.f32 0.0, %v817
        %v819 = vpop.f32.mrb[0].mxu0
        %820 = vmatprep.mubr.f32.mxu0 0.0
        %821 = vmatmul.mubr.f32.gmra.mrb[0].mxu0 %v605
        %v822 = vpop.f32.mrb[0].mxu0
        %v823 = vadd.f32 0.0, %v822
        %v824 = vpop.f32.mrb[0].mxu0
        %825 = vmatprep.mubr.f32.mxu0 0.0
        %826 = vmatmul.mubr.f32.gmra.mrb[0].mxu0 %v608
        %v827 = vpop.f32.mrb[0].mxu0
        %v828 = vadd.f32 0.0, %v827
        %v829 = vpop.f32.mrb[0].mxu0
        %830 = vmatprep.mubr.f32.mxu0 0.0
        %831 = vmatmul.mubr.f32.gmra.mrb[0].mxu0 %v611
        %v832 = vpop.f32.mrb[0].mxu0
        %v833 = vadd.f32 0.0, %v832
        %v834 = vpop.f32.mrb[0].mxu0
        %835 = vmatprep.mubr.f32.mxu0 0.0
        %836 = vmatmul.mubr.f32.gmra.mrb[0].mxu0 %v614
        %v837 = vpop.f32.mrb[0].mxu0
        %v838 = vadd.f32 0.0, %v837
        %v839 = vpop.f32.mrb[0].mxu0
        %840 = vdwg.mxu0
        %v842 = vsel %vm326, %v447, 0
        %v845 = vsel %vm326, %v448, 0
        %v848 = vsel %vm326, %v449, 0
        %v851 = vsel %vm326, %v450, 0
        %v854 = vsel %vm326, %v451, 0
        %v857 = vsel %vm326, %v452, 0
        %v860 = vsel %vm326, %v453, 0
        %v863 = vsel %vm326, %v454, 0
        %v866 = vsel %vm326, %v455, 0
        %v869 = vsel %vm326, %v456, 0
        %v872 = vsel %vm326, %v457, 0
        %v875 = vsel %vm326, %v458, 0
        %v878 = vsel %vm326, %v459, 0
        %v881 = vsel %vm326, %v460, 0
        %v884 = vsel %vm326, %v461, 0
        %v887 = vsel %vm326, %v462, 0
        %v890 = vsel %vm326, %v463, 0
        %v893 = vsel %vm326, %v464, 0
        %v896 = vsel %vm326, %v465, 0
        %v899 = vsel %vm326, %v466, 0
        %v902 = vsel %vm326, %v467, 0
        %v905 = vsel %vm326, %v468, 0
        %v908 = vsel %vm326, %v469, 0
        %v911 = vsel %vm326, %v470, 0
        %v914 = vsel %vm326, %v471, 0
        %v917 = vsel %vm326, %v472, 0
        %v920 = vsel %vm326, %v473, 0
        %v923 = vsel %vm326, %v474, 0
        %v926 = vsel %vm326, %v475, 0
        %v929 = vsel %vm326, %v476, 0
        %v932 = vsel %vm326, %v477, 0
        %v935 = vsel %vm326, %v478, 0
        %937 = vmatprep.subr.mxu0 0.0
        %938 = vmatpush1.msra.mxu0 %v479
        %939 = vmatprep.subr.mxu0 0.0
        %940 = vmatpush1.msra.mxu0 %v480
        %941 = vmatprep.subr.mxu0 0.0
        %942 = vmatpush1.msra.mxu0 %v481
        %943 = vmatprep.subr.mxu0 0.0
        %944 = vmatpush1.msra.mxu0 %v482
        %945 = vmatprep.subr.mxu0 0.0
        %946 = vmatpush1.msra.mxu0 0.0
        %947 = vmatprep.subr.mxu0 0.0
        %948 = vmatpush1.msra.mxu0 0.0
        %949 = vmatprep.subr.mxu0 0.0
        %950 = vmatpush1.msra.mxu0 0.0
        %951 = vmatprep.subr.mxu0 0.0
        %952 = vmatpush1.msra.mxu0 0.0
        %953 = vmatprep.subr.mxu0 0.0
        %954 = vmatpush1.msra.mxu0 0.0
        %955 = vmatprep.subr.mxu0 0.0
        %956 = vmatpush1.msra.mxu0 0.0
        %957 = vmatprep.subr.mxu0 0.0
        %958 = vmatpush1.msra.mxu0 0.0
        %959 = vmatprep.subr.mxu0 0.0
        %960 = vmatpush1.msra.mxu0 0.0
        %961 = vmatprep.subr.mxu0 0.0
        %962 = vmatpush1.msra.mxu0 0.0
        %963 = vmatprep.subr.mxu0 0.0
        %964 = vmatpush1.msra.mxu0 0.0
        %965 = vmatprep.subr.mxu0 0.0
        %966 = vmatpush1.msra.mxu0 0.0
        %967 = vmatprep.subr.mxu0 0.0
        %968 = vmatpush1.msra.mxu0 0.0
        %969 = vmatprep.subr.mxu0 0.0
        %970 = vmatpush1.msra.mxu0 0.0
        %971 = vmatprep.subr.mxu0 0.0
        %972 = vmatpush1.msra.mxu0 0.0
        %973 = vmatprep.subr.mxu0 0.0
        %974 = vmatpush1.msra.mxu0 0.0
        %975 = vmatprep.subr.mxu0 0.0
        %976 = vmatpush1.msra.mxu0 0.0
        %977 = vmatprep.subr.mxu0 0.0
        %978 = vmatpush1.msra.mxu0 0.0
        %979 = vmatprep.subr.mxu0 0.0
        %980 = vmatpush1.msra.mxu0 0.0
        %981 = vmatprep.subr.mxu0 0.0
        %982 = vmatpush1.msra.mxu0 0.0
        %983 = vmatprep.subr.mxu0 0.0
        %984 = vmatpush1.msra.mxu0 0.0
        %985 = vmatprep.subr.mxu0 0.0
        %986 = vmatpush1.msra.mxu0 0.0
        %987 = vmatprep.subr.mxu0 0.0
        %988 = vmatpush1.msra.mxu0 0.0
        %989 = vmatprep.subr.mxu0 0.0
        %990 = vmatpush1.msra.mxu0 0.0
        %991 = vmatprep.subr.mxu0 0.0
        %992 = vmatpush1.msra.mxu0 0.0
        %993 = vmatprep.subr.mxu0 0.0
        %994 = vmatpush1.msra.mxu0 0.0
        %995 = vmatprep.subr.mxu0 0.0
        %996 = vmatpush1.msra.mxu0 0.0
        %997 = vmatprep.subr.mxu0 0.0
        %998 = vmatpush1.msra.mxu0 0.0
        %999 = vmatprep.subr.mxu0 0.0
        %1000 = vmatpush1.msra.mxu0 0.0
        %1001 = vmatprep.mubr.f32.mxu0 0.0
        %1002 = vmatmul.mubr.f32.gmra.mrb[0].mxu0 %v842
        %v1003 = vpop.f32.mrb[0].mxu0
        %v1004 = vadd.f32 %v683, %v1003
        %v1005 = vpop.f32.mrb[0].mxu0
        %1006 = vmatprep.mubr.f32.mxu0 0.0
        %1007 = vmatmul.mubr.f32.gmra.mrb[0].mxu0 %v845
        %v1008 = vpop.f32.mrb[0].mxu0
        %v1009 = vadd.f32 %v688, %v1008
        %v1010 = vpop.f32.mrb[0].mxu0
        %1011 = vmatprep.mubr.f32.mxu0 0.0
        %1012 = vmatmul.mubr.f32.gmra.mrb[0].mxu0 %v848
        %v1013 = vpop.f32.mrb[0].mxu0
        %v1014 = vadd.f32 %v693, %v1013
        %v1015 = vpop.f32.mrb[0].mxu0
        %1016 = vmatprep.mubr.f32.mxu0 0.0
        %1017 = vmatmul.mubr.f32.gmra.mrb[0].mxu0 %v851
        %v1018 = vpop.f32.mrb[0].mxu0
        %v1019 = vadd.f32 %v698, %v1018
        %v1020 = vpop.f32.mrb[0].mxu0
        %1021 = vmatprep.mubr.f32.mxu0 0.0
        %1022 = vmatmul.mubr.f32.gmra.mrb[0].mxu0 %v854
        %v1023 = vpop.f32.mrb[0].mxu0
        %v1024 = vadd.f32 %v703, %v1023
        %v1025 = vpop.f32.mrb[0].mxu0
        %1026 = vmatprep.mubr.f32.mxu0 0.0
        %1027 = vmatmul.mubr.f32.gmra.mrb[0].mxu0 %v857
        %v1028 = vpop.f32.mrb[0].mxu0
        %v1029 = vadd.f32 %v708, %v1028
        %v1030 = vpop.f32.mrb[0].mxu0
        %1031 = vmatprep.mubr.f32.mxu0 0.0
        %1032 = vmatmul.mubr.f32.gmra.mrb[0].mxu0 %v860
        %v1033 = vpop.f32.mrb[0].mxu0
        %v1034 = vadd.f32 %v713, %v1033
        %v1035 = vpop.f32.mrb[0].mxu0
        %1036 = vmatprep.mubr.f32.mxu0 0.0
        %1037 = vmatmul.mubr.f32.gmra.mrb[0].mxu0 %v863
        %v1038 = vpop.f32.mrb[0].mxu0
        %v1039 = vadd.f32 %v718, %v1038
        %v1040 = vpop.f32.mrb[0].mxu0
        %1041 = vmatprep.mubr.f32.mxu0 0.0
        %1042 = vmatmul.mubr.f32.gmra.mrb[0].mxu0 %v866
        %v1043 = vpop.f32.mrb[0].mxu0
        %v1044 = vadd.f32 %v723, %v1043
        %v1045 = vpop.f32.mrb[0].mxu0
        %1046 = vmatprep.mubr.f32.mxu0 0.0
        %1047 = vmatmul.mubr.f32.gmra.mrb[0].mxu0 %v869
        %v1048 = vpop.f32.mrb[0].mxu0
        %v1049 = vadd.f32 %v728, %v1048
        %v1050 = vpop.f32.mrb[0].mxu0
        %1051 = vmatprep.mubr.f32.mxu0 0.0
        %1052 = vmatmul.mubr.f32.gmra.mrb[0].mxu0 %v872
        %v1053 = vpop.f32.mrb[0].mxu0
        %v1054 = vadd.f32 %v733, %v1053
        %v1055 = vpop.f32.mrb[0].mxu0
        %1056 = vmatprep.mubr.f32.mxu0 0.0
        %1057 = vmatmul.mubr.f32.gmra.mrb[0].mxu0 %v875
        %v1058 = vpop.f32.mrb[0].mxu0
        %v1059 = vadd.f32 %v738, %v1058
        %v1060 = vpop.f32.mrb[0].mxu0
        %1061 = vmatprep.mubr.f32.mxu0 0.0
        %1062 = vmatmul.mubr.f32.gmra.mrb[0].mxu0 %v878
        %v1063 = vpop.f32.mrb[0].mxu0
        %v1064 = vadd.f32 %v743, %v1063
        %v1065 = vpop.f32.mrb[0].mxu0
        %1066 = vmatprep.mubr.f32.mxu0 0.0
        %1067 = vmatmul.mubr.f32.gmra.mrb[0].mxu0 %v881
        %v1068 = vpop.f32.mrb[0].mxu0
        %v1069 = vadd.f32 %v748, %v1068
        %v1070 = vpop.f32.mrb[0].mxu0
        %1071 = vmatprep.mubr.f32.mxu0 0.0
        %1072 = vmatmul.mubr.f32.gmra.mrb[0].mxu0 %v884
        %v1073 = vpop.f32.mrb[0].mxu0
        %v1074 = vadd.f32 %v753, %v1073
        %v1075 = vpop.f32.mrb[0].mxu0
        %1076 = vmatprep.mubr.f32.mxu0 0.0
        %1077 = vmatmul.mubr.f32.gmra.mrb[0].mxu0 %v887
        %v1078 = vpop.f32.mrb[0].mxu0
        %v1079 = vadd.f32 %v758, %v1078
        %v1080 = vpop.f32.mrb[0].mxu0
        %1081 = vmatprep.mubr.f32.mxu0 0.0
        %1082 = vmatmul.mubr.f32.gmra.mrb[0].mxu0 %v890
        %v1083 = vpop.f32.mrb[0].mxu0
        %v1084 = vadd.f32 %v763, %v1083
        %v1085 = vpop.f32.mrb[0].mxu0
        %1086 = vmatprep.mubr.f32.mxu0 0.0
        %1087 = vmatmul.mubr.f32.gmra.mrb[0].mxu0 %v893
        %v1088 = vpop.f32.mrb[0].mxu0
        %v1089 = vadd.f32 %v768, %v1088
        %v1090 = vpop.f32.mrb[0].mxu0
        %1091 = vmatprep.mubr.f32.mxu0 0.0
        %1092 = vmatmul.mubr.f32.gmra.mrb[0].mxu0 %v896
        %v1093 = vpop.f32.mrb[0].mxu0
        %v1094 = vadd.f32 %v773, %v1093
        %v1095 = vpop.f32.mrb[0].mxu0
        %1096 = vmatprep.mubr.f32.mxu0 0.0
        %1097 = vmatmul.mubr.f32.gmra.mrb[0].mxu0 %v899
        %v1098 = vpop.f32.mrb[0].mxu0
        %v1099 = vadd.f32 %v778, %v1098
        %v1100 = vpop.f32.mrb[0].mxu0
        %1101 = vmatprep.mubr.f32.mxu0 0.0
        %1102 = vmatmul.mubr.f32.gmra.mrb[0].mxu0 %v902
        %v1103 = vpop.f32.mrb[0].mxu0
        %v1104 = vadd.f32 %v783, %v1103
        %v1105 = vpop.f32.mrb[0].mxu0
        %1106 = vmatprep.mubr.f32.mxu0 0.0
        %1107 = vmatmul.mubr.f32.gmra.mrb[0].mxu0 %v905
        %v1108 = vpop.f32.mrb[0].mxu0
        %v1109 = vadd.f32 %v788, %v1108
        %v1110 = vpop.f32.mrb[0].mxu0
        %1111 = vmatprep.mubr.f32.mxu0 0.0
        %1112 = vmatmul.mubr.f32.gmra.mrb[0].mxu0 %v908
        %v1113 = vpop.f32.mrb[0].mxu0
        %v1114 = vadd.f32 %v793, %v1113
        %v1115 = vpop.f32.mrb[0].mxu0
        %1116 = vmatprep.mubr.f32.mxu0 0.0
        %1117 = vmatmul.mubr.f32.gmra.mrb[0].mxu0 %v911
        %v1118 = vpop.f32.mrb[0].mxu0
        %v1119 = vadd.f32 %v798, %v1118
        %v1120 = vpop.f32.mrb[0].mxu0
        %1121 = vmatprep.mubr.f32.mxu0 0.0
        %1122 = vmatmul.mubr.f32.gmra.mrb[0].mxu0 %v914
        %v1123 = vpop.f32.mrb[0].mxu0
        %v1124 = vadd.f32 %v803, %v1123
        %v1125 = vpop.f32.mrb[0].mxu0
        %1126 = vmatprep.mubr.f32.mxu0 0.0
        %1127 = vmatmul.mubr.f32.gmra.mrb[0].mxu0 %v917
        %v1128 = vpop.f32.mrb[0].mxu0
        %v1129 = vadd.f32 %v808, %v1128
        %v1130 = vpop.f32.mrb[0].mxu0
        %1131 = vmatprep.mubr.f32.mxu0 0.0
        %1132 = vmatmul.mubr.f32.gmra.mrb[0].mxu0 %v920
        %v1133 = vpop.f32.mrb[0].mxu0
        %v1134 = vadd.f32 %v813, %v1133
        %v1135 = vpop.f32.mrb[0].mxu0
        %1136 = vmatprep.mubr.f32.mxu0 0.0
        %1137 = vmatmul.mubr.f32.gmra.mrb[0].mxu0 %v923
        %v1138 = vpop.f32.mrb[0].mxu0
        %v1139 = vadd.f32 %v818, %v1138
        %v1140 = vpop.f32.mrb[0].mxu0
        %1141 = vmatprep.mubr.f32.mxu0 0.0
        %1142 = vmatmul.mubr.f32.gmra.mrb[0].mxu0 %v926
        %v1143 = vpop.f32.mrb[0].mxu0
        %v1144 = vadd.f32 %v823, %v1143
        %v1145 = vpop.f32.mrb[0].mxu0
        %1146 = vmatprep.mubr.f32.mxu0 0.0
        %1147 = vmatmul.mubr.f32.gmra.mrb[0].mxu0 %v929
        %v1148 = vpop.f32.mrb[0].mxu0
        %v1149 = vadd.f32 %v828, %v1148
        %v1150 = vpop.f32.mrb[0].mxu0
        %1151 = vmatprep.mubr.f32.mxu0 0.0
        %1152 = vmatmul.mubr.f32.gmra.mrb[0].mxu0 %v932
        %v1153 = vpop.f32.mrb[0].mxu0
        %v1154 = vadd.f32 %v833, %v1153
        %v1155 = vpop.f32.mrb[0].mxu0
        %1156 = vmatprep.mubr.f32.mxu0 0.0
        %1157 = vmatmul.mubr.f32.gmra.mrb[0].mxu0 %v935
        %v1158 = vpop.f32.mrb[0].mxu0
        %v1159 = vadd.f32 %v838, %v1158
        %v1160 = vpop.f32.mrb[0].mxu0
        %1161 = vdwg.mxu0
        %v1162 = vld [vmem:[#allocation2 + $0x2] sm:$0xff]
        %v1163 = vld [vmem:[#allocation2 + $0xa] sm:$0xff]
        %v1164 = vld [vmem:[#allocation2 + $0x1a] sm:$0xff]
        %v1165 = vld [vmem:[#allocation2 + $0x22] sm:$0xff]
        %v1166 = vld [vmem:[#allocation2 + $0x32] sm:$0xff]
        %v1167 = vld [vmem:[#allocation2 + $0x3a] sm:$0xff]
        %v1168 = vld [vmem:[#allocation2 + $0x4a] sm:$0xff]
        %v1169 = vld [vmem:[#allocation2 + $0x52] sm:$0xff]
        %v1170 = vld [vmem:[#allocation2 + $0x62] sm:$0xff]
        %v1171 = vld [vmem:[#allocation2 + $0x6a] sm:$0xff]
        %v1172 = vld [vmem:[#allocation2 + $0x7a] sm:$0xff]
        %v1173 = vld [vmem:[#allocation2 + $0x82] sm:$0xff]
        %v1174 = vld [vmem:[#allocation2 + $0x92] sm:$0xff]
        %v1175 = vld [vmem:[#allocation2 + $0x9a] sm:$0xff]
        %v1176 = vld [vmem:[#allocation2 + $0xaa] sm:$0xff]
        %v1177 = vld [vmem:[#allocation2 + $0xb2] sm:$0xff]
        %v1178 = vld [vmem:[#allocation2 + $0xc2] sm:$0xff]
        %v1179 = vld [vmem:[#allocation2 + $0xca] sm:$0xff]
        %v1180 = vld [vmem:[#allocation2 + $0xda] sm:$0xff]
        %v1181 = vld [vmem:[#allocation2 + $0xe2] sm:$0xff]
        %v1182 = vld [vmem:[#allocation2 + $0xf2] sm:$0xff]
        %v1183 = vld [vmem:[#allocation2 + $0xfa] sm:$0xff]
        %v1184 = vld [vmem:[#allocation2 + $0x10a] sm:$0xff]
        %v1185 = vld [vmem:[#allocation2 + $0x112] sm:$0xff]
        %v1186 = vld [vmem:[#allocation2 + $0x122] sm:$0xff]
        %v1187 = vld [vmem:[#allocation2 + $0x12a] sm:$0xff]
        %v1188 = vld [vmem:[#allocation2 + $0x13a] sm:$0xff]
        %v1189 = vld [vmem:[#allocation2 + $0x142] sm:$0xff]
        %v1190 = vld [vmem:[#allocation2 + $0x152] sm:$0xff]
        %v1191 = vld [vmem:[#allocation2 + $0x15a] sm:$0xff]
        %v1192 = vld [vmem:[#allocation2 + $0x16a] sm:$0xff]
        %v1193 = vld [vmem:[#allocation2 + $0x172] sm:$0xff]
        %s1194 = scalar_lea.vmem [#allocation7], 64
        %v1195 = vld [vmem:[%s1194] sm:$0xff]
        %v1196 = vld [vmem:[%s1194 + $0x8] sm:$0xff]
        %v1197 = vld [vmem:[%s1194 + $0x10] sm:$0xff]
        %v1198 = vld [vmem:[%s1194 + $0x18] sm:$0xff]
        %v1200 = vsel %vm326, %v1162, 0
        %v1203 = vsel %vm326, %v1163, 0
        %v1206 = vsel %vm326, %v1164, 0
        %v1209 = vsel %vm326, %v1165, 0
        %v1212 = vsel %vm326, %v1166, 0
        %v1215 = vsel %vm326, %v1167, 0
        %v1218 = vsel %vm326, %v1168, 0
        %v1221 = vsel %vm326, %v1169, 0
        %v1224 = vsel %vm326, %v1170, 0
        %v1227 = vsel %vm326, %v1171, 0
        %v1230 = vsel %vm326, %v1172, 0
        %v1233 = vsel %vm326, %v1173, 0
        %v1236 = vsel %vm326, %v1174, 0
        %v1239 = vsel %vm326, %v1175, 0
        %v1242 = vsel %vm326, %v1176, 0
        %v1245 = vsel %vm326, %v1177, 0
        %v1248 = vsel %vm326, %v1178, 0
        %v1251 = vsel %vm326, %v1179, 0
        %v1254 = vsel %vm326, %v1180, 0
        %v1257 = vsel %vm326, %v1181, 0
        %v1260 = vsel %vm326, %v1182, 0
        %v1263 = vsel %vm326, %v1183, 0
        %v1266 = vsel %vm326, %v1184, 0
        %v1269 = vsel %vm326, %v1185, 0
        %v1272 = vsel %vm326, %v1186, 0
        %v1275 = vsel %vm326, %v1187, 0
        %v1278 = vsel %vm326, %v1188, 0
        %v1281 = vsel %vm326, %v1189, 0
        %v1284 = vsel %vm326, %v1190, 0
        %v1287 = vsel %vm326, %v1191, 0
        %v1290 = vsel %vm326, %v1192, 0
        %v1293 = vsel %vm326, %v1193, 0
        %1295 = vmatprep.subr.mxu0 0.0
        %1296 = vmatpush1.msra.mxu0 %v1195
        %1297 = vmatprep.subr.mxu0 0.0
        %1298 = vmatpush1.msra.mxu0 %v1196
        %1299 = vmatprep.subr.mxu0 0.0
        %1300 = vmatpush1.msra.mxu0 %v1197
        %1301 = vmatprep.subr.mxu0 0.0
        %1302 = vmatpush1.msra.mxu0 %v1198
        %1303 = vmatprep.subr.mxu0 0.0
        %1304 = vmatpush1.msra.mxu0 0.0
        %1305 = vmatprep.subr.mxu0 0.0
        %1306 = vmatpush1.msra.mxu0 0.0
        %1307 = vmatprep.subr.mxu0 0.0
        %1308 = vmatpush1.msra.mxu0 0.0
        %1309 = vmatprep.subr.mxu0 0.0
        %1310 = vmatpush1.msra.mxu0 0.0
        %1311 = vmatprep.subr.mxu0 0.0
        %1312 = vmatpush1.msra.mxu0 0.0
        %1313 = vmatprep.subr.mxu0 0.0
        %1314 = vmatpush1.msra.mxu0 0.0
        %1315 = vmatprep.subr.mxu0 0.0
        %1316 = vmatpush1.msra.mxu0 0.0
        %1317 = vmatprep.subr.mxu0 0.0
        %1318 = vmatpush1.msra.mxu0 0.0
        %1319 = vmatprep.subr.mxu0 0.0
        %1320 = vmatpush1.msra.mxu0 0.0
        %1321 = vmatprep.subr.mxu0 0.0
        %1322 = vmatpush1.msra.mxu0 0.0
        %1323 = vmatprep.subr.mxu0 0.0
        %1324 = vmatpush1.msra.mxu0 0.0
        %1325 = vmatprep.subr.mxu0 0.0
        %1326 = vmatpush1.msra.mxu0 0.0
        %1327 = vmatprep.subr.mxu0 0.0
        %1328 = vmatpush1.msra.mxu0 0.0
        %1329 = vmatprep.subr.mxu0 0.0
        %1330 = vmatpush1.msra.mxu0 0.0
        %1331 = vmatprep.subr.mxu0 0.0
        %1332 = vmatpush1.msra.mxu0 0.0
        %1333 = vmatprep.subr.mxu0 0.0
        %1334 = vmatpush1.msra.mxu0 0.0
        %1335 = vmatprep.subr.mxu0 0.0
        %1336 = vmatpush1.msra.mxu0 0.0
        %1337 = vmatprep.subr.mxu0 0.0
        %1338 = vmatpush1.msra.mxu0 0.0
        %1339 = vmatprep.subr.mxu0 0.0
        %1340 = vmatpush1.msra.mxu0 0.0
        %1341 = vmatprep.subr.mxu0 0.0
        %1342 = vmatpush1.msra.mxu0 0.0
        %1343 = vmatprep.subr.mxu0 0.0
        %1344 = vmatpush1.msra.mxu0 0.0
        %1345 = vmatprep.subr.mxu0 0.0
        %1346 = vmatpush1.msra.mxu0 0.0
        %1347 = vmatprep.subr.mxu0 0.0
        %1348 = vmatpush1.msra.mxu0 0.0
        %1349 = vmatprep.subr.mxu0 0.0
        %1350 = vmatpush1.msra.mxu0 0.0
        %1351 = vmatprep.subr.mxu0 0.0
        %1352 = vmatpush1.msra.mxu0 0.0
        %1353 = vmatprep.subr.mxu0 0.0
        %1354 = vmatpush1.msra.mxu0 0.0
        %1355 = vmatprep.subr.mxu0 0.0
        %1356 = vmatpush1.msra.mxu0 0.0
        %1357 = vmatprep.subr.mxu0 0.0
        %1358 = vmatpush1.msra.mxu0 0.0
        %1359 = vmatprep.mubr.f32.mxu0 0.0
        %1360 = vmatmul.mubr.f32.gmra.mrb[0].mxu0 %v1200
        %v1361 = vpop.f32.mrb[0].mxu0
        %v1362 = vadd.f32 0.0, %v1361
        %v1363 = vpop.f32.mrb[0].mxu0
        %1364 = vmatprep.mubr.f32.mxu0 0.0
        %1365 = vmatmul.mubr.f32.gmra.mrb[0].mxu0 %v1203
        %v1366 = vpop.f32.mrb[0].mxu0
        %v1367 = vadd.f32 0.0, %v1366
        %v1368 = vpop.f32.mrb[0].mxu0
        %1369 = vmatprep.mubr.f32.mxu0 0.0
        %1370 = vmatmul.mubr.f32.gmra.mrb[0].mxu0 %v1206
        %v1371 = vpop.f32.mrb[0].mxu0
        %v1372 = vadd.f32 0.0, %v1371
        %v1373 = vpop.f32.mrb[0].mxu0
        %1374 = vmatprep.mubr.f32.mxu0 0.0
        %1375 = vmatmul.mubr.f32.gmra.mrb[0].mxu0 %v1209
        %v1376 = vpop.f32.mrb[0].mxu0
        %v1377 = vadd.f32 0.0, %v1376
        %v1378 = vpop.f32.mrb[0].mxu0
        %1379 = vmatprep.mubr.f32.mxu0 0.0
        %1380 = vmatmul.mubr.f32.gmra.mrb[0].mxu0 %v1212
        %v1381 = vpop.f32.mrb[0].mxu0
        %v1382 = vadd.f32 0.0, %v1381
        %v1383 = vpop.f32.mrb[0].mxu0
        %1384 = vmatprep.mubr.f32.mxu0 0.0
        %1385 = vmatmul.mubr.f32.gmra.mrb[0].mxu0 %v1215
        %v1386 = vpop.f32.mrb[0].mxu0
        %v1387 = vadd.f32 0.0, %v1386
        %v1388 = vpop.f32.mrb[0].mxu0
        %1389 = vmatprep.mubr.f32.mxu0 0.0
        %1390 = vmatmul.mubr.f32.gmra.mrb[0].mxu0 %v1218
        %v1391 = vpop.f32.mrb[0].mxu0
        %v1392 = vadd.f32 0.0, %v1391
        %v1393 = vpop.f32.mrb[0].mxu0
        %1394 = vmatprep.mubr.f32.mxu0 0.0
        %1395 = vmatmul.mubr.f32.gmra.mrb[0].mxu0 %v1221
        %v1396 = vpop.f32.mrb[0].mxu0
        %v1397 = vadd.f32 0.0, %v1396
        %v1398 = vpop.f32.mrb[0].mxu0
        %1399 = vmatprep.mubr.f32.mxu0 0.0
        %1400 = vmatmul.mubr.f32.gmra.mrb[0].mxu0 %v1224
        %v1401 = vpop.f32.mrb[0].mxu0
        %v1402 = vadd.f32 0.0, %v1401
        %v1403 = vpop.f32.mrb[0].mxu0
        %1404 = vmatprep.mubr.f32.mxu0 0.0
        %1405 = vmatmul.mubr.f32.gmra.mrb[0].mxu0 %v1227
        %v1406 = vpop.f32.mrb[0].mxu0
        %v1407 = vadd.f32 0.0, %v1406
        %v1408 = vpop.f32.mrb[0].mxu0
        %1409 = vmatprep.mubr.f32.mxu0 0.0
        %1410 = vmatmul.mubr.f32.gmra.mrb[0].mxu0 %v1230
        %v1411 = vpop.f32.mrb[0].mxu0
        %v1412 = vadd.f32 0.0, %v1411
        %v1413 = vpop.f32.mrb[0].mxu0
        %1414 = vmatprep.mubr.f32.mxu0 0.0
        %1415 = vmatmul.mubr.f32.gmra.mrb[0].mxu0 %v1233
        %v1416 = vpop.f32.mrb[0].mxu0
        %v1417 = vadd.f32 0.0, %v1416
        %v1418 = vpop.f32.mrb[0].mxu0
        %1419 = vmatprep.mubr.f32.mxu0 0.0
        %1420 = vmatmul.mubr.f32.gmra.mrb[0].mxu0 %v1236
        %v1421 = vpop.f32.mrb[0].mxu0
        %v1422 = vadd.f32 0.0, %v1421
        %v1423 = vpop.f32.mrb[0].mxu0
        %1424 = vmatprep.mubr.f32.mxu0 0.0
        %1425 = vmatmul.mubr.f32.gmra.mrb[0].mxu0 %v1239
        %v1426 = vpop.f32.mrb[0].mxu0
        %v1427 = vadd.f32 0.0, %v1426
        %v1428 = vpop.f32.mrb[0].mxu0
        %1429 = vmatprep.mubr.f32.mxu0 0.0
        %1430 = vmatmul.mubr.f32.gmra.mrb[0].mxu0 %v1242
        %v1431 = vpop.f32.mrb[0].mxu0
        %v1432 = vadd.f32 0.0, %v1431
        %v1433 = vpop.f32.mrb[0].mxu0
        %1434 = vmatprep.mubr.f32.mxu0 0.0
        %1435 = vmatmul.mubr.f32.gmra.mrb[0].mxu0 %v1245
        %v1436 = vpop.f32.mrb[0].mxu0
        %v1437 = vadd.f32 0.0, %v1436
        %v1438 = vpop.f32.mrb[0].mxu0
        %1439 = vmatprep.mubr.f32.mxu0 0.0
        %1440 = vmatmul.mubr.f32.gmra.mrb[0].mxu0 %v1248
        %v1441 = vpop.f32.mrb[0].mxu0
        %v1442 = vadd.f32 0.0, %v1441
        %v1443 = vpop.f32.mrb[0].mxu0
        %1444 = vmatprep.mubr.f32.mxu0 0.0
        %1445 = vmatmul.mubr.f32.gmra.mrb[0].mxu0 %v1251
        %v1446 = vpop.f32.mrb[0].mxu0
        %v1447 = vadd.f32 0.0, %v1446
        %v1448 = vpop.f32.mrb[0].mxu0
        %1449 = vmatprep.mubr.f32.mxu0 0.0
        %1450 = vmatmul.mubr.f32.gmra.mrb[0].mxu0 %v1254
        %v1451 = vpop.f32.mrb[0].mxu0
        %v1452 = vadd.f32 0.0, %v1451
        %v1453 = vpop.f32.mrb[0].mxu0
        %1454 = vmatprep.mubr.f32.mxu0 0.0
        %1455 = vmatmul.mubr.f32.gmra.mrb[0].mxu0 %v1257
        %v1456 = vpop.f32.mrb[0].mxu0
        %v1457 = vadd.f32 0.0, %v1456
        %v1458 = vpop.f32.mrb[0].mxu0
        %1459 = vmatprep.mubr.f32.mxu0 0.0
        %1460 = vmatmul.mubr.f32.gmra.mrb[0].mxu0 %v1260
        %v1461 = vpop.f32.mrb[0].mxu0
        %v1462 = vadd.f32 0.0, %v1461
        %v1463 = vpop.f32.mrb[0].mxu0
        %1464 = vmatprep.mubr.f32.mxu0 0.0
        %1465 = vmatmul.mubr.f32.gmra.mrb[0].mxu0 %v1263
        %v1466 = vpop.f32.mrb[0].mxu0
        %v1467 = vadd.f32 0.0, %v1466
        %v1468 = vpop.f32.mrb[0].mxu0
        %1469 = vmatprep.mubr.f32.mxu0 0.0
        %1470 = vmatmul.mubr.f32.gmra.mrb[0].mxu0 %v1266
        %v1471 = vpop.f32.mrb[0].mxu0
        %v1472 = vadd.f32 0.0, %v1471
        %v1473 = vpop.f32.mrb[0].mxu0
        %1474 = vmatprep.mubr.f32.mxu0 0.0
        %1475 = vmatmul.mubr.f32.gmra.mrb[0].mxu0 %v1269
        %v1476 = vpop.f32.mrb[0].mxu0
        %v1477 = vadd.f32 0.0, %v1476
        %v1478 = vpop.f32.mrb[0].mxu0
        %1479 = vmatprep.mubr.f32.mxu0 0.0
        %1480 = vmatmul.mubr.f32.gmra.mrb[0].mxu0 %v1272
        %v1481 = vpop.f32.mrb[0].mxu0
        %v1482 = vadd.f32 0.0, %v1481
        %v1483 = vpop.f32.mrb[0].mxu0
        %1484 = vmatprep.mubr.f32.mxu0 0.0
        %1485 = vmatmul.mubr.f32.gmra.mrb[0].mxu0 %v1275
        %v1486 = vpop.f32.mrb[0].mxu0
        %v1487 = vadd.f32 0.0, %v1486
        %v1488 = vpop.f32.mrb[0].mxu0
        %1489 = vmatprep.mubr.f32.mxu0 0.0
        %1490 = vmatmul.mubr.f32.gmra.mrb[0].mxu0 %v1278
        %v1491 = vpop.f32.mrb[0].mxu0
        %v1492 = vadd.f32 0.0, %v1491
        %v1493 = vpop.f32.mrb[0].mxu0
        %1494 = vmatprep.mubr.f32.mxu0 0.0
        %1495 = vmatmul.mubr.f32.gmra.mrb[0].mxu0 %v1281
        %v1496 = vpop.f32.mrb[0].mxu0
        %v1497 = vadd.f32 0.0, %v1496
        %v1498 = vpop.f32.mrb[0].mxu0
        %1499 = vmatprep.mubr.f32.mxu0 0.0
        %1500 = vmatmul.mubr.f32.gmra.mrb[0].mxu0 %v1284
        %v1501 = vpop.f32.mrb[0].mxu0
        %v1502 = vadd.f32 0.0, %v1501
        %v1503 = vpop.f32.mrb[0].mxu0
        %1504 = vmatprep.mubr.f32.mxu0 0.0
        %1505 = vmatmul.mubr.f32.gmra.mrb[0].mxu0 %v1287
        %v1506 = vpop.f32.mrb[0].mxu0
        %v1507 = vadd.f32 0.0, %v1506
        %v1508 = vpop.f32.mrb[0].mxu0
        %1509 = vmatprep.mubr.f32.mxu0 0.0
        %1510 = vmatmul.mubr.f32.gmra.mrb[0].mxu0 %v1290
        %v1511 = vpop.f32.mrb[0].mxu0
        %v1512 = vadd.f32 0.0, %v1511
        %v1513 = vpop.f32.mrb[0].mxu0
        %1514 = vmatprep.mubr.f32.mxu0 0.0
        %1515 = vmatmul.mubr.f32.gmra.mrb[0].mxu0 %v1293
        %v1516 = vpop.f32.mrb[0].mxu0
        %v1517 = vadd.f32 0.0, %v1516
        %v1518 = vpop.f32.mrb[0].mxu0
        %1519 = vdwg.mxu0
        %v1520 = vadd.f32 %v1004, %v1362
        %v1521 = vadd.f32 %v1009, %v1367
        %v1522 = vadd.f32 %v1014, %v1372
        %v1523 = vadd.f32 %v1019, %v1377
        %v1524 = vadd.f32 %v1024, %v1382
        %v1525 = vadd.f32 %v1029, %v1387
        %v1526 = vadd.f32 %v1034, %v1392
        %v1527 = vadd.f32 %v1039, %v1397
        %v1528 = vadd.f32 %v1044, %v1402
        %v1529 = vadd.f32 %v1049, %v1407
        %v1530 = vadd.f32 %v1054, %v1412
        %v1531 = vadd.f32 %v1059, %v1417
        %v1532 = vadd.f32 %v1064, %v1422
        %v1533 = vadd.f32 %v1069, %v1427
        %v1534 = vadd.f32 %v1074, %v1432
        %v1535 = vadd.f32 %v1079, %v1437
        %v1536 = vadd.f32 %v1084, %v1442
        %v1537 = vadd.f32 %v1089, %v1447
        %v1538 = vadd.f32 %v1094, %v1452
        %v1539 = vadd.f32 %v1099, %v1457
        %v1540 = vadd.f32 %v1104, %v1462
        %v1541 = vadd.f32 %v1109, %v1467
        %v1542 = vadd.f32 %v1114, %v1472
        %v1543 = vadd.f32 %v1119, %v1477
        %v1544 = vadd.f32 %v1124, %v1482
        %v1545 = vadd.f32 %v1129, %v1487
        %v1546 = vadd.f32 %v1134, %v1492
        %v1547 = vadd.f32 %v1139, %v1497
        %v1548 = vadd.f32 %v1144, %v1502
        %v1549 = vadd.f32 %v1149, %v1507
        %v1550 = vadd.f32 %v1154, %v1512
        %v1551 = vadd.f32 %v1159, %v1517
        %v1552 = vld [vmem:[%s414] sm:$0xff]
        %v1553 = vld [vmem:[%s414 + $0x8] sm:$0xff]
        %v1554 = vld [vmem:[%s414 + $0x18] sm:$0xff]
        %v1555 = vld [vmem:[%s414 + $0x20] sm:$0xff]
        %v1556 = vld [vmem:[%s414 + $0x30] sm:$0xff]
        %v1557 = vld [vmem:[%s414 + $0x38] sm:$0xff]
        %v1558 = vld [vmem:[%s414 + $0x48] sm:$0xff]
        %v1559 = vld [vmem:[%s414 + $0x50] sm:$0xff]
        %v1560 = vld [vmem:[%s414 + $0x60] sm:$0xff]
        %v1561 = vld [vmem:[%s414 + $0x68] sm:$0xff]
        %v1562 = vld [vmem:[%s414 + $0x78] sm:$0xff]
        %v1563 = vld [vmem:[%s414 + $0x80] sm:$0xff]
        %v1564 = vld [vmem:[%s414 + $0x90] sm:$0xff]
        %v1565 = vld [vmem:[%s414 + $0x98] sm:$0xff]
        %v1566 = vld [vmem:[%s414 + $0xa8] sm:$0xff]
        %v1567 = vld [vmem:[%s414 + $0xb0] sm:$0xff]
        %v1568 = vld [vmem:[%s414 + $0xc0] sm:$0xff]
        %v1569 = vld [vmem:[%s414 + $0xc8] sm:$0xff]
        %v1570 = vld [vmem:[%s414 + $0xd8] sm:$0xff]
        %v1571 = vld [vmem:[%s414 + $0xe0] sm:$0xff]
        %v1572 = vld [vmem:[%s414 + $0xf0] sm:$0xff]
        %v1573 = vld [vmem:[%s414 + $0xf8] sm:$0xff]
        %v1574 = vld [vmem:[%s414 + $0x108] sm:$0xff]
        %v1575 = vld [vmem:[%s414 + $0x110] sm:$0xff]
        %v1576 = vld [vmem:[%s414 + $0x120] sm:$0xff]
        %v1577 = vld [vmem:[%s414 + $0x128] sm:$0xff]
        %v1578 = vld [vmem:[%s414 + $0x138] sm:$0xff]
        %v1579 = vld [vmem:[%s414 + $0x140] sm:$0xff]
        %v1580 = vld [vmem:[%s414 + $0x150] sm:$0xff]
        %v1581 = vld [vmem:[%s414 + $0x158] sm:$0xff]
        %v1582 = vld [vmem:[%s414 + $0x168] sm:$0xff]
        %v1583 = vld [vmem:[%s414 + $0x170] sm:$0xff]
        %s1584 = scalar_lea.vmem [#allocation7], 96
        %v1585 = vld [vmem:[%s1584] sm:$0xff]
        %v1586 = vld [vmem:[%s1584 + $0x8] sm:$0xff]
        %v1587 = vld [vmem:[%s1584 + $0x10] sm:$0xff]
        %v1588 = vld [vmem:[%s1584 + $0x18] sm:$0xff]
        %v1590 = vsel %vm326, %v1552, 0
        %v1593 = vsel %vm326, %v1553, 0
        %v1596 = vsel %vm326, %v1554, 0
        %v1599 = vsel %vm326, %v1555, 0
        %v1602 = vsel %vm326, %v1556, 0
        %v1605 = vsel %vm326, %v1557, 0
        %v1608 = vsel %vm326, %v1558, 0
        %v1611 = vsel %vm326, %v1559, 0
        %v1614 = vsel %vm326, %v1560, 0
        %v1617 = vsel %vm326, %v1561, 0
        %v1620 = vsel %vm326, %v1562, 0
        %v1623 = vsel %vm326, %v1563, 0
        %v1626 = vsel %vm326, %v1564, 0
        %v1629 = vsel %vm326, %v1565, 0
        %v1632 = vsel %vm326, %v1566, 0
        %v1635 = vsel %vm326, %v1567, 0
        %v1638 = vsel %vm326, %v1568, 0
        %v1641 = vsel %vm326, %v1569, 0
        %v1644 = vsel %vm326, %v1570, 0
        %v1647 = vsel %vm326, %v1571, 0
        %v1650 = vsel %vm326, %v1572, 0
        %v1653 = vsel %vm326, %v1573, 0
        %v1656 = vsel %vm326, %v1574, 0
        %v1659 = vsel %vm326, %v1575, 0
        %v1662 = vsel %vm326, %v1576, 0
        %v1665 = vsel %vm326, %v1577, 0
        %v1668 = vsel %vm326, %v1578, 0
        %v1671 = vsel %vm326, %v1579, 0
        %v1674 = vsel %vm326, %v1580, 0
        %v1677 = vsel %vm326, %v1581, 0
        %v1680 = vsel %vm326, %v1582, 0
        %v1683 = vsel %vm326, %v1583, 0
        %1685 = vmatprep.subr.mxu0 0.0
        %1686 = vmatpush1.msra.mxu0 %v1585
        %1687 = vmatprep.subr.mxu0 0.0
        %1688 = vmatpush1.msra.mxu0 %v1586
        %1689 = vmatprep.subr.mxu0 0.0
        %1690 = vmatpush1.msra.mxu0 %v1587
        %1691 = vmatprep.subr.mxu0 0.0
        %1692 = vmatpush1.msra.mxu0 %v1588
        %1693 = vmatprep.subr.mxu0 0.0
        %1694 = vmatpush1.msra.mxu0 0.0
        %1695 = vmatprep.subr.mxu0 0.0
        %1696 = vmatpush1.msra.mxu0 0.0
        %1697 = vmatprep.subr.mxu0 0.0
        %1698 = vmatpush1.msra.mxu0 0.0
        %1699 = vmatprep.subr.mxu0 0.0
        %1700 = vmatpush1.msra.mxu0 0.0
        %1701 = vmatprep.subr.mxu0 0.0
        %1702 = vmatpush1.msra.mxu0 0.0
        %1703 = vmatprep.subr.mxu0 0.0
        %1704 = vmatpush1.msra.mxu0 0.0
        %1705 = vmatprep.subr.mxu0 0.0
        %1706 = vmatpush1.msra.mxu0 0.0
        %1707 = vmatprep.subr.mxu0 0.0
        %1708 = vmatpush1.msra.mxu0 0.0
        %1709 = vmatprep.subr.mxu0 0.0
        %1710 = vmatpush1.msra.mxu0 0.0
        %1711 = vmatprep.subr.mxu0 0.0
        %1712 = vmatpush1.msra.mxu0 0.0
        %1713 = vmatprep.subr.mxu0 0.0
        %1714 = vmatpush1.msra.mxu0 0.0
        %1715 = vmatprep.subr.mxu0 0.0
        %1716 = vmatpush1.msra.mxu0 0.0
        %1717 = vmatprep.subr.mxu0 0.0
        %1718 = vmatpush1.msra.mxu0 0.0
        %1719 = vmatprep.subr.mxu0 0.0
        %1720 = vmatpush1.msra.mxu0 0.0
        %1721 = vmatprep.subr.mxu0 0.0
        %1722 = vmatpush1.msra.mxu0 0.0
        %1723 = vmatprep.subr.mxu0 0.0
        %1724 = vmatpush1.msra.mxu0 0.0
        %1725 = vmatprep.subr.mxu0 0.0
        %1726 = vmatpush1.msra.mxu0 0.0
        %1727 = vmatprep.subr.mxu0 0.0
        %1728 = vmatpush1.msra.mxu0 0.0
        %1729 = vmatprep.subr.mxu0 0.0
        %1730 = vmatpush1.msra.mxu0 0.0
        %1731 = vmatprep.subr.mxu0 0.0
        %1732 = vmatpush1.msra.mxu0 0.0
        %1733 = vmatprep.subr.mxu0 0.0
        %1734 = vmatpush1.msra.mxu0 0.0
        %1735 = vmatprep.subr.mxu0 0.0
        %1736 = vmatpush1.msra.mxu0 0.0
        %1737 = vmatprep.subr.mxu0 0.0
        %1738 = vmatpush1.msra.mxu0 0.0
        %1739 = vmatprep.subr.mxu0 0.0
        %1740 = vmatpush1.msra.mxu0 0.0
        %1741 = vmatprep.subr.mxu0 0.0
        %1742 = vmatpush1.msra.mxu0 0.0
        %1743 = vmatprep.subr.mxu0 0.0
        %1744 = vmatpush1.msra.mxu0 0.0
        %1745 = vmatprep.subr.mxu0 0.0
        %1746 = vmatpush1.msra.mxu0 0.0
        %1747 = vmatprep.subr.mxu0 0.0
        %1748 = vmatpush1.msra.mxu0 0.0
        %1749 = vmatprep.mubr.f32.mxu0 0.0
        %1750 = vmatmul.mubr.f32.gmra.mrb[0].mxu0 %v1590
        %v1751 = vpop.f32.mrb[0].mxu0
        %v1752 = vadd.f32 0.0, %v1751
        %v1753 = vpop.f32.mrb[0].mxu0
        %1754 = vmatprep.mubr.f32.mxu0 0.0
        %1755 = vmatmul.mubr.f32.gmra.mrb[0].mxu0 %v1593
        %v1756 = vpop.f32.mrb[0].mxu0
        %v1757 = vadd.f32 0.0, %v1756
        %v1758 = vpop.f32.mrb[0].mxu0
        %1759 = vmatprep.mubr.f32.mxu0 0.0
        %1760 = vmatmul.mubr.f32.gmra.mrb[0].mxu0 %v1596
        %v1761 = vpop.f32.mrb[0].mxu0
        %v1762 = vadd.f32 0.0, %v1761
        %v1763 = vpop.f32.mrb[0].mxu0
        %1764 = vmatprep.mubr.f32.mxu0 0.0
        %1765 = vmatmul.mubr.f32.gmra.mrb[0].mxu0 %v1599
        %v1766 = vpop.f32.mrb[0].mxu0
        %v1767 = vadd.f32 0.0, %v1766
        %v1768 = vpop.f32.mrb[0].mxu0
        %1769 = vmatprep.mubr.f32.mxu0 0.0
        %1770 = vmatmul.mubr.f32.gmra.mrb[0].mxu0 %v1602
        %v1771 = vpop.f32.mrb[0].mxu0
        %v1772 = vadd.f32 0.0, %v1771
        %v1773 = vpop.f32.mrb[0].mxu0
        %1774 = vmatprep.mubr.f32.mxu0 0.0
        %1775 = vmatmul.mubr.f32.gmra.mrb[0].mxu0 %v1605
        %v1776 = vpop.f32.mrb[0].mxu0
        %v1777 = vadd.f32 0.0, %v1776
        %v1778 = vpop.f32.mrb[0].mxu0
        %1779 = vmatprep.mubr.f32.mxu0 0.0
        %1780 = vmatmul.mubr.f32.gmra.mrb[0].mxu0 %v1608
        %v1781 = vpop.f32.mrb[0].mxu0
        %v1782 = vadd.f32 0.0, %v1781
        %v1783 = vpop.f32.mrb[0].mxu0
        %1784 = vmatprep.mubr.f32.mxu0 0.0
        %1785 = vmatmul.mubr.f32.gmra.mrb[0].mxu0 %v1611
        %v1786 = vpop.f32.mrb[0].mxu0
        %v1787 = vadd.f32 0.0, %v1786
        %v1788 = vpop.f32.mrb[0].mxu0
        %1789 = vmatprep.mubr.f32.mxu0 0.0
        %1790 = vmatmul.mubr.f32.gmra.mrb[0].mxu0 %v1614
        %v1791 = vpop.f32.mrb[0].mxu0
        %v1792 = vadd.f32 0.0, %v1791
        %v1793 = vpop.f32.mrb[0].mxu0
        %1794 = vmatprep.mubr.f32.mxu0 0.0
        %1795 = vmatmul.mubr.f32.gmra.mrb[0].mxu0 %v1617
        %v1796 = vpop.f32.mrb[0].mxu0
        %v1797 = vadd.f32 0.0, %v1796
        %v1798 = vpop.f32.mrb[0].mxu0
        %1799 = vmatprep.mubr.f32.mxu0 0.0
        %1800 = vmatmul.mubr.f32.gmra.mrb[0].mxu0 %v1620
        %v1801 = vpop.f32.mrb[0].mxu0
        %v1802 = vadd.f32 0.0, %v1801
        %v1803 = vpop.f32.mrb[0].mxu0
        %1804 = vmatprep.mubr.f32.mxu0 0.0
        %1805 = vmatmul.mubr.f32.gmra.mrb[0].mxu0 %v1623
        %v1806 = vpop.f32.mrb[0].mxu0
        %v1807 = vadd.f32 0.0, %v1806
        %v1808 = vpop.f32.mrb[0].mxu0
        %1809 = vmatprep.mubr.f32.mxu0 0.0
        %1810 = vmatmul.mubr.f32.gmra.mrb[0].mxu0 %v1626
        %v1811 = vpop.f32.mrb[0].mxu0
        %v1812 = vadd.f32 0.0, %v1811
        %v1813 = vpop.f32.mrb[0].mxu0
        %1814 = vmatprep.mubr.f32.mxu0 0.0
        %1815 = vmatmul.mubr.f32.gmra.mrb[0].mxu0 %v1629
        %v1816 = vpop.f32.mrb[0].mxu0
        %v1817 = vadd.f32 0.0, %v1816
        %v1818 = vpop.f32.mrb[0].mxu0
        %1819 = vmatprep.mubr.f32.mxu0 0.0
        %1820 = vmatmul.mubr.f32.gmra.mrb[0].mxu0 %v1632
        %v1821 = vpop.f32.mrb[0].mxu0
        %v1822 = vadd.f32 0.0, %v1821
        %v1823 = vpop.f32.mrb[0].mxu0
        %1824 = vmatprep.mubr.f32.mxu0 0.0
        %1825 = vmatmul.mubr.f32.gmra.mrb[0].mxu0 %v1635
        %v1826 = vpop.f32.mrb[0].mxu0
        %v1827 = vadd.f32 0.0, %v1826
        %v1828 = vpop.f32.mrb[0].mxu0
        %1829 = vmatprep.mubr.f32.mxu0 0.0
        %1830 = vmatmul.mubr.f32.gmra.mrb[0].mxu0 %v1638
        %v1831 = vpop.f32.mrb[0].mxu0
        %v1832 = vadd.f32 0.0, %v1831
        %v1833 = vpop.f32.mrb[0].mxu0
        %1834 = vmatprep.mubr.f32.mxu0 0.0
        %1835 = vmatmul.mubr.f32.gmra.mrb[0].mxu0 %v1641
        %v1836 = vpop.f32.mrb[0].mxu0
        %v1837 = vadd.f32 0.0, %v1836
        %v1838 = vpop.f32.mrb[0].mxu0
        %1839 = vmatprep.mubr.f32.mxu0 0.0
        %1840 = vmatmul.mubr.f32.gmra.mrb[0].mxu0 %v1644
        %v1841 = vpop.f32.mrb[0].mxu0
        %v1842 = vadd.f32 0.0, %v1841
        %v1843 = vpop.f32.mrb[0].mxu0
        %1844 = vmatprep.mubr.f32.mxu0 0.0
        %1845 = vmatmul.mubr.f32.gmra.mrb[0].mxu0 %v1647
        %v1846 = vpop.f32.mrb[0].mxu0
        %v1847 = vadd.f32 0.0, %v1846
        %v1848 = vpop.f32.mrb[0].mxu0
        %1849 = vmatprep.mubr.f32.mxu0 0.0
        %1850 = vmatmul.mubr.f32.gmra.mrb[0].mxu0 %v1650
        %v1851 = vpop.f32.mrb[0].mxu0
        %v1852 = vadd.f32 0.0, %v1851
        %v1853 = vpop.f32.mrb[0].mxu0
        %1854 = vmatprep.mubr.f32.mxu0 0.0
        %1855 = vmatmul.mubr.f32.gmra.mrb[0].mxu0 %v1653
        %v1856 = vpop.f32.mrb[0].mxu0
        %v1857 = vadd.f32 0.0, %v1856
        %v1858 = vpop.f32.mrb[0].mxu0
        %1859 = vmatprep.mubr.f32.mxu0 0.0
        %1860 = vmatmul.mubr.f32.gmra.mrb[0].mxu0 %v1656
        %v1861 = vpop.f32.mrb[0].mxu0
        %v1862 = vadd.f32 0.0, %v1861
        %v1863 = vpop.f32.mrb[0].mxu0
        %1864 = vmatprep.mubr.f32.mxu0 0.0
        %1865 = vmatmul.mubr.f32.gmra.mrb[0].mxu0 %v1659
        %v1866 = vpop.f32.mrb[0].mxu0
        %v1867 = vadd.f32 0.0, %v1866
        %v1868 = vpop.f32.mrb[0].mxu0
        %1869 = vmatprep.mubr.f32.mxu0 0.0
        %1870 = vmatmul.mubr.f32.gmra.mrb[0].mxu0 %v1662
        %v1871 = vpop.f32.mrb[0].mxu0
        %v1872 = vadd.f32 0.0, %v1871
        %v1873 = vpop.f32.mrb[0].mxu0
        %1874 = vmatprep.mubr.f32.mxu0 0.0
        %1875 = vmatmul.mubr.f32.gmra.mrb[0].mxu0 %v1665
        %v1876 = vpop.f32.mrb[0].mxu0
        %v1877 = vadd.f32 0.0, %v1876
        %v1878 = vpop.f32.mrb[0].mxu0
        %1879 = vmatprep.mubr.f32.mxu0 0.0
        %1880 = vmatmul.mubr.f32.gmra.mrb[0].mxu0 %v1668
        %v1881 = vpop.f32.mrb[0].mxu0
        %v1882 = vadd.f32 0.0, %v1881
        %v1883 = vpop.f32.mrb[0].mxu0
        %1884 = vmatprep.mubr.f32.mxu0 0.0
        %1885 = vmatmul.mubr.f32.gmra.mrb[0].mxu0 %v1671
        %v1886 = vpop.f32.mrb[0].mxu0
        %v1887 = vadd.f32 0.0, %v1886
        %v1888 = vpop.f32.mrb[0].mxu0
        %1889 = vmatprep.mubr.f32.mxu0 0.0
        %1890 = vmatmul.mubr.f32.gmra.mrb[0].mxu0 %v1674
        %v1891 = vpop.f32.mrb[0].mxu0
        %v1892 = vadd.f32 0.0, %v1891
        %v1893 = vpop.f32.mrb[0].mxu0
        %1894 = vmatprep.mubr.f32.mxu0 0.0
        %1895 = vmatmul.mubr.f32.gmra.mrb[0].mxu0 %v1677
        %v1896 = vpop.f32.mrb[0].mxu0
        %v1897 = vadd.f32 0.0, %v1896
        %v1898 = vpop.f32.mrb[0].mxu0
        %1899 = vmatprep.mubr.f32.mxu0 0.0
        %1900 = vmatmul.mubr.f32.gmra.mrb[0].mxu0 %v1680
        %v1901 = vpop.f32.mrb[0].mxu0
        %v1902 = vadd.f32 0.0, %v1901
        %v1903 = vpop.f32.mrb[0].mxu0
        %1904 = vmatprep.mubr.f32.mxu0 0.0
        %1905 = vmatmul.mubr.f32.gmra.mrb[0].mxu0 %v1683
        %v1906 = vpop.f32.mrb[0].mxu0
        %v1907 = vadd.f32 0.0, %v1906
        %v1908 = vpop.f32.mrb[0].mxu0
        %1909 = vdwg.mxu0
        %v1910 = vadd.f32 %v1520, %v1752
        %v1911 = vadd.f32 %v1521, %v1757
        %v1912 = vadd.f32 %v1522, %v1762
        %v1913 = vadd.f32 %v1523, %v1767
        %v1914 = vadd.f32 %v1524, %v1772
        %v1915 = vadd.f32 %v1525, %v1777
        %v1916 = vadd.f32 %v1526, %v1782
        %v1917 = vadd.f32 %v1527, %v1787
        %v1918 = vadd.f32 %v1528, %v1792
        %v1919 = vadd.f32 %v1529, %v1797
        %v1920 = vadd.f32 %v1530, %v1802
        %v1921 = vadd.f32 %v1531, %v1807
        %v1922 = vadd.f32 %v1532, %v1812
        %v1923 = vadd.f32 %v1533, %v1817
        %v1924 = vadd.f32 %v1534, %v1822
        %v1925 = vadd.f32 %v1535, %v1827
        %v1926 = vadd.f32 %v1536, %v1832
        %v1927 = vadd.f32 %v1537, %v1837
        %v1928 = vadd.f32 %v1538, %v1842
        %v1929 = vadd.f32 %v1539, %v1847
        %v1930 = vadd.f32 %v1540, %v1852
        %v1931 = vadd.f32 %v1541, %v1857
        %v1932 = vadd.f32 %v1542, %v1862
        %v1933 = vadd.f32 %v1543, %v1867
        %v1934 = vadd.f32 %v1544, %v1872
        %v1935 = vadd.f32 %v1545, %v1877
        %v1936 = vadd.f32 %v1546, %v1882
        %v1937 = vadd.f32 %v1547, %v1887
        %v1938 = vadd.f32 %v1548, %v1892
        %v1939 = vadd.f32 %v1549, %v1897
        %v1940 = vadd.f32 %v1550, %v1902
        %v1941 = vadd.f32 %v1551, %v1907
        %v1942 = vld [vmem:[%s414 + $0x1] sm:$0xff]
        %v1943 = vld [vmem:[%s414 + $0x9] sm:$0xff]
        %v1944 = vld [vmem:[%s414 + $0x19] sm:$0xff]
        %v1945 = vld [vmem:[%s414 + $0x21] sm:$0xff]
        %v1946 = vld [vmem:[%s414 + $0x31] sm:$0xff]
        %v1947 = vld [vmem:[%s414 + $0x39] sm:$0xff]
        %v1948 = vld [vmem:[%s414 + $0x49] sm:$0xff]
        %v1949 = vld [vmem:[%s414 + $0x51] sm:$0xff]
        %v1950 = vld [vmem:[%s414 + $0x61] sm:$0xff]
        %v1951 = vld [vmem:[%s414 + $0x69] sm:$0xff]
        %v1952 = vld [vmem:[%s414 + $0x79] sm:$0xff]
        %v1953 = vld [vmem:[%s414 + $0x81] sm:$0xff]
        %v1954 = vld [vmem:[%s414 + $0x91] sm:$0xff]
        %v1955 = vld [vmem:[%s414 + $0x99] sm:$0xff]
        %v1956 = vld [vmem:[%s414 + $0xa9] sm:$0xff]
        %v1957 = vld [vmem:[%s414 + $0xb1] sm:$0xff]
        %v1958 = vld [vmem:[%s414 + $0xc1] sm:$0xff]
        %v1959 = vld [vmem:[%s414 + $0xc9] sm:$0xff]
        %v1960 = vld [vmem:[%s414 + $0xd9] sm:$0xff]
        %v1961 = vld [vmem:[%s414 + $0xe1] sm:$0xff]
        %v1962 = vld [vmem:[%s414 + $0xf1] sm:$0xff]
        %v1963 = vld [vmem:[%s414 + $0xf9] sm:$0xff]
        %v1964 = vld [vmem:[%s414 + $0x109] sm:$0xff]
        %v1965 = vld [vmem:[%s414 + $0x111] sm:$0xff]
        %v1966 = vld [vmem:[%s414 + $0x121] sm:$0xff]
        %v1967 = vld [vmem:[%s414 + $0x129] sm:$0xff]
        %v1968 = vld [vmem:[%s414 + $0x139] sm:$0xff]
        %v1969 = vld [vmem:[%s414 + $0x141] sm:$0xff]
        %v1970 = vld [vmem:[%s414 + $0x151] sm:$0xff]
        %v1971 = vld [vmem:[%s414 + $0x159] sm:$0xff]
        %v1972 = vld [vmem:[%s414 + $0x169] sm:$0xff]
        %v1973 = vld [vmem:[%s414 + $0x171] sm:$0xff]
        %s1974 = scalar_lea.vmem [#allocation7], 128
        %v1975 = vld [vmem:[%s1974] sm:$0xff]
        %v1976 = vld [vmem:[%s1974 + $0x8] sm:$0xff]
        %v1977 = vld [vmem:[%s1974 + $0x10] sm:$0xff]
        %v1978 = vld [vmem:[%s1974 + $0x18] sm:$0xff]
        %v1980 = vsel %vm326, %v1942, 0
        %v1983 = vsel %vm326, %v1943, 0
        %v1986 = vsel %vm326, %v1944, 0
        %v1989 = vsel %vm326, %v1945, 0
        %v1992 = vsel %vm326, %v1946, 0
        %v1995 = vsel %vm326, %v1947, 0
        %v1998 = vsel %vm326, %v1948, 0
        %v2001 = vsel %vm326, %v1949, 0
        %v2004 = vsel %vm326, %v1950, 0
        %v2007 = vsel %vm326, %v1951, 0
        %v2010 = vsel %vm326, %v1952, 0
        %v2013 = vsel %vm326, %v1953, 0
        %v2016 = vsel %vm326, %v1954, 0
        %v2019 = vsel %vm326, %v1955, 0
        %v2022 = vsel %vm326, %v1956, 0
        %v2025 = vsel %vm326, %v1957, 0
        %v2028 = vsel %vm326, %v1958, 0
        %v2031 = vsel %vm326, %v1959, 0
        %v2034 = vsel %vm326, %v1960, 0
        %v2037 = vsel %vm326, %v1961, 0
        %v2040 = vsel %vm326, %v1962, 0
        %v2043 = vsel %vm326, %v1963, 0
        %v2046 = vsel %vm326, %v1964, 0
        %v2049 = vsel %vm326, %v1965, 0
        %v2052 = vsel %vm326, %v1966, 0
        %v2055 = vsel %vm326, %v1967, 0
        %v2058 = vsel %vm326, %v1968, 0
        %v2061 = vsel %vm326, %v1969, 0
        %v2064 = vsel %vm326, %v1970, 0
        %v2067 = vsel %vm326, %v1971, 0
        %v2070 = vsel %vm326, %v1972, 0
        %v2073 = vsel %vm326, %v1973, 0
        %2075 = vmatprep.subr.mxu0 0.0
        %2076 = vmatpush1.msra.mxu0 %v1975
        %2077 = vmatprep.subr.mxu0 0.0
        %2078 = vmatpush1.msra.mxu0 %v1976
        %2079 = vmatprep.subr.mxu0 0.0
        %2080 = vmatpush1.msra.mxu0 %v1977
        %2081 = vmatprep.subr.mxu0 0.0
        %2082 = vmatpush1.msra.mxu0 %v1978
        %2083 = vmatprep.subr.mxu0 0.0
        %2084 = vmatpush1.msra.mxu0 0.0
        %2085 = vmatprep.subr.mxu0 0.0
        %2086 = vmatpush1.msra.mxu0 0.0
        %2087 = vmatprep.subr.mxu0 0.0
        %2088 = vmatpush1.msra.mxu0 0.0
        %2089 = vmatprep.subr.mxu0 0.0
        %2090 = vmatpush1.msra.mxu0 0.0
        %2091 = vmatprep.subr.mxu0 0.0
        %2092 = vmatpush1.msra.mxu0 0.0
        %2093 = vmatprep.subr.mxu0 0.0
        %2094 = vmatpush1.msra.mxu0 0.0
        %2095 = vmatprep.subr.mxu0 0.0
        %2096 = vmatpush1.msra.mxu0 0.0
        %2097 = vmatprep.subr.mxu0 0.0
        %2098 = vmatpush1.msra.mxu0 0.0
        %2099 = vmatprep.subr.mxu0 0.0
        %2100 = vmatpush1.msra.mxu0 0.0
        %2101 = vmatprep.subr.mxu0 0.0
        %2102 = vmatpush1.msra.mxu0 0.0
        %2103 = vmatprep.subr.mxu0 0.0
        %2104 = vmatpush1.msra.mxu0 0.0
        %2105 = vmatprep.subr.mxu0 0.0
        %2106 = vmatpush1.msra.mxu0 0.0
        %2107 = vmatprep.subr.mxu0 0.0
        %2108 = vmatpush1.msra.mxu0 0.0
        %2109 = vmatprep.subr.mxu0 0.0
        %2110 = vmatpush1.msra.mxu0 0.0
        %2111 = vmatprep.subr.mxu0 0.0
        %2112 = vmatpush1.msra.mxu0 0.0
        %2113 = vmatprep.subr.mxu0 0.0
        %2114 = vmatpush1.msra.mxu0 0.0
        %2115 = vmatprep.subr.mxu0 0.0
        %2116 = vmatpush1.msra.mxu0 0.0
        %2117 = vmatprep.subr.mxu0 0.0
        %2118 = vmatpush1.msra.mxu0 0.0
        %2119 = vmatprep.subr.mxu0 0.0
        %2120 = vmatpush1.msra.mxu0 0.0
        %2121 = vmatprep.subr.mxu0 0.0
        %2122 = vmatpush1.msra.mxu0 0.0
        %2123 = vmatprep.subr.mxu0 0.0
        %2124 = vmatpush1.msra.mxu0 0.0
        %2125 = vmatprep.subr.mxu0 0.0
        %2126 = vmatpush1.msra.mxu0 0.0
        %2127 = vmatprep.subr.mxu0 0.0
        %2128 = vmatpush1.msra.mxu0 0.0
        %2129 = vmatprep.subr.mxu0 0.0
        %2130 = vmatpush1.msra.mxu0 0.0
        %2131 = vmatprep.subr.mxu0 0.0
        %2132 = vmatpush1.msra.mxu0 0.0
        %2133 = vmatprep.subr.mxu0 0.0
        %2134 = vmatpush1.msra.mxu0 0.0
        %2135 = vmatprep.subr.mxu0 0.0
        %2136 = vmatpush1.msra.mxu0 0.0
        %2137 = vmatprep.subr.mxu0 0.0
        %2138 = vmatpush1.msra.mxu0 0.0
        %2139 = vmatprep.mubr.f32.mxu0 0.0
        %2140 = vmatmul.mubr.f32.gmra.mrb[0].mxu0 %v1980
        %v2141 = vpop.f32.mrb[0].mxu0
        %v2142 = vadd.f32 0.0, %v2141
        %v2143 = vpop.f32.mrb[0].mxu0
        %2144 = vmatprep.mubr.f32.mxu0 0.0
        %2145 = vmatmul.mubr.f32.gmra.mrb[0].mxu0 %v1983
        %v2146 = vpop.f32.mrb[0].mxu0
        %v2147 = vadd.f32 0.0, %v2146
        %v2148 = vpop.f32.mrb[0].mxu0
        %2149 = vmatprep.mubr.f32.mxu0 0.0
        %2150 = vmatmul.mubr.f32.gmra.mrb[0].mxu0 %v1986
        %v2151 = vpop.f32.mrb[0].mxu0
        %v2152 = vadd.f32 0.0, %v2151
        %v2153 = vpop.f32.mrb[0].mxu0
        %2154 = vmatprep.mubr.f32.mxu0 0.0
        %2155 = vmatmul.mubr.f32.gmra.mrb[0].mxu0 %v1989
        %v2156 = vpop.f32.mrb[0].mxu0
        %v2157 = vadd.f32 0.0, %v2156
        %v2158 = vpop.f32.mrb[0].mxu0
        %2159 = vmatprep.mubr.f32.mxu0 0.0
        %2160 = vmatmul.mubr.f32.gmra.mrb[0].mxu0 %v1992
        %v2161 = vpop.f32.mrb[0].mxu0
        %v2162 = vadd.f32 0.0, %v2161
        %v2163 = vpop.f32.mrb[0].mxu0
        %2164 = vmatprep.mubr.f32.mxu0 0.0
        %2165 = vmatmul.mubr.f32.gmra.mrb[0].mxu0 %v1995
        %v2166 = vpop.f32.mrb[0].mxu0
        %v2167 = vadd.f32 0.0, %v2166
        %v2168 = vpop.f32.mrb[0].mxu0
        %2169 = vmatprep.mubr.f32.mxu0 0.0
        %2170 = vmatmul.mubr.f32.gmra.mrb[0].mxu0 %v1998
        %v2171 = vpop.f32.mrb[0].mxu0
        %v2172 = vadd.f32 0.0, %v2171
        %v2173 = vpop.f32.mrb[0].mxu0
        %2174 = vmatprep.mubr.f32.mxu0 0.0
        %2175 = vmatmul.mubr.f32.gmra.mrb[0].mxu0 %v2001
        %v2176 = vpop.f32.mrb[0].mxu0
        %v2177 = vadd.f32 0.0, %v2176
        %v2178 = vpop.f32.mrb[0].mxu0
        %2179 = vmatprep.mubr.f32.mxu0 0.0
        %2180 = vmatmul.mubr.f32.gmra.mrb[0].mxu0 %v2004
        %v2181 = vpop.f32.mrb[0].mxu0
        %v2182 = vadd.f32 0.0, %v2181
        %v2183 = vpop.f32.mrb[0].mxu0
        %2184 = vmatprep.mubr.f32.mxu0 0.0
        %2185 = vmatmul.mubr.f32.gmra.mrb[0].mxu0 %v2007
        %v2186 = vpop.f32.mrb[0].mxu0
        %v2187 = vadd.f32 0.0, %v2186
        %v2188 = vpop.f32.mrb[0].mxu0
        %2189 = vmatprep.mubr.f32.mxu0 0.0
        %2190 = vmatmul.mubr.f32.gmra.mrb[0].mxu0 %v2010
        %v2191 = vpop.f32.mrb[0].mxu0
        %v2192 = vadd.f32 0.0, %v2191
        %v2193 = vpop.f32.mrb[0].mxu0
        %2194 = vmatprep.mubr.f32.mxu0 0.0
        %2195 = vmatmul.mubr.f32.gmra.mrb[0].mxu0 %v2013
        %v2196 = vpop.f32.mrb[0].mxu0
        %v2197 = vadd.f32 0.0, %v2196
        %v2198 = vpop.f32.mrb[0].mxu0
        %2199 = vmatprep.mubr.f32.mxu0 0.0
        %2200 = vmatmul.mubr.f32.gmra.mrb[0].mxu0 %v2016
        %v2201 = vpop.f32.mrb[0].mxu0
        %v2202 = vadd.f32 0.0, %v2201
        %v2203 = vpop.f32.mrb[0].mxu0
        %2204 = vmatprep.mubr.f32.mxu0 0.0
        %2205 = vmatmul.mubr.f32.gmra.mrb[0].mxu0 %v2019
        %v2206 = vpop.f32.mrb[0].mxu0
        %v2207 = vadd.f32 0.0, %v2206
        %v2208 = vpop.f32.mrb[0].mxu0
        %2209 = vmatprep.mubr.f32.mxu0 0.0
        %2210 = vmatmul.mubr.f32.gmra.mrb[0].mxu0 %v2022
        %v2211 = vpop.f32.mrb[0].mxu0
        %v2212 = vadd.f32 0.0, %v2211
        %v2213 = vpop.f32.mrb[0].mxu0
        %2214 = vmatprep.mubr.f32.mxu0 0.0
        %2215 = vmatmul.mubr.f32.gmra.mrb[0].mxu0 %v2025
        %v2216 = vpop.f32.mrb[0].mxu0
        %v2217 = vadd.f32 0.0, %v2216
        %v2218 = vpop.f32.mrb[0].mxu0
        %2219 = vmatprep.mubr.f32.mxu0 0.0
        %2220 = vmatmul.mubr.f32.gmra.mrb[0].mxu0 %v2028
        %v2221 = vpop.f32.mrb[0].mxu0
        %v2222 = vadd.f32 0.0, %v2221
        %v2223 = vpop.f32.mrb[0].mxu0
        %2224 = vmatprep.mubr.f32.mxu0 0.0
        %2225 = vmatmul.mubr.f32.gmra.mrb[0].mxu0 %v2031
        %v2226 = vpop.f32.mrb[0].mxu0
        %v2227 = vadd.f32 0.0, %v2226
        %v2228 = vpop.f32.mrb[0].mxu0
        %2229 = vmatprep.mubr.f32.mxu0 0.0
        %2230 = vmatmul.mubr.f32.gmra.mrb[0].mxu0 %v2034
        %v2231 = vpop.f32.mrb[0].mxu0
        %v2232 = vadd.f32 0.0, %v2231
        %v2233 = vpop.f32.mrb[0].mxu0
        %2234 = vmatprep.mubr.f32.mxu0 0.0
        %2235 = vmatmul.mubr.f32.gmra.mrb[0].mxu0 %v2037
        %v2236 = vpop.f32.mrb[0].mxu0
        %v2237 = vadd.f32 0.0, %v2236
        %v2238 = vpop.f32.mrb[0].mxu0
        %2239 = vmatprep.mubr.f32.mxu0 0.0
        %2240 = vmatmul.mubr.f32.gmra.mrb[0].mxu0 %v2040
        %v2241 = vpop.f32.mrb[0].mxu0
        %v2242 = vadd.f32 0.0, %v2241
        %v2243 = vpop.f32.mrb[0].mxu0
        %2244 = vmatprep.mubr.f32.mxu0 0.0
        %2245 = vmatmul.mubr.f32.gmra.mrb[0].mxu0 %v2043
        %v2246 = vpop.f32.mrb[0].mxu0
        %v2247 = vadd.f32 0.0, %v2246
        %v2248 = vpop.f32.mrb[0].mxu0
        %2249 = vmatprep.mubr.f32.mxu0 0.0
        %2250 = vmatmul.mubr.f32.gmra.mrb[0].mxu0 %v2046
        %v2251 = vpop.f32.mrb[0].mxu0
        %v2252 = vadd.f32 0.0, %v2251
        %v2253 = vpop.f32.mrb[0].mxu0
        %2254 = vmatprep.mubr.f32.mxu0 0.0
        %2255 = vmatmul.mubr.f32.gmra.mrb[0].mxu0 %v2049
        %v2256 = vpop.f32.mrb[0].mxu0
        %v2257 = vadd.f32 0.0, %v2256
        %v2258 = vpop.f32.mrb[0].mxu0
        %2259 = vmatprep.mubr.f32.mxu0 0.0
        %2260 = vmatmul.mubr.f32.gmra.mrb[0].mxu0 %v2052
        %v2261 = vpop.f32.mrb[0].mxu0
        %v2262 = vadd.f32 0.0, %v2261
        %v2263 = vpop.f32.mrb[0].mxu0
        %2264 = vmatprep.mubr.f32.mxu0 0.0
        %2265 = vmatmul.mubr.f32.gmra.mrb[0].mxu0 %v2055
        %v2266 = vpop.f32.mrb[0].mxu0
        %v2267 = vadd.f32 0.0, %v2266
        %v2268 = vpop.f32.mrb[0].mxu0
        %2269 = vmatprep.mubr.f32.mxu0 0.0
        %2270 = vmatmul.mubr.f32.gmra.mrb[0].mxu0 %v2058
        %v2271 = vpop.f32.mrb[0].mxu0
        %v2272 = vadd.f32 0.0, %v2271
        %v2273 = vpop.f32.mrb[0].mxu0
        %2274 = vmatprep.mubr.f32.mxu0 0.0
        %2275 = vmatmul.mubr.f32.gmra.mrb[0].mxu0 %v2061
        %v2276 = vpop.f32.mrb[0].mxu0
        %v2277 = vadd.f32 0.0, %v2276
        %v2278 = vpop.f32.mrb[0].mxu0
        %2279 = vmatprep.mubr.f32.mxu0 0.0
        %2280 = vmatmul.mubr.f32.gmra.mrb[0].mxu0 %v2064
        %v2281 = vpop.f32.mrb[0].mxu0
        %v2282 = vadd.f32 0.0, %v2281
        %v2283 = vpop.f32.mrb[0].mxu0
        %2284 = vmatprep.mubr.f32.mxu0 0.0
        %2285 = vmatmul.mubr.f32.gmra.mrb[0].mxu0 %v2067
        %v2286 = vpop.f32.mrb[0].mxu0
        %v2287 = vadd.f32 0.0, %v2286
        %v2288 = vpop.f32.mrb[0].mxu0
        %2289 = vmatprep.mubr.f32.mxu0 0.0
        %2290 = vmatmul.mubr.f32.gmra.mrb[0].mxu0 %v2070
        %v2291 = vpop.f32.mrb[0].mxu0
        %v2292 = vadd.f32 0.0, %v2291
        %v2293 = vpop.f32.mrb[0].mxu0
        %2294 = vmatprep.mubr.f32.mxu0 0.0
        %2295 = vmatmul.mubr.f32.gmra.mrb[0].mxu0 %v2073
        %v2296 = vpop.f32.mrb[0].mxu0
        %v2297 = vadd.f32 0.0, %v2296
        %v2298 = vpop.f32.mrb[0].mxu0
        %2299 = vdwg.mxu0
        %v2300 = vadd.f32 %v1910, %v2142
        %v2301 = vadd.f32 %v1911, %v2147
        %v2302 = vadd.f32 %v1912, %v2152
        %v2303 = vadd.f32 %v1913, %v2157
        %v2304 = vadd.f32 %v1914, %v2162
        %v2305 = vadd.f32 %v1915, %v2167
        %v2306 = vadd.f32 %v1916, %v2172
        %v2307 = vadd.f32 %v1917, %v2177
        %v2308 = vadd.f32 %v1918, %v2182
        %v2309 = vadd.f32 %v1919, %v2187
        %v2310 = vadd.f32 %v1920, %v2192
        %v2311 = vadd.f32 %v1921, %v2197
        %v2312 = vadd.f32 %v1922, %v2202
        %v2313 = vadd.f32 %v1923, %v2207
        %v2314 = vadd.f32 %v1924, %v2212
        %v2315 = vadd.f32 %v1925, %v2217
        %v2316 = vadd.f32 %v1926, %v2222
        %v2317 = vadd.f32 %v1927, %v2227
        %v2318 = vadd.f32 %v1928, %v2232
        %v2319 = vadd.f32 %v1929, %v2237
        %v2320 = vadd.f32 %v1930, %v2242
        %v2321 = vadd.f32 %v1931, %v2247
        %v2322 = vadd.f32 %v1932, %v2252
        %v2323 = vadd.f32 %v1933, %v2257
        %v2324 = vadd.f32 %v1934, %v2262
        %v2325 = vadd.f32 %v1935, %v2267
        %v2326 = vadd.f32 %v1936, %v2272
        %v2327 = vadd.f32 %v1937, %v2277
        %v2328 = vadd.f32 %v1938, %v2282
        %v2329 = vadd.f32 %v1939, %v2287
        %v2330 = vadd.f32 %v1940, %v2292
        %v2331 = vadd.f32 %v1941, %v2297
        %v2332 = vld [vmem:[%s414 + $0x2] sm:$0xff]
        %v2333 = vld [vmem:[%s414 + $0xa] sm:$0xff]
        %v2334 = vld [vmem:[%s414 + $0x1a] sm:$0xff]
        %v2335 = vld [vmem:[%s414 + $0x22] sm:$0xff]
        %v2336 = vld [vmem:[%s414 + $0x32] sm:$0xff]
        %v2337 = vld [vmem:[%s414 + $0x3a] sm:$0xff]
        %v2338 = vld [vmem:[%s414 + $0x4a] sm:$0xff]
        %v2339 = vld [vmem:[%s414 + $0x52] sm:$0xff]
        %v2340 = vld [vmem:[%s414 + $0x62] sm:$0xff]
        %v2341 = vld [vmem:[%s414 + $0x6a] sm:$0xff]
        %v2342 = vld [vmem:[%s414 + $0x7a] sm:$0xff]
        %v2343 = vld [vmem:[%s414 + $0x82] sm:$0xff]
        %v2344 = vld [vmem:[%s414 + $0x92] sm:$0xff]
        %v2345 = vld [vmem:[%s414 + $0x9a] sm:$0xff]
        %v2346 = vld [vmem:[%s414 + $0xaa] sm:$0xff]
        %v2347 = vld [vmem:[%s414 + $0xb2] sm:$0xff]
        %v2348 = vld [vmem:[%s414 + $0xc2] sm:$0xff]
        %v2349 = vld [vmem:[%s414 + $0xca] sm:$0xff]
        %v2350 = vld [vmem:[%s414 + $0xda] sm:$0xff]
        %v2351 = vld [vmem:[%s414 + $0xe2] sm:$0xff]
        %v2352 = vld [vmem:[%s414 + $0xf2] sm:$0xff]
        %v2353 = vld [vmem:[%s414 + $0xfa] sm:$0xff]
        %v2354 = vld [vmem:[%s414 + $0x10a] sm:$0xff]
        %v2355 = vld [vmem:[%s414 + $0x112] sm:$0xff]
        %v2356 = vld [vmem:[%s414 + $0x122] sm:$0xff]
        %v2357 = vld [vmem:[%s414 + $0x12a] sm:$0xff]
        %v2358 = vld [vmem:[%s414 + $0x13a] sm:$0xff]
        %v2359 = vld [vmem:[%s414 + $0x142] sm:$0xff]
        %v2360 = vld [vmem:[%s414 + $0x152] sm:$0xff]
        %v2361 = vld [vmem:[%s414 + $0x15a] sm:$0xff]
        %v2362 = vld [vmem:[%s414 + $0x16a] sm:$0xff]
        %v2363 = vld [vmem:[%s414 + $0x172] sm:$0xff]
        %s2364 = scalar_lea.vmem [#allocation7], 160
        %v2365 = vld [vmem:[%s2364] sm:$0xff]
        %v2366 = vld [vmem:[%s2364 + $0x8] sm:$0xff]
        %v2367 = vld [vmem:[%s2364 + $0x10] sm:$0xff]
        %v2368 = vld [vmem:[%s2364 + $0x18] sm:$0xff]
        %v2370 = vsel %vm326, %v2332, 0
        %v2373 = vsel %vm326, %v2333, 0
        %v2376 = vsel %vm326, %v2334, 0
        %v2379 = vsel %vm326, %v2335, 0
        %v2382 = vsel %vm326, %v2336, 0
        %v2385 = vsel %vm326, %v2337, 0
        %v2388 = vsel %vm326, %v2338, 0
        %v2391 = vsel %vm326, %v2339, 0
        %v2394 = vsel %vm326, %v2340, 0
        %v2397 = vsel %vm326, %v2341, 0
        %v2400 = vsel %vm326, %v2342, 0
        %v2403 = vsel %vm326, %v2343, 0
        %v2406 = vsel %vm326, %v2344, 0
        %v2409 = vsel %vm326, %v2345, 0
        %v2412 = vsel %vm326, %v2346, 0
        %v2415 = vsel %vm326, %v2347, 0
        %v2418 = vsel %vm326, %v2348, 0
        %v2421 = vsel %vm326, %v2349, 0
        %v2424 = vsel %vm326, %v2350, 0
        %v2427 = vsel %vm326, %v2351, 0
        %v2430 = vsel %vm326, %v2352, 0
        %v2433 = vsel %vm326, %v2353, 0
        %v2436 = vsel %vm326, %v2354, 0
        %v2439 = vsel %vm326, %v2355, 0
        %v2442 = vsel %vm326, %v2356, 0
        %v2445 = vsel %vm326, %v2357, 0
        %v2448 = vsel %vm326, %v2358, 0
        %v2451 = vsel %vm326, %v2359, 0
        %v2454 = vsel %vm326, %v2360, 0
        %v2457 = vsel %vm326, %v2361, 0
        %v2460 = vsel %vm326, %v2362, 0
        %v2463 = vsel %vm326, %v2363, 0
        %2465 = vmatprep.subr.mxu0 0.0
        %2466 = vmatpush1.msra.mxu0 %v2365
        %2467 = vmatprep.subr.mxu0 0.0
        %2468 = vmatpush1.msra.mxu0 %v2366
        %2469 = vmatprep.subr.mxu0 0.0
        %2470 = vmatpush1.msra.mxu0 %v2367
        %2471 = vmatprep.subr.mxu0 0.0
        %2472 = vmatpush1.msra.mxu0 %v2368
        %2473 = vmatprep.subr.mxu0 0.0
        %2474 = vmatpush1.msra.mxu0 0.0
        %2475 = vmatprep.subr.mxu0 0.0
        %2476 = vmatpush1.msra.mxu0 0.0
        %2477 = vmatprep.subr.mxu0 0.0
        %2478 = vmatpush1.msra.mxu0 0.0
        %2479 = vmatprep.subr.mxu0 0.0
        %2480 = vmatpush1.msra.mxu0 0.0
        %2481 = vmatprep.subr.mxu0 0.0
        %2482 = vmatpush1.msra.mxu0 0.0
        %2483 = vmatprep.subr.mxu0 0.0
        %2484 = vmatpush1.msra.mxu0 0.0
        %2485 = vmatprep.subr.mxu0 0.0
        %2486 = vmatpush1.msra.mxu0 0.0
        %2487 = vmatprep.subr.mxu0 0.0
        %2488 = vmatpush1.msra.mxu0 0.0
        %2489 = vmatprep.subr.mxu0 0.0
        %2490 = vmatpush1.msra.mxu0 0.0
        %2491 = vmatprep.subr.mxu0 0.0
        %2492 = vmatpush1.msra.mxu0 0.0
        %2493 = vmatprep.subr.mxu0 0.0
        %2494 = vmatpush1.msra.mxu0 0.0
        %2495 = vmatprep.subr.mxu0 0.0
        %2496 = vmatpush1.msra.mxu0 0.0
        %2497 = vmatprep.subr.mxu0 0.0
        %2498 = vmatpush1.msra.mxu0 0.0
        %2499 = vmatprep.subr.mxu0 0.0
        %2500 = vmatpush1.msra.mxu0 0.0
        %2501 = vmatprep.subr.mxu0 0.0
        %2502 = vmatpush1.msra.mxu0 0.0
        %2503 = vmatprep.subr.mxu0 0.0
        %2504 = vmatpush1.msra.mxu0 0.0
        %2505 = vmatprep.subr.mxu0 0.0
        %2506 = vmatpush1.msra.mxu0 0.0
        %2507 = vmatprep.subr.mxu0 0.0
        %2508 = vmatpush1.msra.mxu0 0.0
        %2509 = vmatprep.subr.mxu0 0.0
        %2510 = vmatpush1.msra.mxu0 0.0
        %2511 = vmatprep.subr.mxu0 0.0
        %2512 = vmatpush1.msra.mxu0 0.0
        %2513 = vmatprep.subr.mxu0 0.0
        %2514 = vmatpush1.msra.mxu0 0.0
        %2515 = vmatprep.subr.mxu0 0.0
        %2516 = vmatpush1.msra.mxu0 0.0
        %2517 = vmatprep.subr.mxu0 0.0
        %2518 = vmatpush1.msra.mxu0 0.0
        %2519 = vmatprep.subr.mxu0 0.0
        %2520 = vmatpush1.msra.mxu0 0.0
        %2521 = vmatprep.subr.mxu0 0.0
        %2522 = vmatpush1.msra.mxu0 0.0
        %2523 = vmatprep.subr.mxu0 0.0
        %2524 = vmatpush1.msra.mxu0 0.0
        %2525 = vmatprep.subr.mxu0 0.0
        %2526 = vmatpush1.msra.mxu0 0.0
        %2527 = vmatprep.subr.mxu0 0.0
        %2528 = vmatpush1.msra.mxu0 0.0
        %2529 = vmatprep.mubr.f32.mxu0 0.0
        %2530 = vmatmul.mubr.f32.gmra.mrb[0].mxu0 %v2370
        %v2531 = vpop.f32.mrb[0].mxu0
        %v2532 = vadd.f32 0.0, %v2531
        %v2533 = vpop.f32.mrb[0].mxu0
        %2534 = vmatprep.mubr.f32.mxu0 0.0
        %2535 = vmatmul.mubr.f32.gmra.mrb[0].mxu0 %v2373
        %v2536 = vpop.f32.mrb[0].mxu0
        %v2537 = vadd.f32 0.0, %v2536
        %v2538 = vpop.f32.mrb[0].mxu0
        %2539 = vmatprep.mubr.f32.mxu0 0.0
        %2540 = vmatmul.mubr.f32.gmra.mrb[0].mxu0 %v2376
        %v2541 = vpop.f32.mrb[0].mxu0
        %v2542 = vadd.f32 0.0, %v2541
        %v2543 = vpop.f32.mrb[0].mxu0
        %2544 = vmatprep.mubr.f32.mxu0 0.0
        %2545 = vmatmul.mubr.f32.gmra.mrb[0].mxu0 %v2379
        %v2546 = vpop.f32.mrb[0].mxu0
        %v2547 = vadd.f32 0.0, %v2546
        %v2548 = vpop.f32.mrb[0].mxu0
        %2549 = vmatprep.mubr.f32.mxu0 0.0
        %2550 = vmatmul.mubr.f32.gmra.mrb[0].mxu0 %v2382
        %v2551 = vpop.f32.mrb[0].mxu0
        %v2552 = vadd.f32 0.0, %v2551
        %v2553 = vpop.f32.mrb[0].mxu0
        %2554 = vmatprep.mubr.f32.mxu0 0.0
        %2555 = vmatmul.mubr.f32.gmra.mrb[0].mxu0 %v2385
        %v2556 = vpop.f32.mrb[0].mxu0
        %v2557 = vadd.f32 0.0, %v2556
        %v2558 = vpop.f32.mrb[0].mxu0
        %2559 = vmatprep.mubr.f32.mxu0 0.0
        %2560 = vmatmul.mubr.f32.gmra.mrb[0].mxu0 %v2388
        %v2561 = vpop.f32.mrb[0].mxu0
        %v2562 = vadd.f32 0.0, %v2561
        %v2563 = vpop.f32.mrb[0].mxu0
        %2564 = vmatprep.mubr.f32.mxu0 0.0
        %2565 = vmatmul.mubr.f32.gmra.mrb[0].mxu0 %v2391
        %v2566 = vpop.f32.mrb[0].mxu0
        %v2567 = vadd.f32 0.0, %v2566
        %v2568 = vpop.f32.mrb[0].mxu0
        %2569 = vmatprep.mubr.f32.mxu0 0.0
        %2570 = vmatmul.mubr.f32.gmra.mrb[0].mxu0 %v2394
        %v2571 = vpop.f32.mrb[0].mxu0
        %v2572 = vadd.f32 0.0, %v2571
        %v2573 = vpop.f32.mrb[0].mxu0
        %2574 = vmatprep.mubr.f32.mxu0 0.0
        %2575 = vmatmul.mubr.f32.gmra.mrb[0].mxu0 %v2397
        %v2576 = vpop.f32.mrb[0].mxu0
        %v2577 = vadd.f32 0.0, %v2576
        %v2578 = vpop.f32.mrb[0].mxu0
        %2579 = vmatprep.mubr.f32.mxu0 0.0
        %2580 = vmatmul.mubr.f32.gmra.mrb[0].mxu0 %v2400
        %v2581 = vpop.f32.mrb[0].mxu0
        %v2582 = vadd.f32 0.0, %v2581
        %v2583 = vpop.f32.mrb[0].mxu0
        %2584 = vmatprep.mubr.f32.mxu0 0.0
        %2585 = vmatmul.mubr.f32.gmra.mrb[0].mxu0 %v2403
        %v2586 = vpop.f32.mrb[0].mxu0
        %v2587 = vadd.f32 0.0, %v2586
        %v2588 = vpop.f32.mrb[0].mxu0
        %2589 = vmatprep.mubr.f32.mxu0 0.0
        %2590 = vmatmul.mubr.f32.gmra.mrb[0].mxu0 %v2406
        %v2591 = vpop.f32.mrb[0].mxu0
        %v2592 = vadd.f32 0.0, %v2591
        %v2593 = vpop.f32.mrb[0].mxu0
        %2594 = vmatprep.mubr.f32.mxu0 0.0
        %2595 = vmatmul.mubr.f32.gmra.mrb[0].mxu0 %v2409
        %v2596 = vpop.f32.mrb[0].mxu0
        %v2597 = vadd.f32 0.0, %v2596
        %v2598 = vpop.f32.mrb[0].mxu0
        %2599 = vmatprep.mubr.f32.mxu0 0.0
        %2600 = vmatmul.mubr.f32.gmra.mrb[0].mxu0 %v2412
        %v2601 = vpop.f32.mrb[0].mxu0
        %v2602 = vadd.f32 0.0, %v2601
        %v2603 = vpop.f32.mrb[0].mxu0
        %2604 = vmatprep.mubr.f32.mxu0 0.0
        %2605 = vmatmul.mubr.f32.gmra.mrb[0].mxu0 %v2415
        %v2606 = vpop.f32.mrb[0].mxu0
        %v2607 = vadd.f32 0.0, %v2606
        %v2608 = vpop.f32.mrb[0].mxu0
        %2609 = vmatprep.mubr.f32.mxu0 0.0
        %2610 = vmatmul.mubr.f32.gmra.mrb[0].mxu0 %v2418
        %v2611 = vpop.f32.mrb[0].mxu0
        %v2612 = vadd.f32 0.0, %v2611
        %v2613 = vpop.f32.mrb[0].mxu0
        %2614 = vmatprep.mubr.f32.mxu0 0.0
        %2615 = vmatmul.mubr.f32.gmra.mrb[0].mxu0 %v2421
        %v2616 = vpop.f32.mrb[0].mxu0
        %v2617 = vadd.f32 0.0, %v2616
        %v2618 = vpop.f32.mrb[0].mxu0
        %2619 = vmatprep.mubr.f32.mxu0 0.0
        %2620 = vmatmul.mubr.f32.gmra.mrb[0].mxu0 %v2424
        %v2621 = vpop.f32.mrb[0].mxu0
        %v2622 = vadd.f32 0.0, %v2621
        %v2623 = vpop.f32.mrb[0].mxu0
        %2624 = vmatprep.mubr.f32.mxu0 0.0
        %2625 = vmatmul.mubr.f32.gmra.mrb[0].mxu0 %v2427
        %v2626 = vpop.f32.mrb[0].mxu0
        %v2627 = vadd.f32 0.0, %v2626
        %v2628 = vpop.f32.mrb[0].mxu0
        %2629 = vmatprep.mubr.f32.mxu0 0.0
        %2630 = vmatmul.mubr.f32.gmra.mrb[0].mxu0 %v2430
        %v2631 = vpop.f32.mrb[0].mxu0
        %v2632 = vadd.f32 0.0, %v2631
        %v2633 = vpop.f32.mrb[0].mxu0
        %2634 = vmatprep.mubr.f32.mxu0 0.0
        %2635 = vmatmul.mubr.f32.gmra.mrb[0].mxu0 %v2433
        %v2636 = vpop.f32.mrb[0].mxu0
        %v2637 = vadd.f32 0.0, %v2636
        %v2638 = vpop.f32.mrb[0].mxu0
        %2639 = vmatprep.mubr.f32.mxu0 0.0
        %2640 = vmatmul.mubr.f32.gmra.mrb[0].mxu0 %v2436
        %v2641 = vpop.f32.mrb[0].mxu0
        %v2642 = vadd.f32 0.0, %v2641
        %v2643 = vpop.f32.mrb[0].mxu0
        %2644 = vmatprep.mubr.f32.mxu0 0.0
        %2645 = vmatmul.mubr.f32.gmra.mrb[0].mxu0 %v2439
        %v2646 = vpop.f32.mrb[0].mxu0
        %v2647 = vadd.f32 0.0, %v2646
        %v2648 = vpop.f32.mrb[0].mxu0
        %2649 = vmatprep.mubr.f32.mxu0 0.0
        %2650 = vmatmul.mubr.f32.gmra.mrb[0].mxu0 %v2442
        %v2651 = vpop.f32.mrb[0].mxu0
        %v2652 = vadd.f32 0.0, %v2651
        %v2653 = vpop.f32.mrb[0].mxu0
        %2654 = vmatprep.mubr.f32.mxu0 0.0
        %2655 = vmatmul.mubr.f32.gmra.mrb[0].mxu0 %v2445
        %v2656 = vpop.f32.mrb[0].mxu0
        %v2657 = vadd.f32 0.0, %v2656
        %v2658 = vpop.f32.mrb[0].mxu0
        %2659 = vmatprep.mubr.f32.mxu0 0.0
        %2660 = vmatmul.mubr.f32.gmra.mrb[0].mxu0 %v2448
        %v2661 = vpop.f32.mrb[0].mxu0
        %v2662 = vadd.f32 0.0, %v2661
        %v2663 = vpop.f32.mrb[0].mxu0
        %2664 = vmatprep.mubr.f32.mxu0 0.0
        %2665 = vmatmul.mubr.f32.gmra.mrb[0].mxu0 %v2451
        %v2666 = vpop.f32.mrb[0].mxu0
        %v2667 = vadd.f32 0.0, %v2666
        %v2668 = vpop.f32.mrb[0].mxu0
        %2669 = vmatprep.mubr.f32.mxu0 0.0
        %2670 = vmatmul.mubr.f32.gmra.mrb[0].mxu0 %v2454
        %v2671 = vpop.f32.mrb[0].mxu0
        %v2672 = vadd.f32 0.0, %v2671
        %v2673 = vpop.f32.mrb[0].mxu0
        %2674 = vmatprep.mubr.f32.mxu0 0.0
        %2675 = vmatmul.mubr.f32.gmra.mrb[0].mxu0 %v2457
        %v2676 = vpop.f32.mrb[0].mxu0
        %v2677 = vadd.f32 0.0, %v2676
        %v2678 = vpop.f32.mrb[0].mxu0
        %2679 = vmatprep.mubr.f32.mxu0 0.0
        %2680 = vmatmul.mubr.f32.gmra.mrb[0].mxu0 %v2460
        %v2681 = vpop.f32.mrb[0].mxu0
        %v2682 = vadd.f32 0.0, %v2681
        %v2683 = vpop.f32.mrb[0].mxu0
        %2684 = vmatprep.mubr.f32.mxu0 0.0
        %2685 = vmatmul.mubr.f32.gmra.mrb[0].mxu0 %v2463
        %v2686 = vpop.f32.mrb[0].mxu0
        %v2687 = vadd.f32 0.0, %v2686
        %v2688 = vpop.f32.mrb[0].mxu0
        %2689 = vdwg.mxu0
        %v2690 = vadd.f32 %v2300, %v2532
        %v2691 = vadd.f32 %v2301, %v2537
        %v2692 = vadd.f32 %v2302, %v2542
        %v2693 = vadd.f32 %v2303, %v2547
        %v2694 = vadd.f32 %v2304, %v2552
        %v2695 = vadd.f32 %v2305, %v2557
        %v2696 = vadd.f32 %v2306, %v2562
        %v2697 = vadd.f32 %v2307, %v2567
        %v2698 = vadd.f32 %v2308, %v2572
        %v2699 = vadd.f32 %v2309, %v2577
        %v2700 = vadd.f32 %v2310, %v2582
        %v2701 = vadd.f32 %v2311, %v2587
        %v2702 = vadd.f32 %v2312, %v2592
        %v2703 = vadd.f32 %v2313, %v2597
        %v2704 = vadd.f32 %v2314, %v2602
        %v2705 = vadd.f32 %v2315, %v2607
        %v2706 = vadd.f32 %v2316, %v2612
        %v2707 = vadd.f32 %v2317, %v2617
        %v2708 = vadd.f32 %v2318, %v2622
        %v2709 = vadd.f32 %v2319, %v2627
        %v2710 = vadd.f32 %v2320, %v2632
        %v2711 = vadd.f32 %v2321, %v2637
        %v2712 = vadd.f32 %v2322, %v2642
        %v2713 = vadd.f32 %v2323, %v2647
        %v2714 = vadd.f32 %v2324, %v2652
        %v2715 = vadd.f32 %v2325, %v2657
        %v2716 = vadd.f32 %v2326, %v2662
        %v2717 = vadd.f32 %v2327, %v2667
        %v2718 = vadd.f32 %v2328, %v2672
        %v2719 = vadd.f32 %v2329, %v2677
        %v2720 = vadd.f32 %v2330, %v2682
        %v2721 = vadd.f32 %v2331, %v2687
        %s2722 = scalar_lea.vmem [#allocation2], 48
        %v2723 = vld [vmem:[%s2722] sm:$0xff]
        %v2724 = vld [vmem:[%s2722 + $0x8] sm:$0xff]
        %v2725 = vld [vmem:[%s2722 + $0x18] sm:$0xff]
        %v2726 = vld [vmem:[%s2722 + $0x20] sm:$0xff]
        %v2727 = vld [vmem:[%s2722 + $0x30] sm:$0xff]
        %v2728 = vld [vmem:[%s2722 + $0x38] sm:$0xff]
        %v2729 = vld [vmem:[%s2722 + $0x48] sm:$0xff]
        %v2730 = vld [vmem:[%s2722 + $0x50] sm:$0xff]
        %v2731 = vld [vmem:[%s2722 + $0x60] sm:$0xff]
        %v2732 = vld [vmem:[%s2722 + $0x68] sm:$0xff]
        %v2733 = vld [vmem:[%s2722 + $0x78] sm:$0xff]
        %v2734 = vld [vmem:[%s2722 + $0x80] sm:$0xff]
        %v2735 = vld [vmem:[%s2722 + $0x90] sm:$0xff]
        %v2736 = vld [vmem:[%s2722 + $0x98] sm:$0xff]
        %v2737 = vld [vmem:[%s2722 + $0xa8] sm:$0xff]
        %v2738 = vld [vmem:[%s2722 + $0xb0] sm:$0xff]
        %v2739 = vld [vmem:[%s2722 + $0xc0] sm:$0xff]
        %v2740 = vld [vmem:[%s2722 + $0xc8] sm:$0xff]
        %v2741 = vld [vmem:[%s2722 + $0xd8] sm:$0xff]
        %v2742 = vld [vmem:[%s2722 + $0xe0] sm:$0xff]
        %v2743 = vld [vmem:[%s2722 + $0xf0] sm:$0xff]
        %v2744 = vld [vmem:[%s2722 + $0xf8] sm:$0xff]
        %v2745 = vld [vmem:[%s2722 + $0x108] sm:$0xff]
        %v2746 = vld [vmem:[%s2722 + $0x110] sm:$0xff]
        %v2747 = vld [vmem:[%s2722 + $0x120] sm:$0xff]
        %v2748 = vld [vmem:[%s2722 + $0x128] sm:$0xff]
        %v2749 = vld [vmem:[%s2722 + $0x138] sm:$0xff]
        %v2750 = vld [vmem:[%s2722 + $0x140] sm:$0xff]
        %v2751 = vld [vmem:[%s2722 + $0x150] sm:$0xff]
        %v2752 = vld [vmem:[%s2722 + $0x158] sm:$0xff]
        %v2753 = vld [vmem:[%s2722 + $0x168] sm:$0xff]
        %v2754 = vld [vmem:[%s2722 + $0x170] sm:$0xff]
        %s2755 = scalar_lea.vmem [#allocation7], 192
        %v2756 = vld [vmem:[%s2755] sm:$0xff]
        %v2757 = vld [vmem:[%s2755 + $0x8] sm:$0xff]
        %v2758 = vld [vmem:[%s2755 + $0x10] sm:$0xff]
        %v2759 = vld [vmem:[%s2755 + $0x18] sm:$0xff]
        %v2761 = vsel %vm326, %v2723, 0
        %v2764 = vsel %vm326, %v2724, 0
        %v2767 = vsel %vm326, %v2725, 0
        %v2770 = vsel %vm326, %v2726, 0
        %v2773 = vsel %vm326, %v2727, 0
        %v2776 = vsel %vm326, %v2728, 0
        %v2779 = vsel %vm326, %v2729, 0
        %v2782 = vsel %vm326, %v2730, 0
        %v2785 = vsel %vm326, %v2731, 0
        %v2788 = vsel %vm326, %v2732, 0
        %v2791 = vsel %vm326, %v2733, 0
        %v2794 = vsel %vm326, %v2734, 0
        %v2797 = vsel %vm326, %v2735, 0
        %v2800 = vsel %vm326, %v2736, 0
        %v2803 = vsel %vm326, %v2737, 0
        %v2806 = vsel %vm326, %v2738, 0
        %v2809 = vsel %vm326, %v2739, 0
        %v2812 = vsel %vm326, %v2740, 0
        %v2815 = vsel %vm326, %v2741, 0
        %v2818 = vsel %vm326, %v2742, 0
        %v2821 = vsel %vm326, %v2743, 0
        %v2824 = vsel %vm326, %v2744, 0
        %v2827 = vsel %vm326, %v2745, 0
        %v2830 = vsel %vm326, %v2746, 0
        %v2833 = vsel %vm326, %v2747, 0
        %v2836 = vsel %vm326, %v2748, 0
        %v2839 = vsel %vm326, %v2749, 0
        %v2842 = vsel %vm326, %v2750, 0
        %v2845 = vsel %vm326, %v2751, 0
        %v2848 = vsel %vm326, %v2752, 0
        %v2851 = vsel %vm326, %v2753, 0
        %v2854 = vsel %vm326, %v2754, 0
        %2856 = vmatprep.subr.mxu0 0.0
        %2857 = vmatpush1.msra.mxu0 %v2756
        %2858 = vmatprep.subr.mxu0 0.0
        %2859 = vmatpush1.msra.mxu0 %v2757
        %2860 = vmatprep.subr.mxu0 0.0
        %2861 = vmatpush1.msra.mxu0 %v2758
        %2862 = vmatprep.subr.mxu0 0.0
        %2863 = vmatpush1.msra.mxu0 %v2759
        %2864 = vmatprep.subr.mxu0 0.0
        %2865 = vmatpush1.msra.mxu0 0.0
        %2866 = vmatprep.subr.mxu0 0.0
        %2867 = vmatpush1.msra.mxu0 0.0
        %2868 = vmatprep.subr.mxu0 0.0
        %2869 = vmatpush1.msra.mxu0 0.0
        %2870 = vmatprep.subr.mxu0 0.0
        %2871 = vmatpush1.msra.mxu0 0.0
        %2872 = vmatprep.subr.mxu0 0.0
        %2873 = vmatpush1.msra.mxu0 0.0
        %2874 = vmatprep.subr.mxu0 0.0
        %2875 = vmatpush1.msra.mxu0 0.0
        %2876 = vmatprep.subr.mxu0 0.0
        %2877 = vmatpush1.msra.mxu0 0.0
        %2878 = vmatprep.subr.mxu0 0.0
        %2879 = vmatpush1.msra.mxu0 0.0
        %2880 = vmatprep.subr.mxu0 0.0
        %2881 = vmatpush1.msra.mxu0 0.0
        %2882 = vmatprep.subr.mxu0 0.0
        %2883 = vmatpush1.msra.mxu0 0.0
        %2884 = vmatprep.subr.mxu0 0.0
        %2885 = vmatpush1.msra.mxu0 0.0
        %2886 = vmatprep.subr.mxu0 0.0
        %2887 = vmatpush1.msra.mxu0 0.0
        %2888 = vmatprep.subr.mxu0 0.0
        %2889 = vmatpush1.msra.mxu0 0.0
        %2890 = vmatprep.subr.mxu0 0.0
        %2891 = vmatpush1.msra.mxu0 0.0
        %2892 = vmatprep.subr.mxu0 0.0
        %2893 = vmatpush1.msra.mxu0 0.0
        %2894 = vmatprep.subr.mxu0 0.0
        %2895 = vmatpush1.msra.mxu0 0.0
        %2896 = vmatprep.subr.mxu0 0.0
        %2897 = vmatpush1.msra.mxu0 0.0
        %2898 = vmatprep.subr.mxu0 0.0
        %2899 = vmatpush1.msra.mxu0 0.0
        %2900 = vmatprep.subr.mxu0 0.0
        %2901 = vmatpush1.msra.mxu0 0.0
        %2902 = vmatprep.subr.mxu0 0.0
        %2903 = vmatpush1.msra.mxu0 0.0
        %2904 = vmatprep.subr.mxu0 0.0
        %2905 = vmatpush1.msra.mxu0 0.0
        %2906 = vmatprep.subr.mxu0 0.0
        %2907 = vmatpush1.msra.mxu0 0.0
        %2908 = vmatprep.subr.mxu0 0.0
        %2909 = vmatpush1.msra.mxu0 0.0
        %2910 = vmatprep.subr.mxu0 0.0
        %2911 = vmatpush1.msra.mxu0 0.0
        %2912 = vmatprep.subr.mxu0 0.0
        %2913 = vmatpush1.msra.mxu0 0.0
        %2914 = vmatprep.subr.mxu0 0.0
        %2915 = vmatpush1.msra.mxu0 0.0
        %2916 = vmatprep.subr.mxu0 0.0
        %2917 = vmatpush1.msra.mxu0 0.0
        %2918 = vmatprep.subr.mxu0 0.0
        %2919 = vmatpush1.msra.mxu0 0.0
        %2920 = vmatprep.mubr.f32.mxu0 0.0
        %2921 = vmatmul.mubr.f32.gmra.mrb[0].mxu0 %v2761
        %v2922 = vpop.f32.mrb[0].mxu0
        %v2923 = vadd.f32 0.0, %v2922
        %v2924 = vpop.f32.mrb[0].mxu0
        %2925 = vmatprep.mubr.f32.mxu0 0.0
        %2926 = vmatmul.mubr.f32.gmra.mrb[0].mxu0 %v2764
        %v2927 = vpop.f32.mrb[0].mxu0
        %v2928 = vadd.f32 0.0, %v2927
        %v2929 = vpop.f32.mrb[0].mxu0
        %2930 = vmatprep.mubr.f32.mxu0 0.0
        %2931 = vmatmul.mubr.f32.gmra.mrb[0].mxu0 %v2767
        %v2932 = vpop.f32.mrb[0].mxu0
        %v2933 = vadd.f32 0.0, %v2932
        %v2934 = vpop.f32.mrb[0].mxu0
        %2935 = vmatprep.mubr.f32.mxu0 0.0
        %2936 = vmatmul.mubr.f32.gmra.mrb[0].mxu0 %v2770
        %v2937 = vpop.f32.mrb[0].mxu0
        %v2938 = vadd.f32 0.0, %v2937
        %v2939 = vpop.f32.mrb[0].mxu0
        %2940 = vmatprep.mubr.f32.mxu0 0.0
        %2941 = vmatmul.mubr.f32.gmra.mrb[0].mxu0 %v2773
        %v2942 = vpop.f32.mrb[0].mxu0
        %v2943 = vadd.f32 0.0, %v2942
        %v2944 = vpop.f32.mrb[0].mxu0
        %2945 = vmatprep.mubr.f32.mxu0 0.0
        %2946 = vmatmul.mubr.f32.gmra.mrb[0].mxu0 %v2776
        %v2947 = vpop.f32.mrb[0].mxu0
        %v2948 = vadd.f32 0.0, %v2947
        %v2949 = vpop.f32.mrb[0].mxu0
        %2950 = vmatprep.mubr.f32.mxu0 0.0
        %2951 = vmatmul.mubr.f32.gmra.mrb[0].mxu0 %v2779
        %v2952 = vpop.f32.mrb[0].mxu0
        %v2953 = vadd.f32 0.0, %v2952
        %v2954 = vpop.f32.mrb[0].mxu0
        %2955 = vmatprep.mubr.f32.mxu0 0.0
        %2956 = vmatmul.mubr.f32.gmra.mrb[0].mxu0 %v2782
        %v2957 = vpop.f32.mrb[0].mxu0
        %v2958 = vadd.f32 0.0, %v2957
        %v2959 = vpop.f32.mrb[0].mxu0
        %2960 = vmatprep.mubr.f32.mxu0 0.0
        %2961 = vmatmul.mubr.f32.gmra.mrb[0].mxu0 %v2785
        %v2962 = vpop.f32.mrb[0].mxu0
        %v2963 = vadd.f32 0.0, %v2962
        %v2964 = vpop.f32.mrb[0].mxu0
        %2965 = vmatprep.mubr.f32.mxu0 0.0
        %2966 = vmatmul.mubr.f32.gmra.mrb[0].mxu0 %v2788
        %v2967 = vpop.f32.mrb[0].mxu0
        %v2968 = vadd.f32 0.0, %v2967
        %v2969 = vpop.f32.mrb[0].mxu0
        %2970 = vmatprep.mubr.f32.mxu0 0.0
        %2971 = vmatmul.mubr.f32.gmra.mrb[0].mxu0 %v2791
        %v2972 = vpop.f32.mrb[0].mxu0
        %v2973 = vadd.f32 0.0, %v2972
        %v2974 = vpop.f32.mrb[0].mxu0
        %2975 = vmatprep.mubr.f32.mxu0 0.0
        %2976 = vmatmul.mubr.f32.gmra.mrb[0].mxu0 %v2794
        %v2977 = vpop.f32.mrb[0].mxu0
        %v2978 = vadd.f32 0.0, %v2977
        %v2979 = vpop.f32.mrb[0].mxu0
        %2980 = vmatprep.mubr.f32.mxu0 0.0
        %2981 = vmatmul.mubr.f32.gmra.mrb[0].mxu0 %v2797
        %v2982 = vpop.f32.mrb[0].mxu0
        %v2983 = vadd.f32 0.0, %v2982
        %v2984 = vpop.f32.mrb[0].mxu0
        %2985 = vmatprep.mubr.f32.mxu0 0.0
        %2986 = vmatmul.mubr.f32.gmra.mrb[0].mxu0 %v2800
        %v2987 = vpop.f32.mrb[0].mxu0
        %v2988 = vadd.f32 0.0, %v2987
        %v2989 = vpop.f32.mrb[0].mxu0
        %2990 = vmatprep.mubr.f32.mxu0 0.0
        %2991 = vmatmul.mubr.f32.gmra.mrb[0].mxu0 %v2803
        %v2992 = vpop.f32.mrb[0].mxu0
        %v2993 = vadd.f32 0.0, %v2992
        %v2994 = vpop.f32.mrb[0].mxu0
        %2995 = vmatprep.mubr.f32.mxu0 0.0
        %2996 = vmatmul.mubr.f32.gmra.mrb[0].mxu0 %v2806
        %v2997 = vpop.f32.mrb[0].mxu0
        %v2998 = vadd.f32 0.0, %v2997
        %v2999 = vpop.f32.mrb[0].mxu0
        %3000 = vmatprep.mubr.f32.mxu0 0.0
        %3001 = vmatmul.mubr.f32.gmra.mrb[0].mxu0 %v2809
        %v3002 = vpop.f32.mrb[0].mxu0
        %v3003 = vadd.f32 0.0, %v3002
        %v3004 = vpop.f32.mrb[0].mxu0
        %3005 = vmatprep.mubr.f32.mxu0 0.0
        %3006 = vmatmul.mubr.f32.gmra.mrb[0].mxu0 %v2812
        %v3007 = vpop.f32.mrb[0].mxu0
        %v3008 = vadd.f32 0.0, %v3007
        %v3009 = vpop.f32.mrb[0].mxu0
        %3010 = vmatprep.mubr.f32.mxu0 0.0
        %3011 = vmatmul.mubr.f32.gmra.mrb[0].mxu0 %v2815
        %v3012 = vpop.f32.mrb[0].mxu0
        %v3013 = vadd.f32 0.0, %v3012
        %v3014 = vpop.f32.mrb[0].mxu0
        %3015 = vmatprep.mubr.f32.mxu0 0.0
        %3016 = vmatmul.mubr.f32.gmra.mrb[0].mxu0 %v2818
        %v3017 = vpop.f32.mrb[0].mxu0
        %v3018 = vadd.f32 0.0, %v3017
        %v3019 = vpop.f32.mrb[0].mxu0
        %3020 = vmatprep.mubr.f32.mxu0 0.0
        %3021 = vmatmul.mubr.f32.gmra.mrb[0].mxu0 %v2821
        %v3022 = vpop.f32.mrb[0].mxu0
        %v3023 = vadd.f32 0.0, %v3022
        %v3024 = vpop.f32.mrb[0].mxu0
        %3025 = vmatprep.mubr.f32.mxu0 0.0
        %3026 = vmatmul.mubr.f32.gmra.mrb[0].mxu0 %v2824
        %v3027 = vpop.f32.mrb[0].mxu0
        %v3028 = vadd.f32 0.0, %v3027
        %v3029 = vpop.f32.mrb[0].mxu0
        %3030 = vmatprep.mubr.f32.mxu0 0.0
        %3031 = vmatmul.mubr.f32.gmra.mrb[0].mxu0 %v2827
        %v3032 = vpop.f32.mrb[0].mxu0
        %v3033 = vadd.f32 0.0, %v3032
        %v3034 = vpop.f32.mrb[0].mxu0
        %3035 = vmatprep.mubr.f32.mxu0 0.0
        %3036 = vmatmul.mubr.f32.gmra.mrb[0].mxu0 %v2830
        %v3037 = vpop.f32.mrb[0].mxu0
        %v3038 = vadd.f32 0.0, %v3037
        %v3039 = vpop.f32.mrb[0].mxu0
        %3040 = vmatprep.mubr.f32.mxu0 0.0
        %3041 = vmatmul.mubr.f32.gmra.mrb[0].mxu0 %v2833
        %v3042 = vpop.f32.mrb[0].mxu0
        %v3043 = vadd.f32 0.0, %v3042
        %v3044 = vpop.f32.mrb[0].mxu0
        %3045 = vmatprep.mubr.f32.mxu0 0.0
        %3046 = vmatmul.mubr.f32.gmra.mrb[0].mxu0 %v2836
        %v3047 = vpop.f32.mrb[0].mxu0
        %v3048 = vadd.f32 0.0, %v3047
        %v3049 = vpop.f32.mrb[0].mxu0
        %3050 = vmatprep.mubr.f32.mxu0 0.0
        %3051 = vmatmul.mubr.f32.gmra.mrb[0].mxu0 %v2839
        %v3052 = vpop.f32.mrb[0].mxu0
        %v3053 = vadd.f32 0.0, %v3052
        %v3054 = vpop.f32.mrb[0].mxu0
        %3055 = vmatprep.mubr.f32.mxu0 0.0
        %3056 = vmatmul.mubr.f32.gmra.mrb[0].mxu0 %v2842
        %v3057 = vpop.f32.mrb[0].mxu0
        %v3058 = vadd.f32 0.0, %v3057
        %v3059 = vpop.f32.mrb[0].mxu0
        %3060 = vmatprep.mubr.f32.mxu0 0.0
        %3061 = vmatmul.mubr.f32.gmra.mrb[0].mxu0 %v2845
        %v3062 = vpop.f32.mrb[0].mxu0
        %v3063 = vadd.f32 0.0, %v3062
        %v3064 = vpop.f32.mrb[0].mxu0
        %3065 = vmatprep.mubr.f32.mxu0 0.0
        %3066 = vmatmul.mubr.f32.gmra.mrb[0].mxu0 %v2848
        %v3067 = vpop.f32.mrb[0].mxu0
        %v3068 = vadd.f32 0.0, %v3067
        %v3069 = vpop.f32.mrb[0].mxu0
        %3070 = vmatprep.mubr.f32.mxu0 0.0
        %3071 = vmatmul.mubr.f32.gmra.mrb[0].mxu0 %v2851
        %v3072 = vpop.f32.mrb[0].mxu0
        %v3073 = vadd.f32 0.0, %v3072
        %v3074 = vpop.f32.mrb[0].mxu0
        %3075 = vmatprep.mubr.f32.mxu0 0.0
        %3076 = vmatmul.mubr.f32.gmra.mrb[0].mxu0 %v2854
        %v3077 = vpop.f32.mrb[0].mxu0
        %v3078 = vadd.f32 0.0, %v3077
        %v3079 = vpop.f32.mrb[0].mxu0
        %3080 = vdwg.mxu0
        %v3081 = vadd.f32 %v2690, %v2923
        %v3082 = vadd.f32 %v2691, %v2928
        %v3083 = vadd.f32 %v2692, %v2933
        %v3084 = vadd.f32 %v2693, %v2938
        %v3085 = vadd.f32 %v2694, %v2943
        %v3086 = vadd.f32 %v2695, %v2948
        %v3087 = vadd.f32 %v2696, %v2953
        %v3088 = vadd.f32 %v2697, %v2958
        %v3089 = vadd.f32 %v2698, %v2963
        %v3090 = vadd.f32 %v2699, %v2968
        %v3091 = vadd.f32 %v2700, %v2973
        %v3092 = vadd.f32 %v2701, %v2978
        %v3093 = vadd.f32 %v2702, %v2983
        %v3094 = vadd.f32 %v2703, %v2988
        %v3095 = vadd.f32 %v2704, %v2993
        %v3096 = vadd.f32 %v2705, %v2998
        %v3097 = vadd.f32 %v2706, %v3003
        %v3098 = vadd.f32 %v2707, %v3008
        %v3099 = vadd.f32 %v2708, %v3013
        %v3100 = vadd.f32 %v2709, %v3018
        %v3101 = vadd.f32 %v2710, %v3023
        %v3102 = vadd.f32 %v2711, %v3028
        %v3103 = vadd.f32 %v2712, %v3033
        %v3104 = vadd.f32 %v2713, %v3038
        %v3105 = vadd.f32 %v2714, %v3043
        %v3106 = vadd.f32 %v2715, %v3048
        %v3107 = vadd.f32 %v2716, %v3053
        %v3108 = vadd.f32 %v2717, %v3058
        %v3109 = vadd.f32 %v2718, %v3063
        %v3110 = vadd.f32 %v2719, %v3068
        %v3111 = vadd.f32 %v2720, %v3073
        %v3112 = vadd.f32 %v2721, %v3078
        %v3113 = vld [vmem:[%s2722 + $0x1] sm:$0xff]
        %v3114 = vld [vmem:[%s2722 + $0x9] sm:$0xff]
        %v3115 = vld [vmem:[%s2722 + $0x19] sm:$0xff]
        %v3116 = vld [vmem:[%s2722 + $0x21] sm:$0xff]
        %v3117 = vld [vmem:[%s2722 + $0x31] sm:$0xff]
        %v3118 = vld [vmem:[%s2722 + $0x39] sm:$0xff]
        %v3119 = vld [vmem:[%s2722 + $0x49] sm:$0xff]
        %v3120 = vld [vmem:[%s2722 + $0x51] sm:$0xff]
        %v3121 = vld [vmem:[%s2722 + $0x61] sm:$0xff]
        %v3122 = vld [vmem:[%s2722 + $0x69] sm:$0xff]
        %v3123 = vld [vmem:[%s2722 + $0x79] sm:$0xff]
        %v3124 = vld [vmem:[%s2722 + $0x81] sm:$0xff]
        %v3125 = vld [vmem:[%s2722 + $0x91] sm:$0xff]
        %v3126 = vld [vmem:[%s2722 + $0x99] sm:$0xff]
        %v3127 = vld [vmem:[%s2722 + $0xa9] sm:$0xff]
        %v3128 = vld [vmem:[%s2722 + $0xb1] sm:$0xff]
        %v3129 = vld [vmem:[%s2722 + $0xc1] sm:$0xff]
        %v3130 = vld [vmem:[%s2722 + $0xc9] sm:$0xff]
        %v3131 = vld [vmem:[%s2722 + $0xd9] sm:$0xff]
        %v3132 = vld [vmem:[%s2722 + $0xe1] sm:$0xff]
        %v3133 = vld [vmem:[%s2722 + $0xf1] sm:$0xff]
        %v3134 = vld [vmem:[%s2722 + $0xf9] sm:$0xff]
        %v3135 = vld [vmem:[%s2722 + $0x109] sm:$0xff]
        %v3136 = vld [vmem:[%s2722 + $0x111] sm:$0xff]
        %v3137 = vld [vmem:[%s2722 + $0x121] sm:$0xff]
        %v3138 = vld [vmem:[%s2722 + $0x129] sm:$0xff]
        %v3139 = vld [vmem:[%s2722 + $0x139] sm:$0xff]
        %v3140 = vld [vmem:[%s2722 + $0x141] sm:$0xff]
        %v3141 = vld [vmem:[%s2722 + $0x151] sm:$0xff]
        %v3142 = vld [vmem:[%s2722 + $0x159] sm:$0xff]
        %v3143 = vld [vmem:[%s2722 + $0x169] sm:$0xff]
        %v3144 = vld [vmem:[%s2722 + $0x171] sm:$0xff]
        %s3145 = scalar_lea.vmem [#allocation7], 224
        %v3146 = vld [vmem:[%s3145] sm:$0xff]
        %v3147 = vld [vmem:[%s3145 + $0x8] sm:$0xff]
        %v3148 = vld [vmem:[%s3145 + $0x10] sm:$0xff]
        %v3149 = vld [vmem:[%s3145 + $0x18] sm:$0xff]
        %v3151 = vsel %vm326, %v3113, 0
        %v3154 = vsel %vm326, %v3114, 0
        %v3157 = vsel %vm326, %v3115, 0
        %v3160 = vsel %vm326, %v3116, 0
        %v3163 = vsel %vm326, %v3117, 0
        %v3166 = vsel %vm326, %v3118, 0
        %v3169 = vsel %vm326, %v3119, 0
        %v3172 = vsel %vm326, %v3120, 0
        %v3175 = vsel %vm326, %v3121, 0
        %v3178 = vsel %vm326, %v3122, 0
        %v3181 = vsel %vm326, %v3123, 0
        %v3184 = vsel %vm326, %v3124, 0
        %v3187 = vsel %vm326, %v3125, 0
        %v3190 = vsel %vm326, %v3126, 0
        %v3193 = vsel %vm326, %v3127, 0
        %v3196 = vsel %vm326, %v3128, 0
        %v3199 = vsel %vm326, %v3129, 0
        %v3202 = vsel %vm326, %v3130, 0
        %v3205 = vsel %vm326, %v3131, 0
        %v3208 = vsel %vm326, %v3132, 0
        %v3211 = vsel %vm326, %v3133, 0
        %v3214 = vsel %vm326, %v3134, 0
        %v3217 = vsel %vm326, %v3135, 0
        %v3220 = vsel %vm326, %v3136, 0
        %v3223 = vsel %vm326, %v3137, 0
        %v3226 = vsel %vm326, %v3138, 0
        %v3229 = vsel %vm326, %v3139, 0
        %v3232 = vsel %vm326, %v3140, 0
        %v3235 = vsel %vm326, %v3141, 0
        %v3238 = vsel %vm326, %v3142, 0
        %v3241 = vsel %vm326, %v3143, 0
        %v3244 = vsel %vm326, %v3144, 0
        %3246 = vmatprep.subr.mxu0 0.0
        %3247 = vmatpush1.msra.mxu0 %v3146
        %3248 = vmatprep.subr.mxu0 0.0
        %3249 = vmatpush1.msra.mxu0 %v3147
        %3250 = vmatprep.subr.mxu0 0.0
        %3251 = vmatpush1.msra.mxu0 %v3148
        %3252 = vmatprep.subr.mxu0 0.0
        %3253 = vmatpush1.msra.mxu0 %v3149
        %3254 = vmatprep.subr.mxu0 0.0
        %3255 = vmatpush1.msra.mxu0 0.0
        %3256 = vmatprep.subr.mxu0 0.0
        %3257 = vmatpush1.msra.mxu0 0.0
        %3258 = vmatprep.subr.mxu0 0.0
        %3259 = vmatpush1.msra.mxu0 0.0
        %3260 = vmatprep.subr.mxu0 0.0
        %3261 = vmatpush1.msra.mxu0 0.0
        %3262 = vmatprep.subr.mxu0 0.0
        %3263 = vmatpush1.msra.mxu0 0.0
        %3264 = vmatprep.subr.mxu0 0.0
        %3265 = vmatpush1.msra.mxu0 0.0
        %3266 = vmatprep.subr.mxu0 0.0
        %3267 = vmatpush1.msra.mxu0 0.0
        %3268 = vmatprep.subr.mxu0 0.0
        %3269 = vmatpush1.msra.mxu0 0.0
        %3270 = vmatprep.subr.mxu0 0.0
        %3271 = vmatpush1.msra.mxu0 0.0
        %3272 = vmatprep.subr.mxu0 0.0
        %3273 = vmatpush1.msra.mxu0 0.0
        %3274 = vmatprep.subr.mxu0 0.0
        %3275 = vmatpush1.msra.mxu0 0.0
        %3276 = vmatprep.subr.mxu0 0.0
        %3277 = vmatpush1.msra.mxu0 0.0
        %3278 = vmatprep.subr.mxu0 0.0
        %3279 = vmatpush1.msra.mxu0 0.0
        %3280 = vmatprep.subr.mxu0 0.0
        %3281 = vmatpush1.msra.mxu0 0.0
        %3282 = vmatprep.subr.mxu0 0.0
        %3283 = vmatpush1.msra.mxu0 0.0
        %3284 = vmatprep.subr.mxu0 0.0
        %3285 = vmatpush1.msra.mxu0 0.0
        %3286 = vmatprep.subr.mxu0 0.0
        %3287 = vmatpush1.msra.mxu0 0.0
        %3288 = vmatprep.subr.mxu0 0.0
        %3289 = vmatpush1.msra.mxu0 0.0
        %3290 = vmatprep.subr.mxu0 0.0
        %3291 = vmatpush1.msra.mxu0 0.0
        %3292 = vmatprep.subr.mxu0 0.0
        %3293 = vmatpush1.msra.mxu0 0.0
        %3294 = vmatprep.subr.mxu0 0.0
        %3295 = vmatpush1.msra.mxu0 0.0
        %3296 = vmatprep.subr.mxu0 0.0
        %3297 = vmatpush1.msra.mxu0 0.0
        %3298 = vmatprep.subr.mxu0 0.0
        %3299 = vmatpush1.msra.mxu0 0.0
        %3300 = vmatprep.subr.mxu0 0.0
        %3301 = vmatpush1.msra.mxu0 0.0
        %3302 = vmatprep.subr.mxu0 0.0
        %3303 = vmatpush1.msra.mxu0 0.0
        %3304 = vmatprep.subr.mxu0 0.0
        %3305 = vmatpush1.msra.mxu0 0.0
        %3306 = vmatprep.subr.mxu0 0.0
        %3307 = vmatpush1.msra.mxu0 0.0
        %3308 = vmatprep.subr.mxu0 0.0
        %3309 = vmatpush1.msra.mxu0 0.0
        %3310 = vmatprep.mubr.f32.mxu0 0.0
        %3311 = vmatmul.mubr.f32.gmra.mrb[0].mxu0 %v3151
        %v3312 = vpop.f32.mrb[0].mxu0
        %v3313 = vadd.f32 0.0, %v3312
        %v3314 = vpop.f32.mrb[0].mxu0
        %3315 = vmatprep.mubr.f32.mxu0 0.0
        %3316 = vmatmul.mubr.f32.gmra.mrb[0].mxu0 %v3154
        %v3317 = vpop.f32.mrb[0].mxu0
        %v3318 = vadd.f32 0.0, %v3317
        %v3319 = vpop.f32.mrb[0].mxu0
        %3320 = vmatprep.mubr.f32.mxu0 0.0
        %3321 = vmatmul.mubr.f32.gmra.mrb[0].mxu0 %v3157
        %v3322 = vpop.f32.mrb[0].mxu0
        %v3323 = vadd.f32 0.0, %v3322
        %v3324 = vpop.f32.mrb[0].mxu0
        %3325 = vmatprep.mubr.f32.mxu0 0.0
        %3326 = vmatmul.mubr.f32.gmra.mrb[0].mxu0 %v3160
        %v3327 = vpop.f32.mrb[0].mxu0
        %v3328 = vadd.f32 0.0, %v3327
        %v3329 = vpop.f32.mrb[0].mxu0
        %3330 = vmatprep.mubr.f32.mxu0 0.0
        %3331 = vmatmul.mubr.f32.gmra.mrb[0].mxu0 %v3163
        %v3332 = vpop.f32.mrb[0].mxu0
        %v3333 = vadd.f32 0.0, %v3332
        %v3334 = vpop.f32.mrb[0].mxu0
        %3335 = vmatprep.mubr.f32.mxu0 0.0
        %3336 = vmatmul.mubr.f32.gmra.mrb[0].mxu0 %v3166
        %v3337 = vpop.f32.mrb[0].mxu0
        %v3338 = vadd.f32 0.0, %v3337
        %v3339 = vpop.f32.mrb[0].mxu0
        %3340 = vmatprep.mubr.f32.mxu0 0.0
        %3341 = vmatmul.mubr.f32.gmra.mrb[0].mxu0 %v3169
        %v3342 = vpop.f32.mrb[0].mxu0
        %v3343 = vadd.f32 0.0, %v3342
        %v3344 = vpop.f32.mrb[0].mxu0
        %3345 = vmatprep.mubr.f32.mxu0 0.0
        %3346 = vmatmul.mubr.f32.gmra.mrb[0].mxu0 %v3172
        %v3347 = vpop.f32.mrb[0].mxu0
        %v3348 = vadd.f32 0.0, %v3347
        %v3349 = vpop.f32.mrb[0].mxu0
        %3350 = vmatprep.mubr.f32.mxu0 0.0
        %3351 = vmatmul.mubr.f32.gmra.mrb[0].mxu0 %v3175
        %v3352 = vpop.f32.mrb[0].mxu0
        %v3353 = vadd.f32 0.0, %v3352
        %v3354 = vpop.f32.mrb[0].mxu0
        %3355 = vmatprep.mubr.f32.mxu0 0.0
        %3356 = vmatmul.mubr.f32.gmra.mrb[0].mxu0 %v3178
        %v3357 = vpop.f32.mrb[0].mxu0
        %v3358 = vadd.f32 0.0, %v3357
        %v3359 = vpop.f32.mrb[0].mxu0
        %3360 = vmatprep.mubr.f32.mxu0 0.0
        %3361 = vmatmul.mubr.f32.gmra.mrb[0].mxu0 %v3181
        %v3362 = vpop.f32.mrb[0].mxu0
        %v3363 = vadd.f32 0.0, %v3362
        %v3364 = vpop.f32.mrb[0].mxu0
        %3365 = vmatprep.mubr.f32.mxu0 0.0
        %3366 = vmatmul.mubr.f32.gmra.mrb[0].mxu0 %v3184
        %v3367 = vpop.f32.mrb[0].mxu0
        %v3368 = vadd.f32 0.0, %v3367
        %v3369 = vpop.f32.mrb[0].mxu0
        %3370 = vmatprep.mubr.f32.mxu0 0.0
        %3371 = vmatmul.mubr.f32.gmra.mrb[0].mxu0 %v3187
        %v3372 = vpop.f32.mrb[0].mxu0
        %v3373 = vadd.f32 0.0, %v3372
        %v3374 = vpop.f32.mrb[0].mxu0
        %3375 = vmatprep.mubr.f32.mxu0 0.0
        %3376 = vmatmul.mubr.f32.gmra.mrb[0].mxu0 %v3190
        %v3377 = vpop.f32.mrb[0].mxu0
        %v3378 = vadd.f32 0.0, %v3377
        %v3379 = vpop.f32.mrb[0].mxu0
        %3380 = vmatprep.mubr.f32.mxu0 0.0
        %3381 = vmatmul.mubr.f32.gmra.mrb[0].mxu0 %v3193
        %v3382 = vpop.f32.mrb[0].mxu0
        %v3383 = vadd.f32 0.0, %v3382
        %v3384 = vpop.f32.mrb[0].mxu0
        %3385 = vmatprep.mubr.f32.mxu0 0.0
        %3386 = vmatmul.mubr.f32.gmra.mrb[0].mxu0 %v3196
        %v3387 = vpop.f32.mrb[0].mxu0
        %v3388 = vadd.f32 0.0, %v3387
        %v3389 = vpop.f32.mrb[0].mxu0
        %3390 = vmatprep.mubr.f32.mxu0 0.0
        %3391 = vmatmul.mubr.f32.gmra.mrb[0].mxu0 %v3199
        %v3392 = vpop.f32.mrb[0].mxu0
        %v3393 = vadd.f32 0.0, %v3392
        %v3394 = vpop.f32.mrb[0].mxu0
        %3395 = vmatprep.mubr.f32.mxu0 0.0
        %3396 = vmatmul.mubr.f32.gmra.mrb[0].mxu0 %v3202
        %v3397 = vpop.f32.mrb[0].mxu0
        %v3398 = vadd.f32 0.0, %v3397
        %v3399 = vpop.f32.mrb[0].mxu0
        %3400 = vmatprep.mubr.f32.mxu0 0.0
        %3401 = vmatmul.mubr.f32.gmra.mrb[0].mxu0 %v3205
        %v3402 = vpop.f32.mrb[0].mxu0
        %v3403 = vadd.f32 0.0, %v3402
        %v3404 = vpop.f32.mrb[0].mxu0
        %3405 = vmatprep.mubr.f32.mxu0 0.0
        %3406 = vmatmul.mubr.f32.gmra.mrb[0].mxu0 %v3208
        %v3407 = vpop.f32.mrb[0].mxu0
        %v3408 = vadd.f32 0.0, %v3407
        %v3409 = vpop.f32.mrb[0].mxu0
        %3410 = vmatprep.mubr.f32.mxu0 0.0
        %3411 = vmatmul.mubr.f32.gmra.mrb[0].mxu0 %v3211
        %v3412 = vpop.f32.mrb[0].mxu0
        %v3413 = vadd.f32 0.0, %v3412
        %v3414 = vpop.f32.mrb[0].mxu0
        %3415 = vmatprep.mubr.f32.mxu0 0.0
        %3416 = vmatmul.mubr.f32.gmra.mrb[0].mxu0 %v3214
        %v3417 = vpop.f32.mrb[0].mxu0
        %v3418 = vadd.f32 0.0, %v3417
        %v3419 = vpop.f32.mrb[0].mxu0
        %3420 = vmatprep.mubr.f32.mxu0 0.0
        %3421 = vmatmul.mubr.f32.gmra.mrb[0].mxu0 %v3217
        %v3422 = vpop.f32.mrb[0].mxu0
        %v3423 = vadd.f32 0.0, %v3422
        %v3424 = vpop.f32.mrb[0].mxu0
        %3425 = vmatprep.mubr.f32.mxu0 0.0
        %3426 = vmatmul.mubr.f32.gmra.mrb[0].mxu0 %v3220
        %v3427 = vpop.f32.mrb[0].mxu0
        %v3428 = vadd.f32 0.0, %v3427
        %v3429 = vpop.f32.mrb[0].mxu0
        %3430 = vmatprep.mubr.f32.mxu0 0.0
        %3431 = vmatmul.mubr.f32.gmra.mrb[0].mxu0 %v3223
        %v3432 = vpop.f32.mrb[0].mxu0
        %v3433 = vadd.f32 0.0, %v3432
        %v3434 = vpop.f32.mrb[0].mxu0
        %3435 = vmatprep.mubr.f32.mxu0 0.0
        %3436 = vmatmul.mubr.f32.gmra.mrb[0].mxu0 %v3226
        %v3437 = vpop.f32.mrb[0].mxu0
        %v3438 = vadd.f32 0.0, %v3437
        %v3439 = vpop.f32.mrb[0].mxu0
        %3440 = vmatprep.mubr.f32.mxu0 0.0
        %3441 = vmatmul.mubr.f32.gmra.mrb[0].mxu0 %v3229
        %v3442 = vpop.f32.mrb[0].mxu0
        %v3443 = vadd.f32 0.0, %v3442
        %v3444 = vpop.f32.mrb[0].mxu0
        %3445 = vmatprep.mubr.f32.mxu0 0.0
        %3446 = vmatmul.mubr.f32.gmra.mrb[0].mxu0 %v3232
        %v3447 = vpop.f32.mrb[0].mxu0
        %v3448 = vadd.f32 0.0, %v3447
        %v3449 = vpop.f32.mrb[0].mxu0
        %3450 = vmatprep.mubr.f32.mxu0 0.0
        %3451 = vmatmul.mubr.f32.gmra.mrb[0].mxu0 %v3235
        %v3452 = vpop.f32.mrb[0].mxu0
        %v3453 = vadd.f32 0.0, %v3452
        %v3454 = vpop.f32.mrb[0].mxu0
        %3455 = vmatprep.mubr.f32.mxu0 0.0
        %3456 = vmatmul.mubr.f32.gmra.mrb[0].mxu0 %v3238
        %v3457 = vpop.f32.mrb[0].mxu0
        %v3458 = vadd.f32 0.0, %v3457
        %v3459 = vpop.f32.mrb[0].mxu0
        %3460 = vmatprep.mubr.f32.mxu0 0.0
        %3461 = vmatmul.mubr.f32.gmra.mrb[0].mxu0 %v3241
        %v3462 = vpop.f32.mrb[0].mxu0
        %v3463 = vadd.f32 0.0, %v3462
        %v3464 = vpop.f32.mrb[0].mxu0
        %3465 = vmatprep.mubr.f32.mxu0 0.0
        %3466 = vmatmul.mubr.f32.gmra.mrb[0].mxu0 %v3244
        %v3467 = vpop.f32.mrb[0].mxu0
        %v3468 = vadd.f32 0.0, %v3467
        %v3469 = vpop.f32.mrb[0].mxu0
        %3470 = vdwg.mxu0
        %v3471 = vadd.f32 %v3081, %v3313
        %v3472 = vadd.f32 %v3082, %v3318
        %v3473 = vadd.f32 %v3083, %v3323
        %v3474 = vadd.f32 %v3084, %v3328
        %v3475 = vadd.f32 %v3085, %v3333
        %v3476 = vadd.f32 %v3086, %v3338
        %v3477 = vadd.f32 %v3087, %v3343
        %v3478 = vadd.f32 %v3088, %v3348
        %v3479 = vadd.f32 %v3089, %v3353
        %v3480 = vadd.f32 %v3090, %v3358
        %v3481 = vadd.f32 %v3091, %v3363
        %v3482 = vadd.f32 %v3092, %v3368
        %v3483 = vadd.f32 %v3093, %v3373
        %v3484 = vadd.f32 %v3094, %v3378
        %v3485 = vadd.f32 %v3095, %v3383
        %v3486 = vadd.f32 %v3096, %v3388
        %v3487 = vadd.f32 %v3097, %v3393
        %v3488 = vadd.f32 %v3098, %v3398
        %v3489 = vadd.f32 %v3099, %v3403
        %v3490 = vadd.f32 %v3100, %v3408
        %v3491 = vadd.f32 %v3101, %v3413
        %v3492 = vadd.f32 %v3102, %v3418
        %v3493 = vadd.f32 %v3103, %v3423
        %v3494 = vadd.f32 %v3104, %v3428
        %v3495 = vadd.f32 %v3105, %v3433
        %v3496 = vadd.f32 %v3106, %v3438
        %v3497 = vadd.f32 %v3107, %v3443
        %v3498 = vadd.f32 %v3108, %v3448
        %v3499 = vadd.f32 %v3109, %v3453
        %v3500 = vadd.f32 %v3110, %v3458
        %v3501 = vadd.f32 %v3111, %v3463
        %v3502 = vadd.f32 %v3112, %v3468
        %v3503 = vld [vmem:[%s2722 + $0x2] sm:$0xff]
        %v3504 = vld [vmem:[%s2722 + $0xa] sm:$0xff]
        %v3505 = vld [vmem:[%s2722 + $0x1a] sm:$0xff]
        %v3506 = vld [vmem:[%s2722 + $0x22] sm:$0xff]
        %v3507 = vld [vmem:[%s2722 + $0x32] sm:$0xff]
        %v3508 = vld [vmem:[%s2722 + $0x3a] sm:$0xff]
        %v3509 = vld [vmem:[%s2722 + $0x4a] sm:$0xff]
        %v3510 = vld [vmem:[%s2722 + $0x52] sm:$0xff]
        %v3511 = vld [vmem:[%s2722 + $0x62] sm:$0xff]
        %v3512 = vld [vmem:[%s2722 + $0x6a] sm:$0xff]
        %v3513 = vld [vmem:[%s2722 + $0x7a] sm:$0xff]
        %v3514 = vld [vmem:[%s2722 + $0x82] sm:$0xff]
        %v3515 = vld [vmem:[%s2722 + $0x92] sm:$0xff]
        %v3516 = vld [vmem:[%s2722 + $0x9a] sm:$0xff]
        %v3517 = vld [vmem:[%s2722 + $0xaa] sm:$0xff]
        %v3518 = vld [vmem:[%s2722 + $0xb2] sm:$0xff]
        %v3519 = vld [vmem:[%s2722 + $0xc2] sm:$0xff]
        %v3520 = vld [vmem:[%s2722 + $0xca] sm:$0xff]
        %v3521 = vld [vmem:[%s2722 + $0xda] sm:$0xff]
        %v3522 = vld [vmem:[%s2722 + $0xe2] sm:$0xff]
        %v3523 = vld [vmem:[%s2722 + $0xf2] sm:$0xff]
        %v3524 = vld [vmem:[%s2722 + $0xfa] sm:$0xff]
        %v3525 = vld [vmem:[%s2722 + $0x10a] sm:$0xff]
        %v3526 = vld [vmem:[%s2722 + $0x112] sm:$0xff]
        %v3527 = vld [vmem:[%s2722 + $0x122] sm:$0xff]
        %v3528 = vld [vmem:[%s2722 + $0x12a] sm:$0xff]
        %v3529 = vld [vmem:[%s2722 + $0x13a] sm:$0xff]
        %v3530 = vld [vmem:[%s2722 + $0x142] sm:$0xff]
        %v3531 = vld [vmem:[%s2722 + $0x152] sm:$0xff]
        %v3532 = vld [vmem:[%s2722 + $0x15a] sm:$0xff]
        %v3533 = vld [vmem:[%s2722 + $0x16a] sm:$0xff]
        %v3534 = vld [vmem:[%s2722 + $0x172] sm:$0xff]
        %s3535 = scalar_lea.vmem [#allocation7], 256
        %v3536 = vld [vmem:[%s3535] sm:$0xff]
        %v3537 = vld [vmem:[%s3535 + $0x8] sm:$0xff]
        %v3538 = vld [vmem:[%s3535 + $0x10] sm:$0xff]
        %v3539 = vld [vmem:[%s3535 + $0x18] sm:$0xff]
        %v3541 = vsel %vm326, %v3503, 0
        %v3544 = vsel %vm326, %v3504, 0
        %v3547 = vsel %vm326, %v3505, 0
        %v3550 = vsel %vm326, %v3506, 0
        %v3553 = vsel %vm326, %v3507, 0
        %v3556 = vsel %vm326, %v3508, 0
        %v3559 = vsel %vm326, %v3509, 0
        %v3562 = vsel %vm326, %v3510, 0
        %v3565 = vsel %vm326, %v3511, 0
        %v3568 = vsel %vm326, %v3512, 0
        %v3571 = vsel %vm326, %v3513, 0
        %v3574 = vsel %vm326, %v3514, 0
        %v3577 = vsel %vm326, %v3515, 0
        %v3580 = vsel %vm326, %v3516, 0
        %v3583 = vsel %vm326, %v3517, 0
        %v3586 = vsel %vm326, %v3518, 0
        %v3589 = vsel %vm326, %v3519, 0
        %v3592 = vsel %vm326, %v3520, 0
        %v3595 = vsel %vm326, %v3521, 0
        %v3598 = vsel %vm326, %v3522, 0
        %v3601 = vsel %vm326, %v3523, 0
        %v3604 = vsel %vm326, %v3524, 0
        %v3607 = vsel %vm326, %v3525, 0
        %v3610 = vsel %vm326, %v3526, 0
        %v3613 = vsel %vm326, %v3527, 0
        %v3616 = vsel %vm326, %v3528, 0
        %v3619 = vsel %vm326, %v3529, 0
        %v3622 = vsel %vm326, %v3530, 0
        %v3625 = vsel %vm326, %v3531, 0
        %v3628 = vsel %vm326, %v3532, 0
        %v3631 = vsel %vm326, %v3533, 0
        %v3634 = vsel %vm326, %v3534, 0
        %3636 = vmatprep.subr.mxu0 0.0
        %3637 = vmatpush1.msra.mxu0 %v3536
        %3638 = vmatprep.subr.mxu0 0.0
        %3639 = vmatpush1.msra.mxu0 %v3537
        %3640 = vmatprep.subr.mxu0 0.0
        %3641 = vmatpush1.msra.mxu0 %v3538
        %3642 = vmatprep.subr.mxu0 0.0
        %3643 = vmatpush1.msra.mxu0 %v3539
        %3644 = vmatprep.subr.mxu0 0.0
        %3645 = vmatpush1.msra.mxu0 0.0
        %3646 = vmatprep.subr.mxu0 0.0
        %3647 = vmatpush1.msra.mxu0 0.0
        %3648 = vmatprep.subr.mxu0 0.0
        %3649 = vmatpush1.msra.mxu0 0.0
        %3650 = vmatprep.subr.mxu0 0.0
        %3651 = vmatpush1.msra.mxu0 0.0
        %3652 = vmatprep.subr.mxu0 0.0
        %3653 = vmatpush1.msra.mxu0 0.0
        %3654 = vmatprep.subr.mxu0 0.0
        %3655 = vmatpush1.msra.mxu0 0.0
        %3656 = vmatprep.subr.mxu0 0.0
        %3657 = vmatpush1.msra.mxu0 0.0
        %3658 = vmatprep.subr.mxu0 0.0
        %3659 = vmatpush1.msra.mxu0 0.0
        %3660 = vmatprep.subr.mxu0 0.0
        %3661 = vmatpush1.msra.mxu0 0.0
        %3662 = vmatprep.subr.mxu0 0.0
        %3663 = vmatpush1.msra.mxu0 0.0
        %3664 = vmatprep.subr.mxu0 0.0
        %3665 = vmatpush1.msra.mxu0 0.0
        %3666 = vmatprep.subr.mxu0 0.0
        %3667 = vmatpush1.msra.mxu0 0.0
        %3668 = vmatprep.subr.mxu0 0.0
        %3669 = vmatpush1.msra.mxu0 0.0
        %3670 = vmatprep.subr.mxu0 0.0
        %3671 = vmatpush1.msra.mxu0 0.0
        %3672 = vmatprep.subr.mxu0 0.0
        %3673 = vmatpush1.msra.mxu0 0.0
        %3674 = vmatprep.subr.mxu0 0.0
        %3675 = vmatpush1.msra.mxu0 0.0
        %3676 = vmatprep.subr.mxu0 0.0
        %3677 = vmatpush1.msra.mxu0 0.0
        %3678 = vmatprep.subr.mxu0 0.0
        %3679 = vmatpush1.msra.mxu0 0.0
        %3680 = vmatprep.subr.mxu0 0.0
        %3681 = vmatpush1.msra.mxu0 0.0
        %3682 = vmatprep.subr.mxu0 0.0
        %3683 = vmatpush1.msra.mxu0 0.0
        %3684 = vmatprep.subr.mxu0 0.0
        %3685 = vmatpush1.msra.mxu0 0.0
        %3686 = vmatprep.subr.mxu0 0.0
        %3687 = vmatpush1.msra.mxu0 0.0
        %3688 = vmatprep.subr.mxu0 0.0
        %3689 = vmatpush1.msra.mxu0 0.0
        %3690 = vmatprep.subr.mxu0 0.0
        %3691 = vmatpush1.msra.mxu0 0.0
        %3692 = vmatprep.subr.mxu0 0.0
        %3693 = vmatpush1.msra.mxu0 0.0
        %3694 = vmatprep.subr.mxu0 0.0
        %3695 = vmatpush1.msra.mxu0 0.0
        %3696 = vmatprep.subr.mxu0 0.0
        %3697 = vmatpush1.msra.mxu0 0.0
        %3698 = vmatprep.subr.mxu0 0.0
        %3699 = vmatpush1.msra.mxu0 0.0
        %3700 = vmatprep.mubr.f32.mxu0 0.0
        %3701 = vmatmul.mubr.f32.gmra.mrb[0].mxu0 %v3541
        %v3702 = vpop.f32.mrb[0].mxu0
        %v3703 = vadd.f32 0.0, %v3702
        %v3704 = vpop.f32.mrb[0].mxu0
        %3705 = vmatprep.mubr.f32.mxu0 0.0
        %3706 = vmatmul.mubr.f32.gmra.mrb[0].mxu0 %v3544
        %v3707 = vpop.f32.mrb[0].mxu0
        %v3708 = vadd.f32 0.0, %v3707
        %v3709 = vpop.f32.mrb[0].mxu0
        %3710 = vmatprep.mubr.f32.mxu0 0.0
        %3711 = vmatmul.mubr.f32.gmra.mrb[0].mxu0 %v3547
        %v3712 = vpop.f32.mrb[0].mxu0
        %v3713 = vadd.f32 0.0, %v3712
        %v3714 = vpop.f32.mrb[0].mxu0
        %3715 = vmatprep.mubr.f32.mxu0 0.0
        %3716 = vmatmul.mubr.f32.gmra.mrb[0].mxu0 %v3550
        %v3717 = vpop.f32.mrb[0].mxu0
        %v3718 = vadd.f32 0.0, %v3717
        %v3719 = vpop.f32.mrb[0].mxu0
        %3720 = vmatprep.mubr.f32.mxu0 0.0
        %3721 = vmatmul.mubr.f32.gmra.mrb[0].mxu0 %v3553
        %v3722 = vpop.f32.mrb[0].mxu0
        %v3723 = vadd.f32 0.0, %v3722
        %v3724 = vpop.f32.mrb[0].mxu0
        %3725 = vmatprep.mubr.f32.mxu0 0.0
        %3726 = vmatmul.mubr.f32.gmra.mrb[0].mxu0 %v3556
        %v3727 = vpop.f32.mrb[0].mxu0
        %v3728 = vadd.f32 0.0, %v3727
        %v3729 = vpop.f32.mrb[0].mxu0
        %3730 = vmatprep.mubr.f32.mxu0 0.0
        %3731 = vmatmul.mubr.f32.gmra.mrb[0].mxu0 %v3559
        %v3732 = vpop.f32.mrb[0].mxu0
        %v3733 = vadd.f32 0.0, %v3732
        %v3734 = vpop.f32.mrb[0].mxu0
        %3735 = vmatprep.mubr.f32.mxu0 0.0
        %3736 = vmatmul.mubr.f32.gmra.mrb[0].mxu0 %v3562
        %v3737 = vpop.f32.mrb[0].mxu0
        %v3738 = vadd.f32 0.0, %v3737
        %v3739 = vpop.f32.mrb[0].mxu0
        %3740 = vmatprep.mubr.f32.mxu0 0.0
        %3741 = vmatmul.mubr.f32.gmra.mrb[0].mxu0 %v3565
        %v3742 = vpop.f32.mrb[0].mxu0
        %v3743 = vadd.f32 0.0, %v3742
        %v3744 = vpop.f32.mrb[0].mxu0
        %3745 = vmatprep.mubr.f32.mxu0 0.0
        %3746 = vmatmul.mubr.f32.gmra.mrb[0].mxu0 %v3568
        %v3747 = vpop.f32.mrb[0].mxu0
        %v3748 = vadd.f32 0.0, %v3747
        %v3749 = vpop.f32.mrb[0].mxu0
        %3750 = vmatprep.mubr.f32.mxu0 0.0
        %3751 = vmatmul.mubr.f32.gmra.mrb[0].mxu0 %v3571
        %v3752 = vpop.f32.mrb[0].mxu0
        %v3753 = vadd.f32 0.0, %v3752
        %v3754 = vpop.f32.mrb[0].mxu0
        %3755 = vmatprep.mubr.f32.mxu0 0.0
        %3756 = vmatmul.mubr.f32.gmra.mrb[0].mxu0 %v3574
        %v3757 = vpop.f32.mrb[0].mxu0
        %v3758 = vadd.f32 0.0, %v3757
        %v3759 = vpop.f32.mrb[0].mxu0
        %3760 = vmatprep.mubr.f32.mxu0 0.0
        %3761 = vmatmul.mubr.f32.gmra.mrb[0].mxu0 %v3577
        %v3762 = vpop.f32.mrb[0].mxu0
        %v3763 = vadd.f32 0.0, %v3762
        %v3764 = vpop.f32.mrb[0].mxu0
        %3765 = vmatprep.mubr.f32.mxu0 0.0
        %3766 = vmatmul.mubr.f32.gmra.mrb[0].mxu0 %v3580
        %v3767 = vpop.f32.mrb[0].mxu0
        %v3768 = vadd.f32 0.0, %v3767
        %v3769 = vpop.f32.mrb[0].mxu0
        %3770 = vmatprep.mubr.f32.mxu0 0.0
        %3771 = vmatmul.mubr.f32.gmra.mrb[0].mxu0 %v3583
        %v3772 = vpop.f32.mrb[0].mxu0
        %v3773 = vadd.f32 0.0, %v3772
        %v3774 = vpop.f32.mrb[0].mxu0
        %3775 = vmatprep.mubr.f32.mxu0 0.0
        %3776 = vmatmul.mubr.f32.gmra.mrb[0].mxu0 %v3586
        %v3777 = vpop.f32.mrb[0].mxu0
        %v3778 = vadd.f32 0.0, %v3777
        %v3779 = vpop.f32.mrb[0].mxu0
        %3780 = vmatprep.mubr.f32.mxu0 0.0
        %3781 = vmatmul.mubr.f32.gmra.mrb[0].mxu0 %v3589
        %v3782 = vpop.f32.mrb[0].mxu0
        %v3783 = vadd.f32 0.0, %v3782
        %v3784 = vpop.f32.mrb[0].mxu0
        %3785 = vmatprep.mubr.f32.mxu0 0.0
        %3786 = vmatmul.mubr.f32.gmra.mrb[0].mxu0 %v3592
        %v3787 = vpop.f32.mrb[0].mxu0
        %v3788 = vadd.f32 0.0, %v3787
        %v3789 = vpop.f32.mrb[0].mxu0
        %3790 = vmatprep.mubr.f32.mxu0 0.0
        %3791 = vmatmul.mubr.f32.gmra.mrb[0].mxu0 %v3595
        %v3792 = vpop.f32.mrb[0].mxu0
        %v3793 = vadd.f32 0.0, %v3792
        %v3794 = vpop.f32.mrb[0].mxu0
        %3795 = vmatprep.mubr.f32.mxu0 0.0
        %3796 = vmatmul.mubr.f32.gmra.mrb[0].mxu0 %v3598
        %v3797 = vpop.f32.mrb[0].mxu0
        %v3798 = vadd.f32 0.0, %v3797
        %v3799 = vpop.f32.mrb[0].mxu0
        %3800 = vmatprep.mubr.f32.mxu0 0.0
        %3801 = vmatmul.mubr.f32.gmra.mrb[0].mxu0 %v3601
        %v3802 = vpop.f32.mrb[0].mxu0
        %v3803 = vadd.f32 0.0, %v3802
        %v3804 = vpop.f32.mrb[0].mxu0
        %3805 = vmatprep.mubr.f32.mxu0 0.0
        %3806 = vmatmul.mubr.f32.gmra.mrb[0].mxu0 %v3604
        %v3807 = vpop.f32.mrb[0].mxu0
        %v3808 = vadd.f32 0.0, %v3807
        %v3809 = vpop.f32.mrb[0].mxu0
        %3810 = vmatprep.mubr.f32.mxu0 0.0
        %3811 = vmatmul.mubr.f32.gmra.mrb[0].mxu0 %v3607
        %v3812 = vpop.f32.mrb[0].mxu0
        %v3813 = vadd.f32 0.0, %v3812
        %v3814 = vpop.f32.mrb[0].mxu0
        %3815 = vmatprep.mubr.f32.mxu0 0.0
        %3816 = vmatmul.mubr.f32.gmra.mrb[0].mxu0 %v3610
        %v3817 = vpop.f32.mrb[0].mxu0
        %v3818 = vadd.f32 0.0, %v3817
        %v3819 = vpop.f32.mrb[0].mxu0
        %3820 = vmatprep.mubr.f32.mxu0 0.0
        %3821 = vmatmul.mubr.f32.gmra.mrb[0].mxu0 %v3613
        %v3822 = vpop.f32.mrb[0].mxu0
        %v3823 = vadd.f32 0.0, %v3822
        %v3824 = vpop.f32.mrb[0].mxu0
        %3825 = vmatprep.mubr.f32.mxu0 0.0
        %3826 = vmatmul.mubr.f32.gmra.mrb[0].mxu0 %v3616
        %v3827 = vpop.f32.mrb[0].mxu0
        %v3828 = vadd.f32 0.0, %v3827
        %v3829 = vpop.f32.mrb[0].mxu0
        %3830 = vmatprep.mubr.f32.mxu0 0.0
        %3831 = vmatmul.mubr.f32.gmra.mrb[0].mxu0 %v3619
        %v3832 = vpop.f32.mrb[0].mxu0
        %v3833 = vadd.f32 0.0, %v3832
        %v3834 = vpop.f32.mrb[0].mxu0
        %3835 = vmatprep.mubr.f32.mxu0 0.0
        %3836 = vmatmul.mubr.f32.gmra.mrb[0].mxu0 %v3622
        %v3837 = vpop.f32.mrb[0].mxu0
        %v3838 = vadd.f32 0.0, %v3837
        %v3839 = vpop.f32.mrb[0].mxu0
        %3840 = vmatprep.mubr.f32.mxu0 0.0
        %3841 = vmatmul.mubr.f32.gmra.mrb[0].mxu0 %v3625
        %v3842 = vpop.f32.mrb[0].mxu0
        %v3843 = vadd.f32 0.0, %v3842
        %v3844 = vpop.f32.mrb[0].mxu0
        %3845 = vmatprep.mubr.f32.mxu0 0.0
        %3846 = vmatmul.mubr.f32.gmra.mrb[0].mxu0 %v3628
        %v3847 = vpop.f32.mrb[0].mxu0
        %v3848 = vadd.f32 0.0, %v3847
        %v3849 = vpop.f32.mrb[0].mxu0
        %3850 = vmatprep.mubr.f32.mxu0 0.0
        %3851 = vmatmul.mubr.f32.gmra.mrb[0].mxu0 %v3631
        %v3852 = vpop.f32.mrb[0].mxu0
        %v3853 = vadd.f32 0.0, %v3852
        %v3854 = vpop.f32.mrb[0].mxu0
        %3855 = vmatprep.mubr.f32.mxu0 0.0
        %3856 = vmatmul.mubr.f32.gmra.mrb[0].mxu0 %v3634
        %v3857 = vpop.f32.mrb[0].mxu0
        %v3858 = vadd.f32 0.0, %v3857
        %v3859 = vpop.f32.mrb[0].mxu0
        %3860 = vdwg.mxu0
        %v3861 = vadd.f32 %v3471, %v3703
        %v3862 = vadd.f32 %v3472, %v3708
        %v3863 = vadd.f32 %v3473, %v3713
        %v3864 = vadd.f32 %v3474, %v3718
        %v3865 = vadd.f32 %v3475, %v3723
        %v3866 = vadd.f32 %v3476, %v3728
        %v3867 = vadd.f32 %v3477, %v3733
        %v3868 = vadd.f32 %v3478, %v3738
        %v3869 = vadd.f32 %v3479, %v3743
        %v3870 = vadd.f32 %v3480, %v3748
        %v3871 = vadd.f32 %v3481, %v3753
        %v3872 = vadd.f32 %v3482, %v3758
        %v3873 = vadd.f32 %v3483, %v3763
        %v3874 = vadd.f32 %v3484, %v3768
        %v3875 = vadd.f32 %v3485, %v3773
        %v3876 = vadd.f32 %v3486, %v3778
        %v3877 = vadd.f32 %v3487, %v3783
        %v3878 = vadd.f32 %v3488, %v3788
        %v3879 = vadd.f32 %v3489, %v3793
        %v3880 = vadd.f32 %v3490, %v3798
        %v3881 = vadd.f32 %v3491, %v3803
        %v3882 = vadd.f32 %v3492, %v3808
        %v3883 = vadd.f32 %v3493, %v3813
        %v3884 = vadd.f32 %v3494, %v3818
        %v3885 = vadd.f32 %v3495, %v3823
        %v3886 = vadd.f32 %v3496, %v3828
        %v3887 = vadd.f32 %v3497, %v3833
        %v3888 = vadd.f32 %v3498, %v3838
        %v3889 = vadd.f32 %v3499, %v3843
        %v3890 = vadd.f32 %v3500, %v3848
        %v3891 = vadd.f32 %v3501, %v3853
        %v3892 = vadd.f32 %v3502, %v3858
        %v3893 = vld [vmem:[%s2] sm:$0x1]
        %v3895 = vlaneseq
        %v3896 = vshrl.u32 %v3895, 7
        %v3897 = vsub.s32 0, %v3896
        %v3898 = vrot.slane %v3893, %v3897
        %v3900 = vmul.f32 %v3861, %v3898
        %v3901 = vmul.f32 %v3862, %v3898
        %v3902 = vmul.f32 %v3863, %v3898
        %v3903 = vmul.f32 %v3864, %v3898
        %v3904 = vmul.f32 %v3865, %v3898
        %v3905 = vmul.f32 %v3866, %v3898
        %v3906 = vmul.f32 %v3867, %v3898
        %v3907 = vmul.f32 %v3868, %v3898
        %v3908 = vmul.f32 %v3869, %v3898
        %v3909 = vmul.f32 %v3870, %v3898
        %v3910 = vmul.f32 %v3871, %v3898
        %v3911 = vmul.f32 %v3872, %v3898
        %v3912 = vmul.f32 %v3873, %v3898
        %v3913 = vmul.f32 %v3874, %v3898
        %v3914 = vmul.f32 %v3875, %v3898
        %v3915 = vmul.f32 %v3876, %v3898
        %v3916 = vmul.f32 %v3877, %v3898
        %v3917 = vmul.f32 %v3878, %v3898
        %v3918 = vmul.f32 %v3879, %v3898
        %v3919 = vmul.f32 %v3880, %v3898
        %v3920 = vmul.f32 %v3881, %v3898
        %v3921 = vmul.f32 %v3882, %v3898
        %v3922 = vmul.f32 %v3883, %v3898
        %v3923 = vmul.f32 %v3884, %v3898
        %v3924 = vmul.f32 %v3885, %v3898
        %v3925 = vmul.f32 %v3886, %v3898
        %v3926 = vmul.f32 %v3887, %v3898
        %v3927 = vmul.f32 %v3888, %v3898
        %v3928 = vmul.f32 %v3889, %v3898
        %v3929 = vmul.f32 %v3890, %v3898
        %v3930 = vmul.f32 %v3891, %v3898
        %v3931 = vmul.f32 %v3892, %v3898
        %v3932 = vld [vmem:[%s3] sm:$0x1]
        %v3934 = vlaneseq
        %v3935 = vshrl.u32 %v3934, 7
        %v3936 = vsub.s32 0, %v3935
        %v3937 = vrot.slane %v3932, %v3936
        %v3939 = vadd.f32 %v3900, %v3937
        %v3940 = vadd.f32 %v3901, %v3937
        %v3941 = vadd.f32 %v3902, %v3937
        %v3942 = vadd.f32 %v3903, %v3937
        %v3943 = vadd.f32 %v3904, %v3937
        %v3944 = vadd.f32 %v3905, %v3937
        %v3945 = vadd.f32 %v3906, %v3937
        %v3946 = vadd.f32 %v3907, %v3937
        %v3947 = vadd.f32 %v3908, %v3937
        %v3948 = vadd.f32 %v3909, %v3937
        %v3949 = vadd.f32 %v3910, %v3937
        %v3950 = vadd.f32 %v3911, %v3937
        %v3951 = vadd.f32 %v3912, %v3937
        %v3952 = vadd.f32 %v3913, %v3937
        %v3953 = vadd.f32 %v3914, %v3937
        %v3954 = vadd.f32 %v3915, %v3937
        %v3955 = vadd.f32 %v3916, %v3937
        %v3956 = vadd.f32 %v3917, %v3937
        %v3957 = vadd.f32 %v3918, %v3937
        %v3958 = vadd.f32 %v3919, %v3937
        %v3959 = vadd.f32 %v3920, %v3937
        %v3960 = vadd.f32 %v3921, %v3937
        %v3961 = vadd.f32 %v3922, %v3937
        %v3962 = vadd.f32 %v3923, %v3937
        %v3963 = vadd.f32 %v3924, %v3937
        %v3964 = vadd.f32 %v3925, %v3937
        %v3965 = vadd.f32 %v3926, %v3937
        %v3966 = vadd.f32 %v3927, %v3937
        %v3967 = vadd.f32 %v3928, %v3937
        %v3968 = vadd.f32 %v3929, %v3937
        %v3969 = vadd.f32 %v3930, %v3937
        %v3970 = vadd.f32 %v3931, %v3937
        %v3971 = vmax.f32 %v3939, 0.0
        %v3972 = vmax.f32 %v3940, 0.0
        %v3973 = vmax.f32 %v3941, 0.0
        %v3974 = vmax.f32 %v3942, 0.0
        %v3975 = vmax.f32 %v3943, 0.0
        %v3976 = vmax.f32 %v3944, 0.0
        %v3977 = vmax.f32 %v3945, 0.0
        %v3978 = vmax.f32 %v3946, 0.0
        %v3979 = vmax.f32 %v3947, 0.0
        %v3980 = vmax.f32 %v3948, 0.0
        %v3981 = vmax.f32 %v3949, 0.0
        %v3982 = vmax.f32 %v3950, 0.0
        %v3983 = vmax.f32 %v3951, 0.0
        %v3984 = vmax.f32 %v3952, 0.0
        %v3985 = vmax.f32 %v3953, 0.0
        %v3986 = vmax.f32 %v3954, 0.0
        %v3987 = vmax.f32 %v3955, 0.0
        %v3988 = vmax.f32 %v3956, 0.0
        %v3989 = vmax.f32 %v3957, 0.0
        %v3990 = vmax.f32 %v3958, 0.0
        %v3991 = vmax.f32 %v3959, 0.0
        %v3992 = vmax.f32 %v3960, 0.0
        %v3993 = vmax.f32 %v3961, 0.0
        %v3994 = vmax.f32 %v3962, 0.0
        %v3995 = vmax.f32 %v3963, 0.0
        %v3996 = vmax.f32 %v3964, 0.0
        %v3997 = vmax.f32 %v3965, 0.0
        %v3998 = vmax.f32 %v3966, 0.0
        %v3999 = vmax.f32 %v3967, 0.0
        %v4000 = vmax.f32 %v3968, 0.0
        %v4001 = vmax.f32 %v3969, 0.0
        %v4002 = vmax.f32 %v3970, 0.0
        %4003 = vst.msk [vmem:[#allocation3] sm:$0xff] %vm326, 0.0
        %4004 = vst.msk [vmem:[#allocation3 + $0x8] sm:$0xff] %vm326, 0.0
        %4005 = vst.msk [vmem:[#allocation3 + $0x10] sm:$0x3] %vm329, 0.0
        %4006 = vst.msk [vmem:[#allocation3 + $0x18] sm:$0xff] %vm326, 0.0
        %4007 = vst.msk [vmem:[#allocation3 + $0x20] sm:$0xff] %vm326, 0.0
        %4008 = vst.msk [vmem:[#allocation3 + $0x28] sm:$0x3] %vm329, 0.0
        %4009 = vst.msk [vmem:[#allocation3 + $0x30] sm:$0xff] %vm326, 0.0
        %4010 = vst.msk [vmem:[#allocation3 + $0x38] sm:$0xff] %vm326, 0.0
        %4011 = vst.msk [vmem:[#allocation3 + $0x40] sm:$0x3] %vm329, 0.0
        %4012 = vst.msk [vmem:[#allocation3 + $0x48] sm:$0xff] %vm326, 0.0
        %4013 = vst.msk [vmem:[#allocation3 + $0x50] sm:$0xff] %vm326, 0.0
        %4014 = vst.msk [vmem:[#allocation3 + $0x58] sm:$0x3] %vm329, 0.0
        %4015 = vst.msk [vmem:[#allocation3 + $0x60] sm:$0xff] %vm326, 0.0
        %4016 = vst.msk [vmem:[#allocation3 + $0x68] sm:$0xff] %vm326, 0.0
        %4017 = vst.msk [vmem:[#allocation3 + $0x70] sm:$0x3] %vm329, 0.0
        %4018 = vst.msk [vmem:[#allocation3 + $0x78] sm:$0xff] %vm326, 0.0
        %4019 = vst.msk [vmem:[#allocation3 + $0x80] sm:$0xff] %vm326, 0.0
        %4020 = vst.msk [vmem:[#allocation3 + $0x88] sm:$0x3] %vm329, 0.0
        %4021 = vst.msk [vmem:[#allocation3 + $0x90] sm:$0xff] %vm326, 0.0
        %4022 = vst.msk [vmem:[#allocation3 + $0x98] sm:$0xff] %vm326, 0.0
        %4023 = vst.msk [vmem:[#allocation3 + $0xa0] sm:$0x3] %vm329, 0.0
        %4024 = vst.msk [vmem:[#allocation3 + $0xa8] sm:$0xff] %vm326, 0.0
        %4025 = vst.msk [vmem:[#allocation3 + $0xb0] sm:$0xff] %vm326, 0.0
        %4026 = vst.msk [vmem:[#allocation3 + $0xb8] sm:$0x3] %vm329, 0.0
        %4027 = vst.msk [vmem:[#allocation3 + $0xc0] sm:$0xff] %vm326, 0.0
        %4028 = vst.msk [vmem:[#allocation3 + $0xc8] sm:$0xff] %vm326, 0.0
        %4029 = vst.msk [vmem:[#allocation3 + $0xd0] sm:$0x3] %vm329, 0.0
        %4030 = vst.msk [vmem:[#allocation3 + $0xd8] sm:$0xff] %vm326, 0.0
        %4031 = vst.msk [vmem:[#allocation3 + $0xe0] sm:$0xff] %vm326, 0.0
        %4032 = vst.msk [vmem:[#allocation3 + $0xe8] sm:$0x3] %vm329, 0.0
        %4033 = vst.msk [vmem:[#allocation3 + $0xf0] sm:$0xff] %vm326, 0.0
        %4034 = vst.msk [vmem:[#allocation3 + $0xf8] sm:$0xff] %vm326, 0.0
        %4035 = vst.msk [vmem:[#allocation3 + $0x100] sm:$0x3] %vm329, 0.0
        %4036 = vst.msk [vmem:[#allocation3 + $0x108] sm:$0xff] %vm326, 0.0
        %4037 = vst.msk [vmem:[#allocation3 + $0x110] sm:$0xff] %vm326, 0.0
        %4038 = vst.msk [vmem:[#allocation3 + $0x118] sm:$0x3] %vm329, 0.0
        %4039 = vst.msk [vmem:[#allocation3 + $0x120] sm:$0xff] %vm326, 0.0
        %4040 = vst.msk [vmem:[#allocation3 + $0x128] sm:$0xff] %vm326, 0.0
        %4041 = vst.msk [vmem:[#allocation3 + $0x130] sm:$0x3] %vm329, 0.0
        %4042 = vst.msk [vmem:[#allocation3 + $0x138] sm:$0xff] %vm326, 0.0
        %4043 = vst.msk [vmem:[#allocation3 + $0x140] sm:$0xff] %vm326, 0.0
        %4044 = vst.msk [vmem:[#allocation3 + $0x148] sm:$0x3] %vm329, 0.0
        %4045 = vst.msk [vmem:[#allocation3 + $0x150] sm:$0xff] %vm326, 0.0
        %4046 = vst.msk [vmem:[#allocation3 + $0x158] sm:$0xff] %vm326, 0.0
        %4047 = vst.msk [vmem:[#allocation3 + $0x160] sm:$0x3] %vm329, 0.0
        %4048 = vst.msk [vmem:[#allocation3 + $0x168] sm:$0xff] %vm326, 0.0
        %4049 = vst.msk [vmem:[#allocation3 + $0x170] sm:$0xff] %vm326, 0.0
        %4050 = vst.msk [vmem:[#allocation3 + $0x178] sm:$0x3] %vm329, 0.0
        %4051 = vst.msk [vmem:[#allocation3 + $0x180] sm:$0xff] %vm326, 0.0
        %4052 = vst.msk [vmem:[#allocation3 + $0x188] sm:$0xff] %vm326, 0.0
        %4053 = vst.msk [vmem:[#allocation3 + $0x190] sm:$0x3] %vm329, 0.0
        %4054 = vst.msk [vmem:[#allocation3 + $0x198] sm:$0xff] %vm326, 0.0
        %4055 = vst.msk [vmem:[#allocation3 + $0x1a0] sm:$0xff] %vm326, 0.0
        %4056 = vst.msk [vmem:[#allocation3 + $0x1a8] sm:$0x3] %vm329, 0.0
        %s4057 = scalar_lea.vmem [#allocation3], 24
        %4058 = vst.msk [vmem:[%s4057 + $0x1] sm:$0xff] %vm326, %v3971
        %4059 = vst.msk [vmem:[%s4057 + $0x9] sm:$0xff] %vm326, %v3972
        %4060 = vst.msk [vmem:[%s4057 + $0x19] sm:$0xff] %vm326, %v3973
        %4061 = vst.msk [vmem:[%s4057 + $0x21] sm:$0xff] %vm326, %v3974
        %4062 = vst.msk [vmem:[%s4057 + $0x31] sm:$0xff] %vm326, %v3975
        %4063 = vst.msk [vmem:[%s4057 + $0x39] sm:$0xff] %vm326, %v3976
        %4064 = vst.msk [vmem:[%s4057 + $0x49] sm:$0xff] %vm326, %v3977
        %4065 = vst.msk [vmem:[%s4057 + $0x51] sm:$0xff] %vm326, %v3978
        %4066 = vst.msk [vmem:[%s4057 + $0x61] sm:$0xff] %vm326, %v3979
        %4067 = vst.msk [vmem:[%s4057 + $0x69] sm:$0xff] %vm326, %v3980
        %4068 = vst.msk [vmem:[%s4057 + $0x79] sm:$0xff] %vm326, %v3981
        %4069 = vst.msk [vmem:[%s4057 + $0x81] sm:$0xff] %vm326, %v3982
        %4070 = vst.msk [vmem:[%s4057 + $0x91] sm:$0xff] %vm326, %v3983
        %4071 = vst.msk [vmem:[%s4057 + $0x99] sm:$0xff] %vm326, %v3984
        %4072 = vst.msk [vmem:[%s4057 + $0xa9] sm:$0xff] %vm326, %v3985
        %4073 = vst.msk [vmem:[%s4057 + $0xb1] sm:$0xff] %vm326, %v3986
        %4074 = vst.msk [vmem:[%s4057 + $0xc1] sm:$0xff] %vm326, %v3987
        %4075 = vst.msk [vmem:[%s4057 + $0xc9] sm:$0xff] %vm326, %v3988
        %4076 = vst.msk [vmem:[%s4057 + $0xd9] sm:$0xff] %vm326, %v3989
        %4077 = vst.msk [vmem:[%s4057 + $0xe1] sm:$0xff] %vm326, %v3990
        %4078 = vst.msk [vmem:[%s4057 + $0xf1] sm:$0xff] %vm326, %v3991
        %4079 = vst.msk [vmem:[%s4057 + $0xf9] sm:$0xff] %vm326, %v3992
        %4080 = vst.msk [vmem:[%s4057 + $0x109] sm:$0xff] %vm326, %v3993
        %4081 = vst.msk [vmem:[%s4057 + $0x111] sm:$0xff] %vm326, %v3994
        %4082 = vst.msk [vmem:[%s4057 + $0x121] sm:$0xff] %vm326, %v3995
        %4083 = vst.msk [vmem:[%s4057 + $0x129] sm:$0xff] %vm326, %v3996
        %4084 = vst.msk [vmem:[%s4057 + $0x139] sm:$0xff] %vm326, %v3997
        %4085 = vst.msk [vmem:[%s4057 + $0x141] sm:$0xff] %vm326, %v3998
        %4086 = vst.msk [vmem:[%s4057 + $0x151] sm:$0xff] %vm326, %v3999
        %4087 = vst.msk [vmem:[%s4057 + $0x159] sm:$0xff] %vm326, %v4000
        %4088 = vst.msk [vmem:[%s4057 + $0x169] sm:$0xff] %vm326, %v4001
        %4089 = vst.msk [vmem:[%s4057 + $0x171] sm:$0xff] %vm326, %v4002
        %v4090 = vld [vmem:[#allocation3] sm:$0xff]
        %v4091 = vld [vmem:[#allocation3 + $0x8] sm:$0xff]
        %v4092 = vld [vmem:[#allocation3 + $0x18] sm:$0xff]
        %v4093 = vld [vmem:[#allocation3 + $0x20] sm:$0xff]
        %v4094 = vld [vmem:[#allocation3 + $0x30] sm:$0xff]
        %v4095 = vld [vmem:[#allocation3 + $0x38] sm:$0xff]
        %v4096 = vld [vmem:[#allocation3 + $0x48] sm:$0xff]
        %v4097 = vld [vmem:[#allocation3 + $0x50] sm:$0xff]
        %v4098 = vld [vmem:[#allocation3 + $0x60] sm:$0xff]
        %v4099 = vld [vmem:[#allocation3 + $0x68] sm:$0xff]
        %v4100 = vld [vmem:[#allocation3 + $0x78] sm:$0xff]
        %v4101 = vld [vmem:[#allocation3 + $0x80] sm:$0xff]
        %v4102 = vld [vmem:[#allocation3 + $0x90] sm:$0xff]
        %v4103 = vld [vmem:[#allocation3 + $0x98] sm:$0xff]
        %v4104 = vld [vmem:[#allocation3 + $0xa8] sm:$0xff]
        %v4105 = vld [vmem:[#allocation3 + $0xb0] sm:$0xff]
        %v4106 = vld [vmem:[#allocation3 + $0xc0] sm:$0xff]
        %v4107 = vld [vmem:[#allocation3 + $0xc8] sm:$0xff]
        %v4108 = vld [vmem:[#allocation3 + $0xd8] sm:$0xff]
        %v4109 = vld [vmem:[#allocation3 + $0xe0] sm:$0xff]
        %v4110 = vld [vmem:[#allocation3 + $0xf0] sm:$0xff]
        %v4111 = vld [vmem:[#allocation3 + $0xf8] sm:$0xff]
        %v4112 = vld [vmem:[#allocation3 + $0x108] sm:$0xff]
        %v4113 = vld [vmem:[#allocation3 + $0x110] sm:$0xff]
        %v4114 = vld [vmem:[#allocation3 + $0x120] sm:$0xff]
        %v4115 = vld [vmem:[#allocation3 + $0x128] sm:$0xff]
        %v4116 = vld [vmem:[#allocation3 + $0x138] sm:$0xff]
        %v4117 = vld [vmem:[#allocation3 + $0x140] sm:$0xff]
        %v4118 = vld [vmem:[#allocation3 + $0x150] sm:$0xff]
        %v4119 = vld [vmem:[#allocation3 + $0x158] sm:$0xff]
        %v4120 = vld [vmem:[#allocation3 + $0x168] sm:$0xff]
        %v4121 = vld [vmem:[#allocation3 + $0x170] sm:$0xff]
        %v4122 = vld [vmem:[#allocation9] sm:$0xff]
        %v4123 = vld [vmem:[#allocation9 + $0x8] sm:$0xff]
        %v4124 = vld [vmem:[#allocation9 + $0x10] sm:$0xff]
        %v4125 = vld [vmem:[#allocation9 + $0x18] sm:$0xff]
        %v4126 = vld [vmem:[#allocation3 + $0x1] sm:$0xff]
        %v4127 = vld [vmem:[#allocation3 + $0x9] sm:$0xff]
        %v4128 = vld [vmem:[#allocation3 + $0x19] sm:$0xff]
        %v4129 = vld [vmem:[#allocation3 + $0x21] sm:$0xff]
        %v4130 = vld [vmem:[#allocation3 + $0x31] sm:$0xff]
        %v4131 = vld [vmem:[#allocation3 + $0x39] sm:$0xff]
        %v4132 = vld [vmem:[#allocation3 + $0x49] sm:$0xff]
        %v4133 = vld [vmem:[#allocation3 + $0x51] sm:$0xff]
        %v4134 = vld [vmem:[#allocation3 + $0x61] sm:$0xff]
        %v4135 = vld [vmem:[#allocation3 + $0x69] sm:$0xff]
        %v4136 = vld [vmem:[#allocation3 + $0x79] sm:$0xff]
        %v4137 = vld [vmem:[#allocation3 + $0x81] sm:$0xff]
        %v4138 = vld [vmem:[#allocation3 + $0x91] sm:$0xff]
        %v4139 = vld [vmem:[#allocation3 + $0x99] sm:$0xff]
        %v4140 = vld [vmem:[#allocation3 + $0xa9] sm:$0xff]
        %v4141 = vld [vmem:[#allocation3 + $0xb1] sm:$0xff]
        %v4142 = vld [vmem:[#allocation3 + $0xc1] sm:$0xff]
        %v4143 = vld [vmem:[#allocation3 + $0xc9] sm:$0xff]
        %v4144 = vld [vmem:[#allocation3 + $0xd9] sm:$0xff]
        %v4145 = vld [vmem:[#allocation3 + $0xe1] sm:$0xff]
        %v4146 = vld [vmem:[#allocation3 + $0xf1] sm:$0xff]
        %v4147 = vld [vmem:[#allocation3 + $0xf9] sm:$0xff]
        %v4148 = vld [vmem:[#allocation3 + $0x109] sm:$0xff]
        %v4149 = vld [vmem:[#allocation3 + $0x111] sm:$0xff]
        %v4150 = vld [vmem:[#allocation3 + $0x121] sm:$0xff]
        %v4151 = vld [vmem:[#allocation3 + $0x129] sm:$0xff]
        %v4152 = vld [vmem:[#allocation3 + $0x139] sm:$0xff]
        %v4153 = vld [vmem:[#allocation3 + $0x141] sm:$0xff]
        %v4154 = vld [vmem:[#allocation3 + $0x151] sm:$0xff]
        %v4155 = vld [vmem:[#allocation3 + $0x159] sm:$0xff]
        %v4156 = vld [vmem:[#allocation3 + $0x169] sm:$0xff]
        %v4157 = vld [vmem:[#allocation3 + $0x171] sm:$0xff]
        %s4158 = scalar_lea.vmem [#allocation9], 32
        %v4159 = vld [vmem:[%s4158] sm:$0xff]
        %v4160 = vld [vmem:[%s4158 + $0x8] sm:$0xff]
        %v4161 = vld [vmem:[%s4158 + $0x10] sm:$0xff]
        %v4162 = vld [vmem:[%s4158 + $0x18] sm:$0xff]
        %v4164 = vsel %vm326, %v4126, 0
        %v4167 = vsel %vm326, %v4127, 0
        %v4170 = vsel %vm326, %v4128, 0
        %v4173 = vsel %vm326, %v4129, 0
        %v4176 = vsel %vm326, %v4130, 0
        %v4179 = vsel %vm326, %v4131, 0
        %v4182 = vsel %vm326, %v4132, 0
        %v4185 = vsel %vm326, %v4133, 0
        %v4188 = vsel %vm326, %v4134, 0
        %v4191 = vsel %vm326, %v4135, 0
        %v4194 = vsel %vm326, %v4136, 0
        %v4197 = vsel %vm326, %v4137, 0
        %v4200 = vsel %vm326, %v4138, 0
        %v4203 = vsel %vm326, %v4139, 0
        %v4206 = vsel %vm326, %v4140, 0
        %v4209 = vsel %vm326, %v4141, 0
        %v4212 = vsel %vm326, %v4142, 0
        %v4215 = vsel %vm326, %v4143, 0
        %v4218 = vsel %vm326, %v4144, 0
        %v4221 = vsel %vm326, %v4145, 0
        %v4224 = vsel %vm326, %v4146, 0
        %v4227 = vsel %vm326, %v4147, 0
        %v4230 = vsel %vm326, %v4148, 0
        %v4233 = vsel %vm326, %v4149, 0
        %v4236 = vsel %vm326, %v4150, 0
        %v4239 = vsel %vm326, %v4151, 0
        %v4242 = vsel %vm326, %v4152, 0
        %v4245 = vsel %vm326, %v4153, 0
        %v4248 = vsel %vm326, %v4154, 0
        %v4251 = vsel %vm326, %v4155, 0
        %v4254 = vsel %vm326, %v4156, 0
        %v4257 = vsel %vm326, %v4157, 0
        %4259 = vmatprep.subr.mxu0 0.0
        %4260 = vmatpush1.msra.mxu0 %v4159
        %4261 = vmatprep.subr.mxu0 0.0
        %4262 = vmatpush1.msra.mxu0 %v4160
        %4263 = vmatprep.subr.mxu0 0.0
        %4264 = vmatpush1.msra.mxu0 %v4161
        %4265 = vmatprep.subr.mxu0 0.0
        %4266 = vmatpush1.msra.mxu0 %v4162
        %4267 = vmatprep.subr.mxu0 0.0
        %4268 = vmatpush1.msra.mxu0 0.0
        %4269 = vmatprep.subr.mxu0 0.0
        %4270 = vmatpush1.msra.mxu0 0.0
        %4271 = vmatprep.subr.mxu0 0.0
        %4272 = vmatpush1.msra.mxu0 0.0
        %4273 = vmatprep.subr.mxu0 0.0
        %4274 = vmatpush1.msra.mxu0 0.0
        %4275 = vmatprep.subr.mxu0 0.0
        %4276 = vmatpush1.msra.mxu0 0.0
        %4277 = vmatprep.subr.mxu0 0.0
        %4278 = vmatpush1.msra.mxu0 0.0
        %4279 = vmatprep.subr.mxu0 0.0
        %4280 = vmatpush1.msra.mxu0 0.0
        %4281 = vmatprep.subr.mxu0 0.0
        %4282 = vmatpush1.msra.mxu0 0.0
        %4283 = vmatprep.subr.mxu0 0.0
        %4284 = vmatpush1.msra.mxu0 0.0
        %4285 = vmatprep.subr.mxu0 0.0
        %4286 = vmatpush1.msra.mxu0 0.0
        %4287 = vmatprep.subr.mxu0 0.0
        %4288 = vmatpush1.msra.mxu0 0.0
        %4289 = vmatprep.subr.mxu0 0.0
        %4290 = vmatpush1.msra.mxu0 0.0
        %4291 = vmatprep.subr.mxu0 0.0
        %4292 = vmatpush1.msra.mxu0 0.0
        %4293 = vmatprep.subr.mxu0 0.0
        %4294 = vmatpush1.msra.mxu0 0.0
        %4295 = vmatprep.subr.mxu0 0.0
        %4296 = vmatpush1.msra.mxu0 0.0
        %4297 = vmatprep.subr.mxu0 0.0
        %4298 = vmatpush1.msra.mxu0 0.0
        %4299 = vmatprep.subr.mxu0 0.0
        %4300 = vmatpush1.msra.mxu0 0.0
        %4301 = vmatprep.subr.mxu0 0.0
        %4302 = vmatpush1.msra.mxu0 0.0
        %4303 = vmatprep.subr.mxu0 0.0
        %4304 = vmatpush1.msra.mxu0 0.0
        %4305 = vmatprep.subr.mxu0 0.0
        %4306 = vmatpush1.msra.mxu0 0.0
        %4307 = vmatprep.subr.mxu0 0.0
        %4308 = vmatpush1.msra.mxu0 0.0
        %4309 = vmatprep.subr.mxu0 0.0
        %4310 = vmatpush1.msra.mxu0 0.0
        %4311 = vmatprep.subr.mxu0 0.0
        %4312 = vmatpush1.msra.mxu0 0.0
        %4313 = vmatprep.subr.mxu0 0.0
        %4314 = vmatpush1.msra.mxu0 0.0
        %4315 = vmatprep.subr.mxu0 0.0
        %4316 = vmatpush1.msra.mxu0 0.0
        %4317 = vmatprep.subr.mxu0 0.0
        %4318 = vmatpush1.msra.mxu0 0.0
        %4319 = vmatprep.subr.mxu0 0.0
        %4320 = vmatpush1.msra.mxu0 0.0
        %4321 = vmatprep.subr.mxu0 0.0
        %4322 = vmatpush1.msra.mxu0 0.0
        %4323 = vmatprep.mubr.f32.mxu0 0.0
        %4324 = vmatmul.mubr.f32.gmra.mrb[0].mxu0 %v4164
        %v4325 = vpop.f32.mrb[0].mxu0
        %v4326 = vadd.f32 0.0, %v4325
        %v4327 = vpop.f32.mrb[0].mxu0
        %4328 = vmatprep.mubr.f32.mxu0 0.0
        %4329 = vmatmul.mubr.f32.gmra.mrb[0].mxu0 %v4167
        %v4330 = vpop.f32.mrb[0].mxu0
        %v4331 = vadd.f32 0.0, %v4330
        %v4332 = vpop.f32.mrb[0].mxu0
        %4333 = vmatprep.mubr.f32.mxu0 0.0
        %4334 = vmatmul.mubr.f32.gmra.mrb[0].mxu0 %v4170
        %v4335 = vpop.f32.mrb[0].mxu0
        %v4336 = vadd.f32 0.0, %v4335
        %v4337 = vpop.f32.mrb[0].mxu0
        %4338 = vmatprep.mubr.f32.mxu0 0.0
        %4339 = vmatmul.mubr.f32.gmra.mrb[0].mxu0 %v4173
        %v4340 = vpop.f32.mrb[0].mxu0
        %v4341 = vadd.f32 0.0, %v4340
        %v4342 = vpop.f32.mrb[0].mxu0
        %4343 = vmatprep.mubr.f32.mxu0 0.0
        %4344 = vmatmul.mubr.f32.gmra.mrb[0].mxu0 %v4176
        %v4345 = vpop.f32.mrb[0].mxu0
        %v4346 = vadd.f32 0.0, %v4345
        %v4347 = vpop.f32.mrb[0].mxu0
        %4348 = vmatprep.mubr.f32.mxu0 0.0
        %4349 = vmatmul.mubr.f32.gmra.mrb[0].mxu0 %v4179
        %v4350 = vpop.f32.mrb[0].mxu0
        %v4351 = vadd.f32 0.0, %v4350
        %v4352 = vpop.f32.mrb[0].mxu0
        %4353 = vmatprep.mubr.f32.mxu0 0.0
        %4354 = vmatmul.mubr.f32.gmra.mrb[0].mxu0 %v4182
        %v4355 = vpop.f32.mrb[0].mxu0
        %v4356 = vadd.f32 0.0, %v4355
        %v4357 = vpop.f32.mrb[0].mxu0
        %4358 = vmatprep.mubr.f32.mxu0 0.0
        %4359 = vmatmul.mubr.f32.gmra.mrb[0].mxu0 %v4185
        %v4360 = vpop.f32.mrb[0].mxu0
        %v4361 = vadd.f32 0.0, %v4360
        %v4362 = vpop.f32.mrb[0].mxu0
        %4363 = vmatprep.mubr.f32.mxu0 0.0
        %4364 = vmatmul.mubr.f32.gmra.mrb[0].mxu0 %v4188
        %v4365 = vpop.f32.mrb[0].mxu0
        %v4366 = vadd.f32 0.0, %v4365
        %v4367 = vpop.f32.mrb[0].mxu0
        %4368 = vmatprep.mubr.f32.mxu0 0.0
        %4369 = vmatmul.mubr.f32.gmra.mrb[0].mxu0 %v4191
        %v4370 = vpop.f32.mrb[0].mxu0
        %v4371 = vadd.f32 0.0, %v4370
        %v4372 = vpop.f32.mrb[0].mxu0
        %4373 = vmatprep.mubr.f32.mxu0 0.0
        %4374 = vmatmul.mubr.f32.gmra.mrb[0].mxu0 %v4194
        %v4375 = vpop.f32.mrb[0].mxu0
        %v4376 = vadd.f32 0.0, %v4375
        %v4377 = vpop.f32.mrb[0].mxu0
        %4378 = vmatprep.mubr.f32.mxu0 0.0
        %4379 = vmatmul.mubr.f32.gmra.mrb[0].mxu0 %v4197
        %v4380 = vpop.f32.mrb[0].mxu0
        %v4381 = vadd.f32 0.0, %v4380
        %v4382 = vpop.f32.mrb[0].mxu0
        %4383 = vmatprep.mubr.f32.mxu0 0.0
        %4384 = vmatmul.mubr.f32.gmra.mrb[0].mxu0 %v4200
        %v4385 = vpop.f32.mrb[0].mxu0
        %v4386 = vadd.f32 0.0, %v4385
        %v4387 = vpop.f32.mrb[0].mxu0
        %4388 = vmatprep.mubr.f32.mxu0 0.0
        %4389 = vmatmul.mubr.f32.gmra.mrb[0].mxu0 %v4203
        %v4390 = vpop.f32.mrb[0].mxu0
        %v4391 = vadd.f32 0.0, %v4390
        %v4392 = vpop.f32.mrb[0].mxu0
        %4393 = vmatprep.mubr.f32.mxu0 0.0
        %4394 = vmatmul.mubr.f32.gmra.mrb[0].mxu0 %v4206
        %v4395 = vpop.f32.mrb[0].mxu0
        %v4396 = vadd.f32 0.0, %v4395
        %v4397 = vpop.f32.mrb[0].mxu0
        %4398 = vmatprep.mubr.f32.mxu0 0.0
        %4399 = vmatmul.mubr.f32.gmra.mrb[0].mxu0 %v4209
        %v4400 = vpop.f32.mrb[0].mxu0
        %v4401 = vadd.f32 0.0, %v4400
        %v4402 = vpop.f32.mrb[0].mxu0
        %4403 = vmatprep.mubr.f32.mxu0 0.0
        %4404 = vmatmul.mubr.f32.gmra.mrb[0].mxu0 %v4212
        %v4405 = vpop.f32.mrb[0].mxu0
        %v4406 = vadd.f32 0.0, %v4405
        %v4407 = vpop.f32.mrb[0].mxu0
        %4408 = vmatprep.mubr.f32.mxu0 0.0
        %4409 = vmatmul.mubr.f32.gmra.mrb[0].mxu0 %v4215
        %v4410 = vpop.f32.mrb[0].mxu0
        %v4411 = vadd.f32 0.0, %v4410
        %v4412 = vpop.f32.mrb[0].mxu0
        %4413 = vmatprep.mubr.f32.mxu0 0.0
        %4414 = vmatmul.mubr.f32.gmra.mrb[0].mxu0 %v4218
        %v4415 = vpop.f32.mrb[0].mxu0
        %v4416 = vadd.f32 0.0, %v4415
        %v4417 = vpop.f32.mrb[0].mxu0
        %4418 = vmatprep.mubr.f32.mxu0 0.0
        %4419 = vmatmul.mubr.f32.gmra.mrb[0].mxu0 %v4221
        %v4420 = vpop.f32.mrb[0].mxu0
        %v4421 = vadd.f32 0.0, %v4420
        %v4422 = vpop.f32.mrb[0].mxu0
        %4423 = vmatprep.mubr.f32.mxu0 0.0
        %4424 = vmatmul.mubr.f32.gmra.mrb[0].mxu0 %v4224
        %v4425 = vpop.f32.mrb[0].mxu0
        %v4426 = vadd.f32 0.0, %v4425
        %v4427 = vpop.f32.mrb[0].mxu0
        %4428 = vmatprep.mubr.f32.mxu0 0.0
        %4429 = vmatmul.mubr.f32.gmra.mrb[0].mxu0 %v4227
        %v4430 = vpop.f32.mrb[0].mxu0
        %v4431 = vadd.f32 0.0, %v4430
        %v4432 = vpop.f32.mrb[0].mxu0
        %4433 = vmatprep.mubr.f32.mxu0 0.0
        %4434 = vmatmul.mubr.f32.gmra.mrb[0].mxu0 %v4230
        %v4435 = vpop.f32.mrb[0].mxu0
        %v4436 = vadd.f32 0.0, %v4435
        %v4437 = vpop.f32.mrb[0].mxu0
        %4438 = vmatprep.mubr.f32.mxu0 0.0
        %4439 = vmatmul.mubr.f32.gmra.mrb[0].mxu0 %v4233
        %v4440 = vpop.f32.mrb[0].mxu0
        %v4441 = vadd.f32 0.0, %v4440
        %v4442 = vpop.f32.mrb[0].mxu0
        %4443 = vmatprep.mubr.f32.mxu0 0.0
        %4444 = vmatmul.mubr.f32.gmra.mrb[0].mxu0 %v4236
        %v4445 = vpop.f32.mrb[0].mxu0
        %v4446 = vadd.f32 0.0, %v4445
        %v4447 = vpop.f32.mrb[0].mxu0
        %4448 = vmatprep.mubr.f32.mxu0 0.0
        %4449 = vmatmul.mubr.f32.gmra.mrb[0].mxu0 %v4239
        %v4450 = vpop.f32.mrb[0].mxu0
        %v4451 = vadd.f32 0.0, %v4450
        %v4452 = vpop.f32.mrb[0].mxu0
        %4453 = vmatprep.mubr.f32.mxu0 0.0
        %4454 = vmatmul.mubr.f32.gmra.mrb[0].mxu0 %v4242
        %v4455 = vpop.f32.mrb[0].mxu0
        %v4456 = vadd.f32 0.0, %v4455
        %v4457 = vpop.f32.mrb[0].mxu0
        %4458 = vmatprep.mubr.f32.mxu0 0.0
        %4459 = vmatmul.mubr.f32.gmra.mrb[0].mxu0 %v4245
        %v4460 = vpop.f32.mrb[0].mxu0
        %v4461 = vadd.f32 0.0, %v4460
        %v4462 = vpop.f32.mrb[0].mxu0
        %4463 = vmatprep.mubr.f32.mxu0 0.0
        %4464 = vmatmul.mubr.f32.gmra.mrb[0].mxu0 %v4248
        %v4465 = vpop.f32.mrb[0].mxu0
        %v4466 = vadd.f32 0.0, %v4465
        %v4467 = vpop.f32.mrb[0].mxu0
        %4468 = vmatprep.mubr.f32.mxu0 0.0
        %4469 = vmatmul.mubr.f32.gmra.mrb[0].mxu0 %v4251
        %v4470 = vpop.f32.mrb[0].mxu0
        %v4471 = vadd.f32 0.0, %v4470
        %v4472 = vpop.f32.mrb[0].mxu0
        %4473 = vmatprep.mubr.f32.mxu0 0.0
        %4474 = vmatmul.mubr.f32.gmra.mrb[0].mxu0 %v4254
        %v4475 = vpop.f32.mrb[0].mxu0
        %v4476 = vadd.f32 0.0, %v4475
        %v4477 = vpop.f32.mrb[0].mxu0
        %4478 = vmatprep.mubr.f32.mxu0 0.0
        %4479 = vmatmul.mubr.f32.gmra.mrb[0].mxu0 %v4257
        %v4480 = vpop.f32.mrb[0].mxu0
        %v4481 = vadd.f32 0.0, %v4480
        %v4482 = vpop.f32.mrb[0].mxu0
        %4483 = vdwg.mxu0
        %v4485 = vsel %vm326, %v4090, 0
        %v4488 = vsel %vm326, %v4091, 0
        %v4491 = vsel %vm326, %v4092, 0
        %v4494 = vsel %vm326, %v4093, 0
        %v4497 = vsel %vm326, %v4094, 0
        %v4500 = vsel %vm326, %v4095, 0
        %v4503 = vsel %vm326, %v4096, 0
        %v4506 = vsel %vm326, %v4097, 0
        %v4509 = vsel %vm326, %v4098, 0
        %v4512 = vsel %vm326, %v4099, 0
        %v4515 = vsel %vm326, %v4100, 0
        %v4518 = vsel %vm326, %v4101, 0
        %v4521 = vsel %vm326, %v4102, 0
        %v4524 = vsel %vm326, %v4103, 0
        %v4527 = vsel %vm326, %v4104, 0
        %v4530 = vsel %vm326, %v4105, 0
        %v4533 = vsel %vm326, %v4106, 0
        %v4536 = vsel %vm326, %v4107, 0
        %v4539 = vsel %vm326, %v4108, 0
        %v4542 = vsel %vm326, %v4109, 0
        %v4545 = vsel %vm326, %v4110, 0
        %v4548 = vsel %vm326, %v4111, 0
        %v4551 = vsel %vm326, %v4112, 0
        %v4554 = vsel %vm326, %v4113, 0
        %v4557 = vsel %vm326, %v4114, 0
        %v4560 = vsel %vm326, %v4115, 0
        %v4563 = vsel %vm326, %v4116, 0
        %v4566 = vsel %vm326, %v4117, 0
        %v4569 = vsel %vm326, %v4118, 0
        %v4572 = vsel %vm326, %v4119, 0
        %v4575 = vsel %vm326, %v4120, 0
        %v4578 = vsel %vm326, %v4121, 0
        %4580 = vmatprep.subr.mxu0 0.0
        %4581 = vmatpush1.msra.mxu0 %v4122
        %4582 = vmatprep.subr.mxu0 0.0
        %4583 = vmatpush1.msra.mxu0 %v4123
        %4584 = vmatprep.subr.mxu0 0.0
        %4585 = vmatpush1.msra.mxu0 %v4124
        %4586 = vmatprep.subr.mxu0 0.0
        %4587 = vmatpush1.msra.mxu0 %v4125
        %4588 = vmatprep.subr.mxu0 0.0
        %4589 = vmatpush1.msra.mxu0 0.0
        %4590 = vmatprep.subr.mxu0 0.0
        %4591 = vmatpush1.msra.mxu0 0.0
        %4592 = vmatprep.subr.mxu0 0.0
        %4593 = vmatpush1.msra.mxu0 0.0
        %4594 = vmatprep.subr.mxu0 0.0
        %4595 = vmatpush1.msra.mxu0 0.0
        %4596 = vmatprep.subr.mxu0 0.0
        %4597 = vmatpush1.msra.mxu0 0.0
        %4598 = vmatprep.subr.mxu0 0.0
        %4599 = vmatpush1.msra.mxu0 0.0
        %4600 = vmatprep.subr.mxu0 0.0
        %4601 = vmatpush1.msra.mxu0 0.0
        %4602 = vmatprep.subr.mxu0 0.0
        %4603 = vmatpush1.msra.mxu0 0.0
        %4604 = vmatprep.subr.mxu0 0.0
        %4605 = vmatpush1.msra.mxu0 0.0
        %4606 = vmatprep.subr.mxu0 0.0
        %4607 = vmatpush1.msra.mxu0 0.0
        %4608 = vmatprep.subr.mxu0 0.0
        %4609 = vmatpush1.msra.mxu0 0.0
        %4610 = vmatprep.subr.mxu0 0.0
        %4611 = vmatpush1.msra.mxu0 0.0
        %4612 = vmatprep.subr.mxu0 0.0
        %4613 = vmatpush1.msra.mxu0 0.0
        %4614 = vmatprep.subr.mxu0 0.0
        %4615 = vmatpush1.msra.mxu0 0.0
        %4616 = vmatprep.subr.mxu0 0.0
        %4617 = vmatpush1.msra.mxu0 0.0
        %4618 = vmatprep.subr.mxu0 0.0
        %4619 = vmatpush1.msra.mxu0 0.0
        %4620 = vmatprep.subr.mxu0 0.0
        %4621 = vmatpush1.msra.mxu0 0.0
        %4622 = vmatprep.subr.mxu0 0.0
        %4623 = vmatpush1.msra.mxu0 0.0
        %4624 = vmatprep.subr.mxu0 0.0
        %4625 = vmatpush1.msra.mxu0 0.0
        %4626 = vmatprep.subr.mxu0 0.0
        %4627 = vmatpush1.msra.mxu0 0.0
        %4628 = vmatprep.subr.mxu0 0.0
        %4629 = vmatpush1.msra.mxu0 0.0
        %4630 = vmatprep.subr.mxu0 0.0
        %4631 = vmatpush1.msra.mxu0 0.0
        %4632 = vmatprep.subr.mxu0 0.0
        %4633 = vmatpush1.msra.mxu0 0.0
        %4634 = vmatprep.subr.mxu0 0.0
        %4635 = vmatpush1.msra.mxu0 0.0
        %4636 = vmatprep.subr.mxu0 0.0
        %4637 = vmatpush1.msra.mxu0 0.0
        %4638 = vmatprep.subr.mxu0 0.0
        %4639 = vmatpush1.msra.mxu0 0.0
        %4640 = vmatprep.subr.mxu0 0.0
        %4641 = vmatpush1.msra.mxu0 0.0
        %4642 = vmatprep.subr.mxu0 0.0
        %4643 = vmatpush1.msra.mxu0 0.0
        %4644 = vmatprep.mubr.f32.mxu0 0.0
        %4645 = vmatmul.mubr.f32.gmra.mrb[0].mxu0 %v4485
        %v4646 = vpop.f32.mrb[0].mxu0
        %v4647 = vadd.f32 %v4326, %v4646
        %v4648 = vpop.f32.mrb[0].mxu0
        %4649 = vmatprep.mubr.f32.mxu0 0.0
        %4650 = vmatmul.mubr.f32.gmra.mrb[0].mxu0 %v4488
        %v4651 = vpop.f32.mrb[0].mxu0
        %v4652 = vadd.f32 %v4331, %v4651
        %v4653 = vpop.f32.mrb[0].mxu0
        %4654 = vmatprep.mubr.f32.mxu0 0.0
        %4655 = vmatmul.mubr.f32.gmra.mrb[0].mxu0 %v4491
        %v4656 = vpop.f32.mrb[0].mxu0
        %v4657 = vadd.f32 %v4336, %v4656
        %v4658 = vpop.f32.mrb[0].mxu0
        %4659 = vmatprep.mubr.f32.mxu0 0.0
        %4660 = vmatmul.mubr.f32.gmra.mrb[0].mxu0 %v4494
        %v4661 = vpop.f32.mrb[0].mxu0
        %v4662 = vadd.f32 %v4341, %v4661
        %v4663 = vpop.f32.mrb[0].mxu0
        %4664 = vmatprep.mubr.f32.mxu0 0.0
        %4665 = vmatmul.mubr.f32.gmra.mrb[0].mxu0 %v4497
        %v4666 = vpop.f32.mrb[0].mxu0
        %v4667 = vadd.f32 %v4346, %v4666
        %v4668 = vpop.f32.mrb[0].mxu0
        %4669 = vmatprep.mubr.f32.mxu0 0.0
        %4670 = vmatmul.mubr.f32.gmra.mrb[0].mxu0 %v4500
        %v4671 = vpop.f32.mrb[0].mxu0
        %v4672 = vadd.f32 %v4351, %v4671
        %v4673 = vpop.f32.mrb[0].mxu0
        %4674 = vmatprep.mubr.f32.mxu0 0.0
        %4675 = vmatmul.mubr.f32.gmra.mrb[0].mxu0 %v4503
        %v4676 = vpop.f32.mrb[0].mxu0
        %v4677 = vadd.f32 %v4356, %v4676
        %v4678 = vpop.f32.mrb[0].mxu0
        %4679 = vmatprep.mubr.f32.mxu0 0.0
        %4680 = vmatmul.mubr.f32.gmra.mrb[0].mxu0 %v4506
        %v4681 = vpop.f32.mrb[0].mxu0
        %v4682 = vadd.f32 %v4361, %v4681
        %v4683 = vpop.f32.mrb[0].mxu0
        %4684 = vmatprep.mubr.f32.mxu0 0.0
        %4685 = vmatmul.mubr.f32.gmra.mrb[0].mxu0 %v4509
        %v4686 = vpop.f32.mrb[0].mxu0
        %v4687 = vadd.f32 %v4366, %v4686
        %v4688 = vpop.f32.mrb[0].mxu0
        %4689 = vmatprep.mubr.f32.mxu0 0.0
        %4690 = vmatmul.mubr.f32.gmra.mrb[0].mxu0 %v4512
        %v4691 = vpop.f32.mrb[0].mxu0
        %v4692 = vadd.f32 %v4371, %v4691
        %v4693 = vpop.f32.mrb[0].mxu0
        %4694 = vmatprep.mubr.f32.mxu0 0.0
        %4695 = vmatmul.mubr.f32.gmra.mrb[0].mxu0 %v4515
        %v4696 = vpop.f32.mrb[0].mxu0
        %v4697 = vadd.f32 %v4376, %v4696
        %v4698 = vpop.f32.mrb[0].mxu0
        %4699 = vmatprep.mubr.f32.mxu0 0.0
        %4700 = vmatmul.mubr.f32.gmra.mrb[0].mxu0 %v4518
        %v4701 = vpop.f32.mrb[0].mxu0
        %v4702 = vadd.f32 %v4381, %v4701
        %v4703 = vpop.f32.mrb[0].mxu0
        %4704 = vmatprep.mubr.f32.mxu0 0.0
        %4705 = vmatmul.mubr.f32.gmra.mrb[0].mxu0 %v4521
        %v4706 = vpop.f32.mrb[0].mxu0
        %v4707 = vadd.f32 %v4386, %v4706
        %v4708 = vpop.f32.mrb[0].mxu0
        %4709 = vmatprep.mubr.f32.mxu0 0.0
        %4710 = vmatmul.mubr.f32.gmra.mrb[0].mxu0 %v4524
        %v4711 = vpop.f32.mrb[0].mxu0
        %v4712 = vadd.f32 %v4391, %v4711
        %v4713 = vpop.f32.mrb[0].mxu0
        %4714 = vmatprep.mubr.f32.mxu0 0.0
        %4715 = vmatmul.mubr.f32.gmra.mrb[0].mxu0 %v4527
        %v4716 = vpop.f32.mrb[0].mxu0
        %v4717 = vadd.f32 %v4396, %v4716
        %v4718 = vpop.f32.mrb[0].mxu0
        %4719 = vmatprep.mubr.f32.mxu0 0.0
        %4720 = vmatmul.mubr.f32.gmra.mrb[0].mxu0 %v4530
        %v4721 = vpop.f32.mrb[0].mxu0
        %v4722 = vadd.f32 %v4401, %v4721
        %v4723 = vpop.f32.mrb[0].mxu0
        %4724 = vmatprep.mubr.f32.mxu0 0.0
        %4725 = vmatmul.mubr.f32.gmra.mrb[0].mxu0 %v4533
        %v4726 = vpop.f32.mrb[0].mxu0
        %v4727 = vadd.f32 %v4406, %v4726
        %v4728 = vpop.f32.mrb[0].mxu0
        %4729 = vmatprep.mubr.f32.mxu0 0.0
        %4730 = vmatmul.mubr.f32.gmra.mrb[0].mxu0 %v4536
        %v4731 = vpop.f32.mrb[0].mxu0
        %v4732 = vadd.f32 %v4411, %v4731
        %v4733 = vpop.f32.mrb[0].mxu0
        %4734 = vmatprep.mubr.f32.mxu0 0.0
        %4735 = vmatmul.mubr.f32.gmra.mrb[0].mxu0 %v4539
        %v4736 = vpop.f32.mrb[0].mxu0
        %v4737 = vadd.f32 %v4416, %v4736
        %v4738 = vpop.f32.mrb[0].mxu0
        %4739 = vmatprep.mubr.f32.mxu0 0.0
        %4740 = vmatmul.mubr.f32.gmra.mrb[0].mxu0 %v4542
        %v4741 = vpop.f32.mrb[0].mxu0
        %v4742 = vadd.f32 %v4421, %v4741
        %v4743 = vpop.f32.mrb[0].mxu0
        %4744 = vmatprep.mubr.f32.mxu0 0.0
        %4745 = vmatmul.mubr.f32.gmra.mrb[0].mxu0 %v4545
        %v4746 = vpop.f32.mrb[0].mxu0
        %v4747 = vadd.f32 %v4426, %v4746
        %v4748 = vpop.f32.mrb[0].mxu0
        %4749 = vmatprep.mubr.f32.mxu0 0.0
        %4750 = vmatmul.mubr.f32.gmra.mrb[0].mxu0 %v4548
        %v4751 = vpop.f32.mrb[0].mxu0
        %v4752 = vadd.f32 %v4431, %v4751
        %v4753 = vpop.f32.mrb[0].mxu0
        %4754 = vmatprep.mubr.f32.mxu0 0.0
        %4755 = vmatmul.mubr.f32.gmra.mrb[0].mxu0 %v4551
        %v4756 = vpop.f32.mrb[0].mxu0
        %v4757 = vadd.f32 %v4436, %v4756
        %v4758 = vpop.f32.mrb[0].mxu0
        %4759 = vmatprep.mubr.f32.mxu0 0.0
        %4760 = vmatmul.mubr.f32.gmra.mrb[0].mxu0 %v4554
        %v4761 = vpop.f32.mrb[0].mxu0
        %v4762 = vadd.f32 %v4441, %v4761
        %v4763 = vpop.f32.mrb[0].mxu0
        %4764 = vmatprep.mubr.f32.mxu0 0.0
        %4765 = vmatmul.mubr.f32.gmra.mrb[0].mxu0 %v4557
        %v4766 = vpop.f32.mrb[0].mxu0
        %v4767 = vadd.f32 %v4446, %v4766
        %v4768 = vpop.f32.mrb[0].mxu0
        %4769 = vmatprep.mubr.f32.mxu0 0.0
        %4770 = vmatmul.mubr.f32.gmra.mrb[0].mxu0 %v4560
        %v4771 = vpop.f32.mrb[0].mxu0
        %v4772 = vadd.f32 %v4451, %v4771
        %v4773 = vpop.f32.mrb[0].mxu0
        %4774 = vmatprep.mubr.f32.mxu0 0.0
        %4775 = vmatmul.mubr.f32.gmra.mrb[0].mxu0 %v4563
        %v4776 = vpop.f32.mrb[0].mxu0
        %v4777 = vadd.f32 %v4456, %v4776
        %v4778 = vpop.f32.mrb[0].mxu0
        %4779 = vmatprep.mubr.f32.mxu0 0.0
        %4780 = vmatmul.mubr.f32.gmra.mrb[0].mxu0 %v4566
        %v4781 = vpop.f32.mrb[0].mxu0
        %v4782 = vadd.f32 %v4461, %v4781
        %v4783 = vpop.f32.mrb[0].mxu0
        %4784 = vmatprep.mubr.f32.mxu0 0.0
        %4785 = vmatmul.mubr.f32.gmra.mrb[0].mxu0 %v4569
        %v4786 = vpop.f32.mrb[0].mxu0
        %v4787 = vadd.f32 %v4466, %v4786
        %v4788 = vpop.f32.mrb[0].mxu0
        %4789 = vmatprep.mubr.f32.mxu0 0.0
        %4790 = vmatmul.mubr.f32.gmra.mrb[0].mxu0 %v4572
        %v4791 = vpop.f32.mrb[0].mxu0
        %v4792 = vadd.f32 %v4471, %v4791
        %v4793 = vpop.f32.mrb[0].mxu0
        %4794 = vmatprep.mubr.f32.mxu0 0.0
        %4795 = vmatmul.mubr.f32.gmra.mrb[0].mxu0 %v4575
        %v4796 = vpop.f32.mrb[0].mxu0
        %v4797 = vadd.f32 %v4476, %v4796
        %v4798 = vpop.f32.mrb[0].mxu0
        %4799 = vmatprep.mubr.f32.mxu0 0.0
        %4800 = vmatmul.mubr.f32.gmra.mrb[0].mxu0 %v4578
        %v4801 = vpop.f32.mrb[0].mxu0
        %v4802 = vadd.f32 %v4481, %v4801
        %v4803 = vpop.f32.mrb[0].mxu0
        %4804 = vdwg.mxu0
        %v4805 = vld [vmem:[#allocation3 + $0x2] sm:$0xff]
        %v4806 = vld [vmem:[#allocation3 + $0xa] sm:$0xff]
        %v4807 = vld [vmem:[#allocation3 + $0x1a] sm:$0xff]
        %v4808 = vld [vmem:[#allocation3 + $0x22] sm:$0xff]
        %v4809 = vld [vmem:[#allocation3 + $0x32] sm:$0xff]
        %v4810 = vld [vmem:[#allocation3 + $0x3a] sm:$0xff]
        %v4811 = vld [vmem:[#allocation3 + $0x4a] sm:$0xff]
        %v4812 = vld [vmem:[#allocation3 + $0x52] sm:$0xff]
        %v4813 = vld [vmem:[#allocation3 + $0x62] sm:$0xff]
        %v4814 = vld [vmem:[#allocation3 + $0x6a] sm:$0xff]
        %v4815 = vld [vmem:[#allocation3 + $0x7a] sm:$0xff]
        %v4816 = vld [vmem:[#allocation3 + $0x82] sm:$0xff]
        %v4817 = vld [vmem:[#allocation3 + $0x92] sm:$0xff]
        %v4818 = vld [vmem:[#allocation3 + $0x9a] sm:$0xff]
        %v4819 = vld [vmem:[#allocation3 + $0xaa] sm:$0xff]
        %v4820 = vld [vmem:[#allocation3 + $0xb2] sm:$0xff]
        %v4821 = vld [vmem:[#allocation3 + $0xc2] sm:$0xff]
        %v4822 = vld [vmem:[#allocation3 + $0xca] sm:$0xff]
        %v4823 = vld [vmem:[#allocation3 + $0xda] sm:$0xff]
        %v4824 = vld [vmem:[#allocation3 + $0xe2] sm:$0xff]
        %v4825 = vld [vmem:[#allocation3 + $0xf2] sm:$0xff]
        %v4826 = vld [vmem:[#allocation3 + $0xfa] sm:$0xff]
        %v4827 = vld [vmem:[#allocation3 + $0x10a] sm:$0xff]
        %v4828 = vld [vmem:[#allocation3 + $0x112] sm:$0xff]
        %v4829 = vld [vmem:[#allocation3 + $0x122] sm:$0xff]
        %v4830 = vld [vmem:[#allocation3 + $0x12a] sm:$0xff]
        %v4831 = vld [vmem:[#allocation3 + $0x13a] sm:$0xff]
        %v4832 = vld [vmem:[#allocation3 + $0x142] sm:$0xff]
        %v4833 = vld [vmem:[#allocation3 + $0x152] sm:$0xff]
        %v4834 = vld [vmem:[#allocation3 + $0x15a] sm:$0xff]
        %v4835 = vld [vmem:[#allocation3 + $0x16a] sm:$0xff]
        %v4836 = vld [vmem:[#allocation3 + $0x172] sm:$0xff]
        %s4837 = scalar_lea.vmem [#allocation9], 64
        %v4838 = vld [vmem:[%s4837] sm:$0xff]
        %v4839 = vld [vmem:[%s4837 + $0x8] sm:$0xff]
        %v4840 = vld [vmem:[%s4837 + $0x10] sm:$0xff]
        %v4841 = vld [vmem:[%s4837 + $0x18] sm:$0xff]
        %v4843 = vsel %vm326, %v4805, 0
        %v4846 = vsel %vm326, %v4806, 0
        %v4849 = vsel %vm326, %v4807, 0
        %v4852 = vsel %vm326, %v4808, 0
        %v4855 = vsel %vm326, %v4809, 0
        %v4858 = vsel %vm326, %v4810, 0
        %v4861 = vsel %vm326, %v4811, 0
        %v4864 = vsel %vm326, %v4812, 0
        %v4867 = vsel %vm326, %v4813, 0
        %v4870 = vsel %vm326, %v4814, 0
        %v4873 = vsel %vm326, %v4815, 0
        %v4876 = vsel %vm326, %v4816, 0
        %v4879 = vsel %vm326, %v4817, 0
        %v4882 = vsel %vm326, %v4818, 0
        %v4885 = vsel %vm326, %v4819, 0
        %v4888 = vsel %vm326, %v4820, 0
        %v4891 = vsel %vm326, %v4821, 0
        %v4894 = vsel %vm326, %v4822, 0
        %v4897 = vsel %vm326, %v4823, 0
        %v4900 = vsel %vm326, %v4824, 0
        %v4903 = vsel %vm326, %v4825, 0
        %v4906 = vsel %vm326, %v4826, 0
        %v4909 = vsel %vm326, %v4827, 0
        %v4912 = vsel %vm326, %v4828, 0
        %v4915 = vsel %vm326, %v4829, 0
        %v4918 = vsel %vm326, %v4830, 0
        %v4921 = vsel %vm326, %v4831, 0
        %v4924 = vsel %vm326, %v4832, 0
        %v4927 = vsel %vm326, %v4833, 0
        %v4930 = vsel %vm326, %v4834, 0
        %v4933 = vsel %vm326, %v4835, 0
        %v4936 = vsel %vm326, %v4836, 0
        %4938 = vmatprep.subr.mxu0 0.0
        %4939 = vmatpush1.msra.mxu0 %v4838
        %4940 = vmatprep.subr.mxu0 0.0
        %4941 = vmatpush1.msra.mxu0 %v4839
        %4942 = vmatprep.subr.mxu0 0.0
        %4943 = vmatpush1.msra.mxu0 %v4840
        %4944 = vmatprep.subr.mxu0 0.0
        %4945 = vmatpush1.msra.mxu0 %v4841
        %4946 = vmatprep.subr.mxu0 0.0
        %4947 = vmatpush1.msra.mxu0 0.0
        %4948 = vmatprep.subr.mxu0 0.0
        %4949 = vmatpush1.msra.mxu0 0.0
        %4950 = vmatprep.subr.mxu0 0.0
        %4951 = vmatpush1.msra.mxu0 0.0
        %4952 = vmatprep.subr.mxu0 0.0
        %4953 = vmatpush1.msra.mxu0 0.0
        %4954 = vmatprep.subr.mxu0 0.0
        %4955 = vmatpush1.msra.mxu0 0.0
        %4956 = vmatprep.subr.mxu0 0.0
        %4957 = vmatpush1.msra.mxu0 0.0
        %4958 = vmatprep.subr.mxu0 0.0
        %4959 = vmatpush1.msra.mxu0 0.0
        %4960 = vmatprep.subr.mxu0 0.0
        %4961 = vmatpush1.msra.mxu0 0.0
        %4962 = vmatprep.subr.mxu0 0.0
        %4963 = vmatpush1.msra.mxu0 0.0
        %4964 = vmatprep.subr.mxu0 0.0
        %4965 = vmatpush1.msra.mxu0 0.0
        %4966 = vmatprep.subr.mxu0 0.0
        %4967 = vmatpush1.msra.mxu0 0.0
        %4968 = vmatprep.subr.mxu0 0.0
        %4969 = vmatpush1.msra.mxu0 0.0
        %4970 = vmatprep.subr.mxu0 0.0
        %4971 = vmatpush1.msra.mxu0 0.0
        %4972 = vmatprep.subr.mxu0 0.0
        %4973 = vmatpush1.msra.mxu0 0.0
        %4974 = vmatprep.subr.mxu0 0.0
        %4975 = vmatpush1.msra.mxu0 0.0
        %4976 = vmatprep.subr.mxu0 0.0
        %4977 = vmatpush1.msra.mxu0 0.0
        %4978 = vmatprep.subr.mxu0 0.0
        %4979 = vmatpush1.msra.mxu0 0.0
        %4980 = vmatprep.subr.mxu0 0.0
        %4981 = vmatpush1.msra.mxu0 0.0
        %4982 = vmatprep.subr.mxu0 0.0
        %4983 = vmatpush1.msra.mxu0 0.0
        %4984 = vmatprep.subr.mxu0 0.0
        %4985 = vmatpush1.msra.mxu0 0.0
        %4986 = vmatprep.subr.mxu0 0.0
        %4987 = vmatpush1.msra.mxu0 0.0
        %4988 = vmatprep.subr.mxu0 0.0
        %4989 = vmatpush1.msra.mxu0 0.0
        %4990 = vmatprep.subr.mxu0 0.0
        %4991 = vmatpush1.msra.mxu0 0.0
        %4992 = vmatprep.subr.mxu0 0.0
        %4993 = vmatpush1.msra.mxu0 0.0
        %4994 = vmatprep.subr.mxu0 0.0
        %4995 = vmatpush1.msra.mxu0 0.0
        %4996 = vmatprep.subr.mxu0 0.0
        %4997 = vmatpush1.msra.mxu0 0.0
        %4998 = vmatprep.subr.mxu0 0.0
        %4999 = vmatpush1.msra.mxu0 0.0
        %5000 = vmatprep.subr.mxu0 0.0
        %5001 = vmatpush1.msra.mxu0 0.0
        %5002 = vmatprep.mubr.f32.mxu0 0.0
        %5003 = vmatmul.mubr.f32.gmra.mrb[0].mxu0 %v4843
        %v5004 = vpop.f32.mrb[0].mxu0
        %v5005 = vadd.f32 0.0, %v5004
        %v5006 = vpop.f32.mrb[0].mxu0
        %5007 = vmatprep.mubr.f32.mxu0 0.0
        %5008 = vmatmul.mubr.f32.gmra.mrb[0].mxu0 %v4846
        %v5009 = vpop.f32.mrb[0].mxu0
        %v5010 = vadd.f32 0.0, %v5009
        %v5011 = vpop.f32.mrb[0].mxu0
        %5012 = vmatprep.mubr.f32.mxu0 0.0
        %5013 = vmatmul.mubr.f32.gmra.mrb[0].mxu0 %v4849
        %v5014 = vpop.f32.mrb[0].mxu0
        %v5015 = vadd.f32 0.0, %v5014
        %v5016 = vpop.f32.mrb[0].mxu0
        %5017 = vmatprep.mubr.f32.mxu0 0.0
        %5018 = vmatmul.mubr.f32.gmra.mrb[0].mxu0 %v4852
        %v5019 = vpop.f32.mrb[0].mxu0
        %v5020 = vadd.f32 0.0, %v5019
        %v5021 = vpop.f32.mrb[0].mxu0
        %5022 = vmatprep.mubr.f32.mxu0 0.0
        %5023 = vmatmul.mubr.f32.gmra.mrb[0].mxu0 %v4855
        %v5024 = vpop.f32.mrb[0].mxu0
        %v5025 = vadd.f32 0.0, %v5024
        %v5026 = vpop.f32.mrb[0].mxu0
        %5027 = vmatprep.mubr.f32.mxu0 0.0
        %5028 = vmatmul.mubr.f32.gmra.mrb[0].mxu0 %v4858
        %v5029 = vpop.f32.mrb[0].mxu0
        %v5030 = vadd.f32 0.0, %v5029
        %v5031 = vpop.f32.mrb[0].mxu0
        %5032 = vmatprep.mubr.f32.mxu0 0.0
        %5033 = vmatmul.mubr.f32.gmra.mrb[0].mxu0 %v4861
        %v5034 = vpop.f32.mrb[0].mxu0
        %v5035 = vadd.f32 0.0, %v5034
        %v5036 = vpop.f32.mrb[0].mxu0
        %5037 = vmatprep.mubr.f32.mxu0 0.0
        %5038 = vmatmul.mubr.f32.gmra.mrb[0].mxu0 %v4864
        %v5039 = vpop.f32.mrb[0].mxu0
        %v5040 = vadd.f32 0.0, %v5039
        %v5041 = vpop.f32.mrb[0].mxu0
        %5042 = vmatprep.mubr.f32.mxu0 0.0
        %5043 = vmatmul.mubr.f32.gmra.mrb[0].mxu0 %v4867
        %v5044 = vpop.f32.mrb[0].mxu0
        %v5045 = vadd.f32 0.0, %v5044
        %v5046 = vpop.f32.mrb[0].mxu0
        %5047 = vmatprep.mubr.f32.mxu0 0.0
        %5048 = vmatmul.mubr.f32.gmra.mrb[0].mxu0 %v4870
        %v5049 = vpop.f32.mrb[0].mxu0
        %v5050 = vadd.f32 0.0, %v5049
        %v5051 = vpop.f32.mrb[0].mxu0
        %5052 = vmatprep.mubr.f32.mxu0 0.0
        %5053 = vmatmul.mubr.f32.gmra.mrb[0].mxu0 %v4873
        %v5054 = vpop.f32.mrb[0].mxu0
        %v5055 = vadd.f32 0.0, %v5054
        %v5056 = vpop.f32.mrb[0].mxu0
        %5057 = vmatprep.mubr.f32.mxu0 0.0
        %5058 = vmatmul.mubr.f32.gmra.mrb[0].mxu0 %v4876
        %v5059 = vpop.f32.mrb[0].mxu0
        %v5060 = vadd.f32 0.0, %v5059
        %v5061 = vpop.f32.mrb[0].mxu0
        %5062 = vmatprep.mubr.f32.mxu0 0.0
        %5063 = vmatmul.mubr.f32.gmra.mrb[0].mxu0 %v4879
        %v5064 = vpop.f32.mrb[0].mxu0
        %v5065 = vadd.f32 0.0, %v5064
        %v5066 = vpop.f32.mrb[0].mxu0
        %5067 = vmatprep.mubr.f32.mxu0 0.0
        %5068 = vmatmul.mubr.f32.gmra.mrb[0].mxu0 %v4882
        %v5069 = vpop.f32.mrb[0].mxu0
        %v5070 = vadd.f32 0.0, %v5069
        %v5071 = vpop.f32.mrb[0].mxu0
        %5072 = vmatprep.mubr.f32.mxu0 0.0
        %5073 = vmatmul.mubr.f32.gmra.mrb[0].mxu0 %v4885
        %v5074 = vpop.f32.mrb[0].mxu0
        %v5075 = vadd.f32 0.0, %v5074
        %v5076 = vpop.f32.mrb[0].mxu0
        %5077 = vmatprep.mubr.f32.mxu0 0.0
        %5078 = vmatmul.mubr.f32.gmra.mrb[0].mxu0 %v4888
        %v5079 = vpop.f32.mrb[0].mxu0
        %v5080 = vadd.f32 0.0, %v5079
        %v5081 = vpop.f32.mrb[0].mxu0
        %5082 = vmatprep.mubr.f32.mxu0 0.0
        %5083 = vmatmul.mubr.f32.gmra.mrb[0].mxu0 %v4891
        %v5084 = vpop.f32.mrb[0].mxu0
        %v5085 = vadd.f32 0.0, %v5084
        %v5086 = vpop.f32.mrb[0].mxu0
        %5087 = vmatprep.mubr.f32.mxu0 0.0
        %5088 = vmatmul.mubr.f32.gmra.mrb[0].mxu0 %v4894
        %v5089 = vpop.f32.mrb[0].mxu0
        %v5090 = vadd.f32 0.0, %v5089
        %v5091 = vpop.f32.mrb[0].mxu0
        %5092 = vmatprep.mubr.f32.mxu0 0.0
        %5093 = vmatmul.mubr.f32.gmra.mrb[0].mxu0 %v4897
        %v5094 = vpop.f32.mrb[0].mxu0
        %v5095 = vadd.f32 0.0, %v5094
        %v5096 = vpop.f32.mrb[0].mxu0
        %5097 = vmatprep.mubr.f32.mxu0 0.0
        %5098 = vmatmul.mubr.f32.gmra.mrb[0].mxu0 %v4900
        %v5099 = vpop.f32.mrb[0].mxu0
        %v5100 = vadd.f32 0.0, %v5099
        %v5101 = vpop.f32.mrb[0].mxu0
        %5102 = vmatprep.mubr.f32.mxu0 0.0
        %5103 = vmatmul.mubr.f32.gmra.mrb[0].mxu0 %v4903
        %v5104 = vpop.f32.mrb[0].mxu0
        %v5105 = vadd.f32 0.0, %v5104
        %v5106 = vpop.f32.mrb[0].mxu0
        %5107 = vmatprep.mubr.f32.mxu0 0.0
        %5108 = vmatmul.mubr.f32.gmra.mrb[0].mxu0 %v4906
        %v5109 = vpop.f32.mrb[0].mxu0
        %v5110 = vadd.f32 0.0, %v5109
        %v5111 = vpop.f32.mrb[0].mxu0
        %5112 = vmatprep.mubr.f32.mxu0 0.0
        %5113 = vmatmul.mubr.f32.gmra.mrb[0].mxu0 %v4909
        %v5114 = vpop.f32.mrb[0].mxu0
        %v5115 = vadd.f32 0.0, %v5114
        %v5116 = vpop.f32.mrb[0].mxu0
        %5117 = vmatprep.mubr.f32.mxu0 0.0
        %5118 = vmatmul.mubr.f32.gmra.mrb[0].mxu0 %v4912
        %v5119 = vpop.f32.mrb[0].mxu0
        %v5120 = vadd.f32 0.0, %v5119
        %v5121 = vpop.f32.mrb[0].mxu0
        %5122 = vmatprep.mubr.f32.mxu0 0.0
        %5123 = vmatmul.mubr.f32.gmra.mrb[0].mxu0 %v4915
        %v5124 = vpop.f32.mrb[0].mxu0
        %v5125 = vadd.f32 0.0, %v5124
        %v5126 = vpop.f32.mrb[0].mxu0
        %5127 = vmatprep.mubr.f32.mxu0 0.0
        %5128 = vmatmul.mubr.f32.gmra.mrb[0].mxu0 %v4918
        %v5129 = vpop.f32.mrb[0].mxu0
        %v5130 = vadd.f32 0.0, %v5129
        %v5131 = vpop.f32.mrb[0].mxu0
        %5132 = vmatprep.mubr.f32.mxu0 0.0
        %5133 = vmatmul.mubr.f32.gmra.mrb[0].mxu0 %v4921
        %v5134 = vpop.f32.mrb[0].mxu0
        %v5135 = vadd.f32 0.0, %v5134
        %v5136 = vpop.f32.mrb[0].mxu0
        %5137 = vmatprep.mubr.f32.mxu0 0.0
        %5138 = vmatmul.mubr.f32.gmra.mrb[0].mxu0 %v4924
        %v5139 = vpop.f32.mrb[0].mxu0
        %v5140 = vadd.f32 0.0, %v5139
        %v5141 = vpop.f32.mrb[0].mxu0
        %5142 = vmatprep.mubr.f32.mxu0 0.0
        %5143 = vmatmul.mubr.f32.gmra.mrb[0].mxu0 %v4927
        %v5144 = vpop.f32.mrb[0].mxu0
        %v5145 = vadd.f32 0.0, %v5144
        %v5146 = vpop.f32.mrb[0].mxu0
        %5147 = vmatprep.mubr.f32.mxu0 0.0
        %5148 = vmatmul.mubr.f32.gmra.mrb[0].mxu0 %v4930
        %v5149 = vpop.f32.mrb[0].mxu0
        %v5150 = vadd.f32 0.0, %v5149
        %v5151 = vpop.f32.mrb[0].mxu0
        %5152 = vmatprep.mubr.f32.mxu0 0.0
        %5153 = vmatmul.mubr.f32.gmra.mrb[0].mxu0 %v4933
        %v5154 = vpop.f32.mrb[0].mxu0
        %v5155 = vadd.f32 0.0, %v5154
        %v5156 = vpop.f32.mrb[0].mxu0
        %5157 = vmatprep.mubr.f32.mxu0 0.0
        %5158 = vmatmul.mubr.f32.gmra.mrb[0].mxu0 %v4936
        %v5159 = vpop.f32.mrb[0].mxu0
        %v5160 = vadd.f32 0.0, %v5159
        %v5161 = vpop.f32.mrb[0].mxu0
        %5162 = vdwg.mxu0
        %v5163 = vadd.f32 %v4647, %v5005
        %v5164 = vadd.f32 %v4652, %v5010
        %v5165 = vadd.f32 %v4657, %v5015
        %v5166 = vadd.f32 %v4662, %v5020
        %v5167 = vadd.f32 %v4667, %v5025
        %v5168 = vadd.f32 %v4672, %v5030
        %v5169 = vadd.f32 %v4677, %v5035
        %v5170 = vadd.f32 %v4682, %v5040
        %v5171 = vadd.f32 %v4687, %v5045
        %v5172 = vadd.f32 %v4692, %v5050
        %v5173 = vadd.f32 %v4697, %v5055
        %v5174 = vadd.f32 %v4702, %v5060
        %v5175 = vadd.f32 %v4707, %v5065
        %v5176 = vadd.f32 %v4712, %v5070
        %v5177 = vadd.f32 %v4717, %v5075
        %v5178 = vadd.f32 %v4722, %v5080
        %v5179 = vadd.f32 %v4727, %v5085
        %v5180 = vadd.f32 %v4732, %v5090
        %v5181 = vadd.f32 %v4737, %v5095
        %v5182 = vadd.f32 %v4742, %v5100
        %v5183 = vadd.f32 %v4747, %v5105
        %v5184 = vadd.f32 %v4752, %v5110
        %v5185 = vadd.f32 %v4757, %v5115
        %v5186 = vadd.f32 %v4762, %v5120
        %v5187 = vadd.f32 %v4767, %v5125
        %v5188 = vadd.f32 %v4772, %v5130
        %v5189 = vadd.f32 %v4777, %v5135
        %v5190 = vadd.f32 %v4782, %v5140
        %v5191 = vadd.f32 %v4787, %v5145
        %v5192 = vadd.f32 %v4792, %v5150
        %v5193 = vadd.f32 %v4797, %v5155
        %v5194 = vadd.f32 %v4802, %v5160
        %v5195 = vld [vmem:[%s4057] sm:$0xff]
        %v5196 = vld [vmem:[%s4057 + $0x8] sm:$0xff]
        %v5197 = vld [vmem:[%s4057 + $0x18] sm:$0xff]
        %v5198 = vld [vmem:[%s4057 + $0x20] sm:$0xff]
        %v5199 = vld [vmem:[%s4057 + $0x30] sm:$0xff]
        %v5200 = vld [vmem:[%s4057 + $0x38] sm:$0xff]
        %v5201 = vld [vmem:[%s4057 + $0x48] sm:$0xff]
        %v5202 = vld [vmem:[%s4057 + $0x50] sm:$0xff]
        %v5203 = vld [vmem:[%s4057 + $0x60] sm:$0xff]
        %v5204 = vld [vmem:[%s4057 + $0x68] sm:$0xff]
        %v5205 = vld [vmem:[%s4057 + $0x78] sm:$0xff]
        %v5206 = vld [vmem:[%s4057 + $0x80] sm:$0xff]
        %v5207 = vld [vmem:[%s4057 + $0x90] sm:$0xff]
        %v5208 = vld [vmem:[%s4057 + $0x98] sm:$0xff]
        %v5209 = vld [vmem:[%s4057 + $0xa8] sm:$0xff]
        %v5210 = vld [vmem:[%s4057 + $0xb0] sm:$0xff]
        %v5211 = vld [vmem:[%s4057 + $0xc0] sm:$0xff]
        %v5212 = vld [vmem:[%s4057 + $0xc8] sm:$0xff]
        %v5213 = vld [vmem:[%s4057 + $0xd8] sm:$0xff]
        %v5214 = vld [vmem:[%s4057 + $0xe0] sm:$0xff]
        %v5215 = vld [vmem:[%s4057 + $0xf0] sm:$0xff]
        %v5216 = vld [vmem:[%s4057 + $0xf8] sm:$0xff]
        %v5217 = vld [vmem:[%s4057 + $0x108] sm:$0xff]
        %v5218 = vld [vmem:[%s4057 + $0x110] sm:$0xff]
        %v5219 = vld [vmem:[%s4057 + $0x120] sm:$0xff]
        %v5220 = vld [vmem:[%s4057 + $0x128] sm:$0xff]
        %v5221 = vld [vmem:[%s4057 + $0x138] sm:$0xff]
        %v5222 = vld [vmem:[%s4057 + $0x140] sm:$0xff]
        %v5223 = vld [vmem:[%s4057 + $0x150] sm:$0xff]
        %v5224 = vld [vmem:[%s4057 + $0x158] sm:$0xff]
        %v5225 = vld [vmem:[%s4057 + $0x168] sm:$0xff]
        %v5226 = vld [vmem:[%s4057 + $0x170] sm:$0xff]
        %s5227 = scalar_lea.vmem [#allocation9], 96
        %v5228 = vld [vmem:[%s5227] sm:$0xff]
        %v5229 = vld [vmem:[%s5227 + $0x8] sm:$0xff]
        %v5230 = vld [vmem:[%s5227 + $0x10] sm:$0xff]
        %v5231 = vld [vmem:[%s5227 + $0x18] sm:$0xff]
        %v5233 = vsel %vm326, %v5195, 0
        %v5236 = vsel %vm326, %v5196, 0
        %v5239 = vsel %vm326, %v5197, 0
        %v5242 = vsel %vm326, %v5198, 0
        %v5245 = vsel %vm326, %v5199, 0
        %v5248 = vsel %vm326, %v5200, 0
        %v5251 = vsel %vm326, %v5201, 0
        %v5254 = vsel %vm326, %v5202, 0
        %v5257 = vsel %vm326, %v5203, 0
        %v5260 = vsel %vm326, %v5204, 0
        %v5263 = vsel %vm326, %v5205, 0
        %v5266 = vsel %vm326, %v5206, 0
        %v5269 = vsel %vm326, %v5207, 0
        %v5272 = vsel %vm326, %v5208, 0
        %v5275 = vsel %vm326, %v5209, 0
        %v5278 = vsel %vm326, %v5210, 0
        %v5281 = vsel %vm326, %v5211, 0
        %v5284 = vsel %vm326, %v5212, 0
        %v5287 = vsel %vm326, %v5213, 0
        %v5290 = vsel %vm326, %v5214, 0
        %v5293 = vsel %vm326, %v5215, 0
        %v5296 = vsel %vm326, %v5216, 0
        %v5299 = vsel %vm326, %v5217, 0
        %v5302 = vsel %vm326, %v5218, 0
        %v5305 = vsel %vm326, %v5219, 0
        %v5308 = vsel %vm326, %v5220, 0
        %v5311 = vsel %vm326, %v5221, 0
        %v5314 = vsel %vm326, %v5222, 0
        %v5317 = vsel %vm326, %v5223, 0
        %v5320 = vsel %vm326, %v5224, 0
        %v5323 = vsel %vm326, %v5225, 0
        %v5326 = vsel %vm326, %v5226, 0
        %5328 = vmatprep.subr.mxu0 0.0
        %5329 = vmatpush1.msra.mxu0 %v5228
        %5330 = vmatprep.subr.mxu0 0.0
        %5331 = vmatpush1.msra.mxu0 %v5229
        %5332 = vmatprep.subr.mxu0 0.0
        %5333 = vmatpush1.msra.mxu0 %v5230
        %5334 = vmatprep.subr.mxu0 0.0
        %5335 = vmatpush1.msra.mxu0 %v5231
        %5336 = vmatprep.subr.mxu0 0.0
        %5337 = vmatpush1.msra.mxu0 0.0
        %5338 = vmatprep.subr.mxu0 0.0
        %5339 = vmatpush1.msra.mxu0 0.0
        %5340 = vmatprep.subr.mxu0 0.0
        %5341 = vmatpush1.msra.mxu0 0.0
        %5342 = vmatprep.subr.mxu0 0.0
        %5343 = vmatpush1.msra.mxu0 0.0
        %5344 = vmatprep.subr.mxu0 0.0
        %5345 = vmatpush1.msra.mxu0 0.0
        %5346 = vmatprep.subr.mxu0 0.0
        %5347 = vmatpush1.msra.mxu0 0.0
        %5348 = vmatprep.subr.mxu0 0.0
        %5349 = vmatpush1.msra.mxu0 0.0
        %5350 = vmatprep.subr.mxu0 0.0
        %5351 = vmatpush1.msra.mxu0 0.0
        %5352 = vmatprep.subr.mxu0 0.0
        %5353 = vmatpush1.msra.mxu0 0.0
        %5354 = vmatprep.subr.mxu0 0.0
        %5355 = vmatpush1.msra.mxu0 0.0
        %5356 = vmatprep.subr.mxu0 0.0
        %5357 = vmatpush1.msra.mxu0 0.0
        %5358 = vmatprep.subr.mxu0 0.0
        %5359 = vmatpush1.msra.mxu0 0.0
        %5360 = vmatprep.subr.mxu0 0.0
        %5361 = vmatpush1.msra.mxu0 0.0
        %5362 = vmatprep.subr.mxu0 0.0
        %5363 = vmatpush1.msra.mxu0 0.0
        %5364 = vmatprep.subr.mxu0 0.0
        %5365 = vmatpush1.msra.mxu0 0.0
        %5366 = vmatprep.subr.mxu0 0.0
        %5367 = vmatpush1.msra.mxu0 0.0
        %5368 = vmatprep.subr.mxu0 0.0
        %5369 = vmatpush1.msra.mxu0 0.0
        %5370 = vmatprep.subr.mxu0 0.0
        %5371 = vmatpush1.msra.mxu0 0.0
        %5372 = vmatprep.subr.mxu0 0.0
        %5373 = vmatpush1.msra.mxu0 0.0
        %5374 = vmatprep.subr.mxu0 0.0
        %5375 = vmatpush1.msra.mxu0 0.0
        %5376 = vmatprep.subr.mxu0 0.0
        %5377 = vmatpush1.msra.mxu0 0.0
        %5378 = vmatprep.subr.mxu0 0.0
        %5379 = vmatpush1.msra.mxu0 0.0
        %5380 = vmatprep.subr.mxu0 0.0
        %5381 = vmatpush1.msra.mxu0 0.0
        %5382 = vmatprep.subr.mxu0 0.0
        %5383 = vmatpush1.msra.mxu0 0.0
        %5384 = vmatprep.subr.mxu0 0.0
        %5385 = vmatpush1.msra.mxu0 0.0
        %5386 = vmatprep.subr.mxu0 0.0
        %5387 = vmatpush1.msra.mxu0 0.0
        %5388 = vmatprep.subr.mxu0 0.0
        %5389 = vmatpush1.msra.mxu0 0.0
        %5390 = vmatprep.subr.mxu0 0.0
        %5391 = vmatpush1.msra.mxu0 0.0
        %5392 = vmatprep.mubr.f32.mxu0 0.0
        %5393 = vmatmul.mubr.f32.gmra.mrb[0].mxu0 %v5233
        %v5394 = vpop.f32.mrb[0].mxu0
        %v5395 = vadd.f32 0.0, %v5394
        %v5396 = vpop.f32.mrb[0].mxu0
        %5397 = vmatprep.mubr.f32.mxu0 0.0
        %5398 = vmatmul.mubr.f32.gmra.mrb[0].mxu0 %v5236
        %v5399 = vpop.f32.mrb[0].mxu0
        %v5400 = vadd.f32 0.0, %v5399
        %v5401 = vpop.f32.mrb[0].mxu0
        %5402 = vmatprep.mubr.f32.mxu0 0.0
        %5403 = vmatmul.mubr.f32.gmra.mrb[0].mxu0 %v5239
        %v5404 = vpop.f32.mrb[0].mxu0
        %v5405 = vadd.f32 0.0, %v5404
        %v5406 = vpop.f32.mrb[0].mxu0
        %5407 = vmatprep.mubr.f32.mxu0 0.0
        %5408 = vmatmul.mubr.f32.gmra.mrb[0].mxu0 %v5242
        %v5409 = vpop.f32.mrb[0].mxu0
        %v5410 = vadd.f32 0.0, %v5409
        %v5411 = vpop.f32.mrb[0].mxu0
        %5412 = vmatprep.mubr.f32.mxu0 0.0
        %5413 = vmatmul.mubr.f32.gmra.mrb[0].mxu0 %v5245
        %v5414 = vpop.f32.mrb[0].mxu0
        %v5415 = vadd.f32 0.0, %v5414
        %v5416 = vpop.f32.mrb[0].mxu0
        %5417 = vmatprep.mubr.f32.mxu0 0.0
        %5418 = vmatmul.mubr.f32.gmra.mrb[0].mxu0 %v5248
        %v5419 = vpop.f32.mrb[0].mxu0
        %v5420 = vadd.f32 0.0, %v5419
        %v5421 = vpop.f32.mrb[0].mxu0
        %5422 = vmatprep.mubr.f32.mxu0 0.0
        %5423 = vmatmul.mubr.f32.gmra.mrb[0].mxu0 %v5251
        %v5424 = vpop.f32.mrb[0].mxu0
        %v5425 = vadd.f32 0.0, %v5424
        %v5426 = vpop.f32.mrb[0].mxu0
        %5427 = vmatprep.mubr.f32.mxu0 0.0
        %5428 = vmatmul.mubr.f32.gmra.mrb[0].mxu0 %v5254
        %v5429 = vpop.f32.mrb[0].mxu0
        %v5430 = vadd.f32 0.0, %v5429
        %v5431 = vpop.f32.mrb[0].mxu0
        %5432 = vmatprep.mubr.f32.mxu0 0.0
        %5433 = vmatmul.mubr.f32.gmra.mrb[0].mxu0 %v5257
        %v5434 = vpop.f32.mrb[0].mxu0
        %v5435 = vadd.f32 0.0, %v5434
        %v5436 = vpop.f32.mrb[0].mxu0
        %5437 = vmatprep.mubr.f32.mxu0 0.0
        %5438 = vmatmul.mubr.f32.gmra.mrb[0].mxu0 %v5260
        %v5439 = vpop.f32.mrb[0].mxu0
        %v5440 = vadd.f32 0.0, %v5439
        %v5441 = vpop.f32.mrb[0].mxu0
        %5442 = vmatprep.mubr.f32.mxu0 0.0
        %5443 = vmatmul.mubr.f32.gmra.mrb[0].mxu0 %v5263
        %v5444 = vpop.f32.mrb[0].mxu0
        %v5445 = vadd.f32 0.0, %v5444
        %v5446 = vpop.f32.mrb[0].mxu0
        %5447 = vmatprep.mubr.f32.mxu0 0.0
        %5448 = vmatmul.mubr.f32.gmra.mrb[0].mxu0 %v5266
        %v5449 = vpop.f32.mrb[0].mxu0
        %v5450 = vadd.f32 0.0, %v5449
        %v5451 = vpop.f32.mrb[0].mxu0
        %5452 = vmatprep.mubr.f32.mxu0 0.0
        %5453 = vmatmul.mubr.f32.gmra.mrb[0].mxu0 %v5269
        %v5454 = vpop.f32.mrb[0].mxu0
        %v5455 = vadd.f32 0.0, %v5454
        %v5456 = vpop.f32.mrb[0].mxu0
        %5457 = vmatprep.mubr.f32.mxu0 0.0
        %5458 = vmatmul.mubr.f32.gmra.mrb[0].mxu0 %v5272
        %v5459 = vpop.f32.mrb[0].mxu0
        %v5460 = vadd.f32 0.0, %v5459
        %v5461 = vpop.f32.mrb[0].mxu0
        %5462 = vmatprep.mubr.f32.mxu0 0.0
        %5463 = vmatmul.mubr.f32.gmra.mrb[0].mxu0 %v5275
        %v5464 = vpop.f32.mrb[0].mxu0
        %v5465 = vadd.f32 0.0, %v5464
        %v5466 = vpop.f32.mrb[0].mxu0
        %5467 = vmatprep.mubr.f32.mxu0 0.0
        %5468 = vmatmul.mubr.f32.gmra.mrb[0].mxu0 %v5278
        %v5469 = vpop.f32.mrb[0].mxu0
        %v5470 = vadd.f32 0.0, %v5469
        %v5471 = vpop.f32.mrb[0].mxu0
        %5472 = vmatprep.mubr.f32.mxu0 0.0
        %5473 = vmatmul.mubr.f32.gmra.mrb[0].mxu0 %v5281
        %v5474 = vpop.f32.mrb[0].mxu0
        %v5475 = vadd.f32 0.0, %v5474
        %v5476 = vpop.f32.mrb[0].mxu0
        %5477 = vmatprep.mubr.f32.mxu0 0.0
        %5478 = vmatmul.mubr.f32.gmra.mrb[0].mxu0 %v5284
        %v5479 = vpop.f32.mrb[0].mxu0
        %v5480 = vadd.f32 0.0, %v5479
        %v5481 = vpop.f32.mrb[0].mxu0
        %5482 = vmatprep.mubr.f32.mxu0 0.0
        %5483 = vmatmul.mubr.f32.gmra.mrb[0].mxu0 %v5287
        %v5484 = vpop.f32.mrb[0].mxu0
        %v5485 = vadd.f32 0.0, %v5484
        %v5486 = vpop.f32.mrb[0].mxu0
        %5487 = vmatprep.mubr.f32.mxu0 0.0
        %5488 = vmatmul.mubr.f32.gmra.mrb[0].mxu0 %v5290
        %v5489 = vpop.f32.mrb[0].mxu0
        %v5490 = vadd.f32 0.0, %v5489
        %v5491 = vpop.f32.mrb[0].mxu0
        %5492 = vmatprep.mubr.f32.mxu0 0.0
        %5493 = vmatmul.mubr.f32.gmra.mrb[0].mxu0 %v5293
        %v5494 = vpop.f32.mrb[0].mxu0
        %v5495 = vadd.f32 0.0, %v5494
        %v5496 = vpop.f32.mrb[0].mxu0
        %5497 = vmatprep.mubr.f32.mxu0 0.0
        %5498 = vmatmul.mubr.f32.gmra.mrb[0].mxu0 %v5296
        %v5499 = vpop.f32.mrb[0].mxu0
        %v5500 = vadd.f32 0.0, %v5499
        %v5501 = vpop.f32.mrb[0].mxu0
        %5502 = vmatprep.mubr.f32.mxu0 0.0
        %5503 = vmatmul.mubr.f32.gmra.mrb[0].mxu0 %v5299
        %v5504 = vpop.f32.mrb[0].mxu0
        %v5505 = vadd.f32 0.0, %v5504
        %v5506 = vpop.f32.mrb[0].mxu0
        %5507 = vmatprep.mubr.f32.mxu0 0.0
        %5508 = vmatmul.mubr.f32.gmra.mrb[0].mxu0 %v5302
        %v5509 = vpop.f32.mrb[0].mxu0
        %v5510 = vadd.f32 0.0, %v5509
        %v5511 = vpop.f32.mrb[0].mxu0
        %5512 = vmatprep.mubr.f32.mxu0 0.0
        %5513 = vmatmul.mubr.f32.gmra.mrb[0].mxu0 %v5305
        %v5514 = vpop.f32.mrb[0].mxu0
        %v5515 = vadd.f32 0.0, %v5514
        %v5516 = vpop.f32.mrb[0].mxu0
        %5517 = vmatprep.mubr.f32.mxu0 0.0
        %5518 = vmatmul.mubr.f32.gmra.mrb[0].mxu0 %v5308
        %v5519 = vpop.f32.mrb[0].mxu0
        %v5520 = vadd.f32 0.0, %v5519
        %v5521 = vpop.f32.mrb[0].mxu0
        %5522 = vmatprep.mubr.f32.mxu0 0.0
        %5523 = vmatmul.mubr.f32.gmra.mrb[0].mxu0 %v5311
        %v5524 = vpop.f32.mrb[0].mxu0
        %v5525 = vadd.f32 0.0, %v5524
        %v5526 = vpop.f32.mrb[0].mxu0
        %5527 = vmatprep.mubr.f32.mxu0 0.0
        %5528 = vmatmul.mubr.f32.gmra.mrb[0].mxu0 %v5314
        %v5529 = vpop.f32.mrb[0].mxu0
        %v5530 = vadd.f32 0.0, %v5529
        %v5531 = vpop.f32.mrb[0].mxu0
        %5532 = vmatprep.mubr.f32.mxu0 0.0
        %5533 = vmatmul.mubr.f32.gmra.mrb[0].mxu0 %v5317
        %v5534 = vpop.f32.mrb[0].mxu0
        %v5535 = vadd.f32 0.0, %v5534
        %v5536 = vpop.f32.mrb[0].mxu0
        %5537 = vmatprep.mubr.f32.mxu0 0.0
        %5538 = vmatmul.mubr.f32.gmra.mrb[0].mxu0 %v5320
        %v5539 = vpop.f32.mrb[0].mxu0
        %v5540 = vadd.f32 0.0, %v5539
        %v5541 = vpop.f32.mrb[0].mxu0
        %5542 = vmatprep.mubr.f32.mxu0 0.0
        %5543 = vmatmul.mubr.f32.gmra.mrb[0].mxu0 %v5323
        %v5544 = vpop.f32.mrb[0].mxu0
        %v5545 = vadd.f32 0.0, %v5544
        %v5546 = vpop.f32.mrb[0].mxu0
        %5547 = vmatprep.mubr.f32.mxu0 0.0
        %5548 = vmatmul.mubr.f32.gmra.mrb[0].mxu0 %v5326
        %v5549 = vpop.f32.mrb[0].mxu0
        %v5550 = vadd.f32 0.0, %v5549
        %v5551 = vpop.f32.mrb[0].mxu0
        %5552 = vdwg.mxu0
        %v5553 = vadd.f32 %v5163, %v5395
        %v5554 = vadd.f32 %v5164, %v5400
        %v5555 = vadd.f32 %v5165, %v5405
        %v5556 = vadd.f32 %v5166, %v5410
        %v5557 = vadd.f32 %v5167, %v5415
        %v5558 = vadd.f32 %v5168, %v5420
        %v5559 = vadd.f32 %v5169, %v5425
        %v5560 = vadd.f32 %v5170, %v5430
        %v5561 = vadd.f32 %v5171, %v5435
        %v5562 = vadd.f32 %v5172, %v5440
        %v5563 = vadd.f32 %v5173, %v5445
        %v5564 = vadd.f32 %v5174, %v5450
        %v5565 = vadd.f32 %v5175, %v5455
        %v5566 = vadd.f32 %v5176, %v5460
        %v5567 = vadd.f32 %v5177, %v5465
        %v5568 = vadd.f32 %v5178, %v5470
        %v5569 = vadd.f32 %v5179, %v5475
        %v5570 = vadd.f32 %v5180, %v5480
        %v5571 = vadd.f32 %v5181, %v5485
        %v5572 = vadd.f32 %v5182, %v5490
        %v5573 = vadd.f32 %v5183, %v5495
        %v5574 = vadd.f32 %v5184, %v5500
        %v5575 = vadd.f32 %v5185, %v5505
        %v5576 = vadd.f32 %v5186, %v5510
        %v5577 = vadd.f32 %v5187, %v5515
        %v5578 = vadd.f32 %v5188, %v5520
        %v5579 = vadd.f32 %v5189, %v5525
        %v5580 = vadd.f32 %v5190, %v5530
        %v5581 = vadd.f32 %v5191, %v5535
        %v5582 = vadd.f32 %v5192, %v5540
        %v5583 = vadd.f32 %v5193, %v5545
        %v5584 = vadd.f32 %v5194, %v5550
        %v5585 = vld [vmem:[%s4057 + $0x1] sm:$0xff]
        %v5586 = vld [vmem:[%s4057 + $0x9] sm:$0xff]
        %v5587 = vld [vmem:[%s4057 + $0x19] sm:$0xff]
        %v5588 = vld [vmem:[%s4057 + $0x21] sm:$0xff]
        %v5589 = vld [vmem:[%s4057 + $0x31] sm:$0xff]
        %v5590 = vld [vmem:[%s4057 + $0x39] sm:$0xff]
        %v5591 = vld [vmem:[%s4057 + $0x49] sm:$0xff]
        %v5592 = vld [vmem:[%s4057 + $0x51] sm:$0xff]
        %v5593 = vld [vmem:[%s4057 + $0x61] sm:$0xff]
        %v5594 = vld [vmem:[%s4057 + $0x69] sm:$0xff]
        %v5595 = vld [vmem:[%s4057 + $0x79] sm:$0xff]
        %v5596 = vld [vmem:[%s4057 + $0x81] sm:$0xff]
        %v5597 = vld [vmem:[%s4057 + $0x91] sm:$0xff]
        %v5598 = vld [vmem:[%s4057 + $0x99] sm:$0xff]
        %v5599 = vld [vmem:[%s4057 + $0xa9] sm:$0xff]
        %v5600 = vld [vmem:[%s4057 + $0xb1] sm:$0xff]
        %v5601 = vld [vmem:[%s4057 + $0xc1] sm:$0xff]
        %v5602 = vld [vmem:[%s4057 + $0xc9] sm:$0xff]
        %v5603 = vld [vmem:[%s4057 + $0xd9] sm:$0xff]
        %v5604 = vld [vmem:[%s4057 + $0xe1] sm:$0xff]
        %v5605 = vld [vmem:[%s4057 + $0xf1] sm:$0xff]
        %v5606 = vld [vmem:[%s4057 + $0xf9] sm:$0xff]
        %v5607 = vld [vmem:[%s4057 + $0x109] sm:$0xff]
        %v5608 = vld [vmem:[%s4057 + $0x111] sm:$0xff]
        %v5609 = vld [vmem:[%s4057 + $0x121] sm:$0xff]
        %v5610 = vld [vmem:[%s4057 + $0x129] sm:$0xff]
        %v5611 = vld [vmem:[%s4057 + $0x139] sm:$0xff]
        %v5612 = vld [vmem:[%s4057 + $0x141] sm:$0xff]
        %v5613 = vld [vmem:[%s4057 + $0x151] sm:$0xff]
        %v5614 = vld [vmem:[%s4057 + $0x159] sm:$0xff]
        %v5615 = vld [vmem:[%s4057 + $0x169] sm:$0xff]
        %v5616 = vld [vmem:[%s4057 + $0x171] sm:$0xff]
        %s5617 = scalar_lea.vmem [#allocation9], 128
        %v5618 = vld [vmem:[%s5617] sm:$0xff]
        %v5619 = vld [vmem:[%s5617 + $0x8] sm:$0xff]
        %v5620 = vld [vmem:[%s5617 + $0x10] sm:$0xff]
        %v5621 = vld [vmem:[%s5617 + $0x18] sm:$0xff]
        %v5623 = vsel %vm326, %v5585, 0
        %v5626 = vsel %vm326, %v5586, 0
        %v5629 = vsel %vm326, %v5587, 0
        %v5632 = vsel %vm326, %v5588, 0
        %v5635 = vsel %vm326, %v5589, 0
        %v5638 = vsel %vm326, %v5590, 0
        %v5641 = vsel %vm326, %v5591, 0
        %v5644 = vsel %vm326, %v5592, 0
        %v5647 = vsel %vm326, %v5593, 0
        %v5650 = vsel %vm326, %v5594, 0
        %v5653 = vsel %vm326, %v5595, 0
        %v5656 = vsel %vm326, %v5596, 0
        %v5659 = vsel %vm326, %v5597, 0
        %v5662 = vsel %vm326, %v5598, 0
        %v5665 = vsel %vm326, %v5599, 0
        %v5668 = vsel %vm326, %v5600, 0
        %v5671 = vsel %vm326, %v5601, 0
        %v5674 = vsel %vm326, %v5602, 0
        %v5677 = vsel %vm326, %v5603, 0
        %v5680 = vsel %vm326, %v5604, 0
        %v5683 = vsel %vm326, %v5605, 0
        %v5686 = vsel %vm326, %v5606, 0
        %v5689 = vsel %vm326, %v5607, 0
        %v5692 = vsel %vm326, %v5608, 0
        %v5695 = vsel %vm326, %v5609, 0
        %v5698 = vsel %vm326, %v5610, 0
        %v5701 = vsel %vm326, %v5611, 0
        %v5704 = vsel %vm326, %v5612, 0
        %v5707 = vsel %vm326, %v5613, 0
        %v5710 = vsel %vm326, %v5614, 0
        %v5713 = vsel %vm326, %v5615, 0
        %v5716 = vsel %vm326, %v5616, 0
        %5718 = vmatprep.subr.mxu0 0.0
        %5719 = vmatpush1.msra.mxu0 %v5618
        %5720 = vmatprep.subr.mxu0 0.0
        %5721 = vmatpush1.msra.mxu0 %v5619
        %5722 = vmatprep.subr.mxu0 0.0
        %5723 = vmatpush1.msra.mxu0 %v5620
        %5724 = vmatprep.subr.mxu0 0.0
        %5725 = vmatpush1.msra.mxu0 %v5621
        %5726 = vmatprep.subr.mxu0 0.0
        %5727 = vmatpush1.msra.mxu0 0.0
        %5728 = vmatprep.subr.mxu0 0.0
        %5729 = vmatpush1.msra.mxu0 0.0
        %5730 = vmatprep.subr.mxu0 0.0
        %5731 = vmatpush1.msra.mxu0 0.0
        %5732 = vmatprep.subr.mxu0 0.0
        %5733 = vmatpush1.msra.mxu0 0.0
        %5734 = vmatprep.subr.mxu0 0.0
        %5735 = vmatpush1.msra.mxu0 0.0
        %5736 = vmatprep.subr.mxu0 0.0
        %5737 = vmatpush1.msra.mxu0 0.0
        %5738 = vmatprep.subr.mxu0 0.0
        %5739 = vmatpush1.msra.mxu0 0.0
        %5740 = vmatprep.subr.mxu0 0.0
        %5741 = vmatpush1.msra.mxu0 0.0
        %5742 = vmatprep.subr.mxu0 0.0
        %5743 = vmatpush1.msra.mxu0 0.0
        %5744 = vmatprep.subr.mxu0 0.0
        %5745 = vmatpush1.msra.mxu0 0.0
        %5746 = vmatprep.subr.mxu0 0.0
        %5747 = vmatpush1.msra.mxu0 0.0
        %5748 = vmatprep.subr.mxu0 0.0
        %5749 = vmatpush1.msra.mxu0 0.0
        %5750 = vmatprep.subr.mxu0 0.0
        %5751 = vmatpush1.msra.mxu0 0.0
        %5752 = vmatprep.subr.mxu0 0.0
        %5753 = vmatpush1.msra.mxu0 0.0
        %5754 = vmatprep.subr.mxu0 0.0
        %5755 = vmatpush1.msra.mxu0 0.0
        %5756 = vmatprep.subr.mxu0 0.0
        %5757 = vmatpush1.msra.mxu0 0.0
        %5758 = vmatprep.subr.mxu0 0.0
        %5759 = vmatpush1.msra.mxu0 0.0
        %5760 = vmatprep.subr.mxu0 0.0
        %5761 = vmatpush1.msra.mxu0 0.0
        %5762 = vmatprep.subr.mxu0 0.0
        %5763 = vmatpush1.msra.mxu0 0.0
        %5764 = vmatprep.subr.mxu0 0.0
        %5765 = vmatpush1.msra.mxu0 0.0
        %5766 = vmatprep.subr.mxu0 0.0
        %5767 = vmatpush1.msra.mxu0 0.0
        %5768 = vmatprep.subr.mxu0 0.0
        %5769 = vmatpush1.msra.mxu0 0.0
        %5770 = vmatprep.subr.mxu0 0.0
        %5771 = vmatpush1.msra.mxu0 0.0
        %5772 = vmatprep.subr.mxu0 0.0
        %5773 = vmatpush1.msra.mxu0 0.0
        %5774 = vmatprep.subr.mxu0 0.0
        %5775 = vmatpush1.msra.mxu0 0.0
        %5776 = vmatprep.subr.mxu0 0.0
        %5777 = vmatpush1.msra.mxu0 0.0
        %5778 = vmatprep.subr.mxu0 0.0
        %5779 = vmatpush1.msra.mxu0 0.0
        %5780 = vmatprep.subr.mxu0 0.0
        %5781 = vmatpush1.msra.mxu0 0.0
        %5782 = vmatprep.mubr.f32.mxu0 0.0
        %5783 = vmatmul.mubr.f32.gmra.mrb[0].mxu0 %v5623
        %v5784 = vpop.f32.mrb[0].mxu0
        %v5785 = vadd.f32 0.0, %v5784
        %v5786 = vpop.f32.mrb[0].mxu0
        %5787 = vmatprep.mubr.f32.mxu0 0.0
        %5788 = vmatmul.mubr.f32.gmra.mrb[0].mxu0 %v5626
        %v5789 = vpop.f32.mrb[0].mxu0
        %v5790 = vadd.f32 0.0, %v5789
        %v5791 = vpop.f32.mrb[0].mxu0
        %5792 = vmatprep.mubr.f32.mxu0 0.0
        %5793 = vmatmul.mubr.f32.gmra.mrb[0].mxu0 %v5629
        %v5794 = vpop.f32.mrb[0].mxu0
        %v5795 = vadd.f32 0.0, %v5794
        %v5796 = vpop.f32.mrb[0].mxu0
        %5797 = vmatprep.mubr.f32.mxu0 0.0
        %5798 = vmatmul.mubr.f32.gmra.mrb[0].mxu0 %v5632
        %v5799 = vpop.f32.mrb[0].mxu0
        %v5800 = vadd.f32 0.0, %v5799
        %v5801 = vpop.f32.mrb[0].mxu0
        %5802 = vmatprep.mubr.f32.mxu0 0.0
        %5803 = vmatmul.mubr.f32.gmra.mrb[0].mxu0 %v5635
        %v5804 = vpop.f32.mrb[0].mxu0
        %v5805 = vadd.f32 0.0, %v5804
        %v5806 = vpop.f32.mrb[0].mxu0
        %5807 = vmatprep.mubr.f32.mxu0 0.0
        %5808 = vmatmul.mubr.f32.gmra.mrb[0].mxu0 %v5638
        %v5809 = vpop.f32.mrb[0].mxu0
        %v5810 = vadd.f32 0.0, %v5809
        %v5811 = vpop.f32.mrb[0].mxu0
        %5812 = vmatprep.mubr.f32.mxu0 0.0
        %5813 = vmatmul.mubr.f32.gmra.mrb[0].mxu0 %v5641
        %v5814 = vpop.f32.mrb[0].mxu0
        %v5815 = vadd.f32 0.0, %v5814
        %v5816 = vpop.f32.mrb[0].mxu0
        %5817 = vmatprep.mubr.f32.mxu0 0.0
        %5818 = vmatmul.mubr.f32.gmra.mrb[0].mxu0 %v5644
        %v5819 = vpop.f32.mrb[0].mxu0
        %v5820 = vadd.f32 0.0, %v5819
        %v5821 = vpop.f32.mrb[0].mxu0
        %5822 = vmatprep.mubr.f32.mxu0 0.0
        %5823 = vmatmul.mubr.f32.gmra.mrb[0].mxu0 %v5647
        %v5824 = vpop.f32.mrb[0].mxu0
        %v5825 = vadd.f32 0.0, %v5824
        %v5826 = vpop.f32.mrb[0].mxu0
        %5827 = vmatprep.mubr.f32.mxu0 0.0
        %5828 = vmatmul.mubr.f32.gmra.mrb[0].mxu0 %v5650
        %v5829 = vpop.f32.mrb[0].mxu0
        %v5830 = vadd.f32 0.0, %v5829
        %v5831 = vpop.f32.mrb[0].mxu0
        %5832 = vmatprep.mubr.f32.mxu0 0.0
        %5833 = vmatmul.mubr.f32.gmra.mrb[0].mxu0 %v5653
        %v5834 = vpop.f32.mrb[0].mxu0
        %v5835 = vadd.f32 0.0, %v5834
        %v5836 = vpop.f32.mrb[0].mxu0
        %5837 = vmatprep.mubr.f32.mxu0 0.0
        %5838 = vmatmul.mubr.f32.gmra.mrb[0].mxu0 %v5656
        %v5839 = vpop.f32.mrb[0].mxu0
        %v5840 = vadd.f32 0.0, %v5839
        %v5841 = vpop.f32.mrb[0].mxu0
        %5842 = vmatprep.mubr.f32.mxu0 0.0
        %5843 = vmatmul.mubr.f32.gmra.mrb[0].mxu0 %v5659
        %v5844 = vpop.f32.mrb[0].mxu0
        %v5845 = vadd.f32 0.0, %v5844
        %v5846 = vpop.f32.mrb[0].mxu0
        %5847 = vmatprep.mubr.f32.mxu0 0.0
        %5848 = vmatmul.mubr.f32.gmra.mrb[0].mxu0 %v5662
        %v5849 = vpop.f32.mrb[0].mxu0
        %v5850 = vadd.f32 0.0, %v5849
        %v5851 = vpop.f32.mrb[0].mxu0
        %5852 = vmatprep.mubr.f32.mxu0 0.0
        %5853 = vmatmul.mubr.f32.gmra.mrb[0].mxu0 %v5665
        %v5854 = vpop.f32.mrb[0].mxu0
        %v5855 = vadd.f32 0.0, %v5854
        %v5856 = vpop.f32.mrb[0].mxu0
        %5857 = vmatprep.mubr.f32.mxu0 0.0
        %5858 = vmatmul.mubr.f32.gmra.mrb[0].mxu0 %v5668
        %v5859 = vpop.f32.mrb[0].mxu0
        %v5860 = vadd.f32 0.0, %v5859
        %v5861 = vpop.f32.mrb[0].mxu0
        %5862 = vmatprep.mubr.f32.mxu0 0.0
        %5863 = vmatmul.mubr.f32.gmra.mrb[0].mxu0 %v5671
        %v5864 = vpop.f32.mrb[0].mxu0
        %v5865 = vadd.f32 0.0, %v5864
        %v5866 = vpop.f32.mrb[0].mxu0
        %5867 = vmatprep.mubr.f32.mxu0 0.0
        %5868 = vmatmul.mubr.f32.gmra.mrb[0].mxu0 %v5674
        %v5869 = vpop.f32.mrb[0].mxu0
        %v5870 = vadd.f32 0.0, %v5869
        %v5871 = vpop.f32.mrb[0].mxu0
        %5872 = vmatprep.mubr.f32.mxu0 0.0
        %5873 = vmatmul.mubr.f32.gmra.mrb[0].mxu0 %v5677
        %v5874 = vpop.f32.mrb[0].mxu0
        %v5875 = vadd.f32 0.0, %v5874
        %v5876 = vpop.f32.mrb[0].mxu0
        %5877 = vmatprep.mubr.f32.mxu0 0.0
        %5878 = vmatmul.mubr.f32.gmra.mrb[0].mxu0 %v5680
        %v5879 = vpop.f32.mrb[0].mxu0
        %v5880 = vadd.f32 0.0, %v5879
        %v5881 = vpop.f32.mrb[0].mxu0
        %5882 = vmatprep.mubr.f32.mxu0 0.0
        %5883 = vmatmul.mubr.f32.gmra.mrb[0].mxu0 %v5683
        %v5884 = vpop.f32.mrb[0].mxu0
        %v5885 = vadd.f32 0.0, %v5884
        %v5886 = vpop.f32.mrb[0].mxu0
        %5887 = vmatprep.mubr.f32.mxu0 0.0
        %5888 = vmatmul.mubr.f32.gmra.mrb[0].mxu0 %v5686
        %v5889 = vpop.f32.mrb[0].mxu0
        %v5890 = vadd.f32 0.0, %v5889
        %v5891 = vpop.f32.mrb[0].mxu0
        %5892 = vmatprep.mubr.f32.mxu0 0.0
        %5893 = vmatmul.mubr.f32.gmra.mrb[0].mxu0 %v5689
        %v5894 = vpop.f32.mrb[0].mxu0
        %v5895 = vadd.f32 0.0, %v5894
        %v5896 = vpop.f32.mrb[0].mxu0
        %5897 = vmatprep.mubr.f32.mxu0 0.0
        %5898 = vmatmul.mubr.f32.gmra.mrb[0].mxu0 %v5692
        %v5899 = vpop.f32.mrb[0].mxu0
        %v5900 = vadd.f32 0.0, %v5899
        %v5901 = vpop.f32.mrb[0].mxu0
        %5902 = vmatprep.mubr.f32.mxu0 0.0
        %5903 = vmatmul.mubr.f32.gmra.mrb[0].mxu0 %v5695
        %v5904 = vpop.f32.mrb[0].mxu0
        %v5905 = vadd.f32 0.0, %v5904
        %v5906 = vpop.f32.mrb[0].mxu0
        %5907 = vmatprep.mubr.f32.mxu0 0.0
        %5908 = vmatmul.mubr.f32.gmra.mrb[0].mxu0 %v5698
        %v5909 = vpop.f32.mrb[0].mxu0
        %v5910 = vadd.f32 0.0, %v5909
        %v5911 = vpop.f32.mrb[0].mxu0
        %5912 = vmatprep.mubr.f32.mxu0 0.0
        %5913 = vmatmul.mubr.f32.gmra.mrb[0].mxu0 %v5701
        %v5914 = vpop.f32.mrb[0].mxu0
        %v5915 = vadd.f32 0.0, %v5914
        %v5916 = vpop.f32.mrb[0].mxu0
        %5917 = vmatprep.mubr.f32.mxu0 0.0
        %5918 = vmatmul.mubr.f32.gmra.mrb[0].mxu0 %v5704
        %v5919 = vpop.f32.mrb[0].mxu0
        %v5920 = vadd.f32 0.0, %v5919
        %v5921 = vpop.f32.mrb[0].mxu0
        %5922 = vmatprep.mubr.f32.mxu0 0.0
        %5923 = vmatmul.mubr.f32.gmra.mrb[0].mxu0 %v5707
        %v5924 = vpop.f32.mrb[0].mxu0
        %v5925 = vadd.f32 0.0, %v5924
        %v5926 = vpop.f32.mrb[0].mxu0
        %5927 = vmatprep.mubr.f32.mxu0 0.0
        %5928 = vmatmul.mubr.f32.gmra.mrb[0].mxu0 %v5710
        %v5929 = vpop.f32.mrb[0].mxu0
        %v5930 = vadd.f32 0.0, %v5929
        %v5931 = vpop.f32.mrb[0].mxu0
        %5932 = vmatprep.mubr.f32.mxu0 0.0
        %5933 = vmatmul.mubr.f32.gmra.mrb[0].mxu0 %v5713
        %v5934 = vpop.f32.mrb[0].mxu0
        %v5935 = vadd.f32 0.0, %v5934
        %v5936 = vpop.f32.mrb[0].mxu0
        %5937 = vmatprep.mubr.f32.mxu0 0.0
        %5938 = vmatmul.mubr.f32.gmra.mrb[0].mxu0 %v5716
        %v5939 = vpop.f32.mrb[0].mxu0
        %v5940 = vadd.f32 0.0, %v5939
        %v5941 = vpop.f32.mrb[0].mxu0
        %5942 = vdwg.mxu0
        %v5943 = vadd.f32 %v5553, %v5785
        %v5944 = vadd.f32 %v5554, %v5790
        %v5945 = vadd.f32 %v5555, %v5795
        %v5946 = vadd.f32 %v5556, %v5800
        %v5947 = vadd.f32 %v5557, %v5805
        %v5948 = vadd.f32 %v5558, %v5810
        %v5949 = vadd.f32 %v5559, %v5815
        %v5950 = vadd.f32 %v5560, %v5820
        %v5951 = vadd.f32 %v5561, %v5825
        %v5952 = vadd.f32 %v5562, %v5830
        %v5953 = vadd.f32 %v5563, %v5835
        %v5954 = vadd.f32 %v5564, %v5840
        %v5955 = vadd.f32 %v5565, %v5845
        %v5956 = vadd.f32 %v5566, %v5850
        %v5957 = vadd.f32 %v5567, %v5855
        %v5958 = vadd.f32 %v5568, %v5860
        %v5959 = vadd.f32 %v5569, %v5865
        %v5960 = vadd.f32 %v5570, %v5870
        %v5961 = vadd.f32 %v5571, %v5875
        %v5962 = vadd.f32 %v5572, %v5880
        %v5963 = vadd.f32 %v5573, %v5885
        %v5964 = vadd.f32 %v5574, %v5890
        %v5965 = vadd.f32 %v5575, %v5895
        %v5966 = vadd.f32 %v5576, %v5900
        %v5967 = vadd.f32 %v5577, %v5905
        %v5968 = vadd.f32 %v5578, %v5910
        %v5969 = vadd.f32 %v5579, %v5915
        %v5970 = vadd.f32 %v5580, %v5920
        %v5971 = vadd.f32 %v5581, %v5925
        %v5972 = vadd.f32 %v5582, %v5930
        %v5973 = vadd.f32 %v5583, %v5935
        %v5974 = vadd.f32 %v5584, %v5940
        %v5975 = vld [vmem:[%s4057 + $0x2] sm:$0xff]
        %v5976 = vld [vmem:[%s4057 + $0xa] sm:$0xff]
        %v5977 = vld [vmem:[%s4057 + $0x1a] sm:$0xff]
        %v5978 = vld [vmem:[%s4057 + $0x22] sm:$0xff]
        %v5979 = vld [vmem:[%s4057 + $0x32] sm:$0xff]
        %v5980 = vld [vmem:[%s4057 + $0x3a] sm:$0xff]
        %v5981 = vld [vmem:[%s4057 + $0x4a] sm:$0xff]
        %v5982 = vld [vmem:[%s4057 + $0x52] sm:$0xff]
        %v5983 = vld [vmem:[%s4057 + $0x62] sm:$0xff]
        %v5984 = vld [vmem:[%s4057 + $0x6a] sm:$0xff]
        %v5985 = vld [vmem:[%s4057 + $0x7a] sm:$0xff]
        %v5986 = vld [vmem:[%s4057 + $0x82] sm:$0xff]
        %v5987 = vld [vmem:[%s4057 + $0x92] sm:$0xff]
        %v5988 = vld [vmem:[%s4057 + $0x9a] sm:$0xff]
        %v5989 = vld [vmem:[%s4057 + $0xaa] sm:$0xff]
        %v5990 = vld [vmem:[%s4057 + $0xb2] sm:$0xff]
        %v5991 = vld [vmem:[%s4057 + $0xc2] sm:$0xff]
        %v5992 = vld [vmem:[%s4057 + $0xca] sm:$0xff]
        %v5993 = vld [vmem:[%s4057 + $0xda] sm:$0xff]
        %v5994 = vld [vmem:[%s4057 + $0xe2] sm:$0xff]
        %v5995 = vld [vmem:[%s4057 + $0xf2] sm:$0xff]
        %v5996 = vld [vmem:[%s4057 + $0xfa] sm:$0xff]
        %v5997 = vld [vmem:[%s4057 + $0x10a] sm:$0xff]
        %v5998 = vld [vmem:[%s4057 + $0x112] sm:$0xff]
        %v5999 = vld [vmem:[%s4057 + $0x122] sm:$0xff]
        %v6000 = vld [vmem:[%s4057 + $0x12a] sm:$0xff]
        %v6001 = vld [vmem:[%s4057 + $0x13a] sm:$0xff]
        %v6002 = vld [vmem:[%s4057 + $0x142] sm:$0xff]
        %v6003 = vld [vmem:[%s4057 + $0x152] sm:$0xff]
        %v6004 = vld [vmem:[%s4057 + $0x15a] sm:$0xff]
        %v6005 = vld [vmem:[%s4057 + $0x16a] sm:$0xff]
        %v6006 = vld [vmem:[%s4057 + $0x172] sm:$0xff]
        %s6007 = scalar_lea.vmem [#allocation9], 160
        %v6008 = vld [vmem:[%s6007] sm:$0xff]
        %v6009 = vld [vmem:[%s6007 + $0x8] sm:$0xff]
        %v6010 = vld [vmem:[%s6007 + $0x10] sm:$0xff]
        %v6011 = vld [vmem:[%s6007 + $0x18] sm:$0xff]
        %v6013 = vsel %vm326, %v5975, 0
        %v6016 = vsel %vm326, %v5976, 0
        %v6019 = vsel %vm326, %v5977, 0
        %v6022 = vsel %vm326, %v5978, 0
        %v6025 = vsel %vm326, %v5979, 0
        %v6028 = vsel %vm326, %v5980, 0
        %v6031 = vsel %vm326, %v5981, 0
        %v6034 = vsel %vm326, %v5982, 0
        %v6037 = vsel %vm326, %v5983, 0
        %v6040 = vsel %vm326, %v5984, 0
        %v6043 = vsel %vm326, %v5985, 0
        %v6046 = vsel %vm326, %v5986, 0
        %v6049 = vsel %vm326, %v5987, 0
        %v6052 = vsel %vm326, %v5988, 0
        %v6055 = vsel %vm326, %v5989, 0
        %v6058 = vsel %vm326, %v5990, 0
        %v6061 = vsel %vm326, %v5991, 0
        %v6064 = vsel %vm326, %v5992, 0
        %v6067 = vsel %vm326, %v5993, 0
        %v6070 = vsel %vm326, %v5994, 0
        %v6073 = vsel %vm326, %v5995, 0
        %v6076 = vsel %vm326, %v5996, 0
        %v6079 = vsel %vm326, %v5997, 0
        %v6082 = vsel %vm326, %v5998, 0
        %v6085 = vsel %vm326, %v5999, 0
        %v6088 = vsel %vm326, %v6000, 0
        %v6091 = vsel %vm326, %v6001, 0
        %v6094 = vsel %vm326, %v6002, 0
        %v6097 = vsel %vm326, %v6003, 0
        %v6100 = vsel %vm326, %v6004, 0
        %v6103 = vsel %vm326, %v6005, 0
        %v6106 = vsel %vm326, %v6006, 0
        %6108 = vmatprep.subr.mxu0 0.0
        %6109 = vmatpush1.msra.mxu0 %v6008
        %6110 = vmatprep.subr.mxu0 0.0
        %6111 = vmatpush1.msra.mxu0 %v6009
        %6112 = vmatprep.subr.mxu0 0.0
        %6113 = vmatpush1.msra.mxu0 %v6010
        %6114 = vmatprep.subr.mxu0 0.0
        %6115 = vmatpush1.msra.mxu0 %v6011
        %6116 = vmatprep.subr.mxu0 0.0
        %6117 = vmatpush1.msra.mxu0 0.0
        %6118 = vmatprep.subr.mxu0 0.0
        %6119 = vmatpush1.msra.mxu0 0.0
        %6120 = vmatprep.subr.mxu0 0.0
        %6121 = vmatpush1.msra.mxu0 0.0
        %6122 = vmatprep.subr.mxu0 0.0
        %6123 = vmatpush1.msra.mxu0 0.0
        %6124 = vmatprep.subr.mxu0 0.0
        %6125 = vmatpush1.msra.mxu0 0.0
        %6126 = vmatprep.subr.mxu0 0.0
        %6127 = vmatpush1.msra.mxu0 0.0
        %6128 = vmatprep.subr.mxu0 0.0
        %6129 = vmatpush1.msra.mxu0 0.0
        %6130 = vmatprep.subr.mxu0 0.0
        %6131 = vmatpush1.msra.mxu0 0.0
        %6132 = vmatprep.subr.mxu0 0.0
        %6133 = vmatpush1.msra.mxu0 0.0
        %6134 = vmatprep.subr.mxu0 0.0
        %6135 = vmatpush1.msra.mxu0 0.0
        %6136 = vmatprep.subr.mxu0 0.0
        %6137 = vmatpush1.msra.mxu0 0.0
        %6138 = vmatprep.subr.mxu0 0.0
        %6139 = vmatpush1.msra.mxu0 0.0
        %6140 = vmatprep.subr.mxu0 0.0
        %6141 = vmatpush1.msra.mxu0 0.0
        %6142 = vmatprep.subr.mxu0 0.0
        %6143 = vmatpush1.msra.mxu0 0.0
        %6144 = vmatprep.subr.mxu0 0.0
        %6145 = vmatpush1.msra.mxu0 0.0
        %6146 = vmatprep.subr.mxu0 0.0
        %6147 = vmatpush1.msra.mxu0 0.0
        %6148 = vmatprep.subr.mxu0 0.0
        %6149 = vmatpush1.msra.mxu0 0.0
        %6150 = vmatprep.subr.mxu0 0.0
        %6151 = vmatpush1.msra.mxu0 0.0
        %6152 = vmatprep.subr.mxu0 0.0
        %6153 = vmatpush1.msra.mxu0 0.0
        %6154 = vmatprep.subr.mxu0 0.0
        %6155 = vmatpush1.msra.mxu0 0.0
        %6156 = vmatprep.subr.mxu0 0.0
        %6157 = vmatpush1.msra.mxu0 0.0
        %6158 = vmatprep.subr.mxu0 0.0
        %6159 = vmatpush1.msra.mxu0 0.0
        %6160 = vmatprep.subr.mxu0 0.0
        %6161 = vmatpush1.msra.mxu0 0.0
        %6162 = vmatprep.subr.mxu0 0.0
        %6163 = vmatpush1.msra.mxu0 0.0
        %6164 = vmatprep.subr.mxu0 0.0
        %6165 = vmatpush1.msra.mxu0 0.0
        %6166 = vmatprep.subr.mxu0 0.0
        %6167 = vmatpush1.msra.mxu0 0.0
        %6168 = vmatprep.subr.mxu0 0.0
        %6169 = vmatpush1.msra.mxu0 0.0
        %6170 = vmatprep.subr.mxu0 0.0
        %6171 = vmatpush1.msra.mxu0 0.0
        %6172 = vmatprep.mubr.f32.mxu0 0.0
        %6173 = vmatmul.mubr.f32.gmra.mrb[0].mxu0 %v6013
        %v6174 = vpop.f32.mrb[0].mxu0
        %v6175 = vadd.f32 0.0, %v6174
        %v6176 = vpop.f32.mrb[0].mxu0
        %6177 = vmatprep.mubr.f32.mxu0 0.0
        %6178 = vmatmul.mubr.f32.gmra.mrb[0].mxu0 %v6016
        %v6179 = vpop.f32.mrb[0].mxu0
        %v6180 = vadd.f32 0.0, %v6179
        %v6181 = vpop.f32.mrb[0].mxu0
        %6182 = vmatprep.mubr.f32.mxu0 0.0
        %6183 = vmatmul.mubr.f32.gmra.mrb[0].mxu0 %v6019
        %v6184 = vpop.f32.mrb[0].mxu0
        %v6185 = vadd.f32 0.0, %v6184
        %v6186 = vpop.f32.mrb[0].mxu0
        %6187 = vmatprep.mubr.f32.mxu0 0.0
        %6188 = vmatmul.mubr.f32.gmra.mrb[0].mxu0 %v6022
        %v6189 = vpop.f32.mrb[0].mxu0
        %v6190 = vadd.f32 0.0, %v6189
        %v6191 = vpop.f32.mrb[0].mxu0
        %6192 = vmatprep.mubr.f32.mxu0 0.0
        %6193 = vmatmul.mubr.f32.gmra.mrb[0].mxu0 %v6025
        %v6194 = vpop.f32.mrb[0].mxu0
        %v6195 = vadd.f32 0.0, %v6194
        %v6196 = vpop.f32.mrb[0].mxu0
        %6197 = vmatprep.mubr.f32.mxu0 0.0
        %6198 = vmatmul.mubr.f32.gmra.mrb[0].mxu0 %v6028
        %v6199 = vpop.f32.mrb[0].mxu0
        %v6200 = vadd.f32 0.0, %v6199
        %v6201 = vpop.f32.mrb[0].mxu0
        %6202 = vmatprep.mubr.f32.mxu0 0.0
        %6203 = vmatmul.mubr.f32.gmra.mrb[0].mxu0 %v6031
        %v6204 = vpop.f32.mrb[0].mxu0
        %v6205 = vadd.f32 0.0, %v6204
        %v6206 = vpop.f32.mrb[0].mxu0
        %6207 = vmatprep.mubr.f32.mxu0 0.0
        %6208 = vmatmul.mubr.f32.gmra.mrb[0].mxu0 %v6034
        %v6209 = vpop.f32.mrb[0].mxu0
        %v6210 = vadd.f32 0.0, %v6209
        %v6211 = vpop.f32.mrb[0].mxu0
        %6212 = vmatprep.mubr.f32.mxu0 0.0
        %6213 = vmatmul.mubr.f32.gmra.mrb[0].mxu0 %v6037
        %v6214 = vpop.f32.mrb[0].mxu0
        %v6215 = vadd.f32 0.0, %v6214
        %v6216 = vpop.f32.mrb[0].mxu0
        %6217 = vmatprep.mubr.f32.mxu0 0.0
        %6218 = vmatmul.mubr.f32.gmra.mrb[0].mxu0 %v6040
        %v6219 = vpop.f32.mrb[0].mxu0
        %v6220 = vadd.f32 0.0, %v6219
        %v6221 = vpop.f32.mrb[0].mxu0
        %6222 = vmatprep.mubr.f32.mxu0 0.0
        %6223 = vmatmul.mubr.f32.gmra.mrb[0].mxu0 %v6043
        %v6224 = vpop.f32.mrb[0].mxu0
        %v6225 = vadd.f32 0.0, %v6224
        %v6226 = vpop.f32.mrb[0].mxu0
        %6227 = vmatprep.mubr.f32.mxu0 0.0
        %6228 = vmatmul.mubr.f32.gmra.mrb[0].mxu0 %v6046
        %v6229 = vpop.f32.mrb[0].mxu0
        %v6230 = vadd.f32 0.0, %v6229
        %v6231 = vpop.f32.mrb[0].mxu0
        %6232 = vmatprep.mubr.f32.mxu0 0.0
        %6233 = vmatmul.mubr.f32.gmra.mrb[0].mxu0 %v6049
        %v6234 = vpop.f32.mrb[0].mxu0
        %v6235 = vadd.f32 0.0, %v6234
        %v6236 = vpop.f32.mrb[0].mxu0
        %6237 = vmatprep.mubr.f32.mxu0 0.0
        %6238 = vmatmul.mubr.f32.gmra.mrb[0].mxu0 %v6052
        %v6239 = vpop.f32.mrb[0].mxu0
        %v6240 = vadd.f32 0.0, %v6239
        %v6241 = vpop.f32.mrb[0].mxu0
        %6242 = vmatprep.mubr.f32.mxu0 0.0
        %6243 = vmatmul.mubr.f32.gmra.mrb[0].mxu0 %v6055
        %v6244 = vpop.f32.mrb[0].mxu0
        %v6245 = vadd.f32 0.0, %v6244
        %v6246 = vpop.f32.mrb[0].mxu0
        %6247 = vmatprep.mubr.f32.mxu0 0.0
        %6248 = vmatmul.mubr.f32.gmra.mrb[0].mxu0 %v6058
        %v6249 = vpop.f32.mrb[0].mxu0
        %v6250 = vadd.f32 0.0, %v6249
        %v6251 = vpop.f32.mrb[0].mxu0
        %6252 = vmatprep.mubr.f32.mxu0 0.0
        %6253 = vmatmul.mubr.f32.gmra.mrb[0].mxu0 %v6061
        %v6254 = vpop.f32.mrb[0].mxu0
        %v6255 = vadd.f32 0.0, %v6254
        %v6256 = vpop.f32.mrb[0].mxu0
        %6257 = vmatprep.mubr.f32.mxu0 0.0
        %6258 = vmatmul.mubr.f32.gmra.mrb[0].mxu0 %v6064
        %v6259 = vpop.f32.mrb[0].mxu0
        %v6260 = vadd.f32 0.0, %v6259
        %v6261 = vpop.f32.mrb[0].mxu0
        %6262 = vmatprep.mubr.f32.mxu0 0.0
        %6263 = vmatmul.mubr.f32.gmra.mrb[0].mxu0 %v6067
        %v6264 = vpop.f32.mrb[0].mxu0
        %v6265 = vadd.f32 0.0, %v6264
        %v6266 = vpop.f32.mrb[0].mxu0
        %6267 = vmatprep.mubr.f32.mxu0 0.0
        %6268 = vmatmul.mubr.f32.gmra.mrb[0].mxu0 %v6070
        %v6269 = vpop.f32.mrb[0].mxu0
        %v6270 = vadd.f32 0.0, %v6269
        %v6271 = vpop.f32.mrb[0].mxu0
        %6272 = vmatprep.mubr.f32.mxu0 0.0
        %6273 = vmatmul.mubr.f32.gmra.mrb[0].mxu0 %v6073
        %v6274 = vpop.f32.mrb[0].mxu0
        %v6275 = vadd.f32 0.0, %v6274
        %v6276 = vpop.f32.mrb[0].mxu0
        %6277 = vmatprep.mubr.f32.mxu0 0.0
        %6278 = vmatmul.mubr.f32.gmra.mrb[0].mxu0 %v6076
        %v6279 = vpop.f32.mrb[0].mxu0
        %v6280 = vadd.f32 0.0, %v6279
        %v6281 = vpop.f32.mrb[0].mxu0
        %6282 = vmatprep.mubr.f32.mxu0 0.0
        %6283 = vmatmul.mubr.f32.gmra.mrb[0].mxu0 %v6079
        %v6284 = vpop.f32.mrb[0].mxu0
        %v6285 = vadd.f32 0.0, %v6284
        %v6286 = vpop.f32.mrb[0].mxu0
        %6287 = vmatprep.mubr.f32.mxu0 0.0
        %6288 = vmatmul.mubr.f32.gmra.mrb[0].mxu0 %v6082
        %v6289 = vpop.f32.mrb[0].mxu0
        %v6290 = vadd.f32 0.0, %v6289
        %v6291 = vpop.f32.mrb[0].mxu0
        %6292 = vmatprep.mubr.f32.mxu0 0.0
        %6293 = vmatmul.mubr.f32.gmra.mrb[0].mxu0 %v6085
        %v6294 = vpop.f32.mrb[0].mxu0
        %v6295 = vadd.f32 0.0, %v6294
        %v6296 = vpop.f32.mrb[0].mxu0
        %6297 = vmatprep.mubr.f32.mxu0 0.0
        %6298 = vmatmul.mubr.f32.gmra.mrb[0].mxu0 %v6088
        %v6299 = vpop.f32.mrb[0].mxu0
        %v6300 = vadd.f32 0.0, %v6299
        %v6301 = vpop.f32.mrb[0].mxu0
        %6302 = vmatprep.mubr.f32.mxu0 0.0
        %6303 = vmatmul.mubr.f32.gmra.mrb[0].mxu0 %v6091
        %v6304 = vpop.f32.mrb[0].mxu0
        %v6305 = vadd.f32 0.0, %v6304
        %v6306 = vpop.f32.mrb[0].mxu0
        %6307 = vmatprep.mubr.f32.mxu0 0.0
        %6308 = vmatmul.mubr.f32.gmra.mrb[0].mxu0 %v6094
        %v6309 = vpop.f32.mrb[0].mxu0
        %v6310 = vadd.f32 0.0, %v6309
        %v6311 = vpop.f32.mrb[0].mxu0
        %6312 = vmatprep.mubr.f32.mxu0 0.0
        %6313 = vmatmul.mubr.f32.gmra.mrb[0].mxu0 %v6097
        %v6314 = vpop.f32.mrb[0].mxu0
        %v6315 = vadd.f32 0.0, %v6314
        %v6316 = vpop.f32.mrb[0].mxu0
        %6317 = vmatprep.mubr.f32.mxu0 0.0
        %6318 = vmatmul.mubr.f32.gmra.mrb[0].mxu0 %v6100
        %v6319 = vpop.f32.mrb[0].mxu0
        %v6320 = vadd.f32 0.0, %v6319
        %v6321 = vpop.f32.mrb[0].mxu0
        %6322 = vmatprep.mubr.f32.mxu0 0.0
        %6323 = vmatmul.mubr.f32.gmra.mrb[0].mxu0 %v6103
        %v6324 = vpop.f32.mrb[0].mxu0
        %v6325 = vadd.f32 0.0, %v6324
        %v6326 = vpop.f32.mrb[0].mxu0
        %6327 = vmatprep.mubr.f32.mxu0 0.0
        %6328 = vmatmul.mubr.f32.gmra.mrb[0].mxu0 %v6106
        %v6329 = vpop.f32.mrb[0].mxu0
        %v6330 = vadd.f32 0.0, %v6329
        %v6331 = vpop.f32.mrb[0].mxu0
        %6332 = vdwg.mxu0
        %v6333 = vadd.f32 %v5943, %v6175
        %v6334 = vadd.f32 %v5944, %v6180
        %v6335 = vadd.f32 %v5945, %v6185
        %v6336 = vadd.f32 %v5946, %v6190
        %v6337 = vadd.f32 %v5947, %v6195
        %v6338 = vadd.f32 %v5948, %v6200
        %v6339 = vadd.f32 %v5949, %v6205
        %v6340 = vadd.f32 %v5950, %v6210
        %v6341 = vadd.f32 %v5951, %v6215
        %v6342 = vadd.f32 %v5952, %v6220
        %v6343 = vadd.f32 %v5953, %v6225
        %v6344 = vadd.f32 %v5954, %v6230
        %v6345 = vadd.f32 %v5955, %v6235
        %v6346 = vadd.f32 %v5956, %v6240
        %v6347 = vadd.f32 %v5957, %v6245
        %v6348 = vadd.f32 %v5958, %v6250
        %v6349 = vadd.f32 %v5959, %v6255
        %v6350 = vadd.f32 %v5960, %v6260
        %v6351 = vadd.f32 %v5961, %v6265
        %v6352 = vadd.f32 %v5962, %v6270
        %v6353 = vadd.f32 %v5963, %v6275
        %v6354 = vadd.f32 %v5964, %v6280
        %v6355 = vadd.f32 %v5965, %v6285
        %v6356 = vadd.f32 %v5966, %v6290
        %v6357 = vadd.f32 %v5967, %v6295
        %v6358 = vadd.f32 %v5968, %v6300
        %v6359 = vadd.f32 %v5969, %v6305
        %v6360 = vadd.f32 %v5970, %v6310
        %v6361 = vadd.f32 %v5971, %v6315
        %v6362 = vadd.f32 %v5972, %v6320
        %v6363 = vadd.f32 %v5973, %v6325
        %v6364 = vadd.f32 %v5974, %v6330
        %s6365 = scalar_lea.vmem [#allocation3], 48
        %v6366 = vld [vmem:[%s6365] sm:$0xff]
        %v6367 = vld [vmem:[%s6365 + $0x8] sm:$0xff]
        %v6368 = vld [vmem:[%s6365 + $0x18] sm:$0xff]
        %v6369 = vld [vmem:[%s6365 + $0x20] sm:$0xff]
        %v6370 = vld [vmem:[%s6365 + $0x30] sm:$0xff]
        %v6371 = vld [vmem:[%s6365 + $0x38] sm:$0xff]
        %v6372 = vld [vmem:[%s6365 + $0x48] sm:$0xff]
        %v6373 = vld [vmem:[%s6365 + $0x50] sm:$0xff]
        %v6374 = vld [vmem:[%s6365 + $0x60] sm:$0xff]
        %v6375 = vld [vmem:[%s6365 + $0x68] sm:$0xff]
        %v6376 = vld [vmem:[%s6365 + $0x78] sm:$0xff]
        %v6377 = vld [vmem:[%s6365 + $0x80] sm:$0xff]
        %v6378 = vld [vmem:[%s6365 + $0x90] sm:$0xff]
        %v6379 = vld [vmem:[%s6365 + $0x98] sm:$0xff]
        %v6380 = vld [vmem:[%s6365 + $0xa8] sm:$0xff]
        %v6381 = vld [vmem:[%s6365 + $0xb0] sm:$0xff]
        %v6382 = vld [vmem:[%s6365 + $0xc0] sm:$0xff]
        %v6383 = vld [vmem:[%s6365 + $0xc8] sm:$0xff]
        %v6384 = vld [vmem:[%s6365 + $0xd8] sm:$0xff]
        %v6385 = vld [vmem:[%s6365 + $0xe0] sm:$0xff]
        %v6386 = vld [vmem:[%s6365 + $0xf0] sm:$0xff]
        %v6387 = vld [vmem:[%s6365 + $0xf8] sm:$0xff]
        %v6388 = vld [vmem:[%s6365 + $0x108] sm:$0xff]
        %v6389 = vld [vmem:[%s6365 + $0x110] sm:$0xff]
        %v6390 = vld [vmem:[%s6365 + $0x120] sm:$0xff]
        %v6391 = vld [vmem:[%s6365 + $0x128] sm:$0xff]
        %v6392 = vld [vmem:[%s6365 + $0x138] sm:$0xff]
        %v6393 = vld [vmem:[%s6365 + $0x140] sm:$0xff]
        %v6394 = vld [vmem:[%s6365 + $0x150] sm:$0xff]
        %v6395 = vld [vmem:[%s6365 + $0x158] sm:$0xff]
        %v6396 = vld [vmem:[%s6365 + $0x168] sm:$0xff]
        %v6397 = vld [vmem:[%s6365 + $0x170] sm:$0xff]
        %s6398 = scalar_lea.vmem [#allocation9], 192
        %v6399 = vld [vmem:[%s6398] sm:$0xff]
        %v6400 = vld [vmem:[%s6398 + $0x8] sm:$0xff]
        %v6401 = vld [vmem:[%s6398 + $0x10] sm:$0xff]
        %v6402 = vld [vmem:[%s6398 + $0x18] sm:$0xff]
        %v6404 = vsel %vm326, %v6366, 0
        %v6407 = vsel %vm326, %v6367, 0
        %v6410 = vsel %vm326, %v6368, 0
        %v6413 = vsel %vm326, %v6369, 0
        %v6416 = vsel %vm326, %v6370, 0
        %v6419 = vsel %vm326, %v6371, 0
        %v6422 = vsel %vm326, %v6372, 0
        %v6425 = vsel %vm326, %v6373, 0
        %v6428 = vsel %vm326, %v6374, 0
        %v6431 = vsel %vm326, %v6375, 0
        %v6434 = vsel %vm326, %v6376, 0
        %v6437 = vsel %vm326, %v6377, 0
        %v6440 = vsel %vm326, %v6378, 0
        %v6443 = vsel %vm326, %v6379, 0
        %v6446 = vsel %vm326, %v6380, 0
        %v6449 = vsel %vm326, %v6381, 0
        %v6452 = vsel %vm326, %v6382, 0
        %v6455 = vsel %vm326, %v6383, 0
        %v6458 = vsel %vm326, %v6384, 0
        %v6461 = vsel %vm326, %v6385, 0
        %v6464 = vsel %vm326, %v6386, 0
        %v6467 = vsel %vm326, %v6387, 0
        %v6470 = vsel %vm326, %v6388, 0
        %v6473 = vsel %vm326, %v6389, 0
        %v6476 = vsel %vm326, %v6390, 0
        %v6479 = vsel %vm326, %v6391, 0
        %v6482 = vsel %vm326, %v6392, 0
        %v6485 = vsel %vm326, %v6393, 0
        %v6488 = vsel %vm326, %v6394, 0
        %v6491 = vsel %vm326, %v6395, 0
        %v6494 = vsel %vm326, %v6396, 0
        %v6497 = vsel %vm326, %v6397, 0
        %6499 = vmatprep.subr.mxu0 0.0
        %6500 = vmatpush1.msra.mxu0 %v6399
        %6501 = vmatprep.subr.mxu0 0.0
        %6502 = vmatpush1.msra.mxu0 %v6400
        %6503 = vmatprep.subr.mxu0 0.0
        %6504 = vmatpush1.msra.mxu0 %v6401
        %6505 = vmatprep.subr.mxu0 0.0
        %6506 = vmatpush1.msra.mxu0 %v6402
        %6507 = vmatprep.subr.mxu0 0.0
        %6508 = vmatpush1.msra.mxu0 0.0
        %6509 = vmatprep.subr.mxu0 0.0
        %6510 = vmatpush1.msra.mxu0 0.0
        %6511 = vmatprep.subr.mxu0 0.0
        %6512 = vmatpush1.msra.mxu0 0.0
        %6513 = vmatprep.subr.mxu0 0.0
        %6514 = vmatpush1.msra.mxu0 0.0
        %6515 = vmatprep.subr.mxu0 0.0
        %6516 = vmatpush1.msra.mxu0 0.0
        %6517 = vmatprep.subr.mxu0 0.0
        %6518 = vmatpush1.msra.mxu0 0.0
        %6519 = vmatprep.subr.mxu0 0.0
        %6520 = vmatpush1.msra.mxu0 0.0
        %6521 = vmatprep.subr.mxu0 0.0
        %6522 = vmatpush1.msra.mxu0 0.0
        %6523 = vmatprep.subr.mxu0 0.0
        %6524 = vmatpush1.msra.mxu0 0.0
        %6525 = vmatprep.subr.mxu0 0.0
        %6526 = vmatpush1.msra.mxu0 0.0
        %6527 = vmatprep.subr.mxu0 0.0
        %6528 = vmatpush1.msra.mxu0 0.0
        %6529 = vmatprep.subr.mxu0 0.0
        %6530 = vmatpush1.msra.mxu0 0.0
        %6531 = vmatprep.subr.mxu0 0.0
        %6532 = vmatpush1.msra.mxu0 0.0
        %6533 = vmatprep.subr.mxu0 0.0
        %6534 = vmatpush1.msra.mxu0 0.0
        %6535 = vmatprep.subr.mxu0 0.0
        %6536 = vmatpush1.msra.mxu0 0.0
        %6537 = vmatprep.subr.mxu0 0.0
        %6538 = vmatpush1.msra.mxu0 0.0
        %6539 = vmatprep.subr.mxu0 0.0
        %6540 = vmatpush1.msra.mxu0 0.0
        %6541 = vmatprep.subr.mxu0 0.0
        %6542 = vmatpush1.msra.mxu0 0.0
        %6543 = vmatprep.subr.mxu0 0.0
        %6544 = vmatpush1.msra.mxu0 0.0
        %6545 = vmatprep.subr.mxu0 0.0
        %6546 = vmatpush1.msra.mxu0 0.0
        %6547 = vmatprep.subr.mxu0 0.0
        %6548 = vmatpush1.msra.mxu0 0.0
        %6549 = vmatprep.subr.mxu0 0.0
        %6550 = vmatpush1.msra.mxu0 0.0
        %6551 = vmatprep.subr.mxu0 0.0
        %6552 = vmatpush1.msra.mxu0 0.0
        %6553 = vmatprep.subr.mxu0 0.0
        %6554 = vmatpush1.msra.mxu0 0.0
        %6555 = vmatprep.subr.mxu0 0.0
        %6556 = vmatpush1.msra.mxu0 0.0
        %6557 = vmatprep.subr.mxu0 0.0
        %6558 = vmatpush1.msra.mxu0 0.0
        %6559 = vmatprep.subr.mxu0 0.0
        %6560 = vmatpush1.msra.mxu0 0.0
        %6561 = vmatprep.subr.mxu0 0.0
        %6562 = vmatpush1.msra.mxu0 0.0
        %6563 = vmatprep.mubr.f32.mxu0 0.0
        %6564 = vmatmul.mubr.f32.gmra.mrb[0].mxu0 %v6404
        %v6565 = vpop.f32.mrb[0].mxu0
        %v6566 = vadd.f32 0.0, %v6565
        %v6567 = vpop.f32.mrb[0].mxu0
        %6568 = vmatprep.mubr.f32.mxu0 0.0
        %6569 = vmatmul.mubr.f32.gmra.mrb[0].mxu0 %v6407
        %v6570 = vpop.f32.mrb[0].mxu0
        %v6571 = vadd.f32 0.0, %v6570
        %v6572 = vpop.f32.mrb[0].mxu0
        %6573 = vmatprep.mubr.f32.mxu0 0.0
        %6574 = vmatmul.mubr.f32.gmra.mrb[0].mxu0 %v6410
        %v6575 = vpop.f32.mrb[0].mxu0
        %v6576 = vadd.f32 0.0, %v6575
        %v6577 = vpop.f32.mrb[0].mxu0
        %6578 = vmatprep.mubr.f32.mxu0 0.0
        %6579 = vmatmul.mubr.f32.gmra.mrb[0].mxu0 %v6413
        %v6580 = vpop.f32.mrb[0].mxu0
        %v6581 = vadd.f32 0.0, %v6580
        %v6582 = vpop.f32.mrb[0].mxu0
        %6583 = vmatprep.mubr.f32.mxu0 0.0
        %6584 = vmatmul.mubr.f32.gmra.mrb[0].mxu0 %v6416
        %v6585 = vpop.f32.mrb[0].mxu0
        %v6586 = vadd.f32 0.0, %v6585
        %v6587 = vpop.f32.mrb[0].mxu0
        %6588 = vmatprep.mubr.f32.mxu0 0.0
        %6589 = vmatmul.mubr.f32.gmra.mrb[0].mxu0 %v6419
        %v6590 = vpop.f32.mrb[0].mxu0
        %v6591 = vadd.f32 0.0, %v6590
        %v6592 = vpop.f32.mrb[0].mxu0
        %6593 = vmatprep.mubr.f32.mxu0 0.0
        %6594 = vmatmul.mubr.f32.gmra.mrb[0].mxu0 %v6422
        %v6595 = vpop.f32.mrb[0].mxu0
        %v6596 = vadd.f32 0.0, %v6595
        %v6597 = vpop.f32.mrb[0].mxu0
        %6598 = vmatprep.mubr.f32.mxu0 0.0
        %6599 = vmatmul.mubr.f32.gmra.mrb[0].mxu0 %v6425
        %v6600 = vpop.f32.mrb[0].mxu0
        %v6601 = vadd.f32 0.0, %v6600
        %v6602 = vpop.f32.mrb[0].mxu0
        %6603 = vmatprep.mubr.f32.mxu0 0.0
        %6604 = vmatmul.mubr.f32.gmra.mrb[0].mxu0 %v6428
        %v6605 = vpop.f32.mrb[0].mxu0
        %v6606 = vadd.f32 0.0, %v6605
        %v6607 = vpop.f32.mrb[0].mxu0
        %6608 = vmatprep.mubr.f32.mxu0 0.0
        %6609 = vmatmul.mubr.f32.gmra.mrb[0].mxu0 %v6431
        %v6610 = vpop.f32.mrb[0].mxu0
        %v6611 = vadd.f32 0.0, %v6610
        %v6612 = vpop.f32.mrb[0].mxu0
        %6613 = vmatprep.mubr.f32.mxu0 0.0
        %6614 = vmatmul.mubr.f32.gmra.mrb[0].mxu0 %v6434
        %v6615 = vpop.f32.mrb[0].mxu0
        %v6616 = vadd.f32 0.0, %v6615
        %v6617 = vpop.f32.mrb[0].mxu0
        %6618 = vmatprep.mubr.f32.mxu0 0.0
        %6619 = vmatmul.mubr.f32.gmra.mrb[0].mxu0 %v6437
        %v6620 = vpop.f32.mrb[0].mxu0
        %v6621 = vadd.f32 0.0, %v6620
        %v6622 = vpop.f32.mrb[0].mxu0
        %6623 = vmatprep.mubr.f32.mxu0 0.0
        %6624 = vmatmul.mubr.f32.gmra.mrb[0].mxu0 %v6440
        %v6625 = vpop.f32.mrb[0].mxu0
        %v6626 = vadd.f32 0.0, %v6625
        %v6627 = vpop.f32.mrb[0].mxu0
        %6628 = vmatprep.mubr.f32.mxu0 0.0
        %6629 = vmatmul.mubr.f32.gmra.mrb[0].mxu0 %v6443
        %v6630 = vpop.f32.mrb[0].mxu0
        %v6631 = vadd.f32 0.0, %v6630
        %v6632 = vpop.f32.mrb[0].mxu0
        %6633 = vmatprep.mubr.f32.mxu0 0.0
        %6634 = vmatmul.mubr.f32.gmra.mrb[0].mxu0 %v6446
        %v6635 = vpop.f32.mrb[0].mxu0
        %v6636 = vadd.f32 0.0, %v6635
        %v6637 = vpop.f32.mrb[0].mxu0
        %6638 = vmatprep.mubr.f32.mxu0 0.0
        %6639 = vmatmul.mubr.f32.gmra.mrb[0].mxu0 %v6449
        %v6640 = vpop.f32.mrb[0].mxu0
        %v6641 = vadd.f32 0.0, %v6640
        %v6642 = vpop.f32.mrb[0].mxu0
        %6643 = vmatprep.mubr.f32.mxu0 0.0
        %6644 = vmatmul.mubr.f32.gmra.mrb[0].mxu0 %v6452
        %v6645 = vpop.f32.mrb[0].mxu0
        %v6646 = vadd.f32 0.0, %v6645
        %v6647 = vpop.f32.mrb[0].mxu0
        %6648 = vmatprep.mubr.f32.mxu0 0.0
        %6649 = vmatmul.mubr.f32.gmra.mrb[0].mxu0 %v6455
        %v6650 = vpop.f32.mrb[0].mxu0
        %v6651 = vadd.f32 0.0, %v6650
        %v6652 = vpop.f32.mrb[0].mxu0
        %6653 = vmatprep.mubr.f32.mxu0 0.0
        %6654 = vmatmul.mubr.f32.gmra.mrb[0].mxu0 %v6458
        %v6655 = vpop.f32.mrb[0].mxu0
        %v6656 = vadd.f32 0.0, %v6655
        %v6657 = vpop.f32.mrb[0].mxu0
        %6658 = vmatprep.mubr.f32.mxu0 0.0
        %6659 = vmatmul.mubr.f32.gmra.mrb[0].mxu0 %v6461
        %v6660 = vpop.f32.mrb[0].mxu0
        %v6661 = vadd.f32 0.0, %v6660
        %v6662 = vpop.f32.mrb[0].mxu0
        %6663 = vmatprep.mubr.f32.mxu0 0.0
        %6664 = vmatmul.mubr.f32.gmra.mrb[0].mxu0 %v6464
        %v6665 = vpop.f32.mrb[0].mxu0
        %v6666 = vadd.f32 0.0, %v6665
        %v6667 = vpop.f32.mrb[0].mxu0
        %6668 = vmatprep.mubr.f32.mxu0 0.0
        %6669 = vmatmul.mubr.f32.gmra.mrb[0].mxu0 %v6467
        %v6670 = vpop.f32.mrb[0].mxu0
        %v6671 = vadd.f32 0.0, %v6670
        %v6672 = vpop.f32.mrb[0].mxu0
        %6673 = vmatprep.mubr.f32.mxu0 0.0
        %6674 = vmatmul.mubr.f32.gmra.mrb[0].mxu0 %v6470
        %v6675 = vpop.f32.mrb[0].mxu0
        %v6676 = vadd.f32 0.0, %v6675
        %v6677 = vpop.f32.mrb[0].mxu0
        %6678 = vmatprep.mubr.f32.mxu0 0.0
        %6679 = vmatmul.mubr.f32.gmra.mrb[0].mxu0 %v6473
        %v6680 = vpop.f32.mrb[0].mxu0
        %v6681 = vadd.f32 0.0, %v6680
        %v6682 = vpop.f32.mrb[0].mxu0
        %6683 = vmatprep.mubr.f32.mxu0 0.0
        %6684 = vmatmul.mubr.f32.gmra.mrb[0].mxu0 %v6476
        %v6685 = vpop.f32.mrb[0].mxu0
        %v6686 = vadd.f32 0.0, %v6685
        %v6687 = vpop.f32.mrb[0].mxu0
        %6688 = vmatprep.mubr.f32.mxu0 0.0
        %6689 = vmatmul.mubr.f32.gmra.mrb[0].mxu0 %v6479
        %v6690 = vpop.f32.mrb[0].mxu0
        %v6691 = vadd.f32 0.0, %v6690
        %v6692 = vpop.f32.mrb[0].mxu0
        %6693 = vmatprep.mubr.f32.mxu0 0.0
        %6694 = vmatmul.mubr.f32.gmra.mrb[0].mxu0 %v6482
        %v6695 = vpop.f32.mrb[0].mxu0
        %v6696 = vadd.f32 0.0, %v6695
        %v6697 = vpop.f32.mrb[0].mxu0
        %6698 = vmatprep.mubr.f32.mxu0 0.0
        %6699 = vmatmul.mubr.f32.gmra.mrb[0].mxu0 %v6485
        %v6700 = vpop.f32.mrb[0].mxu0
        %v6701 = vadd.f32 0.0, %v6700
        %v6702 = vpop.f32.mrb[0].mxu0
        %6703 = vmatprep.mubr.f32.mxu0 0.0
        %6704 = vmatmul.mubr.f32.gmra.mrb[0].mxu0 %v6488
        %v6705 = vpop.f32.mrb[0].mxu0
        %v6706 = vadd.f32 0.0, %v6705
        %v6707 = vpop.f32.mrb[0].mxu0
        %6708 = vmatprep.mubr.f32.mxu0 0.0
        %6709 = vmatmul.mubr.f32.gmra.mrb[0].mxu0 %v6491
        %v6710 = vpop.f32.mrb[0].mxu0
        %v6711 = vadd.f32 0.0, %v6710
        %v6712 = vpop.f32.mrb[0].mxu0
        %6713 = vmatprep.mubr.f32.mxu0 0.0
        %6714 = vmatmul.mubr.f32.gmra.mrb[0].mxu0 %v6494
        %v6715 = vpop.f32.mrb[0].mxu0
        %v6716 = vadd.f32 0.0, %v6715
        %v6717 = vpop.f32.mrb[0].mxu0
        %6718 = vmatprep.mubr.f32.mxu0 0.0
        %6719 = vmatmul.mubr.f32.gmra.mrb[0].mxu0 %v6497
        %v6720 = vpop.f32.mrb[0].mxu0
        %v6721 = vadd.f32 0.0, %v6720
        %v6722 = vpop.f32.mrb[0].mxu0
        %6723 = vdwg.mxu0
        %v6724 = vadd.f32 %v6333, %v6566
        %v6725 = vadd.f32 %v6334, %v6571
        %v6726 = vadd.f32 %v6335, %v6576
        %v6727 = vadd.f32 %v6336, %v6581
        %v6728 = vadd.f32 %v6337, %v6586
        %v6729 = vadd.f32 %v6338, %v6591
        %v6730 = vadd.f32 %v6339, %v6596
        %v6731 = vadd.f32 %v6340, %v6601
        %v6732 = vadd.f32 %v6341, %v6606
        %v6733 = vadd.f32 %v6342, %v6611
        %v6734 = vadd.f32 %v6343, %v6616
        %v6735 = vadd.f32 %v6344, %v6621
        %v6736 = vadd.f32 %v6345, %v6626
        %v6737 = vadd.f32 %v6346, %v6631
        %v6738 = vadd.f32 %v6347, %v6636
        %v6739 = vadd.f32 %v6348, %v6641
        %v6740 = vadd.f32 %v6349, %v6646
        %v6741 = vadd.f32 %v6350, %v6651
        %v6742 = vadd.f32 %v6351, %v6656
        %v6743 = vadd.f32 %v6352, %v6661
        %v6744 = vadd.f32 %v6353, %v6666
        %v6745 = vadd.f32 %v6354, %v6671
        %v6746 = vadd.f32 %v6355, %v6676
        %v6747 = vadd.f32 %v6356, %v6681
        %v6748 = vadd.f32 %v6357, %v6686
        %v6749 = vadd.f32 %v6358, %v6691
        %v6750 = vadd.f32 %v6359, %v6696
        %v6751 = vadd.f32 %v6360, %v6701
        %v6752 = vadd.f32 %v6361, %v6706
        %v6753 = vadd.f32 %v6362, %v6711
        %v6754 = vadd.f32 %v6363, %v6716
        %v6755 = vadd.f32 %v6364, %v6721
        %v6756 = vld [vmem:[%s6365 + $0x1] sm:$0xff]
        %v6757 = vld [vmem:[%s6365 + $0x9] sm:$0xff]
        %v6758 = vld [vmem:[%s6365 + $0x19] sm:$0xff]
        %v6759 = vld [vmem:[%s6365 + $0x21] sm:$0xff]
        %v6760 = vld [vmem:[%s6365 + $0x31] sm:$0xff]
        %v6761 = vld [vmem:[%s6365 + $0x39] sm:$0xff]
        %v6762 = vld [vmem:[%s6365 + $0x49] sm:$0xff]
        %v6763 = vld [vmem:[%s6365 + $0x51] sm:$0xff]
        %v6764 = vld [vmem:[%s6365 + $0x61] sm:$0xff]
        %v6765 = vld [vmem:[%s6365 + $0x69] sm:$0xff]
        %v6766 = vld [vmem:[%s6365 + $0x79] sm:$0xff]
        %v6767 = vld [vmem:[%s6365 + $0x81] sm:$0xff]
        %v6768 = vld [vmem:[%s6365 + $0x91] sm:$0xff]
        %v6769 = vld [vmem:[%s6365 + $0x99] sm:$0xff]
        %v6770 = vld [vmem:[%s6365 + $0xa9] sm:$0xff]
        %v6771 = vld [vmem:[%s6365 + $0xb1] sm:$0xff]
        %v6772 = vld [vmem:[%s6365 + $0xc1] sm:$0xff]
        %v6773 = vld [vmem:[%s6365 + $0xc9] sm:$0xff]
        %v6774 = vld [vmem:[%s6365 + $0xd9] sm:$0xff]
        %v6775 = vld [vmem:[%s6365 + $0xe1] sm:$0xff]
        %v6776 = vld [vmem:[%s6365 + $0xf1] sm:$0xff]
        %v6777 = vld [vmem:[%s6365 + $0xf9] sm:$0xff]
        %v6778 = vld [vmem:[%s6365 + $0x109] sm:$0xff]
        %v6779 = vld [vmem:[%s6365 + $0x111] sm:$0xff]
        %v6780 = vld [vmem:[%s6365 + $0x121] sm:$0xff]
        %v6781 = vld [vmem:[%s6365 + $0x129] sm:$0xff]
        %v6782 = vld [vmem:[%s6365 + $0x139] sm:$0xff]
        %v6783 = vld [vmem:[%s6365 + $0x141] sm:$0xff]
        %v6784 = vld [vmem:[%s6365 + $0x151] sm:$0xff]
        %v6785 = vld [vmem:[%s6365 + $0x159] sm:$0xff]
        %v6786 = vld [vmem:[%s6365 + $0x169] sm:$0xff]
        %v6787 = vld [vmem:[%s6365 + $0x171] sm:$0xff]
        %s6788 = scalar_lea.vmem [#allocation9], 224
        %v6789 = vld [vmem:[%s6788] sm:$0xff]
        %v6790 = vld [vmem:[%s6788 + $0x8] sm:$0xff]
        %v6791 = vld [vmem:[%s6788 + $0x10] sm:$0xff]
        %v6792 = vld [vmem:[%s6788 + $0x18] sm:$0xff]
        %v6794 = vsel %vm326, %v6756, 0
        %v6797 = vsel %vm326, %v6757, 0
        %v6800 = vsel %vm326, %v6758, 0
        %v6803 = vsel %vm326, %v6759, 0
        %v6806 = vsel %vm326, %v6760, 0
        %v6809 = vsel %vm326, %v6761, 0
        %v6812 = vsel %vm326, %v6762, 0
        %v6815 = vsel %vm326, %v6763, 0
        %v6818 = vsel %vm326, %v6764, 0
        %v6821 = vsel %vm326, %v6765, 0
        %v6824 = vsel %vm326, %v6766, 0
        %v6827 = vsel %vm326, %v6767, 0
        %v6830 = vsel %vm326, %v6768, 0
        %v6833 = vsel %vm326, %v6769, 0
        %v6836 = vsel %vm326, %v6770, 0
        %v6839 = vsel %vm326, %v6771, 0
        %v6842 = vsel %vm326, %v6772, 0
        %v6845 = vsel %vm326, %v6773, 0
        %v6848 = vsel %vm326, %v6774, 0
        %v6851 = vsel %vm326, %v6775, 0
        %v6854 = vsel %vm326, %v6776, 0
        %v6857 = vsel %vm326, %v6777, 0
        %v6860 = vsel %vm326, %v6778, 0
        %v6863 = vsel %vm326, %v6779, 0
        %v6866 = vsel %vm326, %v6780, 0
        %v6869 = vsel %vm326, %v6781, 0
        %v6872 = vsel %vm326, %v6782, 0
        %v6875 = vsel %vm326, %v6783, 0
        %v6878 = vsel %vm326, %v6784, 0
        %v6881 = vsel %vm326, %v6785, 0
        %v6884 = vsel %vm326, %v6786, 0
        %v6887 = vsel %vm326, %v6787, 0
        %6889 = vmatprep.subr.mxu0 0.0
        %6890 = vmatpush1.msra.mxu0 %v6789
        %6891 = vmatprep.subr.mxu0 0.0
        %6892 = vmatpush1.msra.mxu0 %v6790
        %6893 = vmatprep.subr.mxu0 0.0
        %6894 = vmatpush1.msra.mxu0 %v6791
        %6895 = vmatprep.subr.mxu0 0.0
        %6896 = vmatpush1.msra.mxu0 %v6792
        %6897 = vmatprep.subr.mxu0 0.0
        %6898 = vmatpush1.msra.mxu0 0.0
        %6899 = vmatprep.subr.mxu0 0.0
        %6900 = vmatpush1.msra.mxu0 0.0
        %6901 = vmatprep.subr.mxu0 0.0
        %6902 = vmatpush1.msra.mxu0 0.0
        %6903 = vmatprep.subr.mxu0 0.0
        %6904 = vmatpush1.msra.mxu0 0.0
        %6905 = vmatprep.subr.mxu0 0.0
        %6906 = vmatpush1.msra.mxu0 0.0
        %6907 = vmatprep.subr.mxu0 0.0
        %6908 = vmatpush1.msra.mxu0 0.0
        %6909 = vmatprep.subr.mxu0 0.0
        %6910 = vmatpush1.msra.mxu0 0.0
        %6911 = vmatprep.subr.mxu0 0.0
        %6912 = vmatpush1.msra.mxu0 0.0
        %6913 = vmatprep.subr.mxu0 0.0
        %6914 = vmatpush1.msra.mxu0 0.0
        %6915 = vmatprep.subr.mxu0 0.0
        %6916 = vmatpush1.msra.mxu0 0.0
        %6917 = vmatprep.subr.mxu0 0.0
        %6918 = vmatpush1.msra.mxu0 0.0
        %6919 = vmatprep.subr.mxu0 0.0
        %6920 = vmatpush1.msra.mxu0 0.0
        %6921 = vmatprep.subr.mxu0 0.0
        %6922 = vmatpush1.msra.mxu0 0.0
        %6923 = vmatprep.subr.mxu0 0.0
        %6924 = vmatpush1.msra.mxu0 0.0
        %6925 = vmatprep.subr.mxu0 0.0
        %6926 = vmatpush1.msra.mxu0 0.0
        %6927 = vmatprep.subr.mxu0 0.0
        %6928 = vmatpush1.msra.mxu0 0.0
        %6929 = vmatprep.subr.mxu0 0.0
        %6930 = vmatpush1.msra.mxu0 0.0
        %6931 = vmatprep.subr.mxu0 0.0
        %6932 = vmatpush1.msra.mxu0 0.0
        %6933 = vmatprep.subr.mxu0 0.0
        %6934 = vmatpush1.msra.mxu0 0.0
        %6935 = vmatprep.subr.mxu0 0.0
        %6936 = vmatpush1.msra.mxu0 0.0
        %6937 = vmatprep.subr.mxu0 0.0
        %6938 = vmatpush1.msra.mxu0 0.0
        %6939 = vmatprep.subr.mxu0 0.0
        %6940 = vmatpush1.msra.mxu0 0.0
        %6941 = vmatprep.subr.mxu0 0.0
        %6942 = vmatpush1.msra.mxu0 0.0
        %6943 = vmatprep.subr.mxu0 0.0
        %6944 = vmatpush1.msra.mxu0 0.0
        %6945 = vmatprep.subr.mxu0 0.0
        %6946 = vmatpush1.msra.mxu0 0.0
        %6947 = vmatprep.subr.mxu0 0.0
        %6948 = vmatpush1.msra.mxu0 0.0
        %6949 = vmatprep.subr.mxu0 0.0
        %6950 = vmatpush1.msra.mxu0 0.0
        %6951 = vmatprep.subr.mxu0 0.0
        %6952 = vmatpush1.msra.mxu0 0.0
        %6953 = vmatprep.mubr.f32.mxu0 0.0
        %6954 = vmatmul.mubr.f32.gmra.mrb[0].mxu0 %v6794
        %v6955 = vpop.f32.mrb[0].mxu0
        %v6956 = vadd.f32 0.0, %v6955
        %v6957 = vpop.f32.mrb[0].mxu0
        %6958 = vmatprep.mubr.f32.mxu0 0.0
        %6959 = vmatmul.mubr.f32.gmra.mrb[0].mxu0 %v6797
        %v6960 = vpop.f32.mrb[0].mxu0
        %v6961 = vadd.f32 0.0, %v6960
        %v6962 = vpop.f32.mrb[0].mxu0
        %6963 = vmatprep.mubr.f32.mxu0 0.0
        %6964 = vmatmul.mubr.f32.gmra.mrb[0].mxu0 %v6800
        %v6965 = vpop.f32.mrb[0].mxu0
        %v6966 = vadd.f32 0.0, %v6965
        %v6967 = vpop.f32.mrb[0].mxu0
        %6968 = vmatprep.mubr.f32.mxu0 0.0
        %6969 = vmatmul.mubr.f32.gmra.mrb[0].mxu0 %v6803
        %v6970 = vpop.f32.mrb[0].mxu0
        %v6971 = vadd.f32 0.0, %v6970
        %v6972 = vpop.f32.mrb[0].mxu0
        %6973 = vmatprep.mubr.f32.mxu0 0.0
        %6974 = vmatmul.mubr.f32.gmra.mrb[0].mxu0 %v6806
        %v6975 = vpop.f32.mrb[0].mxu0
        %v6976 = vadd.f32 0.0, %v6975
        %v6977 = vpop.f32.mrb[0].mxu0
        %6978 = vmatprep.mubr.f32.mxu0 0.0
        %6979 = vmatmul.mubr.f32.gmra.mrb[0].mxu0 %v6809
        %v6980 = vpop.f32.mrb[0].mxu0
        %v6981 = vadd.f32 0.0, %v6980
        %v6982 = vpop.f32.mrb[0].mxu0
        %6983 = vmatprep.mubr.f32.mxu0 0.0
        %6984 = vmatmul.mubr.f32.gmra.mrb[0].mxu0 %v6812
        %v6985 = vpop.f32.mrb[0].mxu0
        %v6986 = vadd.f32 0.0, %v6985
        %v6987 = vpop.f32.mrb[0].mxu0
        %6988 = vmatprep.mubr.f32.mxu0 0.0
        %6989 = vmatmul.mubr.f32.gmra.mrb[0].mxu0 %v6815
        %v6990 = vpop.f32.mrb[0].mxu0
        %v6991 = vadd.f32 0.0, %v6990
        %v6992 = vpop.f32.mrb[0].mxu0
        %6993 = vmatprep.mubr.f32.mxu0 0.0
        %6994 = vmatmul.mubr.f32.gmra.mrb[0].mxu0 %v6818
        %v6995 = vpop.f32.mrb[0].mxu0
        %v6996 = vadd.f32 0.0, %v6995
        %v6997 = vpop.f32.mrb[0].mxu0
        %6998 = vmatprep.mubr.f32.mxu0 0.0
        %6999 = vmatmul.mubr.f32.gmra.mrb[0].mxu0 %v6821
        %v7000 = vpop.f32.mrb[0].mxu0
        %v7001 = vadd.f32 0.0, %v7000
        %v7002 = vpop.f32.mrb[0].mxu0
        %7003 = vmatprep.mubr.f32.mxu0 0.0
        %7004 = vmatmul.mubr.f32.gmra.mrb[0].mxu0 %v6824
        %v7005 = vpop.f32.mrb[0].mxu0
        %v7006 = vadd.f32 0.0, %v7005
        %v7007 = vpop.f32.mrb[0].mxu0
        %7008 = vmatprep.mubr.f32.mxu0 0.0
        %7009 = vmatmul.mubr.f32.gmra.mrb[0].mxu0 %v6827
        %v7010 = vpop.f32.mrb[0].mxu0
        %v7011 = vadd.f32 0.0, %v7010
        %v7012 = vpop.f32.mrb[0].mxu0
        %7013 = vmatprep.mubr.f32.mxu0 0.0
        %7014 = vmatmul.mubr.f32.gmra.mrb[0].mxu0 %v6830
        %v7015 = vpop.f32.mrb[0].mxu0
        %v7016 = vadd.f32 0.0, %v7015
        %v7017 = vpop.f32.mrb[0].mxu0
        %7018 = vmatprep.mubr.f32.mxu0 0.0
        %7019 = vmatmul.mubr.f32.gmra.mrb[0].mxu0 %v6833
        %v7020 = vpop.f32.mrb[0].mxu0
        %v7021 = vadd.f32 0.0, %v7020
        %v7022 = vpop.f32.mrb[0].mxu0
        %7023 = vmatprep.mubr.f32.mxu0 0.0
        %7024 = vmatmul.mubr.f32.gmra.mrb[0].mxu0 %v6836
        %v7025 = vpop.f32.mrb[0].mxu0
        %v7026 = vadd.f32 0.0, %v7025
        %v7027 = vpop.f32.mrb[0].mxu0
        %7028 = vmatprep.mubr.f32.mxu0 0.0
        %7029 = vmatmul.mubr.f32.gmra.mrb[0].mxu0 %v6839
        %v7030 = vpop.f32.mrb[0].mxu0
        %v7031 = vadd.f32 0.0, %v7030
        %v7032 = vpop.f32.mrb[0].mxu0
        %7033 = vmatprep.mubr.f32.mxu0 0.0
        %7034 = vmatmul.mubr.f32.gmra.mrb[0].mxu0 %v6842
        %v7035 = vpop.f32.mrb[0].mxu0
        %v7036 = vadd.f32 0.0, %v7035
        %v7037 = vpop.f32.mrb[0].mxu0
        %7038 = vmatprep.mubr.f32.mxu0 0.0
        %7039 = vmatmul.mubr.f32.gmra.mrb[0].mxu0 %v6845
        %v7040 = vpop.f32.mrb[0].mxu0
        %v7041 = vadd.f32 0.0, %v7040
        %v7042 = vpop.f32.mrb[0].mxu0
        %7043 = vmatprep.mubr.f32.mxu0 0.0
        %7044 = vmatmul.mubr.f32.gmra.mrb[0].mxu0 %v6848
        %v7045 = vpop.f32.mrb[0].mxu0
        %v7046 = vadd.f32 0.0, %v7045
        %v7047 = vpop.f32.mrb[0].mxu0
        %7048 = vmatprep.mubr.f32.mxu0 0.0
        %7049 = vmatmul.mubr.f32.gmra.mrb[0].mxu0 %v6851
        %v7050 = vpop.f32.mrb[0].mxu0
        %v7051 = vadd.f32 0.0, %v7050
        %v7052 = vpop.f32.mrb[0].mxu0
        %7053 = vmatprep.mubr.f32.mxu0 0.0
        %7054 = vmatmul.mubr.f32.gmra.mrb[0].mxu0 %v6854
        %v7055 = vpop.f32.mrb[0].mxu0
        %v7056 = vadd.f32 0.0, %v7055
        %v7057 = vpop.f32.mrb[0].mxu0
        %7058 = vmatprep.mubr.f32.mxu0 0.0
        %7059 = vmatmul.mubr.f32.gmra.mrb[0].mxu0 %v6857
        %v7060 = vpop.f32.mrb[0].mxu0
        %v7061 = vadd.f32 0.0, %v7060
        %v7062 = vpop.f32.mrb[0].mxu0
        %7063 = vmatprep.mubr.f32.mxu0 0.0
        %7064 = vmatmul.mubr.f32.gmra.mrb[0].mxu0 %v6860
        %v7065 = vpop.f32.mrb[0].mxu0
        %v7066 = vadd.f32 0.0, %v7065
        %v7067 = vpop.f32.mrb[0].mxu0
        %7068 = vmatprep.mubr.f32.mxu0 0.0
        %7069 = vmatmul.mubr.f32.gmra.mrb[0].mxu0 %v6863
        %v7070 = vpop.f32.mrb[0].mxu0
        %v7071 = vadd.f32 0.0, %v7070
        %v7072 = vpop.f32.mrb[0].mxu0
        %7073 = vmatprep.mubr.f32.mxu0 0.0
        %7074 = vmatmul.mubr.f32.gmra.mrb[0].mxu0 %v6866
        %v7075 = vpop.f32.mrb[0].mxu0
        %v7076 = vadd.f32 0.0, %v7075
        %v7077 = vpop.f32.mrb[0].mxu0
        %7078 = vmatprep.mubr.f32.mxu0 0.0
        %7079 = vmatmul.mubr.f32.gmra.mrb[0].mxu0 %v6869
        %v7080 = vpop.f32.mrb[0].mxu0
        %v7081 = vadd.f32 0.0, %v7080
        %v7082 = vpop.f32.mrb[0].mxu0
        %7083 = vmatprep.mubr.f32.mxu0 0.0
        %7084 = vmatmul.mubr.f32.gmra.mrb[0].mxu0 %v6872
        %v7085 = vpop.f32.mrb[0].mxu0
        %v7086 = vadd.f32 0.0, %v7085
        %v7087 = vpop.f32.mrb[0].mxu0
        %7088 = vmatprep.mubr.f32.mxu0 0.0
        %7089 = vmatmul.mubr.f32.gmra.mrb[0].mxu0 %v6875
        %v7090 = vpop.f32.mrb[0].mxu0
        %v7091 = vadd.f32 0.0, %v7090
        %v7092 = vpop.f32.mrb[0].mxu0
        %7093 = vmatprep.mubr.f32.mxu0 0.0
        %7094 = vmatmul.mubr.f32.gmra.mrb[0].mxu0 %v6878
        %v7095 = vpop.f32.mrb[0].mxu0
        %v7096 = vadd.f32 0.0, %v7095
        %v7097 = vpop.f32.mrb[0].mxu0
        %7098 = vmatprep.mubr.f32.mxu0 0.0
        %7099 = vmatmul.mubr.f32.gmra.mrb[0].mxu0 %v6881
        %v7100 = vpop.f32.mrb[0].mxu0
        %v7101 = vadd.f32 0.0, %v7100
        %v7102 = vpop.f32.mrb[0].mxu0
        %7103 = vmatprep.mubr.f32.mxu0 0.0
        %7104 = vmatmul.mubr.f32.gmra.mrb[0].mxu0 %v6884
        %v7105 = vpop.f32.mrb[0].mxu0
        %v7106 = vadd.f32 0.0, %v7105
        %v7107 = vpop.f32.mrb[0].mxu0
        %7108 = vmatprep.mubr.f32.mxu0 0.0
        %7109 = vmatmul.mubr.f32.gmra.mrb[0].mxu0 %v6887
        %v7110 = vpop.f32.mrb[0].mxu0
        %v7111 = vadd.f32 0.0, %v7110
        %v7112 = vpop.f32.mrb[0].mxu0
        %7113 = vdwg.mxu0
        %v7114 = vadd.f32 %v6724, %v6956
        %v7115 = vadd.f32 %v6725, %v6961
        %v7116 = vadd.f32 %v6726, %v6966
        %v7117 = vadd.f32 %v6727, %v6971
        %v7118 = vadd.f32 %v6728, %v6976
        %v7119 = vadd.f32 %v6729, %v6981
        %v7120 = vadd.f32 %v6730, %v6986
        %v7121 = vadd.f32 %v6731, %v6991
        %v7122 = vadd.f32 %v6732, %v6996
        %v7123 = vadd.f32 %v6733, %v7001
        %v7124 = vadd.f32 %v6734, %v7006
        %v7125 = vadd.f32 %v6735, %v7011
        %v7126 = vadd.f32 %v6736, %v7016
        %v7127 = vadd.f32 %v6737, %v7021
        %v7128 = vadd.f32 %v6738, %v7026
        %v7129 = vadd.f32 %v6739, %v7031
        %v7130 = vadd.f32 %v6740, %v7036
        %v7131 = vadd.f32 %v6741, %v7041
        %v7132 = vadd.f32 %v6742, %v7046
        %v7133 = vadd.f32 %v6743, %v7051
        %v7134 = vadd.f32 %v6744, %v7056
        %v7135 = vadd.f32 %v6745, %v7061
        %v7136 = vadd.f32 %v6746, %v7066
        %v7137 = vadd.f32 %v6747, %v7071
        %v7138 = vadd.f32 %v6748, %v7076
        %v7139 = vadd.f32 %v6749, %v7081
        %v7140 = vadd.f32 %v6750, %v7086
        %v7141 = vadd.f32 %v6751, %v7091
        %v7142 = vadd.f32 %v6752, %v7096
        %v7143 = vadd.f32 %v6753, %v7101
        %v7144 = vadd.f32 %v6754, %v7106
        %v7145 = vadd.f32 %v6755, %v7111
        %v7146 = vld [vmem:[%s6365 + $0x2] sm:$0xff]
        %v7147 = vld [vmem:[%s6365 + $0xa] sm:$0xff]
        %v7148 = vld [vmem:[%s6365 + $0x1a] sm:$0xff]
        %v7149 = vld [vmem:[%s6365 + $0x22] sm:$0xff]
        %v7150 = vld [vmem:[%s6365 + $0x32] sm:$0xff]
        %v7151 = vld [vmem:[%s6365 + $0x3a] sm:$0xff]
        %v7152 = vld [vmem:[%s6365 + $0x4a] sm:$0xff]
        %v7153 = vld [vmem:[%s6365 + $0x52] sm:$0xff]
        %v7154 = vld [vmem:[%s6365 + $0x62] sm:$0xff]
        %v7155 = vld [vmem:[%s6365 + $0x6a] sm:$0xff]
        %v7156 = vld [vmem:[%s6365 + $0x7a] sm:$0xff]
        %v7157 = vld [vmem:[%s6365 + $0x82] sm:$0xff]
        %v7158 = vld [vmem:[%s6365 + $0x92] sm:$0xff]
        %v7159 = vld [vmem:[%s6365 + $0x9a] sm:$0xff]
        %v7160 = vld [vmem:[%s6365 + $0xaa] sm:$0xff]
        %v7161 = vld [vmem:[%s6365 + $0xb2] sm:$0xff]
        %v7162 = vld [vmem:[%s6365 + $0xc2] sm:$0xff]
        %v7163 = vld [vmem:[%s6365 + $0xca] sm:$0xff]
        %v7164 = vld [vmem:[%s6365 + $0xda] sm:$0xff]
        %v7165 = vld [vmem:[%s6365 + $0xe2] sm:$0xff]
        %v7166 = vld [vmem:[%s6365 + $0xf2] sm:$0xff]
        %v7167 = vld [vmem:[%s6365 + $0xfa] sm:$0xff]
        %v7168 = vld [vmem:[%s6365 + $0x10a] sm:$0xff]
        %v7169 = vld [vmem:[%s6365 + $0x112] sm:$0xff]
        %v7170 = vld [vmem:[%s6365 + $0x122] sm:$0xff]
        %v7171 = vld [vmem:[%s6365 + $0x12a] sm:$0xff]
        %v7172 = vld [vmem:[%s6365 + $0x13a] sm:$0xff]
        %v7173 = vld [vmem:[%s6365 + $0x142] sm:$0xff]
        %v7174 = vld [vmem:[%s6365 + $0x152] sm:$0xff]
        %v7175 = vld [vmem:[%s6365 + $0x15a] sm:$0xff]
        %v7176 = vld [vmem:[%s6365 + $0x16a] sm:$0xff]
        %v7177 = vld [vmem:[%s6365 + $0x172] sm:$0xff]
        %s7178 = scalar_lea.vmem [#allocation9], 256
        %v7179 = vld [vmem:[%s7178] sm:$0xff]
        %v7180 = vld [vmem:[%s7178 + $0x8] sm:$0xff]
        %v7181 = vld [vmem:[%s7178 + $0x10] sm:$0xff]
        %v7182 = vld [vmem:[%s7178 + $0x18] sm:$0xff]
        %v7184 = vsel %vm326, %v7146, 0
        %v7187 = vsel %vm326, %v7147, 0
        %v7190 = vsel %vm326, %v7148, 0
        %v7193 = vsel %vm326, %v7149, 0
        %v7196 = vsel %vm326, %v7150, 0
        %v7199 = vsel %vm326, %v7151, 0
        %v7202 = vsel %vm326, %v7152, 0
        %v7205 = vsel %vm326, %v7153, 0
        %v7208 = vsel %vm326, %v7154, 0
        %v7211 = vsel %vm326, %v7155, 0
        %v7214 = vsel %vm326, %v7156, 0
        %v7217 = vsel %vm326, %v7157, 0
        %v7220 = vsel %vm326, %v7158, 0
        %v7223 = vsel %vm326, %v7159, 0
        %v7226 = vsel %vm326, %v7160, 0
        %v7229 = vsel %vm326, %v7161, 0
        %v7232 = vsel %vm326, %v7162, 0
        %v7235 = vsel %vm326, %v7163, 0
        %v7238 = vsel %vm326, %v7164, 0
        %v7241 = vsel %vm326, %v7165, 0
        %v7244 = vsel %vm326, %v7166, 0
        %v7247 = vsel %vm326, %v7167, 0
        %v7250 = vsel %vm326, %v7168, 0
        %v7253 = vsel %vm326, %v7169, 0
        %v7256 = vsel %vm326, %v7170, 0
        %v7259 = vsel %vm326, %v7171, 0
        %v7262 = vsel %vm326, %v7172, 0
        %v7265 = vsel %vm326, %v7173, 0
        %v7268 = vsel %vm326, %v7174, 0
        %v7271 = vsel %vm326, %v7175, 0
        %v7274 = vsel %vm326, %v7176, 0
        %v7277 = vsel %vm326, %v7177, 0
        %7279 = vmatprep.subr.mxu0 0.0
        %7280 = vmatpush1.msra.mxu0 %v7179
        %7281 = vmatprep.subr.mxu0 0.0
        %7282 = vmatpush1.msra.mxu0 %v7180
        %7283 = vmatprep.subr.mxu0 0.0
        %7284 = vmatpush1.msra.mxu0 %v7181
        %7285 = vmatprep.subr.mxu0 0.0
        %7286 = vmatpush1.msra.mxu0 %v7182
        %7287 = vmatprep.subr.mxu0 0.0
        %7288 = vmatpush1.msra.mxu0 0.0
        %7289 = vmatprep.subr.mxu0 0.0
        %7290 = vmatpush1.msra.mxu0 0.0
        %7291 = vmatprep.subr.mxu0 0.0
        %7292 = vmatpush1.msra.mxu0 0.0
        %7293 = vmatprep.subr.mxu0 0.0
        %7294 = vmatpush1.msra.mxu0 0.0
        %7295 = vmatprep.subr.mxu0 0.0
        %7296 = vmatpush1.msra.mxu0 0.0
        %7297 = vmatprep.subr.mxu0 0.0
        %7298 = vmatpush1.msra.mxu0 0.0
        %7299 = vmatprep.subr.mxu0 0.0
        %7300 = vmatpush1.msra.mxu0 0.0
        %7301 = vmatprep.subr.mxu0 0.0
        %7302 = vmatpush1.msra.mxu0 0.0
        %7303 = vmatprep.subr.mxu0 0.0
        %7304 = vmatpush1.msra.mxu0 0.0
        %7305 = vmatprep.subr.mxu0 0.0
        %7306 = vmatpush1.msra.mxu0 0.0
        %7307 = vmatprep.subr.mxu0 0.0
        %7308 = vmatpush1.msra.mxu0 0.0
        %7309 = vmatprep.subr.mxu0 0.0
        %7310 = vmatpush1.msra.mxu0 0.0
        %7311 = vmatprep.subr.mxu0 0.0
        %7312 = vmatpush1.msra.mxu0 0.0
        %7313 = vmatprep.subr.mxu0 0.0
        %7314 = vmatpush1.msra.mxu0 0.0
        %7315 = vmatprep.subr.mxu0 0.0
        %7316 = vmatpush1.msra.mxu0 0.0
        %7317 = vmatprep.subr.mxu0 0.0
        %7318 = vmatpush1.msra.mxu0 0.0
        %7319 = vmatprep.subr.mxu0 0.0
        %7320 = vmatpush1.msra.mxu0 0.0
        %7321 = vmatprep.subr.mxu0 0.0
        %7322 = vmatpush1.msra.mxu0 0.0
        %7323 = vmatprep.subr.mxu0 0.0
        %7324 = vmatpush1.msra.mxu0 0.0
        %7325 = vmatprep.subr.mxu0 0.0
        %7326 = vmatpush1.msra.mxu0 0.0
        %7327 = vmatprep.subr.mxu0 0.0
        %7328 = vmatpush1.msra.mxu0 0.0
        %7329 = vmatprep.subr.mxu0 0.0
        %7330 = vmatpush1.msra.mxu0 0.0
        %7331 = vmatprep.subr.mxu0 0.0
        %7332 = vmatpush1.msra.mxu0 0.0
        %7333 = vmatprep.subr.mxu0 0.0
        %7334 = vmatpush1.msra.mxu0 0.0
        %7335 = vmatprep.subr.mxu0 0.0
        %7336 = vmatpush1.msra.mxu0 0.0
        %7337 = vmatprep.subr.mxu0 0.0
        %7338 = vmatpush1.msra.mxu0 0.0
        %7339 = vmatprep.subr.mxu0 0.0
        %7340 = vmatpush1.msra.mxu0 0.0
        %7341 = vmatprep.subr.mxu0 0.0
        %7342 = vmatpush1.msra.mxu0 0.0
        %7343 = vmatprep.mubr.f32.mxu0 0.0
        %7344 = vmatmul.mubr.f32.gmra.mrb[0].mxu0 %v7184
        %v7345 = vpop.f32.mrb[0].mxu0
        %v7346 = vadd.f32 0.0, %v7345
        %v7347 = vpop.f32.mrb[0].mxu0
        %7348 = vmatprep.mubr.f32.mxu0 0.0
        %7349 = vmatmul.mubr.f32.gmra.mrb[0].mxu0 %v7187
        %v7350 = vpop.f32.mrb[0].mxu0
        %v7351 = vadd.f32 0.0, %v7350
        %v7352 = vpop.f32.mrb[0].mxu0
        %7353 = vmatprep.mubr.f32.mxu0 0.0
        %7354 = vmatmul.mubr.f32.gmra.mrb[0].mxu0 %v7190
        %v7355 = vpop.f32.mrb[0].mxu0
        %v7356 = vadd.f32 0.0, %v7355
        %v7357 = vpop.f32.mrb[0].mxu0
        %7358 = vmatprep.mubr.f32.mxu0 0.0
        %7359 = vmatmul.mubr.f32.gmra.mrb[0].mxu0 %v7193
        %v7360 = vpop.f32.mrb[0].mxu0
        %v7361 = vadd.f32 0.0, %v7360
        %v7362 = vpop.f32.mrb[0].mxu0
        %7363 = vmatprep.mubr.f32.mxu0 0.0
        %7364 = vmatmul.mubr.f32.gmra.mrb[0].mxu0 %v7196
        %v7365 = vpop.f32.mrb[0].mxu0
        %v7366 = vadd.f32 0.0, %v7365
        %v7367 = vpop.f32.mrb[0].mxu0
        %7368 = vmatprep.mubr.f32.mxu0 0.0
        %7369 = vmatmul.mubr.f32.gmra.mrb[0].mxu0 %v7199
        %v7370 = vpop.f32.mrb[0].mxu0
        %v7371 = vadd.f32 0.0, %v7370
        %v7372 = vpop.f32.mrb[0].mxu0
        %7373 = vmatprep.mubr.f32.mxu0 0.0
        %7374 = vmatmul.mubr.f32.gmra.mrb[0].mxu0 %v7202
        %v7375 = vpop.f32.mrb[0].mxu0
        %v7376 = vadd.f32 0.0, %v7375
        %v7377 = vpop.f32.mrb[0].mxu0
        %7378 = vmatprep.mubr.f32.mxu0 0.0
        %7379 = vmatmul.mubr.f32.gmra.mrb[0].mxu0 %v7205
        %v7380 = vpop.f32.mrb[0].mxu0
        %v7381 = vadd.f32 0.0, %v7380
        %v7382 = vpop.f32.mrb[0].mxu0
        %7383 = vmatprep.mubr.f32.mxu0 0.0
        %7384 = vmatmul.mubr.f32.gmra.mrb[0].mxu0 %v7208
        %v7385 = vpop.f32.mrb[0].mxu0
        %v7386 = vadd.f32 0.0, %v7385
        %v7387 = vpop.f32.mrb[0].mxu0
        %7388 = vmatprep.mubr.f32.mxu0 0.0
        %7389 = vmatmul.mubr.f32.gmra.mrb[0].mxu0 %v7211
        %v7390 = vpop.f32.mrb[0].mxu0
        %v7391 = vadd.f32 0.0, %v7390
        %v7392 = vpop.f32.mrb[0].mxu0
        %7393 = vmatprep.mubr.f32.mxu0 0.0
        %7394 = vmatmul.mubr.f32.gmra.mrb[0].mxu0 %v7214
        %v7395 = vpop.f32.mrb[0].mxu0
        %v7396 = vadd.f32 0.0, %v7395
        %v7397 = vpop.f32.mrb[0].mxu0
        %7398 = vmatprep.mubr.f32.mxu0 0.0
        %7399 = vmatmul.mubr.f32.gmra.mrb[0].mxu0 %v7217
        %v7400 = vpop.f32.mrb[0].mxu0
        %v7401 = vadd.f32 0.0, %v7400
        %v7402 = vpop.f32.mrb[0].mxu0
        %7403 = vmatprep.mubr.f32.mxu0 0.0
        %7404 = vmatmul.mubr.f32.gmra.mrb[0].mxu0 %v7220
        %v7405 = vpop.f32.mrb[0].mxu0
        %v7406 = vadd.f32 0.0, %v7405
        %v7407 = vpop.f32.mrb[0].mxu0
        %7408 = vmatprep.mubr.f32.mxu0 0.0
        %7409 = vmatmul.mubr.f32.gmra.mrb[0].mxu0 %v7223
        %v7410 = vpop.f32.mrb[0].mxu0
        %v7411 = vadd.f32 0.0, %v7410
        %v7412 = vpop.f32.mrb[0].mxu0
        %7413 = vmatprep.mubr.f32.mxu0 0.0
        %7414 = vmatmul.mubr.f32.gmra.mrb[0].mxu0 %v7226
        %v7415 = vpop.f32.mrb[0].mxu0
        %v7416 = vadd.f32 0.0, %v7415
        %v7417 = vpop.f32.mrb[0].mxu0
        %7418 = vmatprep.mubr.f32.mxu0 0.0
        %7419 = vmatmul.mubr.f32.gmra.mrb[0].mxu0 %v7229
        %v7420 = vpop.f32.mrb[0].mxu0
        %v7421 = vadd.f32 0.0, %v7420
        %v7422 = vpop.f32.mrb[0].mxu0
        %7423 = vmatprep.mubr.f32.mxu0 0.0
        %7424 = vmatmul.mubr.f32.gmra.mrb[0].mxu0 %v7232
        %v7425 = vpop.f32.mrb[0].mxu0
        %v7426 = vadd.f32 0.0, %v7425
        %v7427 = vpop.f32.mrb[0].mxu0
        %7428 = vmatprep.mubr.f32.mxu0 0.0
        %7429 = vmatmul.mubr.f32.gmra.mrb[0].mxu0 %v7235
        %v7430 = vpop.f32.mrb[0].mxu0
        %v7431 = vadd.f32 0.0, %v7430
        %v7432 = vpop.f32.mrb[0].mxu0
        %7433 = vmatprep.mubr.f32.mxu0 0.0
        %7434 = vmatmul.mubr.f32.gmra.mrb[0].mxu0 %v7238
        %v7435 = vpop.f32.mrb[0].mxu0
        %v7436 = vadd.f32 0.0, %v7435
        %v7437 = vpop.f32.mrb[0].mxu0
        %7438 = vmatprep.mubr.f32.mxu0 0.0
        %7439 = vmatmul.mubr.f32.gmra.mrb[0].mxu0 %v7241
        %v7440 = vpop.f32.mrb[0].mxu0
        %v7441 = vadd.f32 0.0, %v7440
        %v7442 = vpop.f32.mrb[0].mxu0
        %7443 = vmatprep.mubr.f32.mxu0 0.0
        %7444 = vmatmul.mubr.f32.gmra.mrb[0].mxu0 %v7244
        %v7445 = vpop.f32.mrb[0].mxu0
        %v7446 = vadd.f32 0.0, %v7445
        %v7447 = vpop.f32.mrb[0].mxu0
        %7448 = vmatprep.mubr.f32.mxu0 0.0
        %7449 = vmatmul.mubr.f32.gmra.mrb[0].mxu0 %v7247
        %v7450 = vpop.f32.mrb[0].mxu0
        %v7451 = vadd.f32 0.0, %v7450
        %v7452 = vpop.f32.mrb[0].mxu0
        %7453 = vmatprep.mubr.f32.mxu0 0.0
        %7454 = vmatmul.mubr.f32.gmra.mrb[0].mxu0 %v7250
        %v7455 = vpop.f32.mrb[0].mxu0
        %v7456 = vadd.f32 0.0, %v7455
        %v7457 = vpop.f32.mrb[0].mxu0
        %7458 = vmatprep.mubr.f32.mxu0 0.0
        %7459 = vmatmul.mubr.f32.gmra.mrb[0].mxu0 %v7253
        %v7460 = vpop.f32.mrb[0].mxu0
        %v7461 = vadd.f32 0.0, %v7460
        %v7462 = vpop.f32.mrb[0].mxu0
        %7463 = vmatprep.mubr.f32.mxu0 0.0
        %7464 = vmatmul.mubr.f32.gmra.mrb[0].mxu0 %v7256
        %v7465 = vpop.f32.mrb[0].mxu0
        %v7466 = vadd.f32 0.0, %v7465
        %v7467 = vpop.f32.mrb[0].mxu0
        %7468 = vmatprep.mubr.f32.mxu0 0.0
        %7469 = vmatmul.mubr.f32.gmra.mrb[0].mxu0 %v7259
        %v7470 = vpop.f32.mrb[0].mxu0
        %v7471 = vadd.f32 0.0, %v7470
        %v7472 = vpop.f32.mrb[0].mxu0
        %7473 = vmatprep.mubr.f32.mxu0 0.0
        %7474 = vmatmul.mubr.f32.gmra.mrb[0].mxu0 %v7262
        %v7475 = vpop.f32.mrb[0].mxu0
        %v7476 = vadd.f32 0.0, %v7475
        %v7477 = vpop.f32.mrb[0].mxu0
        %7478 = vmatprep.mubr.f32.mxu0 0.0
        %7479 = vmatmul.mubr.f32.gmra.mrb[0].mxu0 %v7265
        %v7480 = vpop.f32.mrb[0].mxu0
        %v7481 = vadd.f32 0.0, %v7480
        %v7482 = vpop.f32.mrb[0].mxu0
        %7483 = vmatprep.mubr.f32.mxu0 0.0
        %7484 = vmatmul.mubr.f32.gmra.mrb[0].mxu0 %v7268
        %v7485 = vpop.f32.mrb[0].mxu0
        %v7486 = vadd.f32 0.0, %v7485
        %v7487 = vpop.f32.mrb[0].mxu0
        %7488 = vmatprep.mubr.f32.mxu0 0.0
        %7489 = vmatmul.mubr.f32.gmra.mrb[0].mxu0 %v7271
        %v7490 = vpop.f32.mrb[0].mxu0
        %v7491 = vadd.f32 0.0, %v7490
        %v7492 = vpop.f32.mrb[0].mxu0
        %7493 = vmatprep.mubr.f32.mxu0 0.0
        %7494 = vmatmul.mubr.f32.gmra.mrb[0].mxu0 %v7274
        %v7495 = vpop.f32.mrb[0].mxu0
        %v7496 = vadd.f32 0.0, %v7495
        %v7497 = vpop.f32.mrb[0].mxu0
        %7498 = vmatprep.mubr.f32.mxu0 0.0
        %7499 = vmatmul.mubr.f32.gmra.mrb[0].mxu0 %v7277
        %v7500 = vpop.f32.mrb[0].mxu0
        %v7501 = vadd.f32 0.0, %v7500
        %v7502 = vpop.f32.mrb[0].mxu0
        %7503 = vdwg.mxu0
        %v7504 = vadd.f32 %v7114, %v7346
        %v7505 = vadd.f32 %v7115, %v7351
        %v7506 = vadd.f32 %v7116, %v7356
        %v7507 = vadd.f32 %v7117, %v7361
        %v7508 = vadd.f32 %v7118, %v7366
        %v7509 = vadd.f32 %v7119, %v7371
        %v7510 = vadd.f32 %v7120, %v7376
        %v7511 = vadd.f32 %v7121, %v7381
        %v7512 = vadd.f32 %v7122, %v7386
        %v7513 = vadd.f32 %v7123, %v7391
        %v7514 = vadd.f32 %v7124, %v7396
        %v7515 = vadd.f32 %v7125, %v7401
        %v7516 = vadd.f32 %v7126, %v7406
        %v7517 = vadd.f32 %v7127, %v7411
        %v7518 = vadd.f32 %v7128, %v7416
        %v7519 = vadd.f32 %v7129, %v7421
        %v7520 = vadd.f32 %v7130, %v7426
        %v7521 = vadd.f32 %v7131, %v7431
        %v7522 = vadd.f32 %v7132, %v7436
        %v7523 = vadd.f32 %v7133, %v7441
        %v7524 = vadd.f32 %v7134, %v7446
        %v7525 = vadd.f32 %v7135, %v7451
        %v7526 = vadd.f32 %v7136, %v7456
        %v7527 = vadd.f32 %v7137, %v7461
        %v7528 = vadd.f32 %v7138, %v7466
        %v7529 = vadd.f32 %v7139, %v7471
        %v7530 = vadd.f32 %v7140, %v7476
        %v7531 = vadd.f32 %v7141, %v7481
        %v7532 = vadd.f32 %v7142, %v7486
        %v7533 = vadd.f32 %v7143, %v7491
        %v7534 = vadd.f32 %v7144, %v7496
        %v7535 = vadd.f32 %v7145, %v7501
        %v7536 = vld [vmem:[%s5] sm:$0x1]
        %v7538 = vlaneseq
        %v7539 = vshrl.u32 %v7538, 7
        %v7540 = vsub.s32 0, %v7539
        %v7541 = vrot.slane %v7536, %v7540
        %v7543 = vmul.f32 %v7504, %v7541
        %v7544 = vmul.f32 %v7505, %v7541
        %v7545 = vmul.f32 %v7506, %v7541
        %v7546 = vmul.f32 %v7507, %v7541
        %v7547 = vmul.f32 %v7508, %v7541
        %v7548 = vmul.f32 %v7509, %v7541
        %v7549 = vmul.f32 %v7510, %v7541
        %v7550 = vmul.f32 %v7511, %v7541
        %v7551 = vmul.f32 %v7512, %v7541
        %v7552 = vmul.f32 %v7513, %v7541
        %v7553 = vmul.f32 %v7514, %v7541
        %v7554 = vmul.f32 %v7515, %v7541
        %v7555 = vmul.f32 %v7516, %v7541
        %v7556 = vmul.f32 %v7517, %v7541
        %v7557 = vmul.f32 %v7518, %v7541
        %v7558 = vmul.f32 %v7519, %v7541
        %v7559 = vmul.f32 %v7520, %v7541
        %v7560 = vmul.f32 %v7521, %v7541
        %v7561 = vmul.f32 %v7522, %v7541
        %v7562 = vmul.f32 %v7523, %v7541
        %v7563 = vmul.f32 %v7524, %v7541
        %v7564 = vmul.f32 %v7525, %v7541
        %v7565 = vmul.f32 %v7526, %v7541
        %v7566 = vmul.f32 %v7527, %v7541
        %v7567 = vmul.f32 %v7528, %v7541
        %v7568 = vmul.f32 %v7529, %v7541
        %v7569 = vmul.f32 %v7530, %v7541
        %v7570 = vmul.f32 %v7531, %v7541
        %v7571 = vmul.f32 %v7532, %v7541
        %v7572 = vmul.f32 %v7533, %v7541
        %v7573 = vmul.f32 %v7534, %v7541
        %v7574 = vmul.f32 %v7535, %v7541
        %v7575 = vld [vmem:[%s6] sm:$0x1]
        %v7577 = vlaneseq
        %v7578 = vshrl.u32 %v7577, 7
        %v7579 = vsub.s32 0, %v7578
        %v7580 = vrot.slane %v7575, %v7579
        %v7582 = vadd.f32 %v7543, %v7580
        %v7583 = vadd.f32 %v7544, %v7580
        %v7584 = vadd.f32 %v7545, %v7580
        %v7585 = vadd.f32 %v7546, %v7580
        %v7586 = vadd.f32 %v7547, %v7580
        %v7587 = vadd.f32 %v7548, %v7580
        %v7588 = vadd.f32 %v7549, %v7580
        %v7589 = vadd.f32 %v7550, %v7580
        %v7590 = vadd.f32 %v7551, %v7580
        %v7591 = vadd.f32 %v7552, %v7580
        %v7592 = vadd.f32 %v7553, %v7580
        %v7593 = vadd.f32 %v7554, %v7580
        %v7594 = vadd.f32 %v7555, %v7580
        %v7595 = vadd.f32 %v7556, %v7580
        %v7596 = vadd.f32 %v7557, %v7580
        %v7597 = vadd.f32 %v7558, %v7580
        %v7598 = vadd.f32 %v7559, %v7580
        %v7599 = vadd.f32 %v7560, %v7580
        %v7600 = vadd.f32 %v7561, %v7580
        %v7601 = vadd.f32 %v7562, %v7580
        %v7602 = vadd.f32 %v7563, %v7580
        %v7603 = vadd.f32 %v7564, %v7580
        %v7604 = vadd.f32 %v7565, %v7580
        %v7605 = vadd.f32 %v7566, %v7580
        %v7606 = vadd.f32 %v7567, %v7580
        %v7607 = vadd.f32 %v7568, %v7580
        %v7608 = vadd.f32 %v7569, %v7580
        %v7609 = vadd.f32 %v7570, %v7580
        %v7610 = vadd.f32 %v7571, %v7580
        %v7611 = vadd.f32 %v7572, %v7580
        %v7612 = vadd.f32 %v7573, %v7580
        %v7613 = vadd.f32 %v7574, %v7580
        %v7614 = vld [vmem:[%s287] sm:$0xff]
        %v7615 = vld [vmem:[%s287 + $0x8] sm:$0xff]
        %v7616 = vld [vmem:[%s287 + $0x10] sm:$0xff]
        %v7617 = vld [vmem:[%s287 + $0x18] sm:$0xff]
        %v7618 = vld [vmem:[%s287 + $0x20] sm:$0xff]
        %v7619 = vld [vmem:[%s287 + $0x28] sm:$0xff]
        %v7620 = vld [vmem:[%s287 + $0x30] sm:$0xff]
        %v7621 = vld [vmem:[%s287 + $0x38] sm:$0xff]
        %v7622 = vld [vmem:[%s287 + $0x40] sm:$0xff]
        %v7623 = vld [vmem:[%s287 + $0x48] sm:$0xff]
        %v7624 = vld [vmem:[%s287 + $0x50] sm:$0xff]
        %v7625 = vld [vmem:[%s287 + $0x58] sm:$0xff]
        %v7626 = vld [vmem:[%s287 + $0x60] sm:$0xff]
        %v7627 = vld [vmem:[%s287 + $0x68] sm:$0xff]
        %v7628 = vld [vmem:[%s287 + $0x70] sm:$0xff]
        %v7629 = vld [vmem:[%s287 + $0x78] sm:$0xff]
        %v7630 = vld [vmem:[%s287 + $0x80] sm:$0xff]
        %v7631 = vld [vmem:[%s287 + $0x88] sm:$0xff]
        %v7632 = vld [vmem:[%s287 + $0x90] sm:$0xff]
        %v7633 = vld [vmem:[%s287 + $0x98] sm:$0xff]
        %v7634 = vld [vmem:[%s287 + $0xa0] sm:$0xff]
        %v7635 = vld [vmem:[%s287 + $0xa8] sm:$0xff]
        %v7636 = vld [vmem:[%s287 + $0xb0] sm:$0xff]
        %v7637 = vld [vmem:[%s287 + $0xb8] sm:$0xff]
        %v7638 = vld [vmem:[%s287 + $0xc0] sm:$0xff]
        %v7639 = vld [vmem:[%s287 + $0xc8] sm:$0xff]
        %v7640 = vld [vmem:[%s287 + $0xd0] sm:$0xff]
        %v7641 = vld [vmem:[%s287 + $0xd8] sm:$0xff]
        %v7642 = vld [vmem:[%s287 + $0xe0] sm:$0xff]
        %v7643 = vld [vmem:[%s287 + $0xe8] sm:$0xff]
        %v7644 = vld [vmem:[%s287 + $0xf0] sm:$0xff]
        %v7645 = vld [vmem:[%s287 + $0xf8] sm:$0xff]
        %v7646 = vadd.f32 %v7582, %v7614
        %v7647 = vadd.f32 %v7583, %v7615
        %v7648 = vadd.f32 %v7584, %v7616
        %v7649 = vadd.f32 %v7585, %v7617
        %v7650 = vadd.f32 %v7586, %v7618
        %v7651 = vadd.f32 %v7587, %v7619
        %v7652 = vadd.f32 %v7588, %v7620
        %v7653 = vadd.f32 %v7589, %v7621
        %v7654 = vadd.f32 %v7590, %v7622
        %v7655 = vadd.f32 %v7591, %v7623
        %v7656 = vadd.f32 %v7592, %v7624
        %v7657 = vadd.f32 %v7593, %v7625
        %v7658 = vadd.f32 %v7594, %v7626
        %v7659 = vadd.f32 %v7595, %v7627
        %v7660 = vadd.f32 %v7596, %v7628
        %v7661 = vadd.f32 %v7597, %v7629
        %v7662 = vadd.f32 %v7598, %v7630
        %v7663 = vadd.f32 %v7599, %v7631
        %v7664 = vadd.f32 %v7600, %v7632
        %v7665 = vadd.f32 %v7601, %v7633
        %v7666 = vadd.f32 %v7602, %v7634
        %v7667 = vadd.f32 %v7603, %v7635
        %v7668 = vadd.f32 %v7604, %v7636
        %v7669 = vadd.f32 %v7605, %v7637
        %v7670 = vadd.f32 %v7606, %v7638
        %v7671 = vadd.f32 %v7607, %v7639
        %v7672 = vadd.f32 %v7608, %v7640
        %v7673 = vadd.f32 %v7609, %v7641
        %v7674 = vadd.f32 %v7610, %v7642
        %v7675 = vadd.f32 %v7611, %v7643
        %v7676 = vadd.f32 %v7612, %v7644
        %v7677 = vadd.f32 %v7613, %v7645
        %v7678 = vmax.f32 %v7646, 0.0
        %v7679 = vmax.f32 %v7647, 0.0
        %v7680 = vmax.f32 %v7648, 0.0
        %v7681 = vmax.f32 %v7649, 0.0
        %v7682 = vmax.f32 %v7650, 0.0
        %v7683 = vmax.f32 %v7651, 0.0
        %v7684 = vmax.f32 %v7652, 0.0
        %v7685 = vmax.f32 %v7653, 0.0
        %v7686 = vmax.f32 %v7654, 0.0
        %v7687 = vmax.f32 %v7655, 0.0
        %v7688 = vmax.f32 %v7656, 0.0
        %v7689 = vmax.f32 %v7657, 0.0
        %v7690 = vmax.f32 %v7658, 0.0
        %v7691 = vmax.f32 %v7659, 0.0
        %v7692 = vmax.f32 %v7660, 0.0
        %v7693 = vmax.f32 %v7661, 0.0
        %v7694 = vmax.f32 %v7662, 0.0
        %v7695 = vmax.f32 %v7663, 0.0
        %v7696 = vmax.f32 %v7664, 0.0
        %v7697 = vmax.f32 %v7665, 0.0
        %v7698 = vmax.f32 %v7666, 0.0
        %v7699 = vmax.f32 %v7667, 0.0
        %v7700 = vmax.f32 %v7668, 0.0
        %v7701 = vmax.f32 %v7669, 0.0
        %v7702 = vmax.f32 %v7670, 0.0
        %v7703 = vmax.f32 %v7671, 0.0
        %v7704 = vmax.f32 %v7672, 0.0
        %v7705 = vmax.f32 %v7673, 0.0
        %v7706 = vmax.f32 %v7674, 0.0
        %v7707 = vmax.f32 %v7675, 0.0
        %v7708 = vmax.f32 %v7676, 0.0
        %v7709 = vmax.f32 %v7677, 0.0
        %7710 = vst.msk [vmem:[%s325] sm:$0xff] %vm326, %v7678
        %7711 = vst.msk [vmem:[%s325 + $0x8] sm:$0xff] %vm326, %v7679
        %7712 = vst.msk [vmem:[%s325 + $0x10] sm:$0xff] %vm326, %v7680
        %7713 = vst.msk [vmem:[%s325 + $0x18] sm:$0xff] %vm326, %v7681
        %7714 = vst.msk [vmem:[%s325 + $0x20] sm:$0xff] %vm326, %v7682
        %7715 = vst.msk [vmem:[%s325 + $0x28] sm:$0xff] %vm326, %v7683
        %7716 = vst.msk [vmem:[%s325 + $0x30] sm:$0xff] %vm326, %v7684
        %7717 = vst.msk [vmem:[%s325 + $0x38] sm:$0xff] %vm326, %v7685
        %7718 = vst.msk [vmem:[%s325 + $0x40] sm:$0xff] %vm326, %v7686
        %7719 = vst.msk [vmem:[%s325 + $0x48] sm:$0xff] %vm326, %v7687
        %7720 = vst.msk [vmem:[%s325 + $0x50] sm:$0xff] %vm326, %v7688
        %7721 = vst.msk [vmem:[%s325 + $0x58] sm:$0xff] %vm326, %v7689
        %7722 = vst.msk [vmem:[%s325 + $0x60] sm:$0xff] %vm326, %v7690
        %7723 = vst.msk [vmem:[%s325 + $0x68] sm:$0xff] %vm326, %v7691
        %7724 = vst.msk [vmem:[%s325 + $0x70] sm:$0xff] %vm326, %v7692
        %7725 = vst.msk [vmem:[%s325 + $0x78] sm:$0xff] %vm326, %v7693
        %7726 = vst.msk [vmem:[%s325 + $0x80] sm:$0xff] %vm326, %v7694
        %7727 = vst.msk [vmem:[%s325 + $0x88] sm:$0xff] %vm326, %v7695
        %7728 = vst.msk [vmem:[%s325 + $0x90] sm:$0xff] %vm326, %v7696
        %7729 = vst.msk [vmem:[%s325 + $0x98] sm:$0xff] %vm326, %v7697
        %7730 = vst.msk [vmem:[%s325 + $0xa0] sm:$0xff] %vm326, %v7698
        %7731 = vst.msk [vmem:[%s325 + $0xa8] sm:$0xff] %vm326, %v7699
        %7732 = vst.msk [vmem:[%s325 + $0xb0] sm:$0xff] %vm326, %v7700
        %7733 = vst.msk [vmem:[%s325 + $0xb8] sm:$0xff] %vm326, %v7701
        %7734 = vst.msk [vmem:[%s325 + $0xc0] sm:$0xff] %vm326, %v7702
        %7735 = vst.msk [vmem:[%s325 + $0xc8] sm:$0xff] %vm326, %v7703
        %7736 = vst.msk [vmem:[%s325 + $0xd0] sm:$0xff] %vm326, %v7704
        %7737 = vst.msk [vmem:[%s325 + $0xd8] sm:$0xff] %vm326, %v7705
        %7738 = vst.msk [vmem:[%s325 + $0xe0] sm:$0xff] %vm326, %v7706
        %7739 = vst.msk [vmem:[%s325 + $0xe8] sm:$0xff] %vm326, %v7707
        %7740 = vst.msk [vmem:[%s325 + $0xf0] sm:$0xff] %vm326, %v7708
        %7741 = vst.msk [vmem:[%s325 + $0xf8] sm:$0xff] %vm326, %v7709
        %s7742 = sand.u32 %s185, 1
        %s7743 = scalar_lea.sflag [#allocation6], %s7742
        %s7744 = sand.u32 %s185, 1
        %s7745 = smul.addr %s7744, 256
        %s7746 = scalar_lea.vmem [#allocation10], %s7745
        // Predicated region
        $region61: #{tpu_custom_call.1} parent=47 // pred_check
          %p7747 = pneg %p195
        $region62: #{tpu_custom_call.1} parent=47 // pred_check_branch
          %7749 = sbr.rel (%p7747) target = $region64
        $region63: #{tpu_custom_call.1} parent=47 // pred_region
          %s7751 = ssub.s32 4096, 4096
          %7752 = vsyncadd %s7743, %s7751
          %s7753 = smul.addr %s25, 32
          %s7754 = smul.addr %s7753, 128
          %s7755 = scalar_lea.hbm %s7, %s7754
          %s7756 = sshll.u32 %s7746, 4
          %s7757 = int_to_ptr.vmem [resolvable:$true] %s7756
          %7762 = dma.vmem_to_hbm [thread:$0]  %s7757, 4096, %s7755, %s7743, 128, 128, 8
        $region64: #{tpu_custom_call.1} parent=47 // pred_fallthru
          _
      $region48: #{tpu_custom_call.1} parent=5 // pred_fallthru
        _
      %p7763 = scmp.le.s32.totalorder 2, %s20
      // Predicated region
      $region65: #{tpu_custom_call.1} parent=5 // pred_check
        %p7764 = pneg %p7763
      $region66: #{tpu_custom_call.1} parent=5 // pred_check_branch
        %7766 = sbr.rel (%p7764) target = $region68
      $region67: #{tpu_custom_call.1} parent=5 // pred_region
        %s7767 = ssub.s32 %s20, 2
        // Predicated region
        $region69: #{tpu_custom_call.1} parent=67 // pred_check
          %p7768 = pneg %p201
        $region70: #{tpu_custom_call.1} parent=67 // pred_check_branch
          %7770 = sbr.rel (%p7768) target = $region72
        $region71: #{tpu_custom_call.1} parent=67 // pred_region
          %s7771 = sand.u32 %s186, 1
          %s7772 = scalar_lea.sflag [#allocation6], %s7771
          %s7773 = sand.u32 %s186, 1
          %s7774 = smul.addr %s7773, 256
          %s7775 = scalar_lea.vmem [#allocation10], %s7774
          %7776 = dma.done %s7772, 4096
        $region72: #{tpu_custom_call.1} parent=67 // pred_fallthru
          _
      $region68: #{tpu_custom_call.1} parent=5 // pred_fallthru
        _
    $region6: #{tpu_custom_call.1} parent=1 // loop_footer
      %s24 = sadd.s32 1, %s20
    $region7: #{tpu_custom_call.1} parent=1 // loop_footer_branch
      %19 = sbr.rel target = $region3
    $region8: #{tpu_custom_call.1} parent=1 // loop_exit
      _
    %7777 = vsyncpa [#allocation5], 1
    %s7778 = scalar_lea.sflag [#allocation5], 1
    %7779 = vsyncpa %s7778, 1
    %7780 = vsyncpa [#allocation8], 1
    %7781 = vsyncpa [#allocation6], 1
    %s7782 = scalar_lea.sflag [#allocation6], 1
    %7783 = vsyncpa %s7782, 1

</llo_original>
